<compile_context>
chip_gen: v7x
topology: tpu7x:2x2x1
jax: 0.10.0
libtpu: 0.0.40
codegen_flags: <defaults>
</compile_context>

<pallas_src>
import functools
import math

import jax
import jax.numpy as jnp
from jax.experimental import pallas as pl
from jax.experimental.pallas import tpu as pltpu

# ----- small synthetic, lane-dense config (real XLM-R: H=768, 12 layers, 12 heads of 64) -----
B, S, H = 2, 128, 128
N_HEADS, D_HEAD = 2, 64
D_FF = 512
N_LAYERS = 2
VOCAB = 256
D_OUT = 1

MXU_DTYPE = jnp.bfloat16            # storage + matmul operand dtype (f32 accumulate / epilogue)


def _vmem_limit_bytes():
    # Generation-aware scoped-VMEM budget: ~3/4 of physical (96 MiB on v5e/v6e's 128 MiB,
    # 48 MiB on v7x's 64 MiB).  Falls back to a universally safe 48 MiB.
    try:
        phys = getattr(pltpu.get_tpu_info(), "vmem_capacity_bytes", None)
        if phys:
            return int(min(phys * 3 // 4, 96 * 1024 * 1024))
    except Exception:
        pass
    return 48 * 1024 * 1024


VMEM_LIMIT = _vmem_limit_bytes()


# ---------------------------------------------------------------------------
# Fused linear:  y = act(x @ w + b)   [optionally:  LayerNorm(residual + y)]
# ---------------------------------------------------------------------------
def _gelu(y):
    # TODO(synk): HF XLM-R uses exact erf-GELU; tanh approximation used for safe TPU lowering.
    c = jnp.sqrt(2.0 / jnp.pi).astype(y.dtype)
    return 0.5 * y * (1.0 + jnp.tanh(c * (y + 0.044715 * y * y * y)))


def _linear_kernel(*refs, act, fuse_ln):
    if fuse_ln:
        x_ref, w_ref, b_ref, r_ref, g_ref, bb_ref, o_ref, acc_ref = refs
    else:
        x_ref, w_ref, b_ref, o_ref, acc_ref = refs

    k = pl.program_id(2)

    @pl.when(k == 0)
    def _():
        acc_ref[...] = jnp.zeros_like(acc_ref)

    # bf16 operands straight off HBM (no per-tile cast), f32 MXU accumulation.
    acc_ref[...] += jnp.dot(x_ref[...], w_ref[...], preferred_element_type=jnp.float32)

    @pl.when(k == pl.num_programs(2) - 1)
    def _():
        y = acc_ref[...] + b_ref[...]                    # f32 epilogue math
        if act == "gelu":
            y = _gelu(y)
        elif act == "tanh":
            y = jnp.tanh(y)
        if fuse_ln:
            y = y + r_ref[...].astype(jnp.float32)
            mu = jnp.mean(y, axis=-1, keepdims=True)
            yc = y - mu
            var = jnp.mean(yc * yc, axis=-1, keepdims=True)
            y = yc * jax.lax.rsqrt(var + 1e-5) * g_ref[...] + bb_ref[...]
        o_ref[...] = y.astype(o_ref.dtype)


def linear(x, w, b, *, act=None, residual=None, ln_g=None, ln_b=None,
           tm=256, tn=512, tk=768):
    # Defaults sized for v6e/v7x (256-wide MXU) and v5e (128-aligned); full-K tiles
    # collapse the reduction grid whenever K <= tk.  Clamped to the actual dims.
    M, K = x.shape
    _, N = w.shape
    fuse_ln = residual is not None
    tm, tk = min(tm, M), min(tk, K)
    tn = N if fuse_ln else min(tn, N)        # LN reduction needs the full output row per block
    grid = (pl.cdiv(M, tm), pl.cdiv(N, tn), pl.cdiv(K, tk))

    in_specs = [
        pl.BlockSpec((tm, tk), lambda i, j, k: (i, k)),
        pl.BlockSpec((tk, tn), lambda i, j, k: (k, j)),
        pl.BlockSpec((1, tn), lambda i, j, k: (0, j)),
    ]
    operands = [x, w, b.reshape(1, N)]
    if fuse_ln:
        in_specs += [
            pl.BlockSpec((tm, tn), lambda i, j, k: (i, j)),
            pl.BlockSpec((1, tn), lambda i, j, k: (0, j)),
            pl.BlockSpec((1, tn), lambda i, j, k: (0, j)),
        ]
        operands += [residual, ln_g.reshape(1, N), ln_b.reshape(1, N)]

    bytes_accessed = (M * K * x.dtype.itemsize + K * N * w.dtype.itemsize
                      + N * b.dtype.itemsize + M * N * x.dtype.itemsize)
    if fuse_ln:
        bytes_accessed += M * N * residual.dtype.itemsize + 2 * N * 4
    cost = pl.CostEstimate(
        flops=2 * M * N * K,
        transcendentals=(M * N if act in ("gelu", "tanh") else 0),
        bytes_accessed=bytes_accessed,
    )

    return pl.pallas_call(
        functools.partial(_linear_kernel, act=act, fuse_ln=fuse_ln),
        out_shape=jax.ShapeDtypeStruct((M, N), x.dtype),
        grid=grid,
        in_specs=in_specs,
        out_specs=pl.BlockSpec((tm, tn), lambda i, j, k: (i, j)),
        scratch_shapes=[pltpu.VMEM((tm, tn), jnp.float32)],
        compiler_params=pltpu.CompilerParams(
            dimension_semantics=("parallel", "parallel", "arbitrary"),
            vmem_limit_bytes=VMEM_LIMIT),
        cost_estimate=cost,
    )(*operands)


# ---------------------------------------------------------------------------
# LayerNorm without residual (embeddings) — no zero-residual DMA
# ---------------------------------------------------------------------------
def _ln_kernel(x_ref, g_ref, b_ref, o_ref):
    x = x_ref[...].astype(jnp.float32)
    mu = jnp.mean(x, axis=-1, keepdims=True)
    xc = x - mu
    var = jnp.mean(xc * xc, axis=-1, keepdims=True)
    o_ref[...] = (xc * jax.lax.rsqrt(var + 1e-5) * g_ref[...] + b_ref[...]).astype(o_ref.dtype)


def layernorm(x, g, b, *, tm=256):
    M, Hh = x.shape
    tm = min(tm, M)
    return pl.pallas_call(
        _ln_kernel,
        out_shape=jax.ShapeDtypeStruct((M, Hh), x.dtype),
        grid=(pl.cdiv(M, tm),),
        in_specs=[
            pl.BlockSpec((tm, Hh), lambda i: (i, 0)),
            pl.BlockSpec((1, Hh), lambda i: (0, 0)),
            pl.BlockSpec((1, Hh), lambda i: (0, 0)),
        ],
        out_specs=pl.BlockSpec((tm, Hh), lambda i: (i, 0)),
        compiler_params=pltpu.CompilerParams(
            dimension_semantics=("parallel",), vmem_limit_bytes=VMEM_LIMIT),
    )(x, g.reshape(1, Hh), b.reshape(1, Hh))


# ---------------------------------------------------------------------------
# Attention: consumes the fused (B, S, 3H) QKV tensor directly, one batch element
# per grid step, all heads handled inside the kernel via static lane slices.
# Output is written lane-dense as (S, NH*Dh) = (S, H) — no XLA split/transpose/merge.
# The 1/sqrt(Dh) scale is already folded into the Q projection weights.
# ---------------------------------------------------------------------------
def _attn_kernel(qkv_ref, m_ref, o_ref, *, n_heads, d_head, hidden):
    qkv = qkv_ref[0]                         # (S, 3H) bf16, one tile load
    mask = m_ref[0]                          # (1, S) additive mask, f32
    outs = []
    for h in range(n_heads):                 # static unroll (TODO(synk): head grid axis at NH=12)
        q = qkv[:, h * d_head:(h + 1) * d_head]                      # (S, Dh), pre-scaled
        k = qkv[:, hidden + h * d_head:hidden + (h + 1) * d_head]
        v = qkv[:, 2 * hidden + h * d_head:2 * hidden + (h + 1) * d_head]
        s = jax.lax.dot_general(q, k, dimension_numbers=(((1,), (1,)), ((), ())),
                                preferred_element_type=jnp.float32)  # (S, S), no k.T
        s = s + mask
        s = s - jnp.max(s, axis=-1, keepdims=True)
        p = jnp.exp(s)
        denom = jnp.sum(p, axis=-1, keepdims=True)
        p = p * pl.reciprocal(denom, approx=True)                    # divide -> EUP slot
        outs.append(jnp.dot(p.astype(MXU_DTYPE), v, preferred_element_type=jnp.float32))
    o_ref[0] = jnp.concatenate(outs, axis=-1).astype(o_ref.dtype)    # lane-dense (S, H) store


def attention(qkv, mask_add):
    # qkv: (B, S, 3H) bf16 (Q pre-scaled); mask_add: (B, 1, S) f32 additive mask
    Bb, Ss, threeH = qkv.shape
    Hh = threeH // 3
    dh = Hh // N_HEADS
    cost = pl.CostEstimate(
        flops=4 * Bb * N_HEADS * Ss * Ss * dh,
        transcendentals=Bb * N_HEADS * Ss * Ss,
        bytes_accessed=(qkv.size * qkv.dtype.itemsize + mask_add.size * 4
                        + Bb * Ss * Hh * qkv.dtype.itemsize),
    )
    return pl.pallas_call(
        functools.partial(_attn_kernel, n_heads=N_HEADS, d_head=dh, hidden=Hh),
        out_shape=jax.ShapeDtypeStruct((Bb, Ss, Hh), qkv.dtype),
        grid=(Bb,),
        in_specs=[
            pl.BlockSpec((1, Ss, threeH), lambda b: (b, 0, 0)),
            pl.BlockSpec((1, 1, Ss), lambda b: (b, 0, 0)),
        ],
        out_specs=pl.BlockSpec((1, Ss, Hh), lambda b: (b, 0, 0)),
        compiler_params=pltpu.CompilerParams(
            dimension_semantics=("parallel",), vmem_limit_bytes=VMEM_LIMIT),
        cost_estimate=cost,
    )(qkv, mask_add)


# ---------------------------------------------------------------------------
# Pooler (tanh(W*CLS+b)) + regressor (Linear(H,1)), fused into a single kernel.
# The D_OUT=1 projection is a VPU multiply + lane reduction, not an MXU matmul.
# ---------------------------------------------------------------------------
def _pool_reg_kernel(cls_ref, pw_ref, pb_ref, rw_ref, rb_ref, o_ref):
    pooled = jnp.dot(cls_ref[...], pw_ref[...],
                     preferred_element_type=jnp.float32) + pb_ref[...]
    pooled = jnp.tanh(pooled)                                               # (B, H), f32
    out = jnp.sum(pooled * rw_ref[...], axis=-1, keepdims=True) + rb_ref[...]   # (B, 1)
    o_ref[...] = out.astype(o_ref.dtype)


def pooler_regressor(cls, pool_w, pool_b, reg_w, reg_b):
    Bb, Hh = cls.shape
    return pl.pallas_call(
        _pool_reg_kernel,
        out_shape=jax.ShapeDtypeStruct((Bb, D_OUT), jnp.float32),
        grid=(1,),
        in_specs=[
            pl.BlockSpec((Bb, Hh), lambda i: (0, 0)),
            pl.BlockSpec((Hh, Hh), lambda i: (0, 0)),
            pl.BlockSpec((1, Hh), lambda i: (0, 0)),
            pl.BlockSpec((1, Hh), lambda i: (0, 0)),
            pl.BlockSpec((1, 1), lambda i: (0, 0)),
        ],
        out_specs=pl.BlockSpec((Bb, D_OUT), lambda i: (0, 0)),
        compiler_params=pltpu.CompilerParams(
            dimension_semantics=("arbitrary",), vmem_limit_bytes=VMEM_LIMIT),
    )(cls, pool_w, pool_b.reshape(1, Hh), reg_w.reshape(1, Hh), reg_b.reshape(1, 1))


# ---------------------------------------------------------------------------
# Model glue (parameter setup, reshapes, embedding gathers)
# ---------------------------------------------------------------------------
def init_params(key):
    keys = iter(jax.random.split(key, 8 + 8 * N_LAYERS))

    def nrm_f32(shape, scale=0.02):
        return (scale * jax.random.normal(next(keys), shape)).astype(jnp.float32)

    def nrm(shape, scale=0.02):
        return nrm_f32(shape, scale).astype(MXU_DTYPE)     # bf16 storage for matmul operands

    params = {
        "tok_emb": nrm((VOCAB, H)),
        "pos_emb": nrm((S + 2, H)),        # roberta positions start at padding_idx+1
        "type_emb": nrm((1, H)),
        "emb_ln_g": jnp.ones((H,), jnp.float32),
        "emb_ln_b": jnp.zeros((H,), jnp.float32),
        "pool_w": nrm((H, H)),
        "pool_b": jnp.zeros((H,), jnp.float32),
        "reg_w": nrm_f32((H, D_OUT)),
        "reg_b": jnp.zeros((D_OUT,), jnp.float32),
        "layers": [],
    }
    q_scale = 1.0 / math.sqrt(D_HEAD)
    for _ in range(N_LAYERS):
        # Fold the 1/sqrt(Dh) softmax scale into the Q projection (mathematically identical,
        # zero runtime cost — no per-score-tensor multiply in the attention kernel).
        w_qkv = nrm_f32((H, 3 * H)).at[:, :H].multiply(q_scale).astype(MXU_DTYPE)
        b_qkv = jnp.zeros((3 * H,), jnp.float32).at[:H].multiply(q_scale)
        params["layers"].append({
            "w_qkv": w_qkv, "b_qkv": b_qkv,
            "wo": nrm((H, H)), "bo": jnp.zeros((H,), jnp.float32),
            "ln1_g": jnp.ones((H,), jnp.float32), "ln1_b": jnp.zeros((H,), jnp.float32),
            "w1": nrm((H, D_FF)), "b1": jnp.zeros((D_FF,), jnp.float32),
            "w2": nrm((D_FF, H)), "b2": jnp.zeros((H,), jnp.float32),
            "ln2_g": jnp.ones((H,), jnp.float32), "ln2_b": jnp.zeros((H,), jnp.float32),
        })
    return params


def encoder_layer(x, p, mask_add):
    M = x.shape[0]                                   # B*S
    # fused QKV projection: one (H, 3H) matmul, Q already scaled
    qkv = linear(x, p["w_qkv"], p["b_qkv"])          # (M, 3H) bf16

    # attention reads the fused QKV directly; output is lane-dense (B, S, H)
    ctx = attention(qkv.reshape(B, S, 3 * H), mask_add).reshape(M, H)

    # attention out-proj with bias + residual-add + LayerNorm fused into the epilogue
    x = linear(ctx, p["wo"], p["bo"], residual=x, ln_g=p["ln1_g"], ln_b=p["ln1_b"])

    # FFN: up-proj with fused GELU, down-proj with fused residual + LayerNorm
    h = linear(x, p["w1"], p["b1"], act="gelu")
    x = linear(h, p["w2"], p["b2"], residual=x, ln_g=p["ln2_g"], ln_b=p["ln2_b"])
    return x


def forward(params, input_ids, attention_mask):
    # --- embeddings (table gathers stay in plain JAX/XLA) ---
    tok = params["tok_emb"][input_ids]                                   # (B, S, H) bf16
    pos_ids = (jnp.cumsum(attention_mask, axis=1) * attention_mask + 1).astype(jnp.int32)
    pos = params["pos_emb"][pos_ids]                                     # (B, S, H)
    typ = params["type_emb"][jnp.zeros((B, S), jnp.int32)]               # (B, S, H)
    emb = (tok + pos + typ).reshape(B * S, H)
    x = layernorm(emb, params["emb_ln_g"], params["emb_ln_b"])           # bf16 activations

    # additive attention mask, shared across heads: (B, 1, S)
    madd = ((1.0 - attention_mask.astype(jnp.float32)) * -1e9)[:, None, :]

    # --- encoder stack ---
    for lp in params["layers"]:
        x = encoder_layer(x, lp, madd)

    # --- pooler (== outputs[1]) + regressor (Dropout(0.2) identity at inference) ---
    cls = x.reshape(B, S, H)[:, 0, :]                                    # (B, H)
    out = pooler_regressor(cls, params["pool_w"], params["pool_b"],
                           params["reg_w"], params["reg_b"])             # (B, 1) f32
    return out


if __name__ == "__main__":
    key = jax.random.PRNGKey(0)
    pkey, ikey = jax.random.split(key)
    params = init_params(pkey)

    input_ids = jax.random.randint(ikey, (B, S), 2, VOCAB)
    attention_mask = jnp.ones((B, S), jnp.int32).at[1, S - 32:].set(0)   # second sample padded
    input_ids = jnp.where(attention_mask == 1, input_ids, 1)             # pad token id = 1

    out = jax.jit(forward)(params, input_ids, attention_mask)
    out = jax.block_until_ready(out)
    assert out.shape == (B, D_OUT) and out.dtype == jnp.float32
    print("KERNEL_OK")
</pallas_src>

<mosaic_0001>
module attributes {stable_mosaic.version = 11 : i64} {
  func.func @_ln_kernel(%arg0: i32, %arg1: memref<256x128xbf16, #tpu.memory_space<vmem>>, %arg2: memref<1x128xf32, #tpu.memory_space<vmem>>, %arg3: memref<1x128xf32, #tpu.memory_space<vmem>>, %arg4: memref<256x128xbf16, #tpu.memory_space<vmem>>) attributes {dimension_semantics = [#tpu.dimension_semantics<parallel>], iteration_bounds = array<i64: 1>, scalar_prefetch = 0 : i64, scratch_operands = 0 : i64, tpu.core_type = #tpu.core_type<tc>, window_params = [{transform_indices = @transform_0, window_bounds = array<i64: 256, 128>}, {pipeline_mode = #tpu.pipeline_mode<synchronous>, transform_indices = @transform_1, window_bounds = array<i64: 1, 128>}, {pipeline_mode = #tpu.pipeline_mode<synchronous>, transform_indices = @transform_2, window_bounds = array<i64: 1, 128>}, {transform_indices = @transform_3, window_bounds = array<i64: 256, 128>}]} {
    %c0 = arith.constant 0 : index
    %c0_0 = arith.constant 0 : index
    %0 = vector.load %arg1[%c0, %c0_0] : memref<256x128xbf16, #tpu.memory_space<vmem>>, vector<256x128xbf16>
    %1 = arith.extf %0 : vector<256x128xbf16> to vector<256x128xf32>
    %cst = arith.constant dense<0.000000e+00> : vector<256xf32>
    %2 = vector.multi_reduction <add>, %1, %cst [1] : vector<256x128xf32> to vector<256xf32>
    %3 = vector.shape_cast %2 : vector<256xf32> to vector<256x1xf32>
    %cst_1 = arith.constant 1.280000e+02 : f32
    %4 = vector.broadcast %cst_1 : f32 to vector<256x1xf32>
    %5 = arith.divf %3, %4 : vector<256x1xf32>
    %6 = vector.broadcast %5 : vector<256x1xf32> to vector<256x128xf32>
    %7 = arith.subf %1, %6 : vector<256x128xf32>
    %8 = arith.mulf %7, %7 : vector<256x128xf32>
    %cst_2 = arith.constant dense<0.000000e+00> : vector<256xf32>
    %9 = vector.multi_reduction <add>, %8, %cst_2 [1] : vector<256x128xf32> to vector<256xf32>
    %10 = vector.shape_cast %9 : vector<256xf32> to vector<256x1xf32>
    %cst_3 = arith.constant 1.280000e+02 : f32
    %11 = vector.broadcast %cst_3 : f32 to vector<256x1xf32>
    %12 = arith.divf %10, %11 : vector<256x1xf32>
    %cst_4 = arith.constant 9.99999974E-6 : f32
    %13 = vector.broadcast %cst_4 : f32 to vector<256x1xf32>
    %14 = arith.addf %12, %13 : vector<256x1xf32>
    %15 = math.rsqrt %14 : vector<256x1xf32>
    %16 = vector.broadcast %15 : vector<256x1xf32> to vector<256x128xf32>
    %17 = arith.mulf %7, %16 : vector<256x128xf32>
    %c0_5 = arith.constant 0 : index
    %c0_6 = arith.constant 0 : index
    %18 = vector.load %arg2[%c0_5, %c0_6] : memref<1x128xf32, #tpu.memory_space<vmem>>, vector<1x128xf32>
    %19 = vector.broadcast %18 : vector<1x128xf32> to vector<256x128xf32>
    %20 = arith.mulf %17, %19 : vector<256x128xf32>
    %c0_7 = arith.constant 0 : index
    %c0_8 = arith.constant 0 : index
    %21 = vector.load %arg3[%c0_7, %c0_8] : memref<1x128xf32, #tpu.memory_space<vmem>>, vector<1x128xf32>
    %22 = vector.broadcast %21 : vector<1x128xf32> to vector<256x128xf32>
    %23 = arith.addf %20, %22 : vector<256x128xf32>
    %24 = arith.truncf %23 : vector<256x128xf32> to vector<256x128xbf16>
    %c0_9 = arith.constant 0 : index
    %c0_10 = arith.constant 0 : index
    %25 = vector.load %arg4[%c0_9, %c0_10] : memref<256x128xbf16, #tpu.memory_space<vmem>>, vector<256x128xbf16>
    tpu.vector_store %arg4[%c0_9, %c0_10], %24 {strides = array<i32>} : memref<256x128xbf16, #tpu.memory_space<vmem>>, vector<256x128xbf16>,
    return
  }
  func.func @transform_0(%arg0: i32) -> (i32, i32) {
    %c0_i32 = arith.constant 0 : i32
    %c0_i32_0 = arith.constant 0 : i32
    return %arg0, %c0_i32 : i32, i32
  }
  func.func @transform_1(%arg0: i32) -> (i32, i32) {
    %c0_i32 = arith.constant 0 : i32
    %c0_i32_0 = arith.constant 0 : i32
    %c0_i32_1 = arith.constant 0 : i32
    return %c0_i32, %c0_i32_0 : i32, i32
  }
  func.func @transform_2(%arg0: i32) -> (i32, i32) {
    %c0_i32 = arith.constant 0 : i32
    %c0_i32_0 = arith.constant 0 : i32
    %c0_i32_1 = arith.constant 0 : i32
    return %c0_i32, %c0_i32_0 : i32, i32
  }
  func.func @transform_3(%arg0: i32) -> (i32, i32) {
    %c0_i32 = arith.constant 0 : i32
    %c0_i32_0 = arith.constant 0 : i32
    return %arg0, %c0_i32 : i32, i32
  }
}

module attributes {stable_mosaic.version = 11 : i64} {
  func.func @_linear_kernel(%arg0: i32, %arg1: i32, %arg2: i32, %arg3: memref<256x128xbf16, #tpu.memory_space<vmem>>, %arg4: memref<128x384xbf16, #tpu.memory_space<vmem>>, %arg5: memref<1x384xf32, #tpu.memory_space<vmem>>, %arg6: memref<256x384xbf16, #tpu.memory_space<vmem>>, %arg7: memref<256x384xf32, #tpu.memory_space<vmem>>) attributes {dimension_semantics = [#tpu.dimension_semantics<parallel>, #tpu.dimension_semantics<parallel>, #tpu.dimension_semantics<arbitrary>], iteration_bounds = array<i64: 1, 1, 1>, scalar_prefetch = 0 : i64, scratch_operands = 1 : i64, tpu.core_type = #tpu.core_type<tc>, window_params = [{transform_indices = @transform_0, window_bounds = array<i64: 256, 128>}, {transform_indices = @transform_1, window_bounds = array<i64: 128, 384>}, {transform_indices = @transform_2, window_bounds = array<i64: 1, 384>}, {transform_indices = @transform_3, window_bounds = array<i64: 256, 384>}]} {
    %c0_i32 = arith.constant 0 : i32
    %0 = arith.cmpi eq, %arg2, %c0_i32 : i32
    %1 = arith.extui %0 : i1 to i32
    %c0_i32_0 = arith.constant 0 : i32
    %2 = arith.cmpi ne, %1, %c0_i32_0 : i32
    scf.if %2 {
      %cst_10 = arith.constant 0.000000e+00 : f32
      %12 = vector.broadcast %cst_10 : f32 to vector<256x384xf32>
      %c0_11 = arith.constant 0 : index
      %c0_12 = arith.constant 0 : index
      %13 = vector.load %arg7[%c0_11, %c0_12] : memref<256x384xf32, #tpu.memory_space<vmem>>, vector<256x384xf32>
      tpu.vector_store %arg7[%c0_11, %c0_12], %12 {strides = array<i32>} : memref<256x384xf32, #tpu.memory_space<vmem>>, vector<256x384xf32>,
    } else {
    }
    %c0 = arith.constant 0 : index
    %c0_1 = arith.constant 0 : index
    %3 = vector.load %arg7[%c0, %c0_1] : memref<256x384xf32, #tpu.memory_space<vmem>>, vector<256x384xf32>
    %c0_2 = arith.constant 0 : index
    %c0_3 = arith.constant 0 : index
    %4 = vector.load %arg3[%c0_2, %c0_3] : memref<256x128xbf16, #tpu.memory_space<vmem>>, vector<256x128xbf16>
    %c0_4 = arith.constant 0 : index
    %c0_5 = arith.constant 0 : index
    %5 = vector.load %arg4[%c0_4, %c0_5] : memref<128x384xbf16, #tpu.memory_space<vmem>>, vector<128x384xbf16>
    %cst = arith.constant dense<0.000000e+00> : vector<256x384xf32>
    %6 = tpu.matmul %4, %5, %cst {dimension_numbers = #tpu.dot_dimension_numbers<[1], [0], [0], [1], [0, 0, 1, 1], [], []>} : vector<256x128xbf16>, vector<128x384xbf16>, vector<256x384xf32> -> vector<256x384xf32>
    %7 = arith.addf %3, %6 : vector<256x384xf32>
    %c0_6 = arith.constant 0 : index
    %c0_7 = arith.constant 0 : index
    %8 = vector.load %arg7[%c0_6, %c0_7] : memref<256x384xf32, #tpu.memory_space<vmem>>, vector<256x384xf32>
    tpu.vector_store %arg7[%c0_6, %c0_7], %7 {strides = array<i32>} : memref<256x384xf32, #tpu.memory_space<vmem>>, vector<256x384xf32>,
    %c0_i32_8 = arith.constant 0 : i32
    %9 = arith.cmpi eq, %arg2, %c0_i32_8 : i32
    %10 = arith.extui %9 : i1 to i32
    %c0_i32_9 = arith.constant 0 : i32
    %11 = arith.cmpi ne, %10, %c0_i32_9 : i32
    scf.if %11 {
      %c0_10 = arith.constant 0 : index
      %c0_11 = arith.constant 0 : index
      %12 = vector.load %arg7[%c0_10, %c0_11] : memref<256x384xf32, #tpu.memory_space<vmem>>, vector<256x384xf32>
      %c0_12 = arith.constant 0 : index
      %c0_13 = arith.constant 0 : index
      %13 = vector.load %arg5[%c0_12, %c0_13] : memref<1x384xf32, #tpu.memory_space<vmem>>, vector<1x384xf32>
      %14 = vector.broadcast %13 : vector<1x384xf32> to vector<256x384xf32>
      %15 = arith.addf %12, %14 : vector<256x384xf32>
      %16 = arith.truncf %15 : vector<256x384xf32> to vector<256x384xbf16>
      %c0_14 = arith.constant 0 : index
      %c0_15 = arith.constant 0 : index
      %17 = vector.load %arg6[%c0_14, %c0_15] : memref<256x384xbf16, #tpu.memory_space<vmem>>, vector<256x384xbf16>
      tpu.vector_store %arg6[%c0_14, %c0_15], %16 {strides = array<i32>} : memref<256x384xbf16, #tpu.memory_space<vmem>>, vector<256x384xbf16>,
    } else {
    }
    return
  }
  func.func @transform_0(%arg0: i32, %arg1: i32, %arg2: i32) -> (i32, i32) {
    %c0_i32 = arith.constant 0 : i32
    return %arg0, %arg2 : i32, i32
  }
  func.func @transform_1(%arg0: i32, %arg1: i32, %arg2: i32) -> (i32, i32) {
    %c0_i32 = arith.constant 0 : i32
    return %arg2, %arg1 : i32, i32
  }
  func.func @transform_2(%arg0: i32, %arg1: i32, %arg2: i32) -> (i32, i32) {
    %c0_i32 = arith.constant 0 : i32
    %c0_i32_0 = arith.constant 0 : i32
    return %c0_i32, %arg1 : i32, i32
  }
  func.func @transform_3(%arg0: i32, %arg1: i32, %arg2: i32) -> (i32, i32) {
    %c0_i32 = arith.constant 0 : i32
    return %arg0, %arg1 : i32, i32
  }
}

module attributes {stable_mosaic.version = 11 : i64} {
  func.func @_attn_kernel(%arg0: i32, %arg1: memref<1x128x384xbf16, #tpu.memory_space<vmem>>, %arg2: memref<1x1x128xf32, #tpu.memory_space<vmem>>, %arg3: memref<1x128x128xbf16, #tpu.memory_space<vmem>>) attributes {dimension_semantics = [#tpu.dimension_semantics<parallel>], iteration_bounds = array<i64: 2>, scalar_prefetch = 0 : i64, scratch_operands = 0 : i64, tpu.core_type = #tpu.core_type<tc>, window_params = [{transform_indices = @transform_0, window_bounds = array<i64: 1, 128, 384>}, {transform_indices = @transform_1, window_bounds = array<i64: 1, 1, 128>}, {transform_indices = @transform_2, window_bounds = array<i64: 1, 128, 128>}]} {
    %c0 = arith.constant 0 : index
    %c0_0 = arith.constant 0 : index
    %c0_1 = arith.constant 0 : index
    %0 = vector.load %arg1[%c0, %c0_0, %c0_1] : memref<1x128x384xbf16, #tpu.memory_space<vmem>>, vector<1x128x384xbf16>
    %1 = vector.shape_cast %0 : vector<1x128x384xbf16> to vector<128x384xbf16>
    %c0_2 = arith.constant 0 : index
    %c0_3 = arith.constant 0 : index
    %c0_4 = arith.constant 0 : index
    %2 = vector.load %arg2[%c0_2, %c0_3, %c0_4] : memref<1x1x128xf32, #tpu.memory_space<vmem>>, vector<1x1x128xf32>
    %3 = vector.shape_cast %2 : vector<1x1x128xf32> to vector<1x128xf32>
    %4 = vector.extract_strided_slice %1 {offsets = [0, 0], sizes = [128, 64], strides = [1, 1]} : vector<128x384xbf16> to vector<128x64xbf16>
    %5 = vector.extract_strided_slice %1 {offsets = [0, 128], sizes = [128, 64], strides = [1, 1]} : vector<128x384xbf16> to vector<128x64xbf16>
    %6 = vector.extract_strided_slice %1 {offsets = [0, 256], sizes = [128, 64], strides = [1, 1]} : vector<128x384xbf16> to vector<128x64xbf16>
    %cst = arith.constant dense<0.000000e+00> : vector<128x128xf32>
    %7 = tpu.matmul %4, %5, %cst {dimension_numbers = #tpu.dot_dimension_numbers<[1], [1], [0], [0], [0, 0, 1, 0], [], []>} : vector<128x64xbf16>, vector<128x64xbf16>, vector<128x128xf32> -> vector<128x128xf32>
    %8 = vector.broadcast %3 : vector<1x128xf32> to vector<128x128xf32>
    %9 = arith.addf %7, %8 : vector<128x128xf32>
    %cst_5 = arith.constant dense<0xFF800000> : vector<128xf32>
    %10 = vector.multi_reduction <maximumf>, %9, %cst_5 [1] : vector<128x128xf32> to vector<128xf32>
    %11 = vector.shape_cast %10 : vector<128xf32> to vector<128x1xf32>
    %12 = vector.broadcast %11 : vector<128x1xf32> to vector<128x128xf32>
    %13 = arith.subf %9, %12 : vector<128x128xf32>
    %14 = math.exp %13 : vector<128x128xf32>
    %cst_6 = arith.constant dense<0.000000e+00> : vector<128xf32>
    %15 = vector.multi_reduction <add>, %14, %cst_6 [1] : vector<128x128xf32> to vector<128xf32>
    %16 = vector.shape_cast %15 : vector<128xf32> to vector<128x1xf32>
    %17 = tpu.reciprocal %16 {approx = true} : vector<128x1xf32> -> vector<128x1xf32>
    %18 = vector.broadcast %17 : vector<128x1xf32> to vector<128x128xf32>
    %19 = arith.mulf %14, %18 : vector<128x128xf32>
    %20 = arith.truncf %19 : vector<128x128xf32> to vector<128x128xbf16>
    %cst_7 = arith.constant dense<0.000000e+00> : vector<128x64xf32>
    %21 = tpu.matmul %20, %6, %cst_7 {dimension_numbers = #tpu.dot_dimension_numbers<[1], [0], [0], [1], [0, 0, 1, 1], [], []>} : vector<128x128xbf16>, vector<128x64xbf16>, vector<128x64xf32> -> vector<128x64xf32>
    %22 = vector.extract_strided_slice %1 {offsets = [0, 64], sizes = [128, 64], strides = [1, 1]} : vector<128x384xbf16> to vector<128x64xbf16>
    %23 = vector.extract_strided_slice %1 {offsets = [0, 192], sizes = [128, 64], strides = [1, 1]} : vector<128x384xbf16> to vector<128x64xbf16>
    %24 = vector.extract_strided_slice %1 {offsets = [0, 320], sizes = [128, 64], strides = [1, 1]} : vector<128x384xbf16> to vector<128x64xbf16>
    %cst_8 = arith.constant dense<0.000000e+00> : vector<128x128xf32>
    %25 = tpu.matmul %22, %23, %cst_8 {dimension_numbers = #tpu.dot_dimension_numbers<[1], [1], [0], [0], [0, 0, 1, 0], [], []>} : vector<128x64xbf16>, vector<128x64xbf16>, vector<128x128xf32> -> vector<128x128xf32>
    %26 = vector.broadcast %3 : vector<1x128xf32> to vector<128x128xf32>
    %27 = arith.addf %25, %26 : vector<128x128xf32>
    %cst_9 = arith.constant dense<0xFF800000> : vector<128xf32>
    %28 = vector.multi_reduction <maximumf>, %27, %cst_9 [1] : vector<128x128xf32> to vector<128xf32>
    %29 = vector.shape_cast %28 : vector<128xf32> to vector<128x1xf32>
    %30 = vector.broadcast %29 : vector<128x1xf32> to vector<128x128xf32>
    %31 = arith.subf %27, %30 : vector<128x128xf32>
    %32 = math.exp %31 : vector<128x128xf32>
    %cst_10 = arith.constant dense<0.000000e+00> : vector<128xf32>
    %33 = vector.multi_reduction <add>, %32, %cst_10 [1] : vector<128x128xf32> to vector<128xf32>
    %34 = vector.shape_cast %33 : vector<128xf32> to vector<128x1xf32>
    %35 = tpu.reciprocal %34 {approx = true} : vector<128x1xf32> -> vector<128x1xf32>
    %36 = vector.broadcast %35 : vector<128x1xf32> to vector<128x128xf32>
    %37 = arith.mulf %32, %36 : vector<128x128xf32>
    %38 = arith.truncf %37 : vector<128x128xf32> to vector<128x128xbf16>
    %cst_11 = arith.constant dense<0.000000e+00> : vector<128x64xf32>
    %39 = tpu.matmul %38, %24, %cst_11 {dimension_numbers = #tpu.dot_dimension_numbers<[1], [0], [0], [1], [0, 0, 1, 1], [], []>} : vector<128x128xbf16>, vector<128x64xbf16>, vector<128x64xf32> -> vector<128x64xf32>
    %40 = tpu.concatenate %21, %39 in 1 : vector<128x64xf32>, vector<128x64xf32> -> vector<128x128xf32>
    %41 = arith.truncf %40 : vector<128x128xf32> to vector<128x128xbf16>
    %c0_12 = arith.constant 0 : index
    %c0_13 = arith.constant 0 : index
    %c0_14 = arith.constant 0 : index
    %42 = vector.load %arg3[%c0_12, %c0_13, %c0_14] : memref<1x128x128xbf16, #tpu.memory_space<vmem>>, vector<1x128x128xbf16>
    %43 = vector.shape_cast %42 : vector<1x128x128xbf16> to vector<128x128xbf16>
    %44 = vector.shape_cast %41 : vector<128x128xbf16> to vector<1x128x128xbf16>
    tpu.vector_store %arg3[%c0_12, %c0_13, %c0_14], %44 {strides = array<i32>} : memref<1x128x128xbf16, #tpu.memory_space<vmem>>, vector<1x128x128xbf16>,
    return
  }
  func.func @transform_0(%arg0: i32) -> (i32, i32, i32) {
    %c0_i32 = arith.constant 0 : i32
    %c0_i32_0 = arith.constant 0 : i32
    %c0_i32_1 = arith.constant 0 : i32
    return %arg0, %c0_i32, %c0_i32_0 : i32, i32, i32
  }
  func.func @transform_1(%arg0: i32) -> (i32, i32, i32) {
    %c0_i32 = arith.constant 0 : i32
    %c0_i32_0 = arith.constant 0 : i32
    %c0_i32_1 = arith.constant 0 : i32
    return %arg0, %c0_i32, %c0_i32_0 : i32, i32, i32
  }
  func.func @transform_2(%arg0: i32) -> (i32, i32, i32) {
    %c0_i32 = arith.constant 0 : i32
    %c0_i32_0 = arith.constant 0 : i32
    %c0_i32_1 = arith.constant 0 : i32
    return %arg0, %c0_i32, %c0_i32_0 : i32, i32, i32
  }
}

module attributes {stable_mosaic.version = 11 : i64} {
  func.func @_linear_kernel(%arg0: i32, %arg1: i32, %arg2: i32, %arg3: memref<256x128xbf16, #tpu.memory_space<vmem>>, %arg4: memref<128x128xbf16, #tpu.memory_space<vmem>>, %arg5: memref<1x128xf32, #tpu.memory_space<vmem>>, %arg6: memref<256x128xbf16, #tpu.memory_space<vmem>>, %arg7: memref<1x128xf32, #tpu.memory_space<vmem>>, %arg8: memref<1x128xf32, #tpu.memory_space<vmem>>, %arg9: memref<256x128xbf16, #tpu.memory_space<vmem>>, %arg10: memref<256x128xf32, #tpu.memory_space<vmem>>) attributes {dimension_semantics = [#tpu.dimension_semantics<parallel>, #tpu.dimension_semantics<parallel>, #tpu.dimension_semantics<arbitrary>], iteration_bounds = array<i64: 1, 1, 1>, scalar_prefetch = 0 : i64, scratch_operands = 1 : i64, tpu.core_type = #tpu.core_type<tc>, window_params = [{transform_indices = @transform_0, window_bounds = array<i64: 256, 128>}, {transform_indices = @transform_1, window_bounds = array<i64: 128, 128>}, {transform_indices = @transform_2, window_bounds = array<i64: 1, 128>}, {transform_indices = @transform_3, window_bounds = array<i64: 256, 128>}, {transform_indices = @transform_4, window_bounds = array<i64: 1, 128>}, {transform_indices = @transform_5, window_bounds = array<i64: 1, 128>}, {transform_indices = @transform_6, window_bounds = array<i64: 256, 128>}]} {
    %c0_i32 = arith.constant 0 : i32
    %0 = arith.cmpi eq, %arg2, %c0_i32 : i32
    %1 = arith.extui %0 : i1 to i32
    %c0_i32_0 = arith.constant 0 : i32
    %2 = arith.cmpi ne, %1, %c0_i32_0 : i32
    scf.if %2 {
      %cst_10 = arith.constant 0.000000e+00 : f32
      %12 = vector.broadcast %cst_10 : f32 to vector<256x128xf32>
      %c0_11 = arith.constant 0 : index
      %c0_12 = arith.constant 0 : index
      %13 = vector.load %arg10[%c0_11, %c0_12] : memref<256x128xf32, #tpu.memory_space<vmem>>, vector<256x128xf32>
      tpu.vector_store %arg10[%c0_11, %c0_12], %12 {strides = array<i32>} : memref<256x128xf32, #tpu.memory_space<vmem>>, vector<256x128xf32>,
    } else {
    }
    %c0 = arith.constant 0 : index
    %c0_1 = arith.constant 0 : index
    %3 = vector.load %arg10[%c0, %c0_1] : memref<256x128xf32, #tpu.memory_space<vmem>>, vector<256x128xf32>
    %c0_2 = arith.constant 0 : index
    %c0_3 = arith.constant 0 : index
    %4 = vector.load %arg3[%c0_2, %c0_3] : memref<256x128xbf16, #tpu.memory_space<vmem>>, vector<256x128xbf16>
    %c0_4 = arith.constant 0 : index
    %c0_5 = arith.constant 0 : index
    %5 = vector.load %arg4[%c0_4, %c0_5] : memref<128x128xbf16, #tpu.memory_space<vmem>>, vector<128x128xbf16>
    %cst = arith.constant dense<0.000000e+00> : vector<256x128xf32>
    %6 = tpu.matmul %4, %5, %cst {dimension_numbers = #tpu.dot_dimension_numbers<[1], [0], [0], [1], [0, 0, 1, 1], [], []>} : vector<256x128xbf16>, vector<128x128xbf16>, vector<256x128xf32> -> vector<256x128xf32>
    %7 = arith.addf %3, %6 : vector<256x128xf32>
    %c0_6 = arith.constant 0 : index
    %c0_7 = arith.constant 0 : index
    %8 = vector.load %arg10[%c0_6, %c0_7] : memref<256x128xf32, #tpu.memory_space<vmem>>, vector<256x128xf32>
    tpu.vector_store %arg10[%c0_6, %c0_7], %7 {strides = array<i32>} : memref<256x128xf32, #tpu.memory_space<vmem>>, vector<256x128xf32>,
    %c0_i32_8 = arith.constant 0 : i32
    %9 = arith.cmpi eq, %arg2, %c0_i32_8 : i32
    %10 = arith.extui %9 : i1 to i32
    %c0_i32_9 = arith.constant 0 : i32
    %11 = arith.cmpi ne, %10, %c0_i32_9 : i32
    scf.if %11 {
      %c0_10 = arith.constant 0 : index
      %c0_11 = arith.constant 0 : index
      %12 = vector.load %arg10[%c0_10, %c0_11] : memref<256x128xf32, #tpu.memory_space<vmem>>, vector<256x128xf32>
      %c0_12 = arith.constant 0 : index
      %c0_13 = arith.constant 0 : index
      %13 = vector.load %arg5[%c0_12, %c0_13] : memref<1x128xf32, #tpu.memory_space<vmem>>, vector<1x128xf32>
      %14 = vector.broadcast %13 : vector<1x128xf32> to vector<256x128xf32>
      %15 = arith.addf %12, %14 : vector<256x128xf32>
      %c0_14 = arith.constant 0 : index
      %c0_15 = arith.constant 0 : index
      %16 = vector.load %arg6[%c0_14, %c0_15] : memref<256x128xbf16, #tpu.memory_space<vmem>>, vector<256x128xbf16>
      %17 = arith.extf %16 : vector<256x128xbf16> to vector<256x128xf32>
      %18 = arith.addf %15, %17 : vector<256x128xf32>
      %cst_16 = arith.constant dense<0.000000e+00> : vector<256xf32>
      %19 = vector.multi_reduction <add>, %18, %cst_16 [1] : vector<256x128xf32> to vector<256xf32>
      %20 = vector.shape_cast %19 : vector<256xf32> to vector<256x1xf32>
      %cst_17 = arith.constant 1.280000e+02 : f32
      %21 = vector.broadcast %cst_17 : f32 to vector<256x1xf32>
      %22 = arith.divf %20, %21 : vector<256x1xf32>
      %23 = vector.broadcast %22 : vector<256x1xf32> to vector<256x128xf32>
      %24 = arith.subf %18, %23 : vector<256x128xf32>
      %25 = arith.mulf %24, %24 : vector<256x128xf32>
      %cst_18 = arith.constant dense<0.000000e+00> : vector<256xf32>
      %26 = vector.multi_reduction <add>, %25, %cst_18 [1] : vector<256x128xf32> to vector<256xf32>
      %27 = vector.shape_cast %26 : vector<256xf32> to vector<256x1xf32>
      %cst_19 = arith.constant 1.280000e+02 : f32
      %28 = vector.broadcast %cst_19 : f32 to vector<256x1xf32>
      %29 = arith.divf %27, %28 : vector<256x1xf32>
      %cst_20 = arith.constant 9.99999974E-6 : f32
      %30 = vector.broadcast %cst_20 : f32 to vector<256x1xf32>
      %31 = arith.addf %29, %30 : vector<256x1xf32>
      %32 = math.rsqrt %31 : vector<256x1xf32>
      %33 = vector.broadcast %32 : vector<256x1xf32> to vector<256x128xf32>
      %34 = arith.mulf %24, %33 : vector<256x128xf32>
      %c0_21 = arith.constant 0 : index
      %c0_22 = arith.constant 0 : index
      %35 = vector.load %arg7[%c0_21, %c0_22] : memref<1x128xf32, #tpu.memory_space<vmem>>, vector<1x128xf32>
      %36 = vector.broadcast %35 : vector<1x128xf32> to vector<256x128xf32>
      %37 = arith.mulf %34, %36 : vector<256x128xf32>
      %c0_23 = arith.constant 0 : index
      %c0_24 = arith.constant 0 : index
      %38 = vector.load %arg8[%c0_23, %c0_24] : memref<1x128xf32, #tpu.memory_space<vmem>>, vector<1x128xf32>
      %39 = vector.broadcast %38 : vector<1x128xf32> to vector<256x128xf32>
      %40 = arith.addf %37, %39 : vector<256x128xf32>
      %41 = arith.truncf %40 : vector<256x128xf32> to vector<256x128xbf16>
      %c0_25 = arith.constant 0 : index
      %c0_26 = arith.constant 0 : index
      %42 = vector.load %arg9[%c0_25, %c0_26] : memref<256x128xbf16, #tpu.memory_space<vmem>>, vector<256x128xbf16>
      tpu.vector_store %arg9[%c0_25, %c0_26], %41 {strides = array<i32>} : memref<256x128xbf16, #tpu.memory_space<vmem>>, vector<256x128xbf16>,
    } else {
    }
    return
  }
  func.func @transform_0(%arg0: i32, %arg1: i32, %arg2: i32) -> (i32, i32) {
    %c0_i32 = arith.constant 0 : i32
    return %arg0, %arg2 : i32, i32
  }
  func.func @transform_1(%arg0: i32, %arg1: i32, %arg2: i32) -> (i32, i32) {
    %c0_i32 = arith.constant 0 : i32
    return %arg2, %arg1 : i32, i32
  }
  func.func @transform_2(%arg0: i32, %arg1: i32, %arg2: i32) -> (i32, i32) {
    %c0_i32 = arith.constant 0 : i32
    %c0_i32_0 = arith.constant 0 : i32
    return %c0_i32, %arg1 : i32, i32
  }
  func.func @transform_3(%arg0: i32, %arg1: i32, %arg2: i32) -> (i32, i32) {
    %c0_i32 = arith.constant 0 : i32
    return %arg0, %arg1 : i32, i32
  }
  func.func @transform_4(%arg0: i32, %arg1: i32, %arg2: i32) -> (i32, i32) {
    %c0_i32 = arith.constant 0 : i32
    %c0_i32_0 = arith.constant 0 : i32
    return %c0_i32, %arg1 : i32, i32
  }
  func.func @transform_5(%arg0: i32, %arg1: i32, %arg2: i32) -> (i32, i32) {
    %c0_i32 = arith.constant 0 : i32
    %c0_i32_0 = arith.constant 0 : i32
    return %c0_i32, %arg1 : i32, i32
  }
  func.func @transform_6(%arg0: i32, %arg1: i32, %arg2: i32) -> (i32, i32) {
    %c0_i32 = arith.constant 0 : i32
    return %arg0, %arg1 : i32, i32
  }
}

module attributes {stable_mosaic.version = 11 : i64} {
  func.func @_linear_kernel(%arg0: i32, %arg1: i32, %arg2: i32, %arg3: memref<256x128xbf16, #tpu.memory_space<vmem>>, %arg4: memref<128x512xbf16, #tpu.memory_space<vmem>>, %arg5: memref<1x512xf32, #tpu.memory_space<vmem>>, %arg6: memref<256x512xbf16, #tpu.memory_space<vmem>>, %arg7: memref<256x512xf32, #tpu.memory_space<vmem>>) attributes {dimension_semantics = [#tpu.dimension_semantics<parallel>, #tpu.dimension_semantics<parallel>, #tpu.dimension_semantics<arbitrary>], iteration_bounds = array<i64: 1, 1, 1>, scalar_prefetch = 0 : i64, scratch_operands = 1 : i64, tpu.core_type = #tpu.core_type<tc>, window_params = [{transform_indices = @transform_0, window_bounds = array<i64: 256, 128>}, {transform_indices = @transform_1, window_bounds = array<i64: 128, 512>}, {transform_indices = @transform_2, window_bounds = array<i64: 1, 512>}, {transform_indices = @transform_3, window_bounds = array<i64: 256, 512>}]} {
    %c0_i32 = arith.constant 0 : i32
    %0 = arith.cmpi eq, %arg2, %c0_i32 : i32
    %1 = arith.extui %0 : i1 to i32
    %c0_i32_0 = arith.constant 0 : i32
    %2 = arith.cmpi ne, %1, %c0_i32_0 : i32
    scf.if %2 {
      %cst_10 = arith.constant 0.000000e+00 : f32
      %12 = vector.broadcast %cst_10 : f32 to vector<256x512xf32>
      %c0_11 = arith.constant 0 : index
      %c0_12 = arith.constant 0 : index
      %13 = vector.load %arg7[%c0_11, %c0_12] : memref<256x512xf32, #tpu.memory_space<vmem>>, vector<256x512xf32>
      tpu.vector_store %arg7[%c0_11, %c0_12], %12 {strides = array<i32>} : memref<256x512xf32, #tpu.memory_space<vmem>>, vector<256x512xf32>,
    } else {
    }
    %c0 = arith.constant 0 : index
    %c0_1 = arith.constant 0 : index
    %3 = vector.load %arg7[%c0, %c0_1] : memref<256x512xf32, #tpu.memory_space<vmem>>, vector<256x512xf32>
    %c0_2 = arith.constant 0 : index
    %c0_3 = arith.constant 0 : index
    %4 = vector.load %arg3[%c0_2, %c0_3] : memref<256x128xbf16, #tpu.memory_space<vmem>>, vector<256x128xbf16>
    %c0_4 = arith.constant 0 : index
    %c0_5 = arith.constant 0 : index
    %5 = vector.load %arg4[%c0_4, %c0_5] : memref<128x512xbf16, #tpu.memory_space<vmem>>, vector<128x512xbf16>
    %cst = arith.constant dense<0.000000e+00> : vector<256x512xf32>
    %6 = tpu.matmul %4, %5, %cst {dimension_numbers = #tpu.dot_dimension_numbers<[1], [0], [0], [1], [0, 0, 1, 1], [], []>} : vector<256x128xbf16>, vector<128x512xbf16>, vector<256x512xf32> -> vector<256x512xf32>
    %7 = arith.addf %3, %6 : vector<256x512xf32>
    %c0_6 = arith.constant 0 : index
    %c0_7 = arith.constant 0 : index
    %8 = vector.load %arg7[%c0_6, %c0_7] : memref<256x512xf32, #tpu.memory_space<vmem>>, vector<256x512xf32>
    tpu.vector_store %arg7[%c0_6, %c0_7], %7 {strides = array<i32>} : memref<256x512xf32, #tpu.memory_space<vmem>>, vector<256x512xf32>,
    %c0_i32_8 = arith.constant 0 : i32
    %9 = arith.cmpi eq, %arg2, %c0_i32_8 : i32
    %10 = arith.extui %9 : i1 to i32
    %c0_i32_9 = arith.constant 0 : i32
    %11 = arith.cmpi ne, %10, %c0_i32_9 : i32
    scf.if %11 {
      %c0_10 = arith.constant 0 : index
      %c0_11 = arith.constant 0 : index
      %12 = vector.load %arg7[%c0_10, %c0_11] : memref<256x512xf32, #tpu.memory_space<vmem>>, vector<256x512xf32>
      %c0_12 = arith.constant 0 : index
      %c0_13 = arith.constant 0 : index
      %13 = vector.load %arg5[%c0_12, %c0_13] : memref<1x512xf32, #tpu.memory_space<vmem>>, vector<1x512xf32>
      %14 = vector.broadcast %13 : vector<1x512xf32> to vector<256x512xf32>
      %15 = arith.addf %12, %14 : vector<256x512xf32>
      %cst_14 = arith.constant 0.636619746 : f32
      %16 = math.sqrt %cst_14 : f32
      %cst_15 = arith.constant 5.000000e-01 : f32
      %17 = vector.broadcast %cst_15 : f32 to vector<256x512xf32>
      %18 = arith.mulf %17, %15 : vector<256x512xf32>
      %cst_16 = arith.constant 4.471500e-02 : f32
      %19 = vector.broadcast %cst_16 : f32 to vector<256x512xf32>
      %20 = arith.mulf %19, %15 : vector<256x512xf32>
      %21 = arith.mulf %20, %15 : vector<256x512xf32>
      %22 = arith.mulf %21, %15 : vector<256x512xf32>
      %23 = arith.addf %15, %22 : vector<256x512xf32>
      %24 = vector.broadcast %16 : f32 to vector<256x512xf32>
      %25 = arith.mulf %24, %23 : vector<256x512xf32>
      %26 = math.tanh %25 : vector<256x512xf32>
      %cst_17 = arith.constant 1.000000e+00 : f32
      %27 = vector.broadcast %cst_17 : f32 to vector<256x512xf32>
      %28 = arith.addf %27, %26 : vector<256x512xf32>
      %29 = arith.mulf %18, %28 : vector<256x512xf32>
      %30 = arith.truncf %29 : vector<256x512xf32> to vector<256x512xbf16>
      %c0_18 = arith.constant 0 : index
      %c0_19 = arith.constant 0 : index
      %31 = vector.load %arg6[%c0_18, %c0_19] : memref<256x512xbf16, #tpu.memory_space<vmem>>, vector<256x512xbf16>
      tpu.vector_store %arg6[%c0_18, %c0_19], %30 {strides = array<i32>} : memref<256x512xbf16, #tpu.memory_space<vmem>>, vector<256x512xbf16>,
    } else {
    }
    return
  }
  func.func @transform_0(%arg0: i32, %arg1: i32, %arg2: i32) -> (i32, i32) {
    %c0_i32 = arith.constant 0 : i32
    return %arg0, %arg2 : i32, i32
  }
  func.func @transform_1(%arg0: i32, %arg1: i32, %arg2: i32) -> (i32, i32) {
    %c0_i32 = arith.constant 0 : i32
    return %arg2, %arg1 : i32, i32
  }
  func.func @transform_2(%arg0: i32, %arg1: i32, %arg2: i32) -> (i32, i32) {
    %c0_i32 = arith.constant 0 : i32
    %c0_i32_0 = arith.constant 0 : i32
    return %c0_i32, %arg1 : i32, i32
  }
  func.func @transform_3(%arg0: i32, %arg1: i32, %arg2: i32) -> (i32, i32) {
    %c0_i32 = arith.constant 0 : i32
    return %arg0, %arg1 : i32, i32
  }
}

module attributes {stable_mosaic.version = 11 : i64} {
  func.func @_linear_kernel(%arg0: i32, %arg1: i32, %arg2: i32, %arg3: memref<256x512xbf16, #tpu.memory_space<vmem>>, %arg4: memref<512x128xbf16, #tpu.memory_space<vmem>>, %arg5: memref<1x128xf32, #tpu.memory_space<vmem>>, %arg6: memref<256x128xbf16, #tpu.memory_space<vmem>>, %arg7: memref<1x128xf32, #tpu.memory_space<vmem>>, %arg8: memref<1x128xf32, #tpu.memory_space<vmem>>, %arg9: memref<256x128xbf16, #tpu.memory_space<vmem>>, %arg10: memref<256x128xf32, #tpu.memory_space<vmem>>) attributes {dimension_semantics = [#tpu.dimension_semantics<parallel>, #tpu.dimension_semantics<parallel>, #tpu.dimension_semantics<arbitrary>], iteration_bounds = array<i64: 1, 1, 1>, scalar_prefetch = 0 : i64, scratch_operands = 1 : i64, tpu.core_type = #tpu.core_type<tc>, window_params = [{transform_indices = @transform_0, window_bounds = array<i64: 256, 512>}, {transform_indices = @transform_1, window_bounds = array<i64: 512, 128>}, {transform_indices = @transform_2, window_bounds = array<i64: 1, 128>}, {transform_indices = @transform_3, window_bounds = array<i64: 256, 128>}, {transform_indices = @transform_4, window_bounds = array<i64: 1, 128>}, {transform_indices = @transform_5, window_bounds = array<i64: 1, 128>}, {transform_indices = @transform_6, window_bounds = array<i64: 256, 128>}]} {
    %c0_i32 = arith.constant 0 : i32
    %0 = arith.cmpi eq, %arg2, %c0_i32 : i32
    %1 = arith.extui %0 : i1 to i32
    %c0_i32_0 = arith.constant 0 : i32
    %2 = arith.cmpi ne, %1, %c0_i32_0 : i32
    scf.if %2 {
      %cst_10 = arith.constant 0.000000e+00 : f32
      %12 = vector.broadcast %cst_10 : f32 to vector<256x128xf32>
      %c0_11 = arith.constant 0 : index
      %c0_12 = arith.constant 0 : index
      %13 = vector.load %arg10[%c0_11, %c0_12] : memref<256x128xf32, #tpu.memory_space<vmem>>, vector<256x128xf32>
      tpu.vector_store %arg10[%c0_11, %c0_12], %12 {strides = array<i32>} : memref<256x128xf32, #tpu.memory_space<vmem>>, vector<256x128xf32>,
    } else {
    }
    %c0 = arith.constant 0 : index
    %c0_1 = arith.constant 0 : index
    %3 = vector.load %arg10[%c0, %c0_1] : memref<256x128xf32, #tpu.memory_space<vmem>>, vector<256x128xf32>
    %c0_2 = arith.constant 0 : index
    %c0_3 = arith.constant 0 : index
    %4 = vector.load %arg3[%c0_2, %c0_3] : memref<256x512xbf16, #tpu.memory_space<vmem>>, vector<256x512xbf16>
    %c0_4 = arith.constant 0 : index
    %c0_5 = arith.constant 0 : index
    %5 = vector.load %arg4[%c0_4, %c0_5] : memref<512x128xbf16, #tpu.memory_space<vmem>>, vector<512x128xbf16>
    %cst = arith.constant dense<0.000000e+00> : vector<256x128xf32>
    %6 = tpu.matmul %4, %5, %cst {dimension_numbers = #tpu.dot_dimension_numbers<[1], [0], [0], [1], [0, 0, 1, 1], [], []>} : vector<256x512xbf16>, vector<512x128xbf16>, vector<256x128xf32> -> vector<256x128xf32>
    %7 = arith.addf %3, %6 : vector<256x128xf32>
    %c0_6 = arith.constant 0 : index
    %c0_7 = arith.constant 0 : index
    %8 = vector.load %arg10[%c0_6, %c0_7] : memref<256x128xf32, #tpu.memory_space<vmem>>, vector<256x128xf32>
    tpu.vector_store %arg10[%c0_6, %c0_7], %7 {strides = array<i32>} : memref<256x128xf32, #tpu.memory_space<vmem>>, vector<256x128xf32>,
    %c0_i32_8 = arith.constant 0 : i32
    %9 = arith.cmpi eq, %arg2, %c0_i32_8 : i32
    %10 = arith.extui %9 : i1 to i32
    %c0_i32_9 = arith.constant 0 : i32
    %11 = arith.cmpi ne, %10, %c0_i32_9 : i32
    scf.if %11 {
      %c0_10 = arith.constant 0 : index
      %c0_11 = arith.constant 0 : index
      %12 = vector.load %arg10[%c0_10, %c0_11] : memref<256x128xf32, #tpu.memory_space<vmem>>, vector<256x128xf32>
      %c0_12 = arith.constant 0 : index
      %c0_13 = arith.constant 0 : index
      %13 = vector.load %arg5[%c0_12, %c0_13] : memref<1x128xf32, #tpu.memory_space<vmem>>, vector<1x128xf32>
      %14 = vector.broadcast %13 : vector<1x128xf32> to vector<256x128xf32>
      %15 = arith.addf %12, %14 : vector<256x128xf32>
      %c0_14 = arith.constant 0 : index
      %c0_15 = arith.constant 0 : index
      %16 = vector.load %arg6[%c0_14, %c0_15] : memref<256x128xbf16, #tpu.memory_space<vmem>>, vector<256x128xbf16>
      %17 = arith.extf %16 : vector<256x128xbf16> to vector<256x128xf32>
      %18 = arith.addf %15, %17 : vector<256x128xf32>
      %cst_16 = arith.constant dense<0.000000e+00> : vector<256xf32>
      %19 = vector.multi_reduction <add>, %18, %cst_16 [1] : vector<256x128xf32> to vector<256xf32>
      %20 = vector.shape_cast %19 : vector<256xf32> to vector<256x1xf32>
      %cst_17 = arith.constant 1.280000e+02 : f32
      %21 = vector.broadcast %cst_17 : f32 to vector<256x1xf32>
      %22 = arith.divf %20, %21 : vector<256x1xf32>
      %23 = vector.broadcast %22 : vector<256x1xf32> to vector<256x128xf32>
      %24 = arith.subf %18, %23 : vector<256x128xf32>
      %25 = arith.mulf %24, %24 : vector<256x128xf32>
      %cst_18 = arith.constant dense<0.000000e+00> : vector<256xf32>
      %26 = vector.multi_reduction <add>, %25, %cst_18 [1] : vector<256x128xf32> to vector<256xf32>
      %27 = vector.shape_cast %26 : vector<256xf32> to vector<256x1xf32>
      %cst_19 = arith.constant 1.280000e+02 : f32
      %28 = vector.broadcast %cst_19 : f32 to vector<256x1xf32>
      %29 = arith.divf %27, %28 : vector<256x1xf32>
      %cst_20 = arith.constant 9.99999974E-6 : f32
      %30 = vector.broadcast %cst_20 : f32 to vector<256x1xf32>
      %31 = arith.addf %29, %30 : vector<256x1xf32>
      %32 = math.rsqrt %31 : vector<256x1xf32>
      %33 = vector.broadcast %32 : vector<256x1xf32> to vector<256x128xf32>
      %34 = arith.mulf %24, %33 : vector<256x128xf32>
      %c0_21 = arith.constant 0 : index
      %c0_22 = arith.constant 0 : index
      %35 = vector.load %arg7[%c0_21, %c0_22] : memref<1x128xf32, #tpu.memory_space<vmem>>, vector<1x128xf32>
      %36 = vector.broadcast %35 : vector<1x128xf32> to vector<256x128xf32>
      %37 = arith.mulf %34, %36 : vector<256x128xf32>
      %c0_23 = arith.constant 0 : index
      %c0_24 = arith.constant 0 : index
      %38 = vector.load %arg8[%c0_23, %c0_24] : memref<1x128xf32, #tpu.memory_space<vmem>>, vector<1x128xf32>
      %39 = vector.broadcast %38 : vector<1x128xf32> to vector<256x128xf32>
      %40 = arith.addf %37, %39 : vector<256x128xf32>
      %41 = arith.truncf %40 : vector<256x128xf32> to vector<256x128xbf16>
      %c0_25 = arith.constant 0 : index
      %c0_26 = arith.constant 0 : index
      %42 = vector.load %arg9[%c0_25, %c0_26] : memref<256x128xbf16, #tpu.memory_space<vmem>>, vector<256x128xbf16>
      tpu.vector_store %arg9[%c0_25, %c0_26], %41 {strides = array<i32>} : memref<256x128xbf16, #tpu.memory_space<vmem>>, vector<256x128xbf16>,
    } else {
    }
    return
  }
  func.func @transform_0(%arg0: i32, %arg1: i32, %arg2: i32) -> (i32, i32) {
    %c0_i32 = arith.constant 0 : i32
    return %arg0, %arg2 : i32, i32
  }
  func.func @transform_1(%arg0: i32, %arg1: i32, %arg2: i32) -> (i32, i32) {
    %c0_i32 = arith.constant 0 : i32
    return %arg2, %arg1 : i32, i32
  }
  func.func @transform_2(%arg0: i32, %arg1: i32, %arg2: i32) -> (i32, i32) {
    %c0_i32 = arith.constant 0 : i32
    %c0_i32_0 = arith.constant 0 : i32
    return %c0_i32, %arg1 : i32, i32
  }
  func.func @transform_3(%arg0: i32, %arg1: i32, %arg2: i32) -> (i32, i32) {
    %c0_i32 = arith.constant 0 : i32
    return %arg0, %arg1 : i32, i32
  }
  func.func @transform_4(%arg0: i32, %arg1: i32, %arg2: i32) -> (i32, i32) {
    %c0_i32 = arith.constant 0 : i32
    %c0_i32_0 = arith.constant 0 : i32
    return %c0_i32, %arg1 : i32, i32
  }
  func.func @transform_5(%arg0: i32, %arg1: i32, %arg2: i32) -> (i32, i32) {
    %c0_i32 = arith.constant 0 : i32
    %c0_i32_0 = arith.constant 0 : i32
    return %c0_i32, %arg1 : i32, i32
  }
  func.func @transform_6(%arg0: i32, %arg1: i32, %arg2: i32) -> (i32, i32) {
    %c0_i32 = arith.constant 0 : i32
    return %arg0, %arg1 : i32, i32
  }
}

module attributes {stable_mosaic.version = 11 : i64} {
  func.func @_pool_reg_kernel(%arg0: i32, %arg1: memref<2x128xbf16, #tpu.memory_space<vmem>>, %arg2: memref<128x128xbf16, #tpu.memory_space<vmem>>, %arg3: memref<1x128xf32, #tpu.memory_space<vmem>>, %arg4: memref<1x128xf32, #tpu.memory_space<vmem>>, %arg5: memref<1x1xf32, #tpu.memory_space<vmem>>, %arg6: memref<2x1xf32, #tpu.memory_space<vmem>>) attributes {dimension_semantics = [#tpu.dimension_semantics<arbitrary>], iteration_bounds = array<i64: 1>, scalar_prefetch = 0 : i64, scratch_operands = 0 : i64, tpu.core_type = #tpu.core_type<tc>, window_params = [{pipeline_mode = #tpu.pipeline_mode<synchronous>, transform_indices = @transform_0, window_bounds = array<i64: 2, 128>}, {pipeline_mode = #tpu.pipeline_mode<synchronous>, transform_indices = @transform_1, window_bounds = array<i64: 128, 128>}, {pipeline_mode = #tpu.pipeline_mode<synchronous>, transform_indices = @transform_2, window_bounds = array<i64: 1, 128>}, {pipeline_mode = #tpu.pipeline_mode<synchronous>, transform_indices = @transform_3, window_bounds = array<i64: 1, 128>}, {pipeline_mode = #tpu.pipeline_mode<synchronous>, transform_indices = @transform_4, window_bounds = array<i64: 1, 1>}, {pipeline_mode = #tpu.pipeline_mode<synchronous>, transform_indices = @transform_5, window_bounds = array<i64: 2, 1>}]} {
    %c0 = arith.constant 0 : index
    %c0_0 = arith.constant 0 : index
    %0 = vector.load %arg1[%c0, %c0_0] : memref<2x128xbf16, #tpu.memory_space<vmem>>, vector<2x128xbf16>
    %c0_1 = arith.constant 0 : index
    %c0_2 = arith.constant 0 : index
    %1 = vector.load %arg2[%c0_1, %c0_2] : memref<128x128xbf16, #tpu.memory_space<vmem>>, vector<128x128xbf16>
    %cst = arith.constant dense<0.000000e+00> : vector<2x128xf32>
    %2 = tpu.matmul %0, %1, %cst {dimension_numbers = #tpu.dot_dimension_numbers<[1], [0], [0], [1], [0, 0, 1, 1], [], []>} : vector<2x128xbf16>, vector<128x128xbf16>, vector<2x128xf32> -> vector<2x128xf32>
    %c0_3 = arith.constant 0 : index
    %c0_4 = arith.constant 0 : index
    %3 = vector.load %arg3[%c0_3, %c0_4] : memref<1x128xf32, #tpu.memory_space<vmem>>, vector<1x128xf32>
    %4 = vector.broadcast %3 : vector<1x128xf32> to vector<2x128xf32>
    %5 = arith.addf %2, %4 : vector<2x128xf32>
    %6 = math.tanh %5 : vector<2x128xf32>
    %c0_5 = arith.constant 0 : index
    %c0_6 = arith.constant 0 : index
    %7 = vector.load %arg4[%c0_5, %c0_6] : memref<1x128xf32, #tpu.memory_space<vmem>>, vector<1x128xf32>
    %8 = vector.broadcast %7 : vector<1x128xf32> to vector<2x128xf32>
    %9 = arith.mulf %6, %8 : vector<2x128xf32>
    %cst_7 = arith.constant dense<0.000000e+00> : vector<2xf32>
    %10 = vector.multi_reduction <add>, %9, %cst_7 [1] : vector<2x128xf32> to vector<2xf32>
    %11 = vector.shape_cast %10 : vector<2xf32> to vector<2x1xf32>
    %c0_8 = arith.constant 0 : index
    %c0_9 = arith.constant 0 : index
    %12 = vector.load %arg5[%c0_8, %c0_9] : memref<1x1xf32, #tpu.memory_space<vmem>>, vector<1x1xf32>
    %13 = vector.broadcast %12 : vector<1x1xf32> to vector<2x1xf32>
    %14 = arith.addf %11, %13 : vector<2x1xf32>
    %c0_10 = arith.constant 0 : index
    %c0_11 = arith.constant 0 : index
    %15 = vector.load %arg6[%c0_10, %c0_11] : memref<2x1xf32, #tpu.memory_space<vmem>>, vector<2x1xf32>
    tpu.vector_store %arg6[%c0_10, %c0_11], %14 {strides = array<i32>} : memref<2x1xf32, #tpu.memory_space<vmem>>, vector<2x1xf32>,
    return
  }
  func.func @transform_0(%arg0: i32) -> (i32, i32) {
    %c0_i32 = arith.constant 0 : i32
    %c0_i32_0 = arith.constant 0 : i32
    %c0_i32_1 = arith.constant 0 : i32
    return %c0_i32, %c0_i32_0 : i32, i32
  }
  func.func @transform_1(%arg0: i32) -> (i32, i32) {
    %c0_i32 = arith.constant 0 : i32
    %c0_i32_0 = arith.constant 0 : i32
    %c0_i32_1 = arith.constant 0 : i32
    return %c0_i32, %c0_i32_0 : i32, i32
  }
  func.func @transform_2(%arg0: i32) -> (i32, i32) {
    %c0_i32 = arith.constant 0 : i32
    %c0_i32_0 = arith.constant 0 : i32
    %c0_i32_1 = arith.constant 0 : i32
    return %c0_i32, %c0_i32_0 : i32, i32
  }
  func.func @transform_3(%arg0: i32) -> (i32, i32) {
    %c0_i32 = arith.constant 0 : i32
    %c0_i32_0 = arith.constant 0 : i32
    %c0_i32_1 = arith.constant 0 : i32
    return %c0_i32, %c0_i32_0 : i32, i32
  }
  func.func @transform_4(%arg0: i32) -> (i32, i32) {
    %c0_i32 = arith.constant 0 : i32
    %c0_i32_0 = arith.constant 0 : i32
    %c0_i32_1 = arith.constant 0 : i32
    return %c0_i32, %c0_i32_0 : i32, i32
  }
  func.func @transform_5(%arg0: i32) -> (i32, i32) {
    %c0_i32 = arith.constant 0 : i32
    %c0_i32_0 = arith.constant 0 : i32
    %c0_i32_1 = arith.constant 0 : i32
    return %c0_i32, %c0_i32_0 : i32, i32
  }
}

</mosaic_0001>

<llo_original>
// kernel: forward.12
$region0: #{forward.12}
  #allocation0 [shape = 'u32[]', space=smem, size = 0x4, offset = 0x4, fixed_abs, tag = 'smem constant byte address 0x4 - core index']
  #allocation1 [shape = 'u32[144,128]{1,0:T(1,128)}', space=vmem, size = 0x12000, scoped, tag = 'internal scratch']
  %s0 = inlined_call_operand.vmem [shape: bf16[256,128], index: 0, kind: input, shape index: {}]
  %s1 = inlined_call_operand.vmem [shape: f32[1,128], index: 1, kind: input, shape index: {}]
  %s2 = inlined_call_operand.vmem [shape: f32[1,128], index: 2, kind: input, shape index: {}]
  %s3 = inlined_call_operand.vmem [shape: bf16[256,128], index: 3, kind: output, shape index: {}]
  %s4 = sld [smem:[#allocation0]]
  $region22: #{forward.12} parent=0
    _
  %s6 = ssub.s32 1, %s4
  %s7 = scalar_select 0, %s6, %s4
  // Predicated region
  $region2: #{forward.12} parent=0 // pred_check
    _
  $region3: #{forward.12} parent=0 // pred_check_branch
    %9 = sbr.rel (0) target = $region5
  $region4: #{forward.12} parent=0 // pred_region
    _
  $region5: #{forward.12} parent=0 // pred_fallthru
    _
  // Predicated region
  $region6: #{forward.12} parent=0 // pred_check
    _
  $region7: #{forward.12} parent=0 // pred_check_branch
    %11 = sbr.rel (0) target = $region9
  $region8: #{forward.12} parent=0 // pred_region
    _
  $region9: #{forward.12} parent=0 // pred_fallthru
    _
  // Predicated region
  $region10: #{forward.12} parent=0 // pred_check
    _
  $region11: #{forward.12} parent=0 // pred_check_branch
    %13 = sbr.rel (0) target = $region13
  $region12: #{forward.12} parent=0 // pred_region
    _
  $region13: #{forward.12} parent=0 // pred_fallthru
    _
  %v14 = vld [vmem:[%s0] sm:$0xf]
  %v15 = vld [vmem:[%s0 + $0x4] sm:$0xf]
  %v16 = vld [vmem:[%s0 + $0x8] sm:$0xf]
  %v17 = vld [vmem:[%s0 + $0xc] sm:$0xf]
  %v18 = vld [vmem:[%s0 + $0x10] sm:$0xf]
  %v19 = vld [vmem:[%s0 + $0x14] sm:$0xf]
  %v20 = vld [vmem:[%s0 + $0x18] sm:$0xf]
  %v21 = vld [vmem:[%s0 + $0x1c] sm:$0xf]
  %v22 = vld [vmem:[%s0 + $0x20] sm:$0xf]
  %v23 = vld [vmem:[%s0 + $0x24] sm:$0xf]
  %v24 = vld [vmem:[%s0 + $0x28] sm:$0xf]
  %v25 = vld [vmem:[%s0 + $0x2c] sm:$0xf]
  %v26 = vld [vmem:[%s0 + $0x30] sm:$0xf]
  %v27 = vld [vmem:[%s0 + $0x34] sm:$0xf]
  %v28 = vld [vmem:[%s0 + $0x38] sm:$0xf]
  %v29 = vld [vmem:[%s0 + $0x3c] sm:$0xf]
  %v30 = vld [vmem:[%s0 + $0x40] sm:$0xf]
  %v31 = vld [vmem:[%s0 + $0x44] sm:$0xf]
  %v32 = vld [vmem:[%s0 + $0x48] sm:$0xf]
  %v33 = vld [vmem:[%s0 + $0x4c] sm:$0xf]
  %v34 = vld [vmem:[%s0 + $0x50] sm:$0xf]
  %v35 = vld [vmem:[%s0 + $0x54] sm:$0xf]
  %v36 = vld [vmem:[%s0 + $0x58] sm:$0xf]
  %v37 = vld [vmem:[%s0 + $0x5c] sm:$0xf]
  %v38 = vld [vmem:[%s0 + $0x60] sm:$0xf]
  %v39 = vld [vmem:[%s0 + $0x64] sm:$0xf]
  %v40 = vld [vmem:[%s0 + $0x68] sm:$0xf]
  %v41 = vld [vmem:[%s0 + $0x6c] sm:$0xf]
  %v42 = vld [vmem:[%s0 + $0x70] sm:$0xf]
  %v43 = vld [vmem:[%s0 + $0x74] sm:$0xf]
  %v44 = vld [vmem:[%s0 + $0x78] sm:$0xf]
  %v45 = vld [vmem:[%s0 + $0x7c] sm:$0xf]
  %v46 = vunpack.c.l.bf16 %v14
  %v47 = vunpack.c.l.bf16 %v15
  %v48 = vunpack.c.l.bf16 %v16
  %v49 = vunpack.c.l.bf16 %v17
  %v50 = vunpack.c.l.bf16 %v18
  %v51 = vunpack.c.l.bf16 %v19
  %v52 = vunpack.c.l.bf16 %v20
  %v53 = vunpack.c.l.bf16 %v21
  %v54 = vunpack.c.l.bf16 %v22
  %v55 = vunpack.c.l.bf16 %v23
  %v56 = vunpack.c.l.bf16 %v24
  %v57 = vunpack.c.l.bf16 %v25
  %v58 = vunpack.c.l.bf16 %v26
  %v59 = vunpack.c.l.bf16 %v27
  %v60 = vunpack.c.l.bf16 %v28
  %v61 = vunpack.c.l.bf16 %v29
  %v62 = vunpack.c.l.bf16 %v30
  %v63 = vunpack.c.l.bf16 %v31
  %v64 = vunpack.c.l.bf16 %v32
  %v65 = vunpack.c.l.bf16 %v33
  %v66 = vunpack.c.l.bf16 %v34
  %v67 = vunpack.c.l.bf16 %v35
  %v68 = vunpack.c.l.bf16 %v36
  %v69 = vunpack.c.l.bf16 %v37
  %v70 = vunpack.c.l.bf16 %v38
  %v71 = vunpack.c.l.bf16 %v39
  %v72 = vunpack.c.l.bf16 %v40
  %v73 = vunpack.c.l.bf16 %v41
  %v74 = vunpack.c.l.bf16 %v42
  %v75 = vunpack.c.l.bf16 %v43
  %v76 = vunpack.c.l.bf16 %v44
  %v77 = vunpack.c.l.bf16 %v45
  %78 = vadd.xlane.f32.xlu0 %v46
  %v79 = vpop.xlane.xlu0 %78
  %80 = vadd.xlane.f32.xlu0 %v47
  %v81 = vpop.xlane.xlu0 %80
  %82 = vadd.xlane.f32.xlu0 %v48
  %v83 = vpop.xlane.xlu0 %82
  %84 = vadd.xlane.f32.xlu0 %v49
  %v85 = vpop.xlane.xlu0 %84
  %86 = vadd.xlane.f32.xlu0 %v50
  %v87 = vpop.xlane.xlu0 %86
  %88 = vadd.xlane.f32.xlu0 %v51
  %v89 = vpop.xlane.xlu0 %88
  %90 = vadd.xlane.f32.xlu0 %v52
  %v91 = vpop.xlane.xlu0 %90
  %92 = vadd.xlane.f32.xlu0 %v53
  %v93 = vpop.xlane.xlu0 %92
  %94 = vadd.xlane.f32.xlu0 %v54
  %v95 = vpop.xlane.xlu0 %94
  %96 = vadd.xlane.f32.xlu0 %v55
  %v97 = vpop.xlane.xlu0 %96
  %98 = vadd.xlane.f32.xlu0 %v56
  %v99 = vpop.xlane.xlu0 %98
  %100 = vadd.xlane.f32.xlu0 %v57
  %v101 = vpop.xlane.xlu0 %100
  %102 = vadd.xlane.f32.xlu0 %v58
  %v103 = vpop.xlane.xlu0 %102
  %104 = vadd.xlane.f32.xlu0 %v59
  %v105 = vpop.xlane.xlu0 %104
  %106 = vadd.xlane.f32.xlu0 %v60
  %v107 = vpop.xlane.xlu0 %106
  %108 = vadd.xlane.f32.xlu0 %v61
  %v109 = vpop.xlane.xlu0 %108
  %110 = vadd.xlane.f32.xlu0 %v62
  %v111 = vpop.xlane.xlu0 %110
  %112 = vadd.xlane.f32.xlu0 %v63
  %v113 = vpop.xlane.xlu0 %112
  %114 = vadd.xlane.f32.xlu0 %v64
  %v115 = vpop.xlane.xlu0 %114
  %116 = vadd.xlane.f32.xlu0 %v65
  %v117 = vpop.xlane.xlu0 %116
  %118 = vadd.xlane.f32.xlu0 %v66
  %v119 = vpop.xlane.xlu0 %118
  %120 = vadd.xlane.f32.xlu0 %v67
  %v121 = vpop.xlane.xlu0 %120
  %122 = vadd.xlane.f32.xlu0 %v68
  %v123 = vpop.xlane.xlu0 %122
  %124 = vadd.xlane.f32.xlu0 %v69
  %v125 = vpop.xlane.xlu0 %124
  %126 = vadd.xlane.f32.xlu0 %v70
  %v127 = vpop.xlane.xlu0 %126
  %128 = vadd.xlane.f32.xlu0 %v71
  %v129 = vpop.xlane.xlu0 %128
  %130 = vadd.xlane.f32.xlu0 %v72
  %v131 = vpop.xlane.xlu0 %130
  %132 = vadd.xlane.f32.xlu0 %v73
  %v133 = vpop.xlane.xlu0 %132
  %134 = vadd.xlane.f32.xlu0 %v74
  %v135 = vpop.xlane.xlu0 %134
  %136 = vadd.xlane.f32.xlu0 %v75
  %v137 = vpop.xlane.xlu0 %136
  %138 = vadd.xlane.f32.xlu0 %v76
  %v139 = vpop.xlane.xlu0 %138
  %140 = vadd.xlane.f32.xlu0 %v77
  %v141 = vpop.xlane.xlu0 %140
  %v142 = vrcp.pop 128.0
  %v143 = vmul.f32 %v79, %v142
  %v144 = vmul.f32 %v81, %v142
  %v145 = vmul.f32 %v83, %v142
  %v146 = vmul.f32 %v85, %v142
  %v147 = vmul.f32 %v87, %v142
  %v148 = vmul.f32 %v89, %v142
  %v149 = vmul.f32 %v91, %v142
  %v150 = vmul.f32 %v93, %v142
  %v151 = vmul.f32 %v95, %v142
  %v152 = vmul.f32 %v97, %v142
  %v153 = vmul.f32 %v99, %v142
  %v154 = vmul.f32 %v101, %v142
  %v155 = vmul.f32 %v103, %v142
  %v156 = vmul.f32 %v105, %v142
  %v157 = vmul.f32 %v107, %v142
  %v158 = vmul.f32 %v109, %v142
  %v159 = vmul.f32 %v111, %v142
  %v160 = vmul.f32 %v113, %v142
  %v161 = vmul.f32 %v115, %v142
  %v162 = vmul.f32 %v117, %v142
  %v163 = vmul.f32 %v119, %v142
  %v164 = vmul.f32 %v121, %v142
  %v165 = vmul.f32 %v123, %v142
  %v166 = vmul.f32 %v125, %v142
  %v167 = vmul.f32 %v127, %v142
  %v168 = vmul.f32 %v129, %v142
  %v169 = vmul.f32 %v131, %v142
  %v170 = vmul.f32 %v133, %v142
  %v171 = vmul.f32 %v135, %v142
  %v172 = vmul.f32 %v137, %v142
  %v173 = vmul.f32 %v139, %v142
  %v174 = vmul.f32 %v141, %v142
  %v175 = vsub.f32 %v46, %v143
  %v176 = vsub.f32 %v47, %v144
  %v177 = vsub.f32 %v48, %v145
  %v178 = vsub.f32 %v49, %v146
  %v179 = vsub.f32 %v50, %v147
  %v180 = vsub.f32 %v51, %v148
  %v181 = vsub.f32 %v52, %v149
  %v182 = vsub.f32 %v53, %v150
  %v183 = vsub.f32 %v54, %v151
  %v184 = vsub.f32 %v55, %v152
  %v185 = vsub.f32 %v56, %v153
  %v186 = vsub.f32 %v57, %v154
  %v187 = vsub.f32 %v58, %v155
  %v188 = vsub.f32 %v59, %v156
  %v189 = vsub.f32 %v60, %v157
  %v190 = vsub.f32 %v61, %v158
  %v191 = vsub.f32 %v62, %v159
  %v192 = vsub.f32 %v63, %v160
  %v193 = vsub.f32 %v64, %v161
  %v194 = vsub.f32 %v65, %v162
  %v195 = vsub.f32 %v66, %v163
  %v196 = vsub.f32 %v67, %v164
  %v197 = vsub.f32 %v68, %v165
  %v198 = vsub.f32 %v69, %v166
  %v199 = vsub.f32 %v70, %v167
  %v200 = vsub.f32 %v71, %v168
  %v201 = vsub.f32 %v72, %v169
  %v202 = vsub.f32 %v73, %v170
  %v203 = vsub.f32 %v74, %v171
  %v204 = vsub.f32 %v75, %v172
  %v205 = vsub.f32 %v76, %v173
  %v206 = vsub.f32 %v77, %v174
  %v207 = vmul.f32 %v175, %v175
  %v208 = vmul.f32 %v176, %v176
  %v209 = vmul.f32 %v177, %v177
  %v210 = vmul.f32 %v178, %v178
  %v211 = vmul.f32 %v179, %v179
  %v212 = vmul.f32 %v180, %v180
  %v213 = vmul.f32 %v181, %v181
  %v214 = vmul.f32 %v182, %v182
  %v215 = vmul.f32 %v183, %v183
  %v216 = vmul.f32 %v184, %v184
  %v217 = vmul.f32 %v185, %v185
  %v218 = vmul.f32 %v186, %v186
  %v219 = vmul.f32 %v187, %v187
  %v220 = vmul.f32 %v188, %v188
  %v221 = vmul.f32 %v189, %v189
  %v222 = vmul.f32 %v190, %v190
  %v223 = vmul.f32 %v191, %v191
  %v224 = vmul.f32 %v192, %v192
  %v225 = vmul.f32 %v193, %v193
  %v226 = vmul.f32 %v194, %v194
  %v227 = vmul.f32 %v195, %v195
  %v228 = vmul.f32 %v196, %v196
  %v229 = vmul.f32 %v197, %v197
  %v230 = vmul.f32 %v198, %v198
  %v231 = vmul.f32 %v199, %v199
  %v232 = vmul.f32 %v200, %v200
  %v233 = vmul.f32 %v201, %v201
  %v234 = vmul.f32 %v202, %v202
  %v235 = vmul.f32 %v203, %v203
  %v236 = vmul.f32 %v204, %v204
  %v237 = vmul.f32 %v205, %v205
  %v238 = vmul.f32 %v206, %v206
  %239 = vadd.xlane.f32.xlu0 %v207
  %v240 = vpop.xlane.xlu0 %239
  %241 = vadd.xlane.f32.xlu0 %v208
  %v242 = vpop.xlane.xlu0 %241
  %243 = vadd.xlane.f32.xlu0 %v209
  %v244 = vpop.xlane.xlu0 %243
  %245 = vadd.xlane.f32.xlu0 %v210
  %v246 = vpop.xlane.xlu0 %245
  %247 = vadd.xlane.f32.xlu0 %v211
  %v248 = vpop.xlane.xlu0 %247
  %249 = vadd.xlane.f32.xlu0 %v212
  %v250 = vpop.xlane.xlu0 %249
  %251 = vadd.xlane.f32.xlu0 %v213
  %v252 = vpop.xlane.xlu0 %251
  %253 = vadd.xlane.f32.xlu0 %v214
  %v254 = vpop.xlane.xlu0 %253
  %255 = vadd.xlane.f32.xlu0 %v215
  %v256 = vpop.xlane.xlu0 %255
  %257 = vadd.xlane.f32.xlu0 %v216
  %v258 = vpop.xlane.xlu0 %257
  %259 = vadd.xlane.f32.xlu0 %v217
  %v260 = vpop.xlane.xlu0 %259
  %261 = vadd.xlane.f32.xlu0 %v218
  %v262 = vpop.xlane.xlu0 %261
  %263 = vadd.xlane.f32.xlu0 %v219
  %v264 = vpop.xlane.xlu0 %263
  %265 = vadd.xlane.f32.xlu0 %v220
  %v266 = vpop.xlane.xlu0 %265
  %267 = vadd.xlane.f32.xlu0 %v221
  %v268 = vpop.xlane.xlu0 %267
  %269 = vadd.xlane.f32.xlu0 %v222
  %v270 = vpop.xlane.xlu0 %269
  %271 = vadd.xlane.f32.xlu0 %v223
  %v272 = vpop.xlane.xlu0 %271
  %273 = vadd.xlane.f32.xlu0 %v224
  %v274 = vpop.xlane.xlu0 %273
  %275 = vadd.xlane.f32.xlu0 %v225
  %v276 = vpop.xlane.xlu0 %275
  %277 = vadd.xlane.f32.xlu0 %v226
  %v278 = vpop.xlane.xlu0 %277
  %279 = vadd.xlane.f32.xlu0 %v227
  %v280 = vpop.xlane.xlu0 %279
  %281 = vadd.xlane.f32.xlu0 %v228
  %v282 = vpop.xlane.xlu0 %281
  %283 = vadd.xlane.f32.xlu0 %v229
  %v284 = vpop.xlane.xlu0 %283
  %285 = vadd.xlane.f32.xlu0 %v230
  %v286 = vpop.xlane.xlu0 %285
  %287 = vadd.xlane.f32.xlu0 %v231
  %v288 = vpop.xlane.xlu0 %287
  %289 = vadd.xlane.f32.xlu0 %v232
  %v290 = vpop.xlane.xlu0 %289
  %291 = vadd.xlane.f32.xlu0 %v233
  %v292 = vpop.xlane.xlu0 %291
  %293 = vadd.xlane.f32.xlu0 %v234
  %v294 = vpop.xlane.xlu0 %293
  %295 = vadd.xlane.f32.xlu0 %v235
  %v296 = vpop.xlane.xlu0 %295
  %297 = vadd.xlane.f32.xlu0 %v236
  %v298 = vpop.xlane.xlu0 %297
  %299 = vadd.xlane.f32.xlu0 %v237
  %v300 = vpop.xlane.xlu0 %299
  %301 = vadd.xlane.f32.xlu0 %v238
  %v302 = vpop.xlane.xlu0 %301
  %v303 = vmul.f32 %v240, %v142
  %v304 = vmul.f32 %v242, %v142
  %v305 = vmul.f32 %v244, %v142
  %v306 = vmul.f32 %v246, %v142
  %v307 = vmul.f32 %v248, %v142
  %v308 = vmul.f32 %v250, %v142
  %v309 = vmul.f32 %v252, %v142
  %v310 = vmul.f32 %v254, %v142
  %v311 = vmul.f32 %v256, %v142
  %v312 = vmul.f32 %v258, %v142
  %v313 = vmul.f32 %v260, %v142
  %v314 = vmul.f32 %v262, %v142
  %v315 = vmul.f32 %v264, %v142
  %v316 = vmul.f32 %v266, %v142
  %v317 = vmul.f32 %v268, %v142
  %v318 = vmul.f32 %v270, %v142
  %v319 = vmul.f32 %v272, %v142
  %v320 = vmul.f32 %v274, %v142
  %v321 = vmul.f32 %v276, %v142
  %v322 = vmul.f32 %v278, %v142
  %v323 = vmul.f32 %v280, %v142
  %v324 = vmul.f32 %v282, %v142
  %v325 = vmul.f32 %v284, %v142
  %v326 = vmul.f32 %v286, %v142
  %v327 = vmul.f32 %v288, %v142
  %v328 = vmul.f32 %v290, %v142
  %v329 = vmul.f32 %v292, %v142
  %v330 = vmul.f32 %v294, %v142
  %v331 = vmul.f32 %v296, %v142
  %v332 = vmul.f32 %v298, %v142
  %v333 = vmul.f32 %v300, %v142
  %v334 = vmul.f32 %v302, %v142
  %v335 = vadd.f32 %v303, 1e-05
  %v336 = vadd.f32 %v304, 1e-05
  %v337 = vadd.f32 %v305, 1e-05
  %v338 = vadd.f32 %v306, 1e-05
  %v339 = vadd.f32 %v307, 1e-05
  %v340 = vadd.f32 %v308, 1e-05
  %v341 = vadd.f32 %v309, 1e-05
  %v342 = vadd.f32 %v310, 1e-05
  %v343 = vadd.f32 %v311, 1e-05
  %v344 = vadd.f32 %v312, 1e-05
  %v345 = vadd.f32 %v313, 1e-05
  %v346 = vadd.f32 %v314, 1e-05
  %v347 = vadd.f32 %v315, 1e-05
  %v348 = vadd.f32 %v316, 1e-05
  %v349 = vadd.f32 %v317, 1e-05
  %v350 = vadd.f32 %v318, 1e-05
  %v351 = vadd.f32 %v319, 1e-05
  %v352 = vadd.f32 %v320, 1e-05
  %v353 = vadd.f32 %v321, 1e-05
  %v354 = vadd.f32 %v322, 1e-05
  %v355 = vadd.f32 %v323, 1e-05
  %v356 = vadd.f32 %v324, 1e-05
  %v357 = vadd.f32 %v325, 1e-05
  %v358 = vadd.f32 %v326, 1e-05
  %v359 = vadd.f32 %v327, 1e-05
  %v360 = vadd.f32 %v328, 1e-05
  %v361 = vadd.f32 %v329, 1e-05
  %v362 = vadd.f32 %v330, 1e-05
  %v363 = vadd.f32 %v331, 1e-05
  %v364 = vadd.f32 %v332, 1e-05
  %v365 = vadd.f32 %v333, 1e-05
  %v366 = vadd.f32 %v334, 1e-05
  %v367 = vrsqrt.pop %v335
  %v368 = vrsqrt.pop %v336
  %v369 = vrsqrt.pop %v337
  %v370 = vrsqrt.pop %v338
  %v371 = vrsqrt.pop %v339
  %v372 = vrsqrt.pop %v340
  %v373 = vrsqrt.pop %v341
  %v374 = vrsqrt.pop %v342
  %v375 = vrsqrt.pop %v343
  %v376 = vrsqrt.pop %v344
  %v377 = vrsqrt.pop %v345
  %v378 = vrsqrt.pop %v346
  %v379 = vrsqrt.pop %v347
  %v380 = vrsqrt.pop %v348
  %v381 = vrsqrt.pop %v349
  %v382 = vrsqrt.pop %v350
  %v383 = vrsqrt.pop %v351
  %v384 = vrsqrt.pop %v352
  %v385 = vrsqrt.pop %v353
  %v386 = vrsqrt.pop %v354
  %v387 = vrsqrt.pop %v355
  %v388 = vrsqrt.pop %v356
  %v389 = vrsqrt.pop %v357
  %v390 = vrsqrt.pop %v358
  %v391 = vrsqrt.pop %v359
  %v392 = vrsqrt.pop %v360
  %v393 = vrsqrt.pop %v361
  %v394 = vrsqrt.pop %v362
  %v395 = vrsqrt.pop %v363
  %v396 = vrsqrt.pop %v364
  %v397 = vrsqrt.pop %v365
  %v398 = vrsqrt.pop %v366
  %v399 = vmul.f32 %v175, %v367
  %v400 = vmul.f32 %v176, %v368
  %v401 = vmul.f32 %v177, %v369
  %v402 = vmul.f32 %v178, %v370
  %v403 = vmul.f32 %v179, %v371
  %v404 = vmul.f32 %v180, %v372
  %v405 = vmul.f32 %v181, %v373
  %v406 = vmul.f32 %v182, %v374
  %v407 = vmul.f32 %v183, %v375
  %v408 = vmul.f32 %v184, %v376
  %v409 = vmul.f32 %v185, %v377
  %v410 = vmul.f32 %v186, %v378
  %v411 = vmul.f32 %v187, %v379
  %v412 = vmul.f32 %v188, %v380
  %v413 = vmul.f32 %v189, %v381
  %v414 = vmul.f32 %v190, %v382
  %v415 = vmul.f32 %v191, %v383
  %v416 = vmul.f32 %v192, %v384
  %v417 = vmul.f32 %v193, %v385
  %v418 = vmul.f32 %v194, %v386
  %v419 = vmul.f32 %v195, %v387
  %v420 = vmul.f32 %v196, %v388
  %v421 = vmul.f32 %v197, %v389
  %v422 = vmul.f32 %v198, %v390
  %v423 = vmul.f32 %v199, %v391
  %v424 = vmul.f32 %v200, %v392
  %v425 = vmul.f32 %v201, %v393
  %v426 = vmul.f32 %v202, %v394
  %v427 = vmul.f32 %v203, %v395
  %v428 = vmul.f32 %v204, %v396
  %v429 = vmul.f32 %v205, %v397
  %v430 = vmul.f32 %v206, %v398
  %v431 = vld [vmem:[%s1] sm:$0x1]
  %v433 = vlaneseq
  %v434 = vshrl.u32 %v433, 7
  %v435 = vsub.s32 0, %v434
  %v436 = vrot.slane %v431, %v435
  %v438 = vmul.f32 %v399, %v436
  %v439 = vmul.f32 %v400, %v436
  %v440 = vmul.f32 %v401, %v436
  %v441 = vmul.f32 %v402, %v436
  %v442 = vmul.f32 %v403, %v436
  %v443 = vmul.f32 %v404, %v436
  %v444 = vmul.f32 %v405, %v436
  %v445 = vmul.f32 %v406, %v436
  %v446 = vmul.f32 %v407, %v436
  %v447 = vmul.f32 %v408, %v436
  %v448 = vmul.f32 %v409, %v436
  %v449 = vmul.f32 %v410, %v436
  %v450 = vmul.f32 %v411, %v436
  %v451 = vmul.f32 %v412, %v436
  %v452 = vmul.f32 %v413, %v436
  %v453 = vmul.f32 %v414, %v436
  %v454 = vmul.f32 %v415, %v436
  %v455 = vmul.f32 %v416, %v436
  %v456 = vmul.f32 %v417, %v436
  %v457 = vmul.f32 %v418, %v436
  %v458 = vmul.f32 %v419, %v436
  %v459 = vmul.f32 %v420, %v436
  %v460 = vmul.f32 %v421, %v436
  %v461 = vmul.f32 %v422, %v436
  %v462 = vmul.f32 %v423, %v436
  %v463 = vmul.f32 %v424, %v436
  %v464 = vmul.f32 %v425, %v436
  %v465 = vmul.f32 %v426, %v436
  %v466 = vmul.f32 %v427, %v436
  %v467 = vmul.f32 %v428, %v436
  %v468 = vmul.f32 %v429, %v436
  %v469 = vmul.f32 %v430, %v436
  %v470 = vld [vmem:[%s2] sm:$0x1]
  %v472 = vlaneseq
  %v473 = vshrl.u32 %v472, 7
  %v474 = vsub.s32 0, %v473
  %v475 = vrot.slane %v470, %v474
  %v477 = vadd.f32 %v438, %v475
  %v478 = vadd.f32 %v439, %v475
  %v479 = vadd.f32 %v440, %v475
  %v480 = vadd.f32 %v441, %v475
  %v481 = vadd.f32 %v442, %v475
  %v482 = vadd.f32 %v443, %v475
  %v483 = vadd.f32 %v444, %v475
  %v484 = vadd.f32 %v445, %v475
  %v485 = vadd.f32 %v446, %v475
  %v486 = vadd.f32 %v447, %v475
  %v487 = vadd.f32 %v448, %v475
  %v488 = vadd.f32 %v449, %v475
  %v489 = vadd.f32 %v450, %v475
  %v490 = vadd.f32 %v451, %v475
  %v491 = vadd.f32 %v452, %v475
  %v492 = vadd.f32 %v453, %v475
  %v493 = vadd.f32 %v454, %v475
  %v494 = vadd.f32 %v455, %v475
  %v495 = vadd.f32 %v456, %v475
  %v496 = vadd.f32 %v457, %v475
  %v497 = vadd.f32 %v458, %v475
  %v498 = vadd.f32 %v459, %v475
  %v499 = vadd.f32 %v460, %v475
  %v500 = vadd.f32 %v461, %v475
  %v501 = vadd.f32 %v462, %v475
  %v502 = vadd.f32 %v463, %v475
  %v503 = vadd.f32 %v464, %v475
  %v504 = vadd.f32 %v465, %v475
  %v505 = vadd.f32 %v466, %v475
  %v506 = vadd.f32 %v467, %v475
  %v507 = vadd.f32 %v468, %v475
  %v508 = vadd.f32 %v469, %v475
  %v509 = vpack.c.bf16 %v478, %v477
  %v510 = vpack.c.bf16 %v480, %v479
  %v511 = vpack.c.bf16 %v482, %v481
  %v512 = vpack.c.bf16 %v484, %v483
  %v513 = vpack.c.bf16 %v486, %v485
  %v514 = vpack.c.bf16 %v488, %v487
  %v515 = vpack.c.bf16 %v490, %v489
  %v516 = vpack.c.bf16 %v492, %v491
  %v517 = vpack.c.bf16 %v494, %v493
  %v518 = vpack.c.bf16 %v496, %v495
  %v519 = vpack.c.bf16 %v498, %v497
  %v520 = vpack.c.bf16 %v500, %v499
  %v521 = vpack.c.bf16 %v502, %v501
  %v522 = vpack.c.bf16 %v504, %v503
  %v523 = vpack.c.bf16 %v506, %v505
  %v524 = vpack.c.bf16 %v508, %v507
  %v541 = vunpack.c.l.b16 %v509
  %v542 = vunpack.c.h.b16 %v509
  %v543 = vunpack.c.l.b16 %v510
  %v544 = vunpack.c.h.b16 %v510
  %v545 = vunpack.c.l.b16 %v511
  %v546 = vunpack.c.h.b16 %v511
  %v547 = vunpack.c.l.b16 %v512
  %v548 = vunpack.c.h.b16 %v512
  %v549 = vunpack.c.l.b16 %v513
  %v550 = vunpack.c.h.b16 %v513
  %v551 = vunpack.c.l.b16 %v514
  %v552 = vunpack.c.h.b16 %v514
  %v553 = vunpack.c.l.b16 %v515
  %v554 = vunpack.c.h.b16 %v515
  %v555 = vunpack.c.l.b16 %v516
  %v556 = vunpack.c.h.b16 %v516
  %v557 = vunpack.c.l.b16 %v517
  %v558 = vunpack.c.h.b16 %v517
  %v559 = vunpack.c.l.b16 %v518
  %v560 = vunpack.c.h.b16 %v518
  %v561 = vunpack.c.l.b16 %v519
  %v562 = vunpack.c.h.b16 %v519
  %v563 = vunpack.c.l.b16 %v520
  %v564 = vunpack.c.h.b16 %v520
  %v565 = vunpack.c.l.b16 %v521
  %v566 = vunpack.c.h.b16 %v521
  %v567 = vunpack.c.l.b16 %v522
  %v568 = vunpack.c.h.b16 %v522
  %v569 = vunpack.c.l.b16 %v523
  %v570 = vunpack.c.h.b16 %v523
  %v571 = vunpack.c.l.b16 %v524
  %v572 = vunpack.c.h.b16 %v524
  %v573 = vpack.c.b16 %v541, %v541
  %v574 = vpack.c.b16 %v542, %v542
  %v575 = vpack.c.b16 %v543, %v543
  %v576 = vpack.c.b16 %v544, %v544
  %v577 = vpack.c.b16 %v545, %v545
  %v578 = vpack.c.b16 %v546, %v546
  %v579 = vpack.c.b16 %v547, %v547
  %v580 = vpack.c.b16 %v548, %v548
  %v581 = vpack.c.b16 %v549, %v549
  %v582 = vpack.c.b16 %v550, %v550
  %v583 = vpack.c.b16 %v551, %v551
  %v584 = vpack.c.b16 %v552, %v552
  %v585 = vpack.c.b16 %v553, %v553
  %v586 = vpack.c.b16 %v554, %v554
  %v587 = vpack.c.b16 %v555, %v555
  %v588 = vpack.c.b16 %v556, %v556
  %v589 = vpack.c.b16 %v557, %v557
  %v590 = vpack.c.b16 %v558, %v558
  %v591 = vpack.c.b16 %v559, %v559
  %v592 = vpack.c.b16 %v560, %v560
  %v593 = vpack.c.b16 %v561, %v561
  %v594 = vpack.c.b16 %v562, %v562
  %v595 = vpack.c.b16 %v563, %v563
  %v596 = vpack.c.b16 %v564, %v564
  %v597 = vpack.c.b16 %v565, %v565
  %v598 = vpack.c.b16 %v566, %v566
  %v599 = vpack.c.b16 %v567, %v567
  %v600 = vpack.c.b16 %v568, %v568
  %v601 = vpack.c.b16 %v569, %v569
  %v602 = vpack.c.b16 %v570, %v570
  %v603 = vpack.c.b16 %v571, %v571
  %v604 = vpack.c.b16 %v572, %v572
  %637 = vst [vmem:[%s3] sm:$0xf] %v573
  %638 = vst [vmem:[%s3 + $0x4] sm:$0xf] %v574
  %639 = vst [vmem:[%s3 + $0x8] sm:$0xf] %v575
  %640 = vst [vmem:[%s3 + $0xc] sm:$0xf] %v576
  %641 = vst [vmem:[%s3 + $0x10] sm:$0xf] %v577
  %642 = vst [vmem:[%s3 + $0x14] sm:$0xf] %v578
  %643 = vst [vmem:[%s3 + $0x18] sm:$0xf] %v579
  %644 = vst [vmem:[%s3 + $0x1c] sm:$0xf] %v580
  %645 = vst [vmem:[%s3 + $0x20] sm:$0xf] %v581
  %646 = vst [vmem:[%s3 + $0x24] sm:$0xf] %v582
  %647 = vst [vmem:[%s3 + $0x28] sm:$0xf] %v583
  %648 = vst [vmem:[%s3 + $0x2c] sm:$0xf] %v584
  %649 = vst [vmem:[%s3 + $0x30] sm:$0xf] %v585
  %650 = vst [vmem:[%s3 + $0x34] sm:$0xf] %v586
  %651 = vst [vmem:[%s3 + $0x38] sm:$0xf] %v587
  %652 = vst [vmem:[%s3 + $0x3c] sm:$0xf] %v588
  %653 = vst [vmem:[%s3 + $0x40] sm:$0xf] %v589
  %654 = vst [vmem:[%s3 + $0x44] sm:$0xf] %v590
  %655 = vst [vmem:[%s3 + $0x48] sm:$0xf] %v591
  %656 = vst [vmem:[%s3 + $0x4c] sm:$0xf] %v592
  %657 = vst [vmem:[%s3 + $0x50] sm:$0xf] %v593
  %658 = vst [vmem:[%s3 + $0x54] sm:$0xf] %v594
  %659 = vst [vmem:[%s3 + $0x58] sm:$0xf] %v595
  %660 = vst [vmem:[%s3 + $0x5c] sm:$0xf] %v596
  %661 = vst [vmem:[%s3 + $0x60] sm:$0xf] %v597
  %662 = vst [vmem:[%s3 + $0x64] sm:$0xf] %v598
  %663 = vst [vmem:[%s3 + $0x68] sm:$0xf] %v599
  %664 = vst [vmem:[%s3 + $0x6c] sm:$0xf] %v600
  %665 = vst [vmem:[%s3 + $0x70] sm:$0xf] %v601
  %666 = vst [vmem:[%s3 + $0x74] sm:$0xf] %v602
  %667 = vst [vmem:[%s3 + $0x78] sm:$0xf] %v603
  %668 = vst [vmem:[%s3 + $0x7c] sm:$0xf] %v604
  // Predicated region
  $region14: #{forward.12} parent=0 // pred_check
    _
  $region15: #{forward.12} parent=0 // pred_check_branch
    %670 = sbr.rel (0) target = $region17
  $region16: #{forward.12} parent=0 // pred_region
    _
  $region17: #{forward.12} parent=0 // pred_fallthru
    _
  // Predicated region
  $region18: #{forward.12} parent=0 // pred_check
    _
  $region19: #{forward.12} parent=0 // pred_check_branch
    %672 = sbr.rel (0) target = $region21
  $region20: #{forward.12} parent=0 // pred_region
    _
  $region21: #{forward.12} parent=0 // pred_fallthru
    _

// kernel: forward.14
$region0: #{forward.14}
  #allocation0 [shape = 'u32[]', space=smem, size = 0x4, offset = 0x4, fixed_abs, tag = 'smem constant byte address 0x4 - core index']
  #allocation1 [shape = 'u32[144,128]{1,0:T(1,128)}', space=vmem, size = 0x12000, scoped, tag = 'internal scratch']
  %s0 = inlined_call_operand.vmem [shape: bf16[2,128,384], index: 0, kind: input, shape index: {}]
  %s1 = inlined_call_operand.vmem [shape: f32[2,1,128], index: 1, kind: input, shape index: {}]
  %s2 = inlined_call_operand.vmem [shape: bf16[2,128,128], index: 2, kind: output, shape index: {}]
  %s3 = sld [smem:[#allocation0]]
  $region41: #{forward.14} parent=0
    _
  %s5 = ssub.s32 1, %s3
  %s6 = scalar_select 0, %s5, %s3
  loop: start=0, step=1, limit=4
  $region2: #{forward.14} parent=0 // loop_pre_header
    _
  $region3: #{forward.14} parent=0 // loop_header
    %s8 = sphi 0, %s12
    %p9 = scmp.ge.s32.totalorder %s8, 4
    %s18 = sphi 0, %s20
    %s21 = sphi 0, %s18
    %s22 = sphi 0, %s21
    %s38 = sphi 0, %s22
    %s44 = sphi 0, %s46
    %s47 = sphi 0, %s44
    %s48 = sphi 0, %s47
    %s64 = sphi 0, %s48
    %s70 = sphi 0, %s72
    %s73 = sphi 0, %s70
    %s74 = sphi 0, %s73
    %s90 = sphi 0, %s74
  $region4: #{forward.14} parent=0 // loop_header_branch
    %11 = sbr.rel (%p9) target = $region8
  $region5: #{forward.14} parent=0 // loop_body
    %s13 = ssub.s32 %s8, 1
    %s14 = ssub.s32 %s8, 2
    %s15 = sadd.s32 %s8, 1
    %s16 = ssub.s32 %s8, %s15
    %p17 = scmp.eq.s32.totalorder %s16, 0
    %s19 = sadd.s32 %s18, 1
    %s20 = scalar_select %p17, %s18, %s19
    %p23 = pneg %p17
    %p24 = scmp.eq.s32.totalorder %s8, 1
    %p25 = por %p23, %p24
    %p26 = scmp.ne.s32.totalorder %s18, %s21
    %p27 = scmp.eq.s32.totalorder %s8, 0
    %p28 = por %p26, %p27
    %p29 = scmp.ne.s32.totalorder %s18, %s21
    %p30 = scmp.eq.s32.totalorder %s13, 1
    %p31 = por %p29, %p30
    %p32 = scmp.ne.s32.totalorder %s21, %s22
    %p33 = scmp.eq.s32.totalorder %s13, 0
    %p34 = por %p32, %p33
    %p35 = scmp.ne.s32.totalorder %s21, %s22
    %p36 = scmp.eq.s32.totalorder %s14, 1
    %p37 = por %p35, %p36
    %p39 = scmp.ne.s32.totalorder %s22, %s38
    %p40 = scmp.eq.s32.totalorder %s14, 0
    %p41 = por %p39, %p40
    %s42 = ssub.s32 %s8, %s15
    %p43 = scmp.eq.s32.totalorder %s42, 0
    %s45 = sadd.s32 %s44, 1
    %s46 = scalar_select %p43, %s44, %s45
    %p49 = pneg %p43
    %p50 = scmp.eq.s32.totalorder %s8, 1
    %p51 = por %p49, %p50
    %p52 = scmp.ne.s32.totalorder %s44, %s47
    %p53 = scmp.eq.s32.totalorder %s8, 0
    %p54 = por %p52, %p53
    %p55 = scmp.ne.s32.totalorder %s44, %s47
    %p56 = scmp.eq.s32.totalorder %s13, 1
    %p57 = por %p55, %p56
    %p58 = scmp.ne.s32.totalorder %s47, %s48
    %p59 = scmp.eq.s32.totalorder %s13, 0
    %p60 = por %p58, %p59
    %p61 = scmp.ne.s32.totalorder %s47, %s48
    %p62 = scmp.eq.s32.totalorder %s14, 1
    %p63 = por %p61, %p62
    %p65 = scmp.ne.s32.totalorder %s48, %s64
    %p66 = scmp.eq.s32.totalorder %s14, 0
    %p67 = por %p65, %p66
    %s68 = ssub.s32 %s8, %s15
    %p69 = scmp.eq.s32.totalorder %s68, 0
    %s71 = sadd.s32 %s70, 1
    %s72 = scalar_select %p69, %s70, %s71
    %p75 = pneg %p69
    %p76 = scmp.eq.s32.totalorder %s8, 1
    %p77 = por %p75, %p76
    %p78 = scmp.ne.s32.totalorder %s70, %s73
    %p79 = scmp.eq.s32.totalorder %s8, 0
    %p80 = por %p78, %p79
    %p81 = scmp.ne.s32.totalorder %s70, %s73
    %p82 = scmp.eq.s32.totalorder %s13, 1
    %p83 = por %p81, %p82
    %p84 = scmp.ne.s32.totalorder %s73, %s74
    %p85 = scmp.eq.s32.totalorder %s13, 0
    %p86 = por %p84, %p85
    %p87 = scmp.ne.s32.totalorder %s73, %s74
    %p88 = scmp.eq.s32.totalorder %s14, 1
    %p89 = por %p87, %p88
    %p91 = scmp.ne.s32.totalorder %s74, %s90
    %p92 = scmp.eq.s32.totalorder %s14, 0
    %p93 = por %p91, %p92
    %p94 = scmp.le.s32.totalorder 1, %s8
    %p95 = scmp.lt.s32.totalorder %s8, 3
    %p96 = pnand %p94, %p95
    %p97 = pneg %p96
    // Predicated region
    $region9: #{forward.14} parent=5 // pred_check
      _
    $region10: #{forward.14} parent=5 // pred_check_branch
      %99 = sbr.rel (%p96) target = $region12
    $region11: #{forward.14} parent=5 // pred_region
      %s100 = ssub.s32 %s8, 1
    $region12: #{forward.14} parent=5 // pred_fallthru
      _
    %p101 = scmp.lt.s32.totalorder %s8, 2
    // Predicated region
    $region13: #{forward.14} parent=5 // pred_check
      %p102 = pneg %p101
    $region14: #{forward.14} parent=5 // pred_check_branch
      %104 = sbr.rel (%p102) target = $region16
    $region15: #{forward.14} parent=5 // pred_region
      // Predicated region
      $region17: #{forward.14} parent=15 // pred_check
        %p105 = pneg %p28
      $region18: #{forward.14} parent=15 // pred_check_branch
        %107 = sbr.rel (%p105) target = $region20
      $region19: #{forward.14} parent=15 // pred_region
        %p108 = scmp.lt.s32.totalorder %s8, 1
        %s109 = scalar_select %p108, %s8, 1
        %s110 = smul.addr %s109, 48
        %s111 = smul.addr %s110, 4
        %s112 = scalar_lea.vmem %s0, %s111
      $region20: #{forward.14} parent=15 // pred_fallthru
        _
      // Predicated region
      $region21: #{forward.14} parent=15 // pred_check
        %p113 = pneg %p54
      $region22: #{forward.14} parent=15 // pred_check_branch
        %115 = sbr.rel (%p113) target = $region24
      $region23: #{forward.14} parent=15 // pred_region
        %p116 = scmp.lt.s32.totalorder %s8, 1
        %s117 = scalar_select %p116, %s8, 1
        %s118 = scalar_lea.vmem %s1, %s117
      $region24: #{forward.14} parent=15 // pred_fallthru
        _
    $region16: #{forward.14} parent=5 // pred_fallthru
      _
    %p119 = scmp.le.s32.totalorder 1, %s8
    %p120 = scmp.lt.s32.totalorder %s8, 3
    %p121 = pnand %p119, %p120
    %p122 = pneg %p121
    // Predicated region
    $region25: #{forward.14} parent=5 // pred_check
      _
    $region26: #{forward.14} parent=5 // pred_check_branch
      %124 = sbr.rel (%p121) target = $region28
    $region27: #{forward.14} parent=5 // pred_region
      %s125 = ssub.s32 %s8, 1
      %p126 = scmp.lt.s32.totalorder %s13, 1
      %s127 = scalar_select %p126, %s13, 1
      %s128 = smul.addr %s127, 48
      %s129 = smul.addr %s128, 4
      %s130 = scalar_lea.vmem %s0, %s129
      %p131 = pneg %p34
      %p132 = pneg %p31
      %p133 = scmp.lt.s32.totalorder %s13, 1
      %s134 = scalar_select %p133, %s13, 1
      %s135 = scalar_lea.vmem %s1, %s134
      %p136 = pneg %p60
      %p137 = pneg %p57
      %p138 = pneg %p86
      %p139 = pneg %p83
      %p140 = scmp.lt.s32.totalorder %s13, 1
      %s141 = scalar_select %p140, %s13, 1
      %s142 = smul.addr %s141, 16
      %s143 = smul.addr %s142, 4
      %s144 = scalar_lea.vmem %s2, %s143
      %p145 = scmp.lt.s32.totalorder %s13, 1
      %s146 = scalar_select %p145, %s13, 1
      %s147 = smul.addr %s146, 48
      %s148 = smul.addr %s147, 4
      %s149 = scalar_lea.vmem %s0, %s148
      %p150 = scmp.lt.s32.totalorder %s13, 1
      %s151 = scalar_select %p150, %s13, 1
      %s152 = scalar_lea.vmem %s1, %s151
      %p153 = scmp.lt.s32.totalorder %s13, 1
      %s154 = scalar_select %p153, %s13, 1
      %s155 = smul.addr %s154, 16
      %s156 = smul.addr %s155, 4
      %s157 = scalar_lea.vmem %s2, %s156
      %v159 = vld [vmem:[%s149] sm:$0xff]
      %v160 = vld [vmem:[%s149 + $0x8] sm:$0xf]
      %v161 = vld [vmem:[%s149 + $0xc] sm:$0xff]
      %v162 = vld [vmem:[%s149 + $0x14] sm:$0xf]
      %v163 = vld [vmem:[%s149 + $0x18] sm:$0xff]
      %v164 = vld [vmem:[%s149 + $0x20] sm:$0xf]
      %v165 = vld [vmem:[%s149 + $0x24] sm:$0xff]
      %v166 = vld [vmem:[%s149 + $0x2c] sm:$0xf]
      %v167 = vld [vmem:[%s149 + $0x30] sm:$0xff]
      %v168 = vld [vmem:[%s149 + $0x38] sm:$0xf]
      %v169 = vld [vmem:[%s149 + $0x3c] sm:$0xff]
      %v170 = vld [vmem:[%s149 + $0x44] sm:$0xf]
      %v171 = vld [vmem:[%s149 + $0x48] sm:$0xff]
      %v172 = vld [vmem:[%s149 + $0x50] sm:$0xf]
      %v173 = vld [vmem:[%s149 + $0x54] sm:$0xff]
      %v174 = vld [vmem:[%s149 + $0x5c] sm:$0xf]
      %v175 = vld [vmem:[%s149 + $0x60] sm:$0xff]
      %v176 = vld [vmem:[%s149 + $0x68] sm:$0xf]
      %v177 = vld [vmem:[%s149 + $0x6c] sm:$0xff]
      %v178 = vld [vmem:[%s149 + $0x74] sm:$0xf]
      %v179 = vld [vmem:[%s149 + $0x78] sm:$0xff]
      %v180 = vld [vmem:[%s149 + $0x80] sm:$0xf]
      %v181 = vld [vmem:[%s149 + $0x84] sm:$0xff]
      %v182 = vld [vmem:[%s149 + $0x8c] sm:$0xf]
      %v183 = vld [vmem:[%s149 + $0x90] sm:$0xff]
      %v184 = vld [vmem:[%s149 + $0x98] sm:$0xf]
      %v185 = vld [vmem:[%s149 + $0x9c] sm:$0xff]
      %v186 = vld [vmem:[%s149 + $0xa4] sm:$0xf]
      %v187 = vld [vmem:[%s149 + $0xa8] sm:$0xff]
      %v188 = vld [vmem:[%s149 + $0xb0] sm:$0xf]
      %v189 = vld [vmem:[%s149 + $0xb4] sm:$0xff]
      %v190 = vld [vmem:[%s149 + $0xbc] sm:$0xf]
      %v191 = vld [vmem:[%s152] sm:$0x1]
      %v193 = vlaneseq
      %v194 = vshrl.u32 %v193, 7
      %v195 = vsub.s32 0, %v194
      %v196 = vrot.slane %v191, %v195
      %v214 = vunpack.c.l.b16 %v159
      %v215 = vunpack.c.l.b16 %v161
      %v216 = vunpack.c.l.b16 %v163
      %v217 = vunpack.c.l.b16 %v165
      %v218 = vunpack.c.l.b16 %v167
      %v219 = vunpack.c.l.b16 %v169
      %v220 = vunpack.c.l.b16 %v171
      %v221 = vunpack.c.l.b16 %v173
      %v222 = vunpack.c.l.b16 %v175
      %v223 = vunpack.c.l.b16 %v177
      %v224 = vunpack.c.l.b16 %v179
      %v225 = vunpack.c.l.b16 %v181
      %v226 = vunpack.c.l.b16 %v183
      %v227 = vunpack.c.l.b16 %v185
      %v228 = vunpack.c.l.b16 %v187
      %v229 = vunpack.c.l.b16 %v189
      %v230 = vpack.c.b16 %v215, %v214
      %v231 = vpack.c.b16 %v217, %v216
      %v232 = vpack.c.b16 %v219, %v218
      %v233 = vpack.c.b16 %v221, %v220
      %v234 = vpack.c.b16 %v223, %v222
      %v235 = vpack.c.b16 %v225, %v224
      %v236 = vpack.c.b16 %v227, %v226
      %v237 = vpack.c.b16 %v229, %v228
      %v238 = vunpack.c.h.b16 %v159
      %v239 = vunpack.c.h.b16 %v161
      %v240 = vunpack.c.h.b16 %v163
      %v241 = vunpack.c.h.b16 %v165
      %v242 = vunpack.c.h.b16 %v167
      %v243 = vunpack.c.h.b16 %v169
      %v244 = vunpack.c.h.b16 %v171
      %v245 = vunpack.c.h.b16 %v173
      %v246 = vunpack.c.h.b16 %v175
      %v247 = vunpack.c.h.b16 %v177
      %v248 = vunpack.c.h.b16 %v179
      %v249 = vunpack.c.h.b16 %v181
      %v250 = vunpack.c.h.b16 %v183
      %v251 = vunpack.c.h.b16 %v185
      %v252 = vunpack.c.h.b16 %v187
      %v253 = vunpack.c.h.b16 %v189
      %v254 = vpack.c.b16 %v239, %v238
      %v255 = vpack.c.b16 %v241, %v240
      %v256 = vpack.c.b16 %v243, %v242
      %v257 = vpack.c.b16 %v245, %v244
      %v258 = vpack.c.b16 %v247, %v246
      %v259 = vpack.c.b16 %v249, %v248
      %v260 = vpack.c.b16 %v251, %v250
      %v261 = vpack.c.b16 %v253, %v252
      %vm262 = vcmask 523264
      %v264 = vsel %vm262, %v230, 0
      %v267 = vsel %vm262, %v231, 0
      %v270 = vsel %vm262, %v232, 0
      %v273 = vsel %vm262, %v233, 0
      %v276 = vsel %vm262, %v234, 0
      %v279 = vsel %vm262, %v235, 0
      %v282 = vsel %vm262, %v236, 0
      %v285 = vsel %vm262, %v237, 0
      %v288 = vsel %vm262, %v254, 0
      %v291 = vsel %vm262, %v255, 0
      %v294 = vsel %vm262, %v256, 0
      %v297 = vsel %vm262, %v257, 0
      %v300 = vsel %vm262, %v258, 0
      %v303 = vsel %vm262, %v259, 0
      %v306 = vsel %vm262, %v260, 0
      %v309 = vsel %vm262, %v261, 0
      %311 = vmatprep.subr.bf16.mxu0 0
      %312 = vmatpush1.bf16.xpose.msra.mxu0 %v288
      %313 = vmatprep.subr.bf16.mxu0 0
      %314 = vmatpush1.bf16.xpose.msra.mxu0 %v291
      %315 = vmatprep.subr.bf16.mxu0 0
      %316 = vmatpush1.bf16.xpose.msra.mxu0 %v294
      %317 = vmatprep.subr.bf16.mxu0 0
      %318 = vmatpush1.bf16.xpose.msra.mxu0 %v297
      %319 = vmatprep.subr.bf16.mxu0 0
      %320 = vmatpush1.bf16.xpose.msra.mxu0 %v300
      %321 = vmatprep.subr.bf16.mxu0 0
      %322 = vmatpush1.bf16.xpose.msra.mxu0 %v303
      %323 = vmatprep.subr.bf16.mxu0 0
      %324 = vmatpush1.bf16.xpose.msra.mxu0 %v306
      %325 = vmatprep.subr.bf16.mxu0 0
      %326 = vmatpush1.bf16.xpose.msra.mxu0 %v309
      %327 = vmatprep.subr.bf16.mxu0 0
      %328 = vmatpush1.bf16.xpose.msra.mxu0 0
      %329 = vmatprep.subr.bf16.mxu0 0
      %330 = vmatpush1.bf16.xpose.msra.mxu0 0
      %331 = vmatprep.subr.bf16.mxu0 0
      %332 = vmatpush1.bf16.xpose.msra.mxu0 0
      %333 = vmatprep.subr.bf16.mxu0 0
      %334 = vmatpush1.bf16.xpose.msra.mxu0 0
      %335 = vmatprep.subr.bf16.mxu0 0
      %336 = vmatpush1.bf16.xpose.msra.mxu0 0
      %337 = vmatprep.subr.bf16.mxu0 0
      %338 = vmatpush1.bf16.xpose.msra.mxu0 0
      %339 = vmatprep.subr.bf16.mxu0 0
      %340 = vmatpush1.bf16.xpose.msra.mxu0 0
      %341 = vmatprep.subr.bf16.mxu0 0
      %342 = vmatpush1.bf16.xpose.msra.mxu0 0
      %343 = vmatprep.mubr.bf16.mxu0 0
      %344 = vmatmul.mubr.bf16.gmra.mrb[0].mxu0 %v264
      %v345 = vpop.f32.mrb[0].mxu0
      %v346 = vadd.f32 %v196, %v345
      %v347 = vpop.f32.mrb[0].mxu0
      %v348 = vpop.f32.mrb[0].mxu0
      %v349 = vadd.f32 %v196, %v348
      %v350 = vpop.f32.mrb[0].mxu0
      %351 = vmatprep.mubr.bf16.mxu0 0
      %352 = vmatmul.mubr.bf16.gmra.mrb[0].mxu0 %v267
      %v353 = vpop.f32.mrb[0].mxu0
      %v354 = vadd.f32 %v196, %v353
      %v355 = vpop.f32.mrb[0].mxu0
      %v356 = vpop.f32.mrb[0].mxu0
      %v357 = vadd.f32 %v196, %v356
      %v358 = vpop.f32.mrb[0].mxu0
      %359 = vmatprep.mubr.bf16.mxu0 0
      %360 = vmatmul.mubr.bf16.gmra.mrb[0].mxu0 %v270
      %v361 = vpop.f32.mrb[0].mxu0
      %v362 = vadd.f32 %v196, %v361
      %v363 = vpop.f32.mrb[0].mxu0
      %v364 = vpop.f32.mrb[0].mxu0
      %v365 = vadd.f32 %v196, %v364
      %v366 = vpop.f32.mrb[0].mxu0
      %367 = vmatprep.mubr.bf16.mxu0 0
      %368 = vmatmul.mubr.bf16.gmra.mrb[0].mxu0 %v273
      %v369 = vpop.f32.mrb[0].mxu0
      %v370 = vadd.f32 %v196, %v369
      %v371 = vpop.f32.mrb[0].mxu0
      %v372 = vpop.f32.mrb[0].mxu0
      %v373 = vadd.f32 %v196, %v372
      %v374 = vpop.f32.mrb[0].mxu0
      %375 = vmatprep.mubr.bf16.mxu0 0
      %376 = vmatmul.mubr.bf16.gmra.mrb[0].mxu0 %v276
      %v377 = vpop.f32.mrb[0].mxu0
      %v378 = vadd.f32 %v196, %v377
      %v379 = vpop.f32.mrb[0].mxu0
      %v380 = vpop.f32.mrb[0].mxu0
      %v381 = vadd.f32 %v196, %v380
      %v382 = vpop.f32.mrb[0].mxu0
      %383 = vmatprep.mubr.bf16.mxu0 0
      %384 = vmatmul.mubr.bf16.gmra.mrb[0].mxu0 %v279
      %v385 = vpop.f32.mrb[0].mxu0
      %v386 = vadd.f32 %v196, %v385
      %v387 = vpop.f32.mrb[0].mxu0
      %v388 = vpop.f32.mrb[0].mxu0
      %v389 = vadd.f32 %v196, %v388
      %v390 = vpop.f32.mrb[0].mxu0
      %391 = vmatprep.mubr.bf16.mxu0 0
      %392 = vmatmul.mubr.bf16.gmra.mrb[0].mxu0 %v282
      %v393 = vpop.f32.mrb[0].mxu0
      %v394 = vadd.f32 %v196, %v393
      %v395 = vpop.f32.mrb[0].mxu0
      %v396 = vpop.f32.mrb[0].mxu0
      %v397 = vadd.f32 %v196, %v396
      %v398 = vpop.f32.mrb[0].mxu0
      %399 = vmatprep.mubr.bf16.mxu0 0
      %400 = vmatmul.mubr.bf16.gmra.mrb[0].mxu0 %v285
      %v401 = vpop.f32.mrb[0].mxu0
      %v402 = vadd.f32 %v196, %v401
      %v403 = vpop.f32.mrb[0].mxu0
      %v404 = vpop.f32.mrb[0].mxu0
      %v405 = vadd.f32 %v196, %v404
      %v406 = vpop.f32.mrb[0].mxu0
      %407 = vdwg.mxu0
      %408 = vmax.xlane.f32.xlu0 %v346
      %v409 = vpop.xlane.xlu0 %408
      %410 = vmax.xlane.f32.xlu0 %v349
      %v411 = vpop.xlane.xlu0 %410
      %412 = vmax.xlane.f32.xlu0 %v354
      %v413 = vpop.xlane.xlu0 %412
      %414 = vmax.xlane.f32.xlu0 %v357
      %v415 = vpop.xlane.xlu0 %414
      %416 = vmax.xlane.f32.xlu0 %v362
      %v417 = vpop.xlane.xlu0 %416
      %418 = vmax.xlane.f32.xlu0 %v365
      %v419 = vpop.xlane.xlu0 %418
      %420 = vmax.xlane.f32.xlu0 %v370
      %v421 = vpop.xlane.xlu0 %420
      %422 = vmax.xlane.f32.xlu0 %v373
      %v423 = vpop.xlane.xlu0 %422
      %424 = vmax.xlane.f32.xlu0 %v378
      %v425 = vpop.xlane.xlu0 %424
      %426 = vmax.xlane.f32.xlu0 %v381
      %v427 = vpop.xlane.xlu0 %426
      %428 = vmax.xlane.f32.xlu0 %v386
      %v429 = vpop.xlane.xlu0 %428
      %430 = vmax.xlane.f32.xlu0 %v389
      %v431 = vpop.xlane.xlu0 %430
      %432 = vmax.xlane.f32.xlu0 %v394
      %v433 = vpop.xlane.xlu0 %432
      %434 = vmax.xlane.f32.xlu0 %v397
      %v435 = vpop.xlane.xlu0 %434
      %436 = vmax.xlane.f32.xlu0 %v402
      %v437 = vpop.xlane.xlu0 %436
      %438 = vmax.xlane.f32.xlu0 %v405
      %v439 = vpop.xlane.xlu0 %438
      %v440 = vsub.f32 %v346, %v409
      %v441 = vsub.f32 %v349, %v411
      %v442 = vsub.f32 %v354, %v413
      %v443 = vsub.f32 %v357, %v415
      %v444 = vsub.f32 %v362, %v417
      %v445 = vsub.f32 %v365, %v419
      %v446 = vsub.f32 %v370, %v421
      %v447 = vsub.f32 %v373, %v423
      %v448 = vsub.f32 %v378, %v425
      %v449 = vsub.f32 %v381, %v427
      %v450 = vsub.f32 %v386, %v429
      %v451 = vsub.f32 %v389, %v431
      %v452 = vsub.f32 %v394, %v433
      %v453 = vsub.f32 %v397, %v435
      %v454 = vsub.f32 %v402, %v437
      %v455 = vsub.f32 %v405, %v439
      %v456 = vmul.f32 %v440, 1.442695
      %v457 = vpow.pop %v456
      %v458 = vmul.f32 %v441, 1.442695
      %v459 = vpow.pop %v458
      %v460 = vmul.f32 %v442, 1.442695
      %v461 = vpow.pop %v460
      %v462 = vmul.f32 %v443, 1.442695
      %v463 = vpow.pop %v462
      %v464 = vmul.f32 %v444, 1.442695
      %v465 = vpow.pop %v464
      %v466 = vmul.f32 %v445, 1.442695
      %v467 = vpow.pop %v466
      %v468 = vmul.f32 %v446, 1.442695
      %v469 = vpow.pop %v468
      %v470 = vmul.f32 %v447, 1.442695
      %v471 = vpow.pop %v470
      %v472 = vmul.f32 %v448, 1.442695
      %v473 = vpow.pop %v472
      %v474 = vmul.f32 %v449, 1.442695
      %v475 = vpow.pop %v474
      %v476 = vmul.f32 %v450, 1.442695
      %v477 = vpow.pop %v476
      %v478 = vmul.f32 %v451, 1.442695
      %v479 = vpow.pop %v478
      %v480 = vmul.f32 %v452, 1.442695
      %v481 = vpow.pop %v480
      %v482 = vmul.f32 %v453, 1.442695
      %v483 = vpow.pop %v482
      %v484 = vmul.f32 %v454, 1.442695
      %v485 = vpow.pop %v484
      %v486 = vmul.f32 %v455, 1.442695
      %v487 = vpow.pop %v486
      %488 = vadd.xlane.f32.xlu0 %v457
      %v489 = vpop.xlane.xlu0 %488
      %490 = vadd.xlane.f32.xlu0 %v459
      %v491 = vpop.xlane.xlu0 %490
      %492 = vadd.xlane.f32.xlu0 %v461
      %v493 = vpop.xlane.xlu0 %492
      %494 = vadd.xlane.f32.xlu0 %v463
      %v495 = vpop.xlane.xlu0 %494
      %496 = vadd.xlane.f32.xlu0 %v465
      %v497 = vpop.xlane.xlu0 %496
      %498 = vadd.xlane.f32.xlu0 %v467
      %v499 = vpop.xlane.xlu0 %498
      %500 = vadd.xlane.f32.xlu0 %v469
      %v501 = vpop.xlane.xlu0 %500
      %502 = vadd.xlane.f32.xlu0 %v471
      %v503 = vpop.xlane.xlu0 %502
      %504 = vadd.xlane.f32.xlu0 %v473
      %v505 = vpop.xlane.xlu0 %504
      %506 = vadd.xlane.f32.xlu0 %v475
      %v507 = vpop.xlane.xlu0 %506
      %508 = vadd.xlane.f32.xlu0 %v477
      %v509 = vpop.xlane.xlu0 %508
      %510 = vadd.xlane.f32.xlu0 %v479
      %v511 = vpop.xlane.xlu0 %510
      %512 = vadd.xlane.f32.xlu0 %v481
      %v513 = vpop.xlane.xlu0 %512
      %514 = vadd.xlane.f32.xlu0 %v483
      %v515 = vpop.xlane.xlu0 %514
      %516 = vadd.xlane.f32.xlu0 %v485
      %v517 = vpop.xlane.xlu0 %516
      %518 = vadd.xlane.f32.xlu0 %v487
      %v519 = vpop.xlane.xlu0 %518
      %v520 = vrcp.pop %v489
      %v521 = vrcp.pop %v491
      %v522 = vrcp.pop %v493
      %v523 = vrcp.pop %v495
      %v524 = vrcp.pop %v497
      %v525 = vrcp.pop %v499
      %v526 = vrcp.pop %v501
      %v527 = vrcp.pop %v503
      %v528 = vrcp.pop %v505
      %v529 = vrcp.pop %v507
      %v530 = vrcp.pop %v509
      %v531 = vrcp.pop %v511
      %v532 = vrcp.pop %v513
      %v533 = vrcp.pop %v515
      %v534 = vrcp.pop %v517
      %v535 = vrcp.pop %v519
      %v536 = vmul.f32 %v457, %v520
      %v537 = vmul.f32 %v459, %v521
      %v538 = vmul.f32 %v461, %v522
      %v539 = vmul.f32 %v463, %v523
      %v540 = vmul.f32 %v465, %v524
      %v541 = vmul.f32 %v467, %v525
      %v542 = vmul.f32 %v469, %v526
      %v543 = vmul.f32 %v471, %v527
      %v544 = vmul.f32 %v473, %v528
      %v545 = vmul.f32 %v475, %v529
      %v546 = vmul.f32 %v477, %v530
      %v547 = vmul.f32 %v479, %v531
      %v548 = vmul.f32 %v481, %v532
      %v549 = vmul.f32 %v483, %v533
      %v550 = vmul.f32 %v485, %v534
      %v551 = vmul.f32 %v487, %v535
      %v552 = vpack.c.bf16 %v537, %v536
      %v553 = vpack.c.bf16 %v539, %v538
      %v554 = vpack.c.bf16 %v541, %v540
      %v555 = vpack.c.bf16 %v543, %v542
      %v556 = vpack.c.bf16 %v545, %v544
      %v557 = vpack.c.bf16 %v547, %v546
      %v558 = vpack.c.bf16 %v549, %v548
      %v559 = vpack.c.bf16 %v551, %v550
      %v576 = vunpack.c.l.b16 %v160
      %v577 = vunpack.c.l.b16 %v162
      %v578 = vunpack.c.l.b16 %v164
      %v579 = vunpack.c.l.b16 %v166
      %v580 = vunpack.c.l.b16 %v168
      %v581 = vunpack.c.l.b16 %v170
      %v582 = vunpack.c.l.b16 %v172
      %v583 = vunpack.c.l.b16 %v174
      %v584 = vunpack.c.l.b16 %v176
      %v585 = vunpack.c.l.b16 %v178
      %v586 = vunpack.c.l.b16 %v180
      %v587 = vunpack.c.l.b16 %v182
      %v588 = vunpack.c.l.b16 %v184
      %v589 = vunpack.c.l.b16 %v186
      %v590 = vunpack.c.l.b16 %v188
      %v591 = vunpack.c.l.b16 %v190
      %v592 = vpack.c.b16 %v577, %v576
      %v593 = vpack.c.b16 %v579, %v578
      %v594 = vpack.c.b16 %v581, %v580
      %v595 = vpack.c.b16 %v583, %v582
      %v596 = vpack.c.b16 %v585, %v584
      %v597 = vpack.c.b16 %v587, %v586
      %v598 = vpack.c.b16 %v589, %v588
      %v599 = vpack.c.b16 %v591, %v590
      %608 = vmatprep.subr.bf16.mxu0 0
      %609 = vmatpush1.bf16.msra.mxu0 %v592
      %610 = vmatprep.subr.bf16.mxu0 0
      %611 = vmatpush1.bf16.msra.mxu0 %v593
      %612 = vmatprep.subr.bf16.mxu0 0
      %613 = vmatpush1.bf16.msra.mxu0 %v594
      %614 = vmatprep.subr.bf16.mxu0 0
      %615 = vmatpush1.bf16.msra.mxu0 %v595
      %616 = vmatprep.subr.bf16.mxu0 0
      %617 = vmatpush1.bf16.msra.mxu0 %v596
      %618 = vmatprep.subr.bf16.mxu0 0
      %619 = vmatpush1.bf16.msra.mxu0 %v597
      %620 = vmatprep.subr.bf16.mxu0 0
      %621 = vmatpush1.bf16.msra.mxu0 %v598
      %622 = vmatprep.subr.bf16.mxu0 0
      %623 = vmatpush1.bf16.msra.mxu0 %v599
      %624 = vmatprep.subr.bf16.mxu0 0
      %625 = vmatpush1.bf16.msra.mxu0 0
      %626 = vmatprep.subr.bf16.mxu0 0
      %627 = vmatpush1.bf16.msra.mxu0 0
      %628 = vmatprep.subr.bf16.mxu0 0
      %629 = vmatpush1.bf16.msra.mxu0 0
      %630 = vmatprep.subr.bf16.mxu0 0
      %631 = vmatpush1.bf16.msra.mxu0 0
      %632 = vmatprep.subr.bf16.mxu0 0
      %633 = vmatpush1.bf16.msra.mxu0 0
      %634 = vmatprep.subr.bf16.mxu0 0
      %635 = vmatpush1.bf16.msra.mxu0 0
      %636 = vmatprep.subr.bf16.mxu0 0
      %637 = vmatpush1.bf16.msra.mxu0 0
      %638 = vmatprep.subr.bf16.mxu0 0
      %639 = vmatpush1.bf16.msra.mxu0 0
      %640 = vmatprep.mubr.bf16.mxu0 0
      %641 = vmatmul.mubr.bf16.gmra.mrb[0].mxu0 %v552
      %v642 = vpop.f32.mrb[0].mxu0
      %v643 = vadd.f32 0.0, %v642
      %v644 = vpop.f32.mrb[0].mxu0
      %v645 = vpop.f32.mrb[0].mxu0
      %v646 = vadd.f32 0.0, %v645
      %v647 = vpop.f32.mrb[0].mxu0
      %648 = vmatprep.mubr.bf16.mxu0 0
      %649 = vmatmul.mubr.bf16.gmra.mrb[0].mxu0 %v553
      %v650 = vpop.f32.mrb[0].mxu0
      %v651 = vadd.f32 0.0, %v650
      %v652 = vpop.f32.mrb[0].mxu0
      %v653 = vpop.f32.mrb[0].mxu0
      %v654 = vadd.f32 0.0, %v653
      %v655 = vpop.f32.mrb[0].mxu0
      %656 = vmatprep.mubr.bf16.mxu0 0
      %657 = vmatmul.mubr.bf16.gmra.mrb[0].mxu0 %v554
      %v658 = vpop.f32.mrb[0].mxu0
      %v659 = vadd.f32 0.0, %v658
      %v660 = vpop.f32.mrb[0].mxu0
      %v661 = vpop.f32.mrb[0].mxu0
      %v662 = vadd.f32 0.0, %v661
      %v663 = vpop.f32.mrb[0].mxu0
      %664 = vmatprep.mubr.bf16.mxu0 0
      %665 = vmatmul.mubr.bf16.gmra.mrb[0].mxu0 %v555
      %v666 = vpop.f32.mrb[0].mxu0
      %v667 = vadd.f32 0.0, %v666
      %v668 = vpop.f32.mrb[0].mxu0
      %v669 = vpop.f32.mrb[0].mxu0
      %v670 = vadd.f32 0.0, %v669
      %v671 = vpop.f32.mrb[0].mxu0
      %672 = vmatprep.mubr.bf16.mxu0 0
      %673 = vmatmul.mubr.bf16.gmra.mrb[0].mxu0 %v556
      %v674 = vpop.f32.mrb[0].mxu0
      %v675 = vadd.f32 0.0, %v674
      %v676 = vpop.f32.mrb[0].mxu0
      %v677 = vpop.f32.mrb[0].mxu0
      %v678 = vadd.f32 0.0, %v677
      %v679 = vpop.f32.mrb[0].mxu0
      %680 = vmatprep.mubr.bf16.mxu0 0
      %681 = vmatmul.mubr.bf16.gmra.mrb[0].mxu0 %v557
      %v682 = vpop.f32.mrb[0].mxu0
      %v683 = vadd.f32 0.0, %v682
      %v684 = vpop.f32.mrb[0].mxu0
      %v685 = vpop.f32.mrb[0].mxu0
      %v686 = vadd.f32 0.0, %v685
      %v687 = vpop.f32.mrb[0].mxu0
      %688 = vmatprep.mubr.bf16.mxu0 0
      %689 = vmatmul.mubr.bf16.gmra.mrb[0].mxu0 %v558
      %v690 = vpop.f32.mrb[0].mxu0
      %v691 = vadd.f32 0.0, %v690
      %v692 = vpop.f32.mrb[0].mxu0
      %v693 = vpop.f32.mrb[0].mxu0
      %v694 = vadd.f32 0.0, %v693
      %v695 = vpop.f32.mrb[0].mxu0
      %696 = vmatprep.mubr.bf16.mxu0 0
      %697 = vmatmul.mubr.bf16.gmra.mrb[0].mxu0 %v559
      %v698 = vpop.f32.mrb[0].mxu0
      %v699 = vadd.f32 0.0, %v698
      %v700 = vpop.f32.mrb[0].mxu0
      %v701 = vpop.f32.mrb[0].mxu0
      %v702 = vadd.f32 0.0, %v701
      %v703 = vpop.f32.mrb[0].mxu0
      %704 = vdwg.mxu0
      %705 = vrot.lane.b32.xlu0 %v230, 64
      %v706 = vpop.permute.xlu0 %705
      %707 = vrot.lane.b32.xlu0 %v231, 64
      %v708 = vpop.permute.xlu0 %707
      %709 = vrot.lane.b32.xlu0 %v232, 64
      %v710 = vpop.permute.xlu0 %709
      %711 = vrot.lane.b32.xlu0 %v233, 64
      %v712 = vpop.permute.xlu0 %711
      %713 = vrot.lane.b32.xlu0 %v234, 64
      %v714 = vpop.permute.xlu0 %713
      %715 = vrot.lane.b32.xlu0 %v235, 64
      %v716 = vpop.permute.xlu0 %715
      %717 = vrot.lane.b32.xlu0 %v236, 64
      %v718 = vpop.permute.xlu0 %717
      %719 = vrot.lane.b32.xlu0 %v237, 64
      %v720 = vpop.permute.xlu0 %719
      %721 = vrot.lane.b32.xlu0 %v254, 64
      %v722 = vpop.permute.xlu0 %721
      %723 = vrot.lane.b32.xlu0 %v255, 64
      %v724 = vpop.permute.xlu0 %723
      %725 = vrot.lane.b32.xlu0 %v256, 64
      %v726 = vpop.permute.xlu0 %725
      %727 = vrot.lane.b32.xlu0 %v257, 64
      %v728 = vpop.permute.xlu0 %727
      %729 = vrot.lane.b32.xlu0 %v258, 64
      %v730 = vpop.permute.xlu0 %729
      %731 = vrot.lane.b32.xlu0 %v259, 64
      %v732 = vpop.permute.xlu0 %731
      %733 = vrot.lane.b32.xlu0 %v260, 64
      %v734 = vpop.permute.xlu0 %733
      %735 = vrot.lane.b32.xlu0 %v261, 64
      %v736 = vpop.permute.xlu0 %735
      %v738 = vsel %vm262, %v706, 0
      %v741 = vsel %vm262, %v708, 0
      %v744 = vsel %vm262, %v710, 0
      %v747 = vsel %vm262, %v712, 0
      %v750 = vsel %vm262, %v714, 0
      %v753 = vsel %vm262, %v716, 0
      %v756 = vsel %vm262, %v718, 0
      %v759 = vsel %vm262, %v720, 0
      %v762 = vsel %vm262, %v722, 0
      %v765 = vsel %vm262, %v724, 0
      %v768 = vsel %vm262, %v726, 0
      %v771 = vsel %vm262, %v728, 0
      %v774 = vsel %vm262, %v730, 0
      %v777 = vsel %vm262, %v732, 0
      %v780 = vsel %vm262, %v734, 0
      %v783 = vsel %vm262, %v736, 0
      %785 = vmatprep.subr.bf16.mxu0 0
      %786 = vmatpush1.bf16.xpose.msra.mxu0 %v762
      %787 = vmatprep.subr.bf16.mxu0 0
      %788 = vmatpush1.bf16.xpose.msra.mxu0 %v765
      %789 = vmatprep.subr.bf16.mxu0 0
      %790 = vmatpush1.bf16.xpose.msra.mxu0 %v768
      %791 = vmatprep.subr.bf16.mxu0 0
      %792 = vmatpush1.bf16.xpose.msra.mxu0 %v771
      %793 = vmatprep.subr.bf16.mxu0 0
      %794 = vmatpush1.bf16.xpose.msra.mxu0 %v774
      %795 = vmatprep.subr.bf16.mxu0 0
      %796 = vmatpush1.bf16.xpose.msra.mxu0 %v777
      %797 = vmatprep.subr.bf16.mxu0 0
      %798 = vmatpush1.bf16.xpose.msra.mxu0 %v780
      %799 = vmatprep.subr.bf16.mxu0 0
      %800 = vmatpush1.bf16.xpose.msra.mxu0 %v783
      %801 = vmatprep.subr.bf16.mxu0 0
      %802 = vmatpush1.bf16.xpose.msra.mxu0 0
      %803 = vmatprep.subr.bf16.mxu0 0
      %804 = vmatpush1.bf16.xpose.msra.mxu0 0
      %805 = vmatprep.subr.bf16.mxu0 0
      %806 = vmatpush1.bf16.xpose.msra.mxu0 0
      %807 = vmatprep.subr.bf16.mxu0 0
      %808 = vmatpush1.bf16.xpose.msra.mxu0 0
      %809 = vmatprep.subr.bf16.mxu0 0
      %810 = vmatpush1.bf16.xpose.msra.mxu0 0
      %811 = vmatprep.subr.bf16.mxu0 0
      %812 = vmatpush1.bf16.xpose.msra.mxu0 0
      %813 = vmatprep.subr.bf16.mxu0 0
      %814 = vmatpush1.bf16.xpose.msra.mxu0 0
      %815 = vmatprep.subr.bf16.mxu0 0
      %816 = vmatpush1.bf16.xpose.msra.mxu0 0
      %817 = vmatprep.mubr.bf16.mxu0 0
      %818 = vmatmul.mubr.bf16.gmra.mrb[0].mxu0 %v738
      %v819 = vpop.f32.mrb[0].mxu0
      %v820 = vadd.f32 %v196, %v819
      %v821 = vpop.f32.mrb[0].mxu0
      %v822 = vpop.f32.mrb[0].mxu0
      %v823 = vadd.f32 %v196, %v822
      %v824 = vpop.f32.mrb[0].mxu0
      %825 = vmatprep.mubr.bf16.mxu0 0
      %826 = vmatmul.mubr.bf16.gmra.mrb[0].mxu0 %v741
      %v827 = vpop.f32.mrb[0].mxu0
      %v828 = vadd.f32 %v196, %v827
      %v829 = vpop.f32.mrb[0].mxu0
      %v830 = vpop.f32.mrb[0].mxu0
      %v831 = vadd.f32 %v196, %v830
      %v832 = vpop.f32.mrb[0].mxu0
      %833 = vmatprep.mubr.bf16.mxu0 0
      %834 = vmatmul.mubr.bf16.gmra.mrb[0].mxu0 %v744
      %v835 = vpop.f32.mrb[0].mxu0
      %v836 = vadd.f32 %v196, %v835
      %v837 = vpop.f32.mrb[0].mxu0
      %v838 = vpop.f32.mrb[0].mxu0
      %v839 = vadd.f32 %v196, %v838
      %v840 = vpop.f32.mrb[0].mxu0
      %841 = vmatprep.mubr.bf16.mxu0 0
      %842 = vmatmul.mubr.bf16.gmra.mrb[0].mxu0 %v747
      %v843 = vpop.f32.mrb[0].mxu0
      %v844 = vadd.f32 %v196, %v843
      %v845 = vpop.f32.mrb[0].mxu0
      %v846 = vpop.f32.mrb[0].mxu0
      %v847 = vadd.f32 %v196, %v846
      %v848 = vpop.f32.mrb[0].mxu0
      %849 = vmatprep.mubr.bf16.mxu0 0
      %850 = vmatmul.mubr.bf16.gmra.mrb[0].mxu0 %v750
      %v851 = vpop.f32.mrb[0].mxu0
      %v852 = vadd.f32 %v196, %v851
      %v853 = vpop.f32.mrb[0].mxu0
      %v854 = vpop.f32.mrb[0].mxu0
      %v855 = vadd.f32 %v196, %v854
      %v856 = vpop.f32.mrb[0].mxu0
      %857 = vmatprep.mubr.bf16.mxu0 0
      %858 = vmatmul.mubr.bf16.gmra.mrb[0].mxu0 %v753
      %v859 = vpop.f32.mrb[0].mxu0
      %v860 = vadd.f32 %v196, %v859
      %v861 = vpop.f32.mrb[0].mxu0
      %v862 = vpop.f32.mrb[0].mxu0
      %v863 = vadd.f32 %v196, %v862
      %v864 = vpop.f32.mrb[0].mxu0
      %865 = vmatprep.mubr.bf16.mxu0 0
      %866 = vmatmul.mubr.bf16.gmra.mrb[0].mxu0 %v756
      %v867 = vpop.f32.mrb[0].mxu0
      %v868 = vadd.f32 %v196, %v867
      %v869 = vpop.f32.mrb[0].mxu0
      %v870 = vpop.f32.mrb[0].mxu0
      %v871 = vadd.f32 %v196, %v870
      %v872 = vpop.f32.mrb[0].mxu0
      %873 = vmatprep.mubr.bf16.mxu0 0
      %874 = vmatmul.mubr.bf16.gmra.mrb[0].mxu0 %v759
      %v875 = vpop.f32.mrb[0].mxu0
      %v876 = vadd.f32 %v196, %v875
      %v877 = vpop.f32.mrb[0].mxu0
      %v878 = vpop.f32.mrb[0].mxu0
      %v879 = vadd.f32 %v196, %v878
      %v880 = vpop.f32.mrb[0].mxu0
      %881 = vdwg.mxu0
      %882 = vmax.xlane.f32.xlu0 %v820
      %v883 = vpop.xlane.xlu0 %882
      %884 = vmax.xlane.f32.xlu0 %v823
      %v885 = vpop.xlane.xlu0 %884
      %886 = vmax.xlane.f32.xlu0 %v828
      %v887 = vpop.xlane.xlu0 %886
      %888 = vmax.xlane.f32.xlu0 %v831
      %v889 = vpop.xlane.xlu0 %888
      %890 = vmax.xlane.f32.xlu0 %v836
      %v891 = vpop.xlane.xlu0 %890
      %892 = vmax.xlane.f32.xlu0 %v839
      %v893 = vpop.xlane.xlu0 %892
      %894 = vmax.xlane.f32.xlu0 %v844
      %v895 = vpop.xlane.xlu0 %894
      %896 = vmax.xlane.f32.xlu0 %v847
      %v897 = vpop.xlane.xlu0 %896
      %898 = vmax.xlane.f32.xlu0 %v852
      %v899 = vpop.xlane.xlu0 %898
      %900 = vmax.xlane.f32.xlu0 %v855
      %v901 = vpop.xlane.xlu0 %900
      %902 = vmax.xlane.f32.xlu0 %v860
      %v903 = vpop.xlane.xlu0 %902
      %904 = vmax.xlane.f32.xlu0 %v863
      %v905 = vpop.xlane.xlu0 %904
      %906 = vmax.xlane.f32.xlu0 %v868
      %v907 = vpop.xlane.xlu0 %906
      %908 = vmax.xlane.f32.xlu0 %v871
      %v909 = vpop.xlane.xlu0 %908
      %910 = vmax.xlane.f32.xlu0 %v876
      %v911 = vpop.xlane.xlu0 %910
      %912 = vmax.xlane.f32.xlu0 %v879
      %v913 = vpop.xlane.xlu0 %912
      %v914 = vsub.f32 %v820, %v883
      %v915 = vsub.f32 %v823, %v885
      %v916 = vsub.f32 %v828, %v887
      %v917 = vsub.f32 %v831, %v889
      %v918 = vsub.f32 %v836, %v891
      %v919 = vsub.f32 %v839, %v893
      %v920 = vsub.f32 %v844, %v895
      %v921 = vsub.f32 %v847, %v897
      %v922 = vsub.f32 %v852, %v899
      %v923 = vsub.f32 %v855, %v901
      %v924 = vsub.f32 %v860, %v903
      %v925 = vsub.f32 %v863, %v905
      %v926 = vsub.f32 %v868, %v907
      %v927 = vsub.f32 %v871, %v909
      %v928 = vsub.f32 %v876, %v911
      %v929 = vsub.f32 %v879, %v913
      %v930 = vmul.f32 %v914, 1.442695
      %v931 = vpow.pop %v930
      %v932 = vmul.f32 %v915, 1.442695
      %v933 = vpow.pop %v932
      %v934 = vmul.f32 %v916, 1.442695
      %v935 = vpow.pop %v934
      %v936 = vmul.f32 %v917, 1.442695
      %v937 = vpow.pop %v936
      %v938 = vmul.f32 %v918, 1.442695
      %v939 = vpow.pop %v938
      %v940 = vmul.f32 %v919, 1.442695
      %v941 = vpow.pop %v940
      %v942 = vmul.f32 %v920, 1.442695
      %v943 = vpow.pop %v942
      %v944 = vmul.f32 %v921, 1.442695
      %v945 = vpow.pop %v944
      %v946 = vmul.f32 %v922, 1.442695
      %v947 = vpow.pop %v946
      %v948 = vmul.f32 %v923, 1.442695
      %v949 = vpow.pop %v948
      %v950 = vmul.f32 %v924, 1.442695
      %v951 = vpow.pop %v950
      %v952 = vmul.f32 %v925, 1.442695
      %v953 = vpow.pop %v952
      %v954 = vmul.f32 %v926, 1.442695
      %v955 = vpow.pop %v954
      %v956 = vmul.f32 %v927, 1.442695
      %v957 = vpow.pop %v956
      %v958 = vmul.f32 %v928, 1.442695
      %v959 = vpow.pop %v958
      %v960 = vmul.f32 %v929, 1.442695
      %v961 = vpow.pop %v960
      %962 = vadd.xlane.f32.xlu0 %v931
      %v963 = vpop.xlane.xlu0 %962
      %964 = vadd.xlane.f32.xlu0 %v933
      %v965 = vpop.xlane.xlu0 %964
      %966 = vadd.xlane.f32.xlu0 %v935
      %v967 = vpop.xlane.xlu0 %966
      %968 = vadd.xlane.f32.xlu0 %v937
      %v969 = vpop.xlane.xlu0 %968
      %970 = vadd.xlane.f32.xlu0 %v939
      %v971 = vpop.xlane.xlu0 %970
      %972 = vadd.xlane.f32.xlu0 %v941
      %v973 = vpop.xlane.xlu0 %972
      %974 = vadd.xlane.f32.xlu0 %v943
      %v975 = vpop.xlane.xlu0 %974
      %976 = vadd.xlane.f32.xlu0 %v945
      %v977 = vpop.xlane.xlu0 %976
      %978 = vadd.xlane.f32.xlu0 %v947
      %v979 = vpop.xlane.xlu0 %978
      %980 = vadd.xlane.f32.xlu0 %v949
      %v981 = vpop.xlane.xlu0 %980
      %982 = vadd.xlane.f32.xlu0 %v951
      %v983 = vpop.xlane.xlu0 %982
      %984 = vadd.xlane.f32.xlu0 %v953
      %v985 = vpop.xlane.xlu0 %984
      %986 = vadd.xlane.f32.xlu0 %v955
      %v987 = vpop.xlane.xlu0 %986
      %988 = vadd.xlane.f32.xlu0 %v957
      %v989 = vpop.xlane.xlu0 %988
      %990 = vadd.xlane.f32.xlu0 %v959
      %v991 = vpop.xlane.xlu0 %990
      %992 = vadd.xlane.f32.xlu0 %v961
      %v993 = vpop.xlane.xlu0 %992
      %v994 = vrcp.pop %v963
      %v995 = vrcp.pop %v965
      %v996 = vrcp.pop %v967
      %v997 = vrcp.pop %v969
      %v998 = vrcp.pop %v971
      %v999 = vrcp.pop %v973
      %v1000 = vrcp.pop %v975
      %v1001 = vrcp.pop %v977
      %v1002 = vrcp.pop %v979
      %v1003 = vrcp.pop %v981
      %v1004 = vrcp.pop %v983
      %v1005 = vrcp.pop %v985
      %v1006 = vrcp.pop %v987
      %v1007 = vrcp.pop %v989
      %v1008 = vrcp.pop %v991
      %v1009 = vrcp.pop %v993
      %v1010 = vmul.f32 %v931, %v994
      %v1011 = vmul.f32 %v933, %v995
      %v1012 = vmul.f32 %v935, %v996
      %v1013 = vmul.f32 %v937, %v997
      %v1014 = vmul.f32 %v939, %v998
      %v1015 = vmul.f32 %v941, %v999
      %v1016 = vmul.f32 %v943, %v1000
      %v1017 = vmul.f32 %v945, %v1001
      %v1018 = vmul.f32 %v947, %v1002
      %v1019 = vmul.f32 %v949, %v1003
      %v1020 = vmul.f32 %v951, %v1004
      %v1021 = vmul.f32 %v953, %v1005
      %v1022 = vmul.f32 %v955, %v1006
      %v1023 = vmul.f32 %v957, %v1007
      %v1024 = vmul.f32 %v959, %v1008
      %v1025 = vmul.f32 %v961, %v1009
      %v1026 = vpack.c.bf16 %v1011, %v1010
      %v1027 = vpack.c.bf16 %v1013, %v1012
      %v1028 = vpack.c.bf16 %v1015, %v1014
      %v1029 = vpack.c.bf16 %v1017, %v1016
      %v1030 = vpack.c.bf16 %v1019, %v1018
      %v1031 = vpack.c.bf16 %v1021, %v1020
      %v1032 = vpack.c.bf16 %v1023, %v1022
      %v1033 = vpack.c.bf16 %v1025, %v1024
      %1034 = vrot.lane.b32.xlu0 %v592, 64
      %v1035 = vpop.permute.xlu0 %1034
      %1036 = vrot.lane.b32.xlu0 %v593, 64
      %v1037 = vpop.permute.xlu0 %1036
      %1038 = vrot.lane.b32.xlu0 %v594, 64
      %v1039 = vpop.permute.xlu0 %1038
      %1040 = vrot.lane.b32.xlu0 %v595, 64
      %v1041 = vpop.permute.xlu0 %1040
      %1042 = vrot.lane.b32.xlu0 %v596, 64
      %v1043 = vpop.permute.xlu0 %1042
      %1044 = vrot.lane.b32.xlu0 %v597, 64
      %v1045 = vpop.permute.xlu0 %1044
      %1046 = vrot.lane.b32.xlu0 %v598, 64
      %v1047 = vpop.permute.xlu0 %1046
      %1048 = vrot.lane.b32.xlu0 %v599, 64
      %v1049 = vpop.permute.xlu0 %1048
      %1058 = vmatprep.subr.bf16.mxu0 0
      %1059 = vmatpush1.bf16.msra.mxu0 %v1035
      %1060 = vmatprep.subr.bf16.mxu0 0
      %1061 = vmatpush1.bf16.msra.mxu0 %v1037
      %1062 = vmatprep.subr.bf16.mxu0 0
      %1063 = vmatpush1.bf16.msra.mxu0 %v1039
      %1064 = vmatprep.subr.bf16.mxu0 0
      %1065 = vmatpush1.bf16.msra.mxu0 %v1041
      %1066 = vmatprep.subr.bf16.mxu0 0
      %1067 = vmatpush1.bf16.msra.mxu0 %v1043
      %1068 = vmatprep.subr.bf16.mxu0 0
      %1069 = vmatpush1.bf16.msra.mxu0 %v1045
      %1070 = vmatprep.subr.bf16.mxu0 0
      %1071 = vmatpush1.bf16.msra.mxu0 %v1047
      %1072 = vmatprep.subr.bf16.mxu0 0
      %1073 = vmatpush1.bf16.msra.mxu0 %v1049
      %1074 = vmatprep.subr.bf16.mxu0 0
      %1075 = vmatpush1.bf16.msra.mxu0 0
      %1076 = vmatprep.subr.bf16.mxu0 0
      %1077 = vmatpush1.bf16.msra.mxu0 0
      %1078 = vmatprep.subr.bf16.mxu0 0
      %1079 = vmatpush1.bf16.msra.mxu0 0
      %1080 = vmatprep.subr.bf16.mxu0 0
      %1081 = vmatpush1.bf16.msra.mxu0 0
      %1082 = vmatprep.subr.bf16.mxu0 0
      %1083 = vmatpush1.bf16.msra.mxu0 0
      %1084 = vmatprep.subr.bf16.mxu0 0
      %1085 = vmatpush1.bf16.msra.mxu0 0
      %1086 = vmatprep.subr.bf16.mxu0 0
      %1087 = vmatpush1.bf16.msra.mxu0 0
      %1088 = vmatprep.subr.bf16.mxu0 0
      %1089 = vmatpush1.bf16.msra.mxu0 0
      %1090 = vmatprep.mubr.bf16.mxu0 0
      %1091 = vmatmul.mubr.bf16.gmra.mrb[0].mxu0 %v1026
      %v1092 = vpop.f32.mrb[0].mxu0
      %v1093 = vadd.f32 0.0, %v1092
      %v1094 = vpop.f32.mrb[0].mxu0
      %v1095 = vpop.f32.mrb[0].mxu0
      %v1096 = vadd.f32 0.0, %v1095
      %v1097 = vpop.f32.mrb[0].mxu0
      %1098 = vmatprep.mubr.bf16.mxu0 0
      %1099 = vmatmul.mubr.bf16.gmra.mrb[0].mxu0 %v1027
      %v1100 = vpop.f32.mrb[0].mxu0
      %v1101 = vadd.f32 0.0, %v1100
      %v1102 = vpop.f32.mrb[0].mxu0
      %v1103 = vpop.f32.mrb[0].mxu0
      %v1104 = vadd.f32 0.0, %v1103
      %v1105 = vpop.f32.mrb[0].mxu0
      %1106 = vmatprep.mubr.bf16.mxu0 0
      %1107 = vmatmul.mubr.bf16.gmra.mrb[0].mxu0 %v1028
      %v1108 = vpop.f32.mrb[0].mxu0
      %v1109 = vadd.f32 0.0, %v1108
      %v1110 = vpop.f32.mrb[0].mxu0
      %v1111 = vpop.f32.mrb[0].mxu0
      %v1112 = vadd.f32 0.0, %v1111
      %v1113 = vpop.f32.mrb[0].mxu0
      %1114 = vmatprep.mubr.bf16.mxu0 0
      %1115 = vmatmul.mubr.bf16.gmra.mrb[0].mxu0 %v1029
      %v1116 = vpop.f32.mrb[0].mxu0
      %v1117 = vadd.f32 0.0, %v1116
      %v1118 = vpop.f32.mrb[0].mxu0
      %v1119 = vpop.f32.mrb[0].mxu0
      %v1120 = vadd.f32 0.0, %v1119
      %v1121 = vpop.f32.mrb[0].mxu0
      %1122 = vmatprep.mubr.bf16.mxu0 0
      %1123 = vmatmul.mubr.bf16.gmra.mrb[0].mxu0 %v1030
      %v1124 = vpop.f32.mrb[0].mxu0
      %v1125 = vadd.f32 0.0, %v1124
      %v1126 = vpop.f32.mrb[0].mxu0
      %v1127 = vpop.f32.mrb[0].mxu0
      %v1128 = vadd.f32 0.0, %v1127
      %v1129 = vpop.f32.mrb[0].mxu0
      %1130 = vmatprep.mubr.bf16.mxu0 0
      %1131 = vmatmul.mubr.bf16.gmra.mrb[0].mxu0 %v1031
      %v1132 = vpop.f32.mrb[0].mxu0
      %v1133 = vadd.f32 0.0, %v1132
      %v1134 = vpop.f32.mrb[0].mxu0
      %v1135 = vpop.f32.mrb[0].mxu0
      %v1136 = vadd.f32 0.0, %v1135
      %v1137 = vpop.f32.mrb[0].mxu0
      %1138 = vmatprep.mubr.bf16.mxu0 0
      %1139 = vmatmul.mubr.bf16.gmra.mrb[0].mxu0 %v1032
      %v1140 = vpop.f32.mrb[0].mxu0
      %v1141 = vadd.f32 0.0, %v1140
      %v1142 = vpop.f32.mrb[0].mxu0
      %v1143 = vpop.f32.mrb[0].mxu0
      %v1144 = vadd.f32 0.0, %v1143
      %v1145 = vpop.f32.mrb[0].mxu0
      %1146 = vmatprep.mubr.bf16.mxu0 0
      %1147 = vmatmul.mubr.bf16.gmra.mrb[0].mxu0 %v1033
      %v1148 = vpop.f32.mrb[0].mxu0
      %v1149 = vadd.f32 0.0, %v1148
      %v1150 = vpop.f32.mrb[0].mxu0
      %v1151 = vpop.f32.mrb[0].mxu0
      %v1152 = vadd.f32 0.0, %v1151
      %v1153 = vpop.f32.mrb[0].mxu0
      %1154 = vdwg.mxu0
      %1171 = vrot.lane.b32.xlu0 %v1093, 64
      %v1172 = vpop.permute.xlu0 %1171
      %1173 = vrot.lane.b32.xlu0 %v1096, 64
      %v1174 = vpop.permute.xlu0 %1173
      %1175 = vrot.lane.b32.xlu0 %v1101, 64
      %v1176 = vpop.permute.xlu0 %1175
      %1177 = vrot.lane.b32.xlu0 %v1104, 64
      %v1178 = vpop.permute.xlu0 %1177
      %1179 = vrot.lane.b32.xlu0 %v1109, 64
      %v1180 = vpop.permute.xlu0 %1179
      %1181 = vrot.lane.b32.xlu0 %v1112, 64
      %v1182 = vpop.permute.xlu0 %1181
      %1183 = vrot.lane.b32.xlu0 %v1117, 64
      %v1184 = vpop.permute.xlu0 %1183
      %1185 = vrot.lane.b32.xlu0 %v1120, 64
      %v1186 = vpop.permute.xlu0 %1185
      %1187 = vrot.lane.b32.xlu0 %v1125, 64
      %v1188 = vpop.permute.xlu0 %1187
      %1189 = vrot.lane.b32.xlu0 %v1128, 64
      %v1190 = vpop.permute.xlu0 %1189
      %1191 = vrot.lane.b32.xlu0 %v1133, 64
      %v1192 = vpop.permute.xlu0 %1191
      %1193 = vrot.lane.b32.xlu0 %v1136, 64
      %v1194 = vpop.permute.xlu0 %1193
      %1195 = vrot.lane.b32.xlu0 %v1141, 64
      %v1196 = vpop.permute.xlu0 %1195
      %1197 = vrot.lane.b32.xlu0 %v1144, 64
      %v1198 = vpop.permute.xlu0 %1197
      %1199 = vrot.lane.b32.xlu0 %v1149, 64
      %v1200 = vpop.permute.xlu0 %1199
      %1201 = vrot.lane.b32.xlu0 %v1152, 64
      %v1202 = vpop.permute.xlu0 %1201
      %v1219 = vsel %vm262, %v643, %v1172
      %v1220 = vsel %vm262, %v646, %v1174
      %v1221 = vsel %vm262, %v651, %v1176
      %v1222 = vsel %vm262, %v654, %v1178
      %v1223 = vsel %vm262, %v659, %v1180
      %v1224 = vsel %vm262, %v662, %v1182
      %v1225 = vsel %vm262, %v667, %v1184
      %v1226 = vsel %vm262, %v670, %v1186
      %v1227 = vsel %vm262, %v675, %v1188
      %v1228 = vsel %vm262, %v678, %v1190
      %v1229 = vsel %vm262, %v683, %v1192
      %v1230 = vsel %vm262, %v686, %v1194
      %v1231 = vsel %vm262, %v691, %v1196
      %v1232 = vsel %vm262, %v694, %v1198
      %v1233 = vsel %vm262, %v699, %v1200
      %v1234 = vsel %vm262, %v702, %v1202
      %v1235 = vpack.c.bf16 %v1220, %v1219
      %v1236 = vpack.c.bf16 %v1222, %v1221
      %v1237 = vpack.c.bf16 %v1224, %v1223
      %v1238 = vpack.c.bf16 %v1226, %v1225
      %v1239 = vpack.c.bf16 %v1228, %v1227
      %v1240 = vpack.c.bf16 %v1230, %v1229
      %v1241 = vpack.c.bf16 %v1232, %v1231
      %v1242 = vpack.c.bf16 %v1234, %v1233
      %v1251 = vunpack.c.l.b16 %v1235
      %v1252 = vunpack.c.h.b16 %v1235
      %v1253 = vunpack.c.l.b16 %v1236
      %v1254 = vunpack.c.h.b16 %v1236
      %v1255 = vunpack.c.l.b16 %v1237
      %v1256 = vunpack.c.h.b16 %v1237
      %v1257 = vunpack.c.l.b16 %v1238
      %v1258 = vunpack.c.h.b16 %v1238
      %v1259 = vunpack.c.l.b16 %v1239
      %v1260 = vunpack.c.h.b16 %v1239
      %v1261 = vunpack.c.l.b16 %v1240
      %v1262 = vunpack.c.h.b16 %v1240
      %v1263 = vunpack.c.l.b16 %v1241
      %v1264 = vunpack.c.h.b16 %v1241
      %v1265 = vunpack.c.l.b16 %v1242
      %v1266 = vunpack.c.h.b16 %v1242
      %v1267 = vpack.c.b16 %v1251, %v1251
      %v1268 = vpack.c.b16 %v1252, %v1252
      %v1269 = vpack.c.b16 %v1253, %v1253
      %v1270 = vpack.c.b16 %v1254, %v1254
      %v1271 = vpack.c.b16 %v1255, %v1255
      %v1272 = vpack.c.b16 %v1256, %v1256
      %v1273 = vpack.c.b16 %v1257, %v1257
      %v1274 = vpack.c.b16 %v1258, %v1258
      %v1275 = vpack.c.b16 %v1259, %v1259
      %v1276 = vpack.c.b16 %v1260, %v1260
      %v1277 = vpack.c.b16 %v1261, %v1261
      %v1278 = vpack.c.b16 %v1262, %v1262
      %v1279 = vpack.c.b16 %v1263, %v1263
      %v1280 = vpack.c.b16 %v1264, %v1264
      %v1281 = vpack.c.b16 %v1265, %v1265
      %v1282 = vpack.c.b16 %v1266, %v1266
      %1299 = vst [vmem:[%s157] sm:$0xf] %v1267
      %1300 = vst [vmem:[%s157 + $0x4] sm:$0xf] %v1268
      %1301 = vst [vmem:[%s157 + $0x8] sm:$0xf] %v1269
      %1302 = vst [vmem:[%s157 + $0xc] sm:$0xf] %v1270
      %1303 = vst [vmem:[%s157 + $0x10] sm:$0xf] %v1271
      %1304 = vst [vmem:[%s157 + $0x14] sm:$0xf] %v1272
      %1305 = vst [vmem:[%s157 + $0x18] sm:$0xf] %v1273
      %1306 = vst [vmem:[%s157 + $0x1c] sm:$0xf] %v1274
      %1307 = vst [vmem:[%s157 + $0x20] sm:$0xf] %v1275
      %1308 = vst [vmem:[%s157 + $0x24] sm:$0xf] %v1276
      %1309 = vst [vmem:[%s157 + $0x28] sm:$0xf] %v1277
      %1310 = vst [vmem:[%s157 + $0x2c] sm:$0xf] %v1278
      %1311 = vst [vmem:[%s157 + $0x30] sm:$0xf] %v1279
      %1312 = vst [vmem:[%s157 + $0x34] sm:$0xf] %v1280
      %1313 = vst [vmem:[%s157 + $0x38] sm:$0xf] %v1281
      %1314 = vst [vmem:[%s157 + $0x3c] sm:$0xf] %v1282
      %p1315 = scmp.lt.s32.totalorder %s13, 1
      %s1316 = scalar_select %p1315, %s13, 1
      %s1317 = smul.addr %s1316, 16
      %s1318 = smul.addr %s1317, 4
      %s1319 = scalar_lea.vmem %s2, %s1318
      // Predicated region
      $region29: #{forward.14} parent=27 // pred_check
        %p1320 = pneg %p83
      $region30: #{forward.14} parent=27 // pred_check_branch
        %1322 = sbr.rel (%p1320) target = $region32
      $region31: #{forward.14} parent=27 // pred_region
        _
      $region32: #{forward.14} parent=27 // pred_fallthru
        _
    $region28: #{forward.14} parent=5 // pred_fallthru
      _
    %p1323 = scmp.le.s32.totalorder 2, %s8
    // Predicated region
    $region33: #{forward.14} parent=5 // pred_check
      %p1324 = pneg %p1323
    $region34: #{forward.14} parent=5 // pred_check_branch
      %1326 = sbr.rel (%p1324) target = $region36
    $region35: #{forward.14} parent=5 // pred_region
      %s1327 = ssub.s32 %s8, 2
      // Predicated region
      $region37: #{forward.14} parent=35 // pred_check
        %p1328 = pneg %p89
      $region38: #{forward.14} parent=35 // pred_check_branch
        %1330 = sbr.rel (%p1328) target = $region40
      $region39: #{forward.14} parent=35 // pred_region
        %p1331 = scmp.lt.s32.totalorder %s14, 1
        %s1332 = scalar_select %p1331, %s14, 1
        %s1333 = smul.addr %s1332, 16
        %s1334 = smul.addr %s1333, 4
        %s1335 = scalar_lea.vmem %s2, %s1334
      $region40: #{forward.14} parent=35 // pred_fallthru
        _
    $region36: #{forward.14} parent=5 // pred_fallthru
      _
  $region6: #{forward.14} parent=0 // loop_footer
    %s12 = sadd.s32 1, %s8
  $region7: #{forward.14} parent=0 // loop_footer_branch
    %7 = sbr.rel target = $region3
  $region8: #{forward.14} parent=0 // loop_exit
    _

// kernel: forward.13
$region0: #{forward.13}
  #allocation0 [shape = 'u32[]', space=smem, size = 0x4, offset = 0x4, fixed_abs, tag = 'smem constant byte address 0x4 - core index']
  #allocation1 [shape = 'u32[144,128]{1,0:T(1,128)}', space=vmem, size = 0x12000, scoped, tag = 'internal scratch']
  #allocation2 [shape = 'f32[256,384]{1,0:T(8,128)}', space=vmem, size = 0x60000, scoped, tag = 'scratch operand']
  %s0 = inlined_call_operand.vmem [shape: bf16[256,128], index: 0, kind: input, shape index: {}]
  %s1 = inlined_call_operand.vmem [shape: bf16[128,384], index: 1, kind: input, shape index: {}]
  %s2 = inlined_call_operand.vmem [shape: f32[1,384], index: 2, kind: input, shape index: {}]
  %s3 = inlined_call_operand.vmem [shape: bf16[256,384], index: 3, kind: output, shape index: {}]
  %s4 = sld [smem:[#allocation0]]
  $region30: #{forward.13} parent=0
    _
  %s6 = ssub.s32 1, %s4
  %s7 = scalar_select 0, %s6, %s4
  // Predicated region
  $region2: #{forward.13} parent=0 // pred_check
    _
  $region3: #{forward.13} parent=0 // pred_check_branch
    %9 = sbr.rel (0) target = $region5
  $region4: #{forward.13} parent=0 // pred_region
    _
  $region5: #{forward.13} parent=0 // pred_fallthru
    _
  // Predicated region
  $region6: #{forward.13} parent=0 // pred_check
    _
  $region7: #{forward.13} parent=0 // pred_check_branch
    %11 = sbr.rel (0) target = $region9
  $region8: #{forward.13} parent=0 // pred_region
    _
  $region9: #{forward.13} parent=0 // pred_fallthru
    _
  // Predicated region
  $region10: #{forward.13} parent=0 // pred_check
    _
  $region11: #{forward.13} parent=0 // pred_check_branch
    %13 = sbr.rel (0) target = $region13
  $region12: #{forward.13} parent=0 // pred_region
    _
  $region13: #{forward.13} parent=0 // pred_fallthru
    _
  %p15 = scmp.eq.s32.totalorder 0, 0
  // Predicated region
  $region14: #{forward.13} parent=0 // pred_check
    %p16 = pneg %p15
  $region15: #{forward.13} parent=0 // pred_check_branch
    %18 = sbr.rel (%p16) target = $region17
  $region16: #{forward.13} parent=0 // pred_region
    %19 = vst [vmem:[#allocation2] sm:$0xff] 0.0
    %20 = vst [vmem:[#allocation2 + $0x8] sm:$0xff] 0.0
    %21 = vst [vmem:[#allocation2 + $0x10] sm:$0xff] 0.0
    %22 = vst [vmem:[#allocation2 + $0x18] sm:$0xff] 0.0
    %23 = vst [vmem:[#allocation2 + $0x20] sm:$0xff] 0.0
    %24 = vst [vmem:[#allocation2 + $0x28] sm:$0xff] 0.0
    %25 = vst [vmem:[#allocation2 + $0x30] sm:$0xff] 0.0
    %26 = vst [vmem:[#allocation2 + $0x38] sm:$0xff] 0.0
    %27 = vst [vmem:[#allocation2 + $0x40] sm:$0xff] 0.0
    %28 = vst [vmem:[#allocation2 + $0x48] sm:$0xff] 0.0
    %29 = vst [vmem:[#allocation2 + $0x50] sm:$0xff] 0.0
    %30 = vst [vmem:[#allocation2 + $0x58] sm:$0xff] 0.0
    %31 = vst [vmem:[#allocation2 + $0x60] sm:$0xff] 0.0
    %32 = vst [vmem:[#allocation2 + $0x68] sm:$0xff] 0.0
    %33 = vst [vmem:[#allocation2 + $0x70] sm:$0xff] 0.0
    %34 = vst [vmem:[#allocation2 + $0x78] sm:$0xff] 0.0
    %35 = vst [vmem:[#allocation2 + $0x80] sm:$0xff] 0.0
    %36 = vst [vmem:[#allocation2 + $0x88] sm:$0xff] 0.0
    %37 = vst [vmem:[#allocation2 + $0x90] sm:$0xff] 0.0
    %38 = vst [vmem:[#allocation2 + $0x98] sm:$0xff] 0.0
    %39 = vst [vmem:[#allocation2 + $0xa0] sm:$0xff] 0.0
    %40 = vst [vmem:[#allocation2 + $0xa8] sm:$0xff] 0.0
    %41 = vst [vmem:[#allocation2 + $0xb0] sm:$0xff] 0.0
    %42 = vst [vmem:[#allocation2 + $0xb8] sm:$0xff] 0.0
    %43 = vst [vmem:[#allocation2 + $0xc0] sm:$0xff] 0.0
    %44 = vst [vmem:[#allocation2 + $0xc8] sm:$0xff] 0.0
    %45 = vst [vmem:[#allocation2 + $0xd0] sm:$0xff] 0.0
    %46 = vst [vmem:[#allocation2 + $0xd8] sm:$0xff] 0.0
    %47 = vst [vmem:[#allocation2 + $0xe0] sm:$0xff] 0.0
    %48 = vst [vmem:[#allocation2 + $0xe8] sm:$0xff] 0.0
    %49 = vst [vmem:[#allocation2 + $0xf0] sm:$0xff] 0.0
    %50 = vst [vmem:[#allocation2 + $0xf8] sm:$0xff] 0.0
    %51 = vst [vmem:[#allocation2 + $0x100] sm:$0xff] 0.0
    %52 = vst [vmem:[#allocation2 + $0x108] sm:$0xff] 0.0
    %53 = vst [vmem:[#allocation2 + $0x110] sm:$0xff] 0.0
    %54 = vst [vmem:[#allocation2 + $0x118] sm:$0xff] 0.0
    %55 = vst [vmem:[#allocation2 + $0x120] sm:$0xff] 0.0
    %56 = vst [vmem:[#allocation2 + $0x128] sm:$0xff] 0.0
    %57 = vst [vmem:[#allocation2 + $0x130] sm:$0xff] 0.0
    %58 = vst [vmem:[#allocation2 + $0x138] sm:$0xff] 0.0
    %59 = vst [vmem:[#allocation2 + $0x140] sm:$0xff] 0.0
    %60 = vst [vmem:[#allocation2 + $0x148] sm:$0xff] 0.0
    %61 = vst [vmem:[#allocation2 + $0x150] sm:$0xff] 0.0
    %62 = vst [vmem:[#allocation2 + $0x158] sm:$0xff] 0.0
    %63 = vst [vmem:[#allocation2 + $0x160] sm:$0xff] 0.0
    %64 = vst [vmem:[#allocation2 + $0x168] sm:$0xff] 0.0
    %65 = vst [vmem:[#allocation2 + $0x170] sm:$0xff] 0.0
    %66 = vst [vmem:[#allocation2 + $0x178] sm:$0xff] 0.0
    %67 = vst [vmem:[#allocation2 + $0x180] sm:$0xff] 0.0
    %68 = vst [vmem:[#allocation2 + $0x188] sm:$0xff] 0.0
    %69 = vst [vmem:[#allocation2 + $0x190] sm:$0xff] 0.0
    %70 = vst [vmem:[#allocation2 + $0x198] sm:$0xff] 0.0
    %71 = vst [vmem:[#allocation2 + $0x1a0] sm:$0xff] 0.0
    %72 = vst [vmem:[#allocation2 + $0x1a8] sm:$0xff] 0.0
    %73 = vst [vmem:[#allocation2 + $0x1b0] sm:$0xff] 0.0
    %74 = vst [vmem:[#allocation2 + $0x1b8] sm:$0xff] 0.0
    %75 = vst [vmem:[#allocation2 + $0x1c0] sm:$0xff] 0.0
    %76 = vst [vmem:[#allocation2 + $0x1c8] sm:$0xff] 0.0
    %77 = vst [vmem:[#allocation2 + $0x1d0] sm:$0xff] 0.0
    %78 = vst [vmem:[#allocation2 + $0x1d8] sm:$0xff] 0.0
    %79 = vst [vmem:[#allocation2 + $0x1e0] sm:$0xff] 0.0
    %80 = vst [vmem:[#allocation2 + $0x1e8] sm:$0xff] 0.0
    %81 = vst [vmem:[#allocation2 + $0x1f0] sm:$0xff] 0.0
    %82 = vst [vmem:[#allocation2 + $0x1f8] sm:$0xff] 0.0
    %83 = vst [vmem:[#allocation2 + $0x200] sm:$0xff] 0.0
    %84 = vst [vmem:[#allocation2 + $0x208] sm:$0xff] 0.0
    %85 = vst [vmem:[#allocation2 + $0x210] sm:$0xff] 0.0
    %86 = vst [vmem:[#allocation2 + $0x218] sm:$0xff] 0.0
    %87 = vst [vmem:[#allocation2 + $0x220] sm:$0xff] 0.0
    %88 = vst [vmem:[#allocation2 + $0x228] sm:$0xff] 0.0
    %89 = vst [vmem:[#allocation2 + $0x230] sm:$0xff] 0.0
    %90 = vst [vmem:[#allocation2 + $0x238] sm:$0xff] 0.0
    %91 = vst [vmem:[#allocation2 + $0x240] sm:$0xff] 0.0
    %92 = vst [vmem:[#allocation2 + $0x248] sm:$0xff] 0.0
    %93 = vst [vmem:[#allocation2 + $0x250] sm:$0xff] 0.0
    %94 = vst [vmem:[#allocation2 + $0x258] sm:$0xff] 0.0
    %95 = vst [vmem:[#allocation2 + $0x260] sm:$0xff] 0.0
    %96 = vst [vmem:[#allocation2 + $0x268] sm:$0xff] 0.0
    %97 = vst [vmem:[#allocation2 + $0x270] sm:$0xff] 0.0
    %98 = vst [vmem:[#allocation2 + $0x278] sm:$0xff] 0.0
    %99 = vst [vmem:[#allocation2 + $0x280] sm:$0xff] 0.0
    %100 = vst [vmem:[#allocation2 + $0x288] sm:$0xff] 0.0
    %101 = vst [vmem:[#allocation2 + $0x290] sm:$0xff] 0.0
    %102 = vst [vmem:[#allocation2 + $0x298] sm:$0xff] 0.0
    %103 = vst [vmem:[#allocation2 + $0x2a0] sm:$0xff] 0.0
    %104 = vst [vmem:[#allocation2 + $0x2a8] sm:$0xff] 0.0
    %105 = vst [vmem:[#allocation2 + $0x2b0] sm:$0xff] 0.0
    %106 = vst [vmem:[#allocation2 + $0x2b8] sm:$0xff] 0.0
    %107 = vst [vmem:[#allocation2 + $0x2c0] sm:$0xff] 0.0
    %108 = vst [vmem:[#allocation2 + $0x2c8] sm:$0xff] 0.0
    %109 = vst [vmem:[#allocation2 + $0x2d0] sm:$0xff] 0.0
    %110 = vst [vmem:[#allocation2 + $0x2d8] sm:$0xff] 0.0
    %111 = vst [vmem:[#allocation2 + $0x2e0] sm:$0xff] 0.0
    %112 = vst [vmem:[#allocation2 + $0x2e8] sm:$0xff] 0.0
    %113 = vst [vmem:[#allocation2 + $0x2f0] sm:$0xff] 0.0
    %114 = vst [vmem:[#allocation2 + $0x2f8] sm:$0xff] 0.0
  $region17: #{forward.13} parent=0 // pred_fallthru
    _
  %v115 = vld [vmem:[#allocation2] sm:$0xff]
  %v116 = vld [vmem:[#allocation2 + $0x8] sm:$0xff]
  %v117 = vld [vmem:[#allocation2 + $0x10] sm:$0xff]
  %v118 = vld [vmem:[#allocation2 + $0x18] sm:$0xff]
  %v119 = vld [vmem:[#allocation2 + $0x20] sm:$0xff]
  %v120 = vld [vmem:[#allocation2 + $0x28] sm:$0xff]
  %v121 = vld [vmem:[#allocation2 + $0x30] sm:$0xff]
  %v122 = vld [vmem:[#allocation2 + $0x38] sm:$0xff]
  %v123 = vld [vmem:[#allocation2 + $0x40] sm:$0xff]
  %v124 = vld [vmem:[#allocation2 + $0x48] sm:$0xff]
  %v125 = vld [vmem:[#allocation2 + $0x50] sm:$0xff]
  %v126 = vld [vmem:[#allocation2 + $0x58] sm:$0xff]
  %v127 = vld [vmem:[#allocation2 + $0x60] sm:$0xff]
  %v128 = vld [vmem:[#allocation2 + $0x68] sm:$0xff]
  %v129 = vld [vmem:[#allocation2 + $0x70] sm:$0xff]
  %v130 = vld [vmem:[#allocation2 + $0x78] sm:$0xff]
  %v131 = vld [vmem:[#allocation2 + $0x80] sm:$0xff]
  %v132 = vld [vmem:[#allocation2 + $0x88] sm:$0xff]
  %v133 = vld [vmem:[#allocation2 + $0x90] sm:$0xff]
  %v134 = vld [vmem:[#allocation2 + $0x98] sm:$0xff]
  %v135 = vld [vmem:[#allocation2 + $0xa0] sm:$0xff]
  %v136 = vld [vmem:[#allocation2 + $0xa8] sm:$0xff]
  %v137 = vld [vmem:[#allocation2 + $0xb0] sm:$0xff]
  %v138 = vld [vmem:[#allocation2 + $0xb8] sm:$0xff]
  %v139 = vld [vmem:[#allocation2 + $0xc0] sm:$0xff]
  %v140 = vld [vmem:[#allocation2 + $0xc8] sm:$0xff]
  %v141 = vld [vmem:[#allocation2 + $0xd0] sm:$0xff]
  %v142 = vld [vmem:[#allocation2 + $0xd8] sm:$0xff]
  %v143 = vld [vmem:[#allocation2 + $0xe0] sm:$0xff]
  %v144 = vld [vmem:[#allocation2 + $0xe8] sm:$0xff]
  %v145 = vld [vmem:[#allocation2 + $0xf0] sm:$0xff]
  %v146 = vld [vmem:[#allocation2 + $0xf8] sm:$0xff]
  %v147 = vld [vmem:[#allocation2 + $0x100] sm:$0xff]
  %v148 = vld [vmem:[#allocation2 + $0x108] sm:$0xff]
  %v149 = vld [vmem:[#allocation2 + $0x110] sm:$0xff]
  %v150 = vld [vmem:[#allocation2 + $0x118] sm:$0xff]
  %v151 = vld [vmem:[#allocation2 + $0x120] sm:$0xff]
  %v152 = vld [vmem:[#allocation2 + $0x128] sm:$0xff]
  %v153 = vld [vmem:[#allocation2 + $0x130] sm:$0xff]
  %v154 = vld [vmem:[#allocation2 + $0x138] sm:$0xff]
  %v155 = vld [vmem:[#allocation2 + $0x140] sm:$0xff]
  %v156 = vld [vmem:[#allocation2 + $0x148] sm:$0xff]
  %v157 = vld [vmem:[#allocation2 + $0x150] sm:$0xff]
  %v158 = vld [vmem:[#allocation2 + $0x158] sm:$0xff]
  %v159 = vld [vmem:[#allocation2 + $0x160] sm:$0xff]
  %v160 = vld [vmem:[#allocation2 + $0x168] sm:$0xff]
  %v161 = vld [vmem:[#allocation2 + $0x170] sm:$0xff]
  %v162 = vld [vmem:[#allocation2 + $0x178] sm:$0xff]
  %v163 = vld [vmem:[#allocation2 + $0x180] sm:$0xff]
  %v164 = vld [vmem:[#allocation2 + $0x188] sm:$0xff]
  %v165 = vld [vmem:[#allocation2 + $0x190] sm:$0xff]
  %v166 = vld [vmem:[#allocation2 + $0x198] sm:$0xff]
  %v167 = vld [vmem:[#allocation2 + $0x1a0] sm:$0xff]
  %v168 = vld [vmem:[#allocation2 + $0x1a8] sm:$0xff]
  %v169 = vld [vmem:[#allocation2 + $0x1b0] sm:$0xff]
  %v170 = vld [vmem:[#allocation2 + $0x1b8] sm:$0xff]
  %v171 = vld [vmem:[#allocation2 + $0x1c0] sm:$0xff]
  %v172 = vld [vmem:[#allocation2 + $0x1c8] sm:$0xff]
  %v173 = vld [vmem:[#allocation2 + $0x1d0] sm:$0xff]
  %v174 = vld [vmem:[#allocation2 + $0x1d8] sm:$0xff]
  %v175 = vld [vmem:[#allocation2 + $0x1e0] sm:$0xff]
  %v176 = vld [vmem:[#allocation2 + $0x1e8] sm:$0xff]
  %v177 = vld [vmem:[#allocation2 + $0x1f0] sm:$0xff]
  %v178 = vld [vmem:[#allocation2 + $0x1f8] sm:$0xff]
  %v179 = vld [vmem:[#allocation2 + $0x200] sm:$0xff]
  %v180 = vld [vmem:[#allocation2 + $0x208] sm:$0xff]
  %v181 = vld [vmem:[#allocation2 + $0x210] sm:$0xff]
  %v182 = vld [vmem:[#allocation2 + $0x218] sm:$0xff]
  %v183 = vld [vmem:[#allocation2 + $0x220] sm:$0xff]
  %v184 = vld [vmem:[#allocation2 + $0x228] sm:$0xff]
  %v185 = vld [vmem:[#allocation2 + $0x230] sm:$0xff]
  %v186 = vld [vmem:[#allocation2 + $0x238] sm:$0xff]
  %v187 = vld [vmem:[#allocation2 + $0x240] sm:$0xff]
  %v188 = vld [vmem:[#allocation2 + $0x248] sm:$0xff]
  %v189 = vld [vmem:[#allocation2 + $0x250] sm:$0xff]
  %v190 = vld [vmem:[#allocation2 + $0x258] sm:$0xff]
  %v191 = vld [vmem:[#allocation2 + $0x260] sm:$0xff]
  %v192 = vld [vmem:[#allocation2 + $0x268] sm:$0xff]
  %v193 = vld [vmem:[#allocation2 + $0x270] sm:$0xff]
  %v194 = vld [vmem:[#allocation2 + $0x278] sm:$0xff]
  %v195 = vld [vmem:[#allocation2 + $0x280] sm:$0xff]
  %v196 = vld [vmem:[#allocation2 + $0x288] sm:$0xff]
  %v197 = vld [vmem:[#allocation2 + $0x290] sm:$0xff]
  %v198 = vld [vmem:[#allocation2 + $0x298] sm:$0xff]
  %v199 = vld [vmem:[#allocation2 + $0x2a0] sm:$0xff]
  %v200 = vld [vmem:[#allocation2 + $0x2a8] sm:$0xff]
  %v201 = vld [vmem:[#allocation2 + $0x2b0] sm:$0xff]
  %v202 = vld [vmem:[#allocation2 + $0x2b8] sm:$0xff]
  %v203 = vld [vmem:[#allocation2 + $0x2c0] sm:$0xff]
  %v204 = vld [vmem:[#allocation2 + $0x2c8] sm:$0xff]
  %v205 = vld [vmem:[#allocation2 + $0x2d0] sm:$0xff]
  %v206 = vld [vmem:[#allocation2 + $0x2d8] sm:$0xff]
  %v207 = vld [vmem:[#allocation2 + $0x2e0] sm:$0xff]
  %v208 = vld [vmem:[#allocation2 + $0x2e8] sm:$0xff]
  %v209 = vld [vmem:[#allocation2 + $0x2f0] sm:$0xff]
  %v210 = vld [vmem:[#allocation2 + $0x2f8] sm:$0xff]
  %v211 = vld [vmem:[%s0] sm:$0xf]
  %v212 = vld [vmem:[%s0 + $0x4] sm:$0xf]
  %v213 = vld [vmem:[%s0 + $0x8] sm:$0xf]
  %v214 = vld [vmem:[%s0 + $0xc] sm:$0xf]
  %v215 = vld [vmem:[%s0 + $0x10] sm:$0xf]
  %v216 = vld [vmem:[%s0 + $0x14] sm:$0xf]
  %v217 = vld [vmem:[%s0 + $0x18] sm:$0xf]
  %v218 = vld [vmem:[%s0 + $0x1c] sm:$0xf]
  %v219 = vld [vmem:[%s0 + $0x20] sm:$0xf]
  %v220 = vld [vmem:[%s0 + $0x24] sm:$0xf]
  %v221 = vld [vmem:[%s0 + $0x28] sm:$0xf]
  %v222 = vld [vmem:[%s0 + $0x2c] sm:$0xf]
  %v223 = vld [vmem:[%s0 + $0x30] sm:$0xf]
  %v224 = vld [vmem:[%s0 + $0x34] sm:$0xf]
  %v225 = vld [vmem:[%s0 + $0x38] sm:$0xf]
  %v226 = vld [vmem:[%s0 + $0x3c] sm:$0xf]
  %v227 = vld [vmem:[%s0 + $0x40] sm:$0xf]
  %v228 = vld [vmem:[%s0 + $0x44] sm:$0xf]
  %v229 = vld [vmem:[%s0 + $0x48] sm:$0xf]
  %v230 = vld [vmem:[%s0 + $0x4c] sm:$0xf]
  %v231 = vld [vmem:[%s0 + $0x50] sm:$0xf]
  %v232 = vld [vmem:[%s0 + $0x54] sm:$0xf]
  %v233 = vld [vmem:[%s0 + $0x58] sm:$0xf]
  %v234 = vld [vmem:[%s0 + $0x5c] sm:$0xf]
  %v235 = vld [vmem:[%s0 + $0x60] sm:$0xf]
  %v236 = vld [vmem:[%s0 + $0x64] sm:$0xf]
  %v237 = vld [vmem:[%s0 + $0x68] sm:$0xf]
  %v238 = vld [vmem:[%s0 + $0x6c] sm:$0xf]
  %v239 = vld [vmem:[%s0 + $0x70] sm:$0xf]
  %v240 = vld [vmem:[%s0 + $0x74] sm:$0xf]
  %v241 = vld [vmem:[%s0 + $0x78] sm:$0xf]
  %v242 = vld [vmem:[%s0 + $0x7c] sm:$0xf]
  %v243 = vld [vmem:[%s1] sm:$0xff]
  %v244 = vld [vmem:[%s1 + $0x8] sm:$0xf]
  %v245 = vld [vmem:[%s1 + $0xc] sm:$0xff]
  %v246 = vld [vmem:[%s1 + $0x14] sm:$0xf]
  %v247 = vld [vmem:[%s1 + $0x18] sm:$0xff]
  %v248 = vld [vmem:[%s1 + $0x20] sm:$0xf]
  %v249 = vld [vmem:[%s1 + $0x24] sm:$0xff]
  %v250 = vld [vmem:[%s1 + $0x2c] sm:$0xf]
  %v251 = vld [vmem:[%s1 + $0x30] sm:$0xff]
  %v252 = vld [vmem:[%s1 + $0x38] sm:$0xf]
  %v253 = vld [vmem:[%s1 + $0x3c] sm:$0xff]
  %v254 = vld [vmem:[%s1 + $0x44] sm:$0xf]
  %v255 = vld [vmem:[%s1 + $0x48] sm:$0xff]
  %v256 = vld [vmem:[%s1 + $0x50] sm:$0xf]
  %v257 = vld [vmem:[%s1 + $0x54] sm:$0xff]
  %v258 = vld [vmem:[%s1 + $0x5c] sm:$0xf]
  %v259 = vld [vmem:[%s1 + $0x60] sm:$0xff]
  %v260 = vld [vmem:[%s1 + $0x68] sm:$0xf]
  %v261 = vld [vmem:[%s1 + $0x6c] sm:$0xff]
  %v262 = vld [vmem:[%s1 + $0x74] sm:$0xf]
  %v263 = vld [vmem:[%s1 + $0x78] sm:$0xff]
  %v264 = vld [vmem:[%s1 + $0x80] sm:$0xf]
  %v265 = vld [vmem:[%s1 + $0x84] sm:$0xff]
  %v266 = vld [vmem:[%s1 + $0x8c] sm:$0xf]
  %v267 = vld [vmem:[%s1 + $0x90] sm:$0xff]
  %v268 = vld [vmem:[%s1 + $0x98] sm:$0xf]
  %v269 = vld [vmem:[%s1 + $0x9c] sm:$0xff]
  %v270 = vld [vmem:[%s1 + $0xa4] sm:$0xf]
  %v271 = vld [vmem:[%s1 + $0xa8] sm:$0xff]
  %v272 = vld [vmem:[%s1 + $0xb0] sm:$0xf]
  %v273 = vld [vmem:[%s1 + $0xb4] sm:$0xff]
  %v274 = vld [vmem:[%s1 + $0xbc] sm:$0xf]
  %v307 = vunpack.c.l.b16 %v211
  %v308 = vunpack.c.l.b16 %v212
  %v309 = vunpack.c.l.b16 %v213
  %v310 = vunpack.c.l.b16 %v214
  %v311 = vunpack.c.l.b16 %v215
  %v312 = vunpack.c.l.b16 %v216
  %v313 = vunpack.c.l.b16 %v217
  %v314 = vunpack.c.l.b16 %v218
  %v315 = vunpack.c.l.b16 %v219
  %v316 = vunpack.c.l.b16 %v220
  %v317 = vunpack.c.l.b16 %v221
  %v318 = vunpack.c.l.b16 %v222
  %v319 = vunpack.c.l.b16 %v223
  %v320 = vunpack.c.l.b16 %v224
  %v321 = vunpack.c.l.b16 %v225
  %v322 = vunpack.c.l.b16 %v226
  %v323 = vunpack.c.l.b16 %v227
  %v324 = vunpack.c.l.b16 %v228
  %v325 = vunpack.c.l.b16 %v229
  %v326 = vunpack.c.l.b16 %v230
  %v327 = vunpack.c.l.b16 %v231
  %v328 = vunpack.c.l.b16 %v232
  %v329 = vunpack.c.l.b16 %v233
  %v330 = vunpack.c.l.b16 %v234
  %v331 = vunpack.c.l.b16 %v235
  %v332 = vunpack.c.l.b16 %v236
  %v333 = vunpack.c.l.b16 %v237
  %v334 = vunpack.c.l.b16 %v238
  %v335 = vunpack.c.l.b16 %v239
  %v336 = vunpack.c.l.b16 %v240
  %v337 = vunpack.c.l.b16 %v241
  %v338 = vunpack.c.l.b16 %v242
  %v339 = vpack.c.b16 %v308, %v307
  %v340 = vpack.c.b16 %v310, %v309
  %v341 = vpack.c.b16 %v312, %v311
  %v342 = vpack.c.b16 %v314, %v313
  %v343 = vpack.c.b16 %v316, %v315
  %v344 = vpack.c.b16 %v318, %v317
  %v345 = vpack.c.b16 %v320, %v319
  %v346 = vpack.c.b16 %v322, %v321
  %v347 = vpack.c.b16 %v324, %v323
  %v348 = vpack.c.b16 %v326, %v325
  %v349 = vpack.c.b16 %v328, %v327
  %v350 = vpack.c.b16 %v330, %v329
  %v351 = vpack.c.b16 %v332, %v331
  %v352 = vpack.c.b16 %v334, %v333
  %v353 = vpack.c.b16 %v336, %v335
  %v354 = vpack.c.b16 %v338, %v337
  %v403 = vunpack.c.l.b16 %v243
  %v404 = vunpack.c.h.b16 %v243
  %v405 = vunpack.c.l.b16 %v244
  %v406 = vunpack.c.l.b16 %v245
  %v407 = vunpack.c.h.b16 %v245
  %v408 = vunpack.c.l.b16 %v246
  %v409 = vunpack.c.l.b16 %v247
  %v410 = vunpack.c.h.b16 %v247
  %v411 = vunpack.c.l.b16 %v248
  %v412 = vunpack.c.l.b16 %v249
  %v413 = vunpack.c.h.b16 %v249
  %v414 = vunpack.c.l.b16 %v250
  %v415 = vunpack.c.l.b16 %v251
  %v416 = vunpack.c.h.b16 %v251
  %v417 = vunpack.c.l.b16 %v252
  %v418 = vunpack.c.l.b16 %v253
  %v419 = vunpack.c.h.b16 %v253
  %v420 = vunpack.c.l.b16 %v254
  %v421 = vunpack.c.l.b16 %v255
  %v422 = vunpack.c.h.b16 %v255
  %v423 = vunpack.c.l.b16 %v256
  %v424 = vunpack.c.l.b16 %v257
  %v425 = vunpack.c.h.b16 %v257
  %v426 = vunpack.c.l.b16 %v258
  %v427 = vunpack.c.l.b16 %v259
  %v428 = vunpack.c.h.b16 %v259
  %v429 = vunpack.c.l.b16 %v260
  %v430 = vunpack.c.l.b16 %v261
  %v431 = vunpack.c.h.b16 %v261
  %v432 = vunpack.c.l.b16 %v262
  %v433 = vunpack.c.l.b16 %v263
  %v434 = vunpack.c.h.b16 %v263
  %v435 = vunpack.c.l.b16 %v264
  %v436 = vunpack.c.l.b16 %v265
  %v437 = vunpack.c.h.b16 %v265
  %v438 = vunpack.c.l.b16 %v266
  %v439 = vunpack.c.l.b16 %v267
  %v440 = vunpack.c.h.b16 %v267
  %v441 = vunpack.c.l.b16 %v268
  %v442 = vunpack.c.l.b16 %v269
  %v443 = vunpack.c.h.b16 %v269
  %v444 = vunpack.c.l.b16 %v270
  %v445 = vunpack.c.l.b16 %v271
  %v446 = vunpack.c.h.b16 %v271
  %v447 = vunpack.c.l.b16 %v272
  %v448 = vunpack.c.l.b16 %v273
  %v449 = vunpack.c.h.b16 %v273
  %v450 = vunpack.c.l.b16 %v274
  %v451 = vpack.c.b16 %v406, %v403
  %v452 = vpack.c.b16 %v407, %v404
  %v453 = vpack.c.b16 %v408, %v405
  %v454 = vpack.c.b16 %v412, %v409
  %v455 = vpack.c.b16 %v413, %v410
  %v456 = vpack.c.b16 %v414, %v411
  %v457 = vpack.c.b16 %v418, %v415
  %v458 = vpack.c.b16 %v419, %v416
  %v459 = vpack.c.b16 %v420, %v417
  %v460 = vpack.c.b16 %v424, %v421
  %v461 = vpack.c.b16 %v425, %v422
  %v462 = vpack.c.b16 %v426, %v423
  %v463 = vpack.c.b16 %v430, %v427
  %v464 = vpack.c.b16 %v431, %v428
  %v465 = vpack.c.b16 %v432, %v429
  %v466 = vpack.c.b16 %v436, %v433
  %v467 = vpack.c.b16 %v437, %v434
  %v468 = vpack.c.b16 %v438, %v435
  %v469 = vpack.c.b16 %v442, %v439
  %v470 = vpack.c.b16 %v443, %v440
  %v471 = vpack.c.b16 %v444, %v441
  %v472 = vpack.c.b16 %v448, %v445
  %v473 = vpack.c.b16 %v449, %v446
  %v474 = vpack.c.b16 %v450, %v447
  %499 = vmatprep.subr.bf16.mxu0 %v452
  %500 = vmatpush1.bf16.msra.mxu0 %v451
  %501 = vmatprep.subr.bf16.mxu0 %v455
  %502 = vmatpush1.bf16.msra.mxu0 %v454
  %503 = vmatprep.subr.bf16.mxu0 %v458
  %504 = vmatpush1.bf16.msra.mxu0 %v457
  %505 = vmatprep.subr.bf16.mxu0 %v461
  %506 = vmatpush1.bf16.msra.mxu0 %v460
  %507 = vmatprep.subr.bf16.mxu0 %v464
  %508 = vmatpush1.bf16.msra.mxu0 %v463
  %509 = vmatprep.subr.bf16.mxu0 %v467
  %510 = vmatpush1.bf16.msra.mxu0 %v466
  %511 = vmatprep.subr.bf16.mxu0 %v470
  %512 = vmatpush1.bf16.msra.mxu0 %v469
  %513 = vmatprep.subr.bf16.mxu0 %v473
  %514 = vmatpush1.bf16.msra.mxu0 %v472
  %515 = vmatprep.subr.bf16.mxu0 0
  %516 = vmatpush1.bf16.msra.mxu0 0
  %517 = vmatprep.subr.bf16.mxu0 0
  %518 = vmatpush1.bf16.msra.mxu0 0
  %519 = vmatprep.subr.bf16.mxu0 0
  %520 = vmatpush1.bf16.msra.mxu0 0
  %521 = vmatprep.subr.bf16.mxu0 0
  %522 = vmatpush1.bf16.msra.mxu0 0
  %523 = vmatprep.subr.bf16.mxu0 0
  %524 = vmatpush1.bf16.msra.mxu0 0
  %525 = vmatprep.subr.bf16.mxu0 0
  %526 = vmatpush1.bf16.msra.mxu0 0
  %527 = vmatprep.subr.bf16.mxu0 0
  %528 = vmatpush1.bf16.msra.mxu0 0
  %529 = vmatprep.subr.bf16.mxu0 0
  %530 = vmatpush1.bf16.msra.mxu0 0
  %531 = vmatprep.mubr.bf16.mxu0 0
  %532 = vmatmul.mubr.bf16.gmra.mrb[0].mxu0 %v339
  %v533 = vpop.f32.mrb[0].mxu0
  %v534 = vadd.f32 0.0, %v533
  %v535 = vpop.f32.mrb[0].mxu0
  %v536 = vadd.f32 0.0, %v535
  %v537 = vpop.f32.mrb[0].mxu0
  %v538 = vadd.f32 0.0, %v537
  %v539 = vpop.f32.mrb[0].mxu0
  %v540 = vadd.f32 0.0, %v539
  %541 = vmatprep.mubr.bf16.mxu0 0
  %542 = vmatmul.mubr.bf16.gmra.mrb[0].mxu0 %v340
  %v543 = vpop.f32.mrb[0].mxu0
  %v544 = vadd.f32 0.0, %v543
  %v545 = vpop.f32.mrb[0].mxu0
  %v546 = vadd.f32 0.0, %v545
  %v547 = vpop.f32.mrb[0].mxu0
  %v548 = vadd.f32 0.0, %v547
  %v549 = vpop.f32.mrb[0].mxu0
  %v550 = vadd.f32 0.0, %v549
  %551 = vmatprep.mubr.bf16.mxu0 0
  %552 = vmatmul.mubr.bf16.gmra.mrb[0].mxu0 %v341
  %v553 = vpop.f32.mrb[0].mxu0
  %v554 = vadd.f32 0.0, %v553
  %v555 = vpop.f32.mrb[0].mxu0
  %v556 = vadd.f32 0.0, %v555
  %v557 = vpop.f32.mrb[0].mxu0
  %v558 = vadd.f32 0.0, %v557
  %v559 = vpop.f32.mrb[0].mxu0
  %v560 = vadd.f32 0.0, %v559
  %561 = vmatprep.mubr.bf16.mxu0 0
  %562 = vmatmul.mubr.bf16.gmra.mrb[0].mxu0 %v342
  %v563 = vpop.f32.mrb[0].mxu0
  %v564 = vadd.f32 0.0, %v563
  %v565 = vpop.f32.mrb[0].mxu0
  %v566 = vadd.f32 0.0, %v565
  %v567 = vpop.f32.mrb[0].mxu0
  %v568 = vadd.f32 0.0, %v567
  %v569 = vpop.f32.mrb[0].mxu0
  %v570 = vadd.f32 0.0, %v569
  %571 = vmatprep.mubr.bf16.mxu0 0
  %572 = vmatmul.mubr.bf16.gmra.mrb[0].mxu0 %v343
  %v573 = vpop.f32.mrb[0].mxu0
  %v574 = vadd.f32 0.0, %v573
  %v575 = vpop.f32.mrb[0].mxu0
  %v576 = vadd.f32 0.0, %v575
  %v577 = vpop.f32.mrb[0].mxu0
  %v578 = vadd.f32 0.0, %v577
  %v579 = vpop.f32.mrb[0].mxu0
  %v580 = vadd.f32 0.0, %v579
  %581 = vmatprep.mubr.bf16.mxu0 0
  %582 = vmatmul.mubr.bf16.gmra.mrb[0].mxu0 %v344
  %v583 = vpop.f32.mrb[0].mxu0
  %v584 = vadd.f32 0.0, %v583
  %v585 = vpop.f32.mrb[0].mxu0
  %v586 = vadd.f32 0.0, %v585
  %v587 = vpop.f32.mrb[0].mxu0
  %v588 = vadd.f32 0.0, %v587
  %v589 = vpop.f32.mrb[0].mxu0
  %v590 = vadd.f32 0.0, %v589
  %591 = vmatprep.mubr.bf16.mxu0 0
  %592 = vmatmul.mubr.bf16.gmra.mrb[0].mxu0 %v345
  %v593 = vpop.f32.mrb[0].mxu0
  %v594 = vadd.f32 0.0, %v593
  %v595 = vpop.f32.mrb[0].mxu0
  %v596 = vadd.f32 0.0, %v595
  %v597 = vpop.f32.mrb[0].mxu0
  %v598 = vadd.f32 0.0, %v597
  %v599 = vpop.f32.mrb[0].mxu0
  %v600 = vadd.f32 0.0, %v599
  %601 = vmatprep.mubr.bf16.mxu0 0
  %602 = vmatmul.mubr.bf16.gmra.mrb[0].mxu0 %v346
  %v603 = vpop.f32.mrb[0].mxu0
  %v604 = vadd.f32 0.0, %v603
  %v605 = vpop.f32.mrb[0].mxu0
  %v606 = vadd.f32 0.0, %v605
  %v607 = vpop.f32.mrb[0].mxu0
  %v608 = vadd.f32 0.0, %v607
  %v609 = vpop.f32.mrb[0].mxu0
  %v610 = vadd.f32 0.0, %v609
  %611 = vmatprep.mubr.bf16.mxu0 0
  %612 = vmatmul.mubr.bf16.gmra.mrb[0].mxu0 %v347
  %v613 = vpop.f32.mrb[0].mxu0
  %v614 = vadd.f32 0.0, %v613
  %v615 = vpop.f32.mrb[0].mxu0
  %v616 = vadd.f32 0.0, %v615
  %v617 = vpop.f32.mrb[0].mxu0
  %v618 = vadd.f32 0.0, %v617
  %v619 = vpop.f32.mrb[0].mxu0
  %v620 = vadd.f32 0.0, %v619
  %621 = vmatprep.mubr.bf16.mxu0 0
  %622 = vmatmul.mubr.bf16.gmra.mrb[0].mxu0 %v348
  %v623 = vpop.f32.mrb[0].mxu0
  %v624 = vadd.f32 0.0, %v623
  %v625 = vpop.f32.mrb[0].mxu0
  %v626 = vadd.f32 0.0, %v625
  %v627 = vpop.f32.mrb[0].mxu0
  %v628 = vadd.f32 0.0, %v627
  %v629 = vpop.f32.mrb[0].mxu0
  %v630 = vadd.f32 0.0, %v629
  %631 = vmatprep.mubr.bf16.mxu0 0
  %632 = vmatmul.mubr.bf16.gmra.mrb[0].mxu0 %v349
  %v633 = vpop.f32.mrb[0].mxu0
  %v634 = vadd.f32 0.0, %v633
  %v635 = vpop.f32.mrb[0].mxu0
  %v636 = vadd.f32 0.0, %v635
  %v637 = vpop.f32.mrb[0].mxu0
  %v638 = vadd.f32 0.0, %v637
  %v639 = vpop.f32.mrb[0].mxu0
  %v640 = vadd.f32 0.0, %v639
  %641 = vmatprep.mubr.bf16.mxu0 0
  %642 = vmatmul.mubr.bf16.gmra.mrb[0].mxu0 %v350
  %v643 = vpop.f32.mrb[0].mxu0
  %v644 = vadd.f32 0.0, %v643
  %v645 = vpop.f32.mrb[0].mxu0
  %v646 = vadd.f32 0.0, %v645
  %v647 = vpop.f32.mrb[0].mxu0
  %v648 = vadd.f32 0.0, %v647
  %v649 = vpop.f32.mrb[0].mxu0
  %v650 = vadd.f32 0.0, %v649
  %651 = vmatprep.mubr.bf16.mxu0 0
  %652 = vmatmul.mubr.bf16.gmra.mrb[0].mxu0 %v351
  %v653 = vpop.f32.mrb[0].mxu0
  %v654 = vadd.f32 0.0, %v653
  %v655 = vpop.f32.mrb[0].mxu0
  %v656 = vadd.f32 0.0, %v655
  %v657 = vpop.f32.mrb[0].mxu0
  %v658 = vadd.f32 0.0, %v657
  %v659 = vpop.f32.mrb[0].mxu0
  %v660 = vadd.f32 0.0, %v659
  %661 = vmatprep.mubr.bf16.mxu0 0
  %662 = vmatmul.mubr.bf16.gmra.mrb[0].mxu0 %v352
  %v663 = vpop.f32.mrb[0].mxu0
  %v664 = vadd.f32 0.0, %v663
  %v665 = vpop.f32.mrb[0].mxu0
  %v666 = vadd.f32 0.0, %v665
  %v667 = vpop.f32.mrb[0].mxu0
  %v668 = vadd.f32 0.0, %v667
  %v669 = vpop.f32.mrb[0].mxu0
  %v670 = vadd.f32 0.0, %v669
  %671 = vmatprep.mubr.bf16.mxu0 0
  %672 = vmatmul.mubr.bf16.gmra.mrb[0].mxu0 %v353
  %v673 = vpop.f32.mrb[0].mxu0
  %v674 = vadd.f32 0.0, %v673
  %v675 = vpop.f32.mrb[0].mxu0
  %v676 = vadd.f32 0.0, %v675
  %v677 = vpop.f32.mrb[0].mxu0
  %v678 = vadd.f32 0.0, %v677
  %v679 = vpop.f32.mrb[0].mxu0
  %v680 = vadd.f32 0.0, %v679
  %681 = vmatprep.mubr.bf16.mxu0 0
  %682 = vmatmul.mubr.bf16.gmra.mrb[0].mxu0 %v354
  %v683 = vpop.f32.mrb[0].mxu0
  %v684 = vadd.f32 0.0, %v683
  %v685 = vpop.f32.mrb[0].mxu0
  %v686 = vadd.f32 0.0, %v685
  %v687 = vpop.f32.mrb[0].mxu0
  %v688 = vadd.f32 0.0, %v687
  %v689 = vpop.f32.mrb[0].mxu0
  %v690 = vadd.f32 0.0, %v689
  %691 = vdwg.mxu0
  %692 = vmatprep.subr.bf16.mxu0 0
  %693 = vmatpush1.bf16.msra.mxu0 %v453
  %694 = vmatprep.subr.bf16.mxu0 0
  %695 = vmatpush1.bf16.msra.mxu0 %v456
  %696 = vmatprep.subr.bf16.mxu0 0
  %697 = vmatpush1.bf16.msra.mxu0 %v459
  %698 = vmatprep.subr.bf16.mxu0 0
  %699 = vmatpush1.bf16.msra.mxu0 %v462
  %700 = vmatprep.subr.bf16.mxu0 0
  %701 = vmatpush1.bf16.msra.mxu0 %v465
  %702 = vmatprep.subr.bf16.mxu0 0
  %703 = vmatpush1.bf16.msra.mxu0 %v468
  %704 = vmatprep.subr.bf16.mxu0 0
  %705 = vmatpush1.bf16.msra.mxu0 %v471
  %706 = vmatprep.subr.bf16.mxu0 0
  %707 = vmatpush1.bf16.msra.mxu0 %v474
  %708 = vmatprep.subr.bf16.mxu0 0
  %709 = vmatpush1.bf16.msra.mxu0 0
  %710 = vmatprep.subr.bf16.mxu0 0
  %711 = vmatpush1.bf16.msra.mxu0 0
  %712 = vmatprep.subr.bf16.mxu0 0
  %713 = vmatpush1.bf16.msra.mxu0 0
  %714 = vmatprep.subr.bf16.mxu0 0
  %715 = vmatpush1.bf16.msra.mxu0 0
  %716 = vmatprep.subr.bf16.mxu0 0
  %717 = vmatpush1.bf16.msra.mxu0 0
  %718 = vmatprep.subr.bf16.mxu0 0
  %719 = vmatpush1.bf16.msra.mxu0 0
  %720 = vmatprep.subr.bf16.mxu0 0
  %721 = vmatpush1.bf16.msra.mxu0 0
  %722 = vmatprep.subr.bf16.mxu0 0
  %723 = vmatpush1.bf16.msra.mxu0 0
  %724 = vmatprep.mubr.bf16.mxu0 0
  %725 = vmatmul.mubr.bf16.gmra.mrb[0].mxu0 %v339
  %v726 = vpop.f32.mrb[0].mxu0
  %v727 = vadd.f32 0.0, %v726
  %v728 = vpop.f32.mrb[0].mxu0
  %v729 = vpop.f32.mrb[0].mxu0
  %v730 = vadd.f32 0.0, %v729
  %v731 = vpop.f32.mrb[0].mxu0
  %732 = vmatprep.mubr.bf16.mxu0 0
  %733 = vmatmul.mubr.bf16.gmra.mrb[0].mxu0 %v340
  %v734 = vpop.f32.mrb[0].mxu0
  %v735 = vadd.f32 0.0, %v734
  %v736 = vpop.f32.mrb[0].mxu0
  %v737 = vpop.f32.mrb[0].mxu0
  %v738 = vadd.f32 0.0, %v737
  %v739 = vpop.f32.mrb[0].mxu0
  %740 = vmatprep.mubr.bf16.mxu0 0
  %741 = vmatmul.mubr.bf16.gmra.mrb[0].mxu0 %v341
  %v742 = vpop.f32.mrb[0].mxu0
  %v743 = vadd.f32 0.0, %v742
  %v744 = vpop.f32.mrb[0].mxu0
  %v745 = vpop.f32.mrb[0].mxu0
  %v746 = vadd.f32 0.0, %v745
  %v747 = vpop.f32.mrb[0].mxu0
  %748 = vmatprep.mubr.bf16.mxu0 0
  %749 = vmatmul.mubr.bf16.gmra.mrb[0].mxu0 %v342
  %v750 = vpop.f32.mrb[0].mxu0
  %v751 = vadd.f32 0.0, %v750
  %v752 = vpop.f32.mrb[0].mxu0
  %v753 = vpop.f32.mrb[0].mxu0
  %v754 = vadd.f32 0.0, %v753
  %v755 = vpop.f32.mrb[0].mxu0
  %756 = vmatprep.mubr.bf16.mxu0 0
  %757 = vmatmul.mubr.bf16.gmra.mrb[0].mxu0 %v343
  %v758 = vpop.f32.mrb[0].mxu0
  %v759 = vadd.f32 0.0, %v758
  %v760 = vpop.f32.mrb[0].mxu0
  %v761 = vpop.f32.mrb[0].mxu0
  %v762 = vadd.f32 0.0, %v761
  %v763 = vpop.f32.mrb[0].mxu0
  %764 = vmatprep.mubr.bf16.mxu0 0
  %765 = vmatmul.mubr.bf16.gmra.mrb[0].mxu0 %v344
  %v766 = vpop.f32.mrb[0].mxu0
  %v767 = vadd.f32 0.0, %v766
  %v768 = vpop.f32.mrb[0].mxu0
  %v769 = vpop.f32.mrb[0].mxu0
  %v770 = vadd.f32 0.0, %v769
  %v771 = vpop.f32.mrb[0].mxu0
  %772 = vmatprep.mubr.bf16.mxu0 0
  %773 = vmatmul.mubr.bf16.gmra.mrb[0].mxu0 %v345
  %v774 = vpop.f32.mrb[0].mxu0
  %v775 = vadd.f32 0.0, %v774
  %v776 = vpop.f32.mrb[0].mxu0
  %v777 = vpop.f32.mrb[0].mxu0
  %v778 = vadd.f32 0.0, %v777
  %v779 = vpop.f32.mrb[0].mxu0
  %780 = vmatprep.mubr.bf16.mxu0 0
  %781 = vmatmul.mubr.bf16.gmra.mrb[0].mxu0 %v346
  %v782 = vpop.f32.mrb[0].mxu0
  %v783 = vadd.f32 0.0, %v782
  %v784 = vpop.f32.mrb[0].mxu0
  %v785 = vpop.f32.mrb[0].mxu0
  %v786 = vadd.f32 0.0, %v785
  %v787 = vpop.f32.mrb[0].mxu0
  %788 = vmatprep.mubr.bf16.mxu0 0
  %789 = vmatmul.mubr.bf16.gmra.mrb[0].mxu0 %v347
  %v790 = vpop.f32.mrb[0].mxu0
  %v791 = vadd.f32 0.0, %v790
  %v792 = vpop.f32.mrb[0].mxu0
  %v793 = vpop.f32.mrb[0].mxu0
  %v794 = vadd.f32 0.0, %v793
  %v795 = vpop.f32.mrb[0].mxu0
  %796 = vmatprep.mubr.bf16.mxu0 0
  %797 = vmatmul.mubr.bf16.gmra.mrb[0].mxu0 %v348
  %v798 = vpop.f32.mrb[0].mxu0
  %v799 = vadd.f32 0.0, %v798
  %v800 = vpop.f32.mrb[0].mxu0
  %v801 = vpop.f32.mrb[0].mxu0
  %v802 = vadd.f32 0.0, %v801
  %v803 = vpop.f32.mrb[0].mxu0
  %804 = vmatprep.mubr.bf16.mxu0 0
  %805 = vmatmul.mubr.bf16.gmra.mrb[0].mxu0 %v349
  %v806 = vpop.f32.mrb[0].mxu0
  %v807 = vadd.f32 0.0, %v806
  %v808 = vpop.f32.mrb[0].mxu0
  %v809 = vpop.f32.mrb[0].mxu0
  %v810 = vadd.f32 0.0, %v809
  %v811 = vpop.f32.mrb[0].mxu0
  %812 = vmatprep.mubr.bf16.mxu0 0
  %813 = vmatmul.mubr.bf16.gmra.mrb[0].mxu0 %v350
  %v814 = vpop.f32.mrb[0].mxu0
  %v815 = vadd.f32 0.0, %v814
  %v816 = vpop.f32.mrb[0].mxu0
  %v817 = vpop.f32.mrb[0].mxu0
  %v818 = vadd.f32 0.0, %v817
  %v819 = vpop.f32.mrb[0].mxu0
  %820 = vmatprep.mubr.bf16.mxu0 0
  %821 = vmatmul.mubr.bf16.gmra.mrb[0].mxu0 %v351
  %v822 = vpop.f32.mrb[0].mxu0
  %v823 = vadd.f32 0.0, %v822
  %v824 = vpop.f32.mrb[0].mxu0
  %v825 = vpop.f32.mrb[0].mxu0
  %v826 = vadd.f32 0.0, %v825
  %v827 = vpop.f32.mrb[0].mxu0
  %828 = vmatprep.mubr.bf16.mxu0 0
  %829 = vmatmul.mubr.bf16.gmra.mrb[0].mxu0 %v352
  %v830 = vpop.f32.mrb[0].mxu0
  %v831 = vadd.f32 0.0, %v830
  %v832 = vpop.f32.mrb[0].mxu0
  %v833 = vpop.f32.mrb[0].mxu0
  %v834 = vadd.f32 0.0, %v833
  %v835 = vpop.f32.mrb[0].mxu0
  %836 = vmatprep.mubr.bf16.mxu0 0
  %837 = vmatmul.mubr.bf16.gmra.mrb[0].mxu0 %v353
  %v838 = vpop.f32.mrb[0].mxu0
  %v839 = vadd.f32 0.0, %v838
  %v840 = vpop.f32.mrb[0].mxu0
  %v841 = vpop.f32.mrb[0].mxu0
  %v842 = vadd.f32 0.0, %v841
  %v843 = vpop.f32.mrb[0].mxu0
  %844 = vmatprep.mubr.bf16.mxu0 0
  %845 = vmatmul.mubr.bf16.gmra.mrb[0].mxu0 %v354
  %v846 = vpop.f32.mrb[0].mxu0
  %v847 = vadd.f32 0.0, %v846
  %v848 = vpop.f32.mrb[0].mxu0
  %v849 = vpop.f32.mrb[0].mxu0
  %v850 = vadd.f32 0.0, %v849
  %v851 = vpop.f32.mrb[0].mxu0
  %852 = vdwg.mxu0
  %v853 = vadd.f32 %v115, %v534
  %v854 = vadd.f32 %v116, %v536
  %v855 = vadd.f32 %v117, %v727
  %v856 = vadd.f32 %v118, %v538
  %v857 = vadd.f32 %v119, %v540
  %v858 = vadd.f32 %v120, %v730
  %v859 = vadd.f32 %v121, %v544
  %v860 = vadd.f32 %v122, %v546
  %v861 = vadd.f32 %v123, %v735
  %v862 = vadd.f32 %v124, %v548
  %v863 = vadd.f32 %v125, %v550
  %v864 = vadd.f32 %v126, %v738
  %v865 = vadd.f32 %v127, %v554
  %v866 = vadd.f32 %v128, %v556
  %v867 = vadd.f32 %v129, %v743
  %v868 = vadd.f32 %v130, %v558
  %v869 = vadd.f32 %v131, %v560
  %v870 = vadd.f32 %v132, %v746
  %v871 = vadd.f32 %v133, %v564
  %v872 = vadd.f32 %v134, %v566
  %v873 = vadd.f32 %v135, %v751
  %v874 = vadd.f32 %v136, %v568
  %v875 = vadd.f32 %v137, %v570
  %v876 = vadd.f32 %v138, %v754
  %v877 = vadd.f32 %v139, %v574
  %v878 = vadd.f32 %v140, %v576
  %v879 = vadd.f32 %v141, %v759
  %v880 = vadd.f32 %v142, %v578
  %v881 = vadd.f32 %v143, %v580
  %v882 = vadd.f32 %v144, %v762
  %v883 = vadd.f32 %v145, %v584
  %v884 = vadd.f32 %v146, %v586
  %v885 = vadd.f32 %v147, %v767
  %v886 = vadd.f32 %v148, %v588
  %v887 = vadd.f32 %v149, %v590
  %v888 = vadd.f32 %v150, %v770
  %v889 = vadd.f32 %v151, %v594
  %v890 = vadd.f32 %v152, %v596
  %v891 = vadd.f32 %v153, %v775
  %v892 = vadd.f32 %v154, %v598
  %v893 = vadd.f32 %v155, %v600
  %v894 = vadd.f32 %v156, %v778
  %v895 = vadd.f32 %v157, %v604
  %v896 = vadd.f32 %v158, %v606
  %v897 = vadd.f32 %v159, %v783
  %v898 = vadd.f32 %v160, %v608
  %v899 = vadd.f32 %v161, %v610
  %v900 = vadd.f32 %v162, %v786
  %v901 = vadd.f32 %v163, %v614
  %v902 = vadd.f32 %v164, %v616
  %v903 = vadd.f32 %v165, %v791
  %v904 = vadd.f32 %v166, %v618
  %v905 = vadd.f32 %v167, %v620
  %v906 = vadd.f32 %v168, %v794
  %v907 = vadd.f32 %v169, %v624
  %v908 = vadd.f32 %v170, %v626
  %v909 = vadd.f32 %v171, %v799
  %v910 = vadd.f32 %v172, %v628
  %v911 = vadd.f32 %v173, %v630
  %v912 = vadd.f32 %v174, %v802
  %v913 = vadd.f32 %v175, %v634
  %v914 = vadd.f32 %v176, %v636
  %v915 = vadd.f32 %v177, %v807
  %v916 = vadd.f32 %v178, %v638
  %v917 = vadd.f32 %v179, %v640
  %v918 = vadd.f32 %v180, %v810
  %v919 = vadd.f32 %v181, %v644
  %v920 = vadd.f32 %v182, %v646
  %v921 = vadd.f32 %v183, %v815
  %v922 = vadd.f32 %v184, %v648
  %v923 = vadd.f32 %v185, %v650
  %v924 = vadd.f32 %v186, %v818
  %v925 = vadd.f32 %v187, %v654
  %v926 = vadd.f32 %v188, %v656
  %v927 = vadd.f32 %v189, %v823
  %v928 = vadd.f32 %v190, %v658
  %v929 = vadd.f32 %v191, %v660
  %v930 = vadd.f32 %v192, %v826
  %v931 = vadd.f32 %v193, %v664
  %v932 = vadd.f32 %v194, %v666
  %v933 = vadd.f32 %v195, %v831
  %v934 = vadd.f32 %v196, %v668
  %v935 = vadd.f32 %v197, %v670
  %v936 = vadd.f32 %v198, %v834
  %v937 = vadd.f32 %v199, %v674
  %v938 = vadd.f32 %v200, %v676
  %v939 = vadd.f32 %v201, %v839
  %v940 = vadd.f32 %v202, %v678
  %v941 = vadd.f32 %v203, %v680
  %v942 = vadd.f32 %v204, %v842
  %v943 = vadd.f32 %v205, %v684
  %v944 = vadd.f32 %v206, %v686
  %v945 = vadd.f32 %v207, %v847
  %v946 = vadd.f32 %v208, %v688
  %v947 = vadd.f32 %v209, %v690
  %v948 = vadd.f32 %v210, %v850
  %949 = vst [vmem:[#allocation2] sm:$0xff] %v853
  %950 = vst [vmem:[#allocation2 + $0x8] sm:$0xff] %v854
  %951 = vst [vmem:[#allocation2 + $0x10] sm:$0xff] %v855
  %952 = vst [vmem:[#allocation2 + $0x18] sm:$0xff] %v856
  %953 = vst [vmem:[#allocation2 + $0x20] sm:$0xff] %v857
  %954 = vst [vmem:[#allocation2 + $0x28] sm:$0xff] %v858
  %955 = vst [vmem:[#allocation2 + $0x30] sm:$0xff] %v859
  %956 = vst [vmem:[#allocation2 + $0x38] sm:$0xff] %v860
  %957 = vst [vmem:[#allocation2 + $0x40] sm:$0xff] %v861
  %958 = vst [vmem:[#allocation2 + $0x48] sm:$0xff] %v862
  %959 = vst [vmem:[#allocation2 + $0x50] sm:$0xff] %v863
  %960 = vst [vmem:[#allocation2 + $0x58] sm:$0xff] %v864
  %961 = vst [vmem:[#allocation2 + $0x60] sm:$0xff] %v865
  %962 = vst [vmem:[#allocation2 + $0x68] sm:$0xff] %v866
  %963 = vst [vmem:[#allocation2 + $0x70] sm:$0xff] %v867
  %964 = vst [vmem:[#allocation2 + $0x78] sm:$0xff] %v868
  %965 = vst [vmem:[#allocation2 + $0x80] sm:$0xff] %v869
  %966 = vst [vmem:[#allocation2 + $0x88] sm:$0xff] %v870
  %967 = vst [vmem:[#allocation2 + $0x90] sm:$0xff] %v871
  %968 = vst [vmem:[#allocation2 + $0x98] sm:$0xff] %v872
  %969 = vst [vmem:[#allocation2 + $0xa0] sm:$0xff] %v873
  %970 = vst [vmem:[#allocation2 + $0xa8] sm:$0xff] %v874
  %971 = vst [vmem:[#allocation2 + $0xb0] sm:$0xff] %v875
  %972 = vst [vmem:[#allocation2 + $0xb8] sm:$0xff] %v876
  %973 = vst [vmem:[#allocation2 + $0xc0] sm:$0xff] %v877
  %974 = vst [vmem:[#allocation2 + $0xc8] sm:$0xff] %v878
  %975 = vst [vmem:[#allocation2 + $0xd0] sm:$0xff] %v879
  %976 = vst [vmem:[#allocation2 + $0xd8] sm:$0xff] %v880
  %977 = vst [vmem:[#allocation2 + $0xe0] sm:$0xff] %v881
  %978 = vst [vmem:[#allocation2 + $0xe8] sm:$0xff] %v882
  %979 = vst [vmem:[#allocation2 + $0xf0] sm:$0xff] %v883
  %980 = vst [vmem:[#allocation2 + $0xf8] sm:$0xff] %v884
  %981 = vst [vmem:[#allocation2 + $0x100] sm:$0xff] %v885
  %982 = vst [vmem:[#allocation2 + $0x108] sm:$0xff] %v886
  %983 = vst [vmem:[#allocation2 + $0x110] sm:$0xff] %v887
  %984 = vst [vmem:[#allocation2 + $0x118] sm:$0xff] %v888
  %985 = vst [vmem:[#allocation2 + $0x120] sm:$0xff] %v889
  %986 = vst [vmem:[#allocation2 + $0x128] sm:$0xff] %v890
  %987 = vst [vmem:[#allocation2 + $0x130] sm:$0xff] %v891
  %988 = vst [vmem:[#allocation2 + $0x138] sm:$0xff] %v892
  %989 = vst [vmem:[#allocation2 + $0x140] sm:$0xff] %v893
  %990 = vst [vmem:[#allocation2 + $0x148] sm:$0xff] %v894
  %991 = vst [vmem:[#allocation2 + $0x150] sm:$0xff] %v895
  %992 = vst [vmem:[#allocation2 + $0x158] sm:$0xff] %v896
  %993 = vst [vmem:[#allocation2 + $0x160] sm:$0xff] %v897
  %994 = vst [vmem:[#allocation2 + $0x168] sm:$0xff] %v898
  %995 = vst [vmem:[#allocation2 + $0x170] sm:$0xff] %v899
  %996 = vst [vmem:[#allocation2 + $0x178] sm:$0xff] %v900
  %997 = vst [vmem:[#allocation2 + $0x180] sm:$0xff] %v901
  %998 = vst [vmem:[#allocation2 + $0x188] sm:$0xff] %v902
  %999 = vst [vmem:[#allocation2 + $0x190] sm:$0xff] %v903
  %1000 = vst [vmem:[#allocation2 + $0x198] sm:$0xff] %v904
  %1001 = vst [vmem:[#allocation2 + $0x1a0] sm:$0xff] %v905
  %1002 = vst [vmem:[#allocation2 + $0x1a8] sm:$0xff] %v906
  %1003 = vst [vmem:[#allocation2 + $0x1b0] sm:$0xff] %v907
  %1004 = vst [vmem:[#allocation2 + $0x1b8] sm:$0xff] %v908
  %1005 = vst [vmem:[#allocation2 + $0x1c0] sm:$0xff] %v909
  %1006 = vst [vmem:[#allocation2 + $0x1c8] sm:$0xff] %v910
  %1007 = vst [vmem:[#allocation2 + $0x1d0] sm:$0xff] %v911
  %1008 = vst [vmem:[#allocation2 + $0x1d8] sm:$0xff] %v912
  %1009 = vst [vmem:[#allocation2 + $0x1e0] sm:$0xff] %v913
  %1010 = vst [vmem:[#allocation2 + $0x1e8] sm:$0xff] %v914
  %1011 = vst [vmem:[#allocation2 + $0x1f0] sm:$0xff] %v915
  %1012 = vst [vmem:[#allocation2 + $0x1f8] sm:$0xff] %v916
  %1013 = vst [vmem:[#allocation2 + $0x200] sm:$0xff] %v917
  %1014 = vst [vmem:[#allocation2 + $0x208] sm:$0xff] %v918
  %1015 = vst [vmem:[#allocation2 + $0x210] sm:$0xff] %v919
  %1016 = vst [vmem:[#allocation2 + $0x218] sm:$0xff] %v920
  %1017 = vst [vmem:[#allocation2 + $0x220] sm:$0xff] %v921
  %1018 = vst [vmem:[#allocation2 + $0x228] sm:$0xff] %v922
  %1019 = vst [vmem:[#allocation2 + $0x230] sm:$0xff] %v923
  %1020 = vst [vmem:[#allocation2 + $0x238] sm:$0xff] %v924
  %1021 = vst [vmem:[#allocation2 + $0x240] sm:$0xff] %v925
  %1022 = vst [vmem:[#allocation2 + $0x248] sm:$0xff] %v926
  %1023 = vst [vmem:[#allocation2 + $0x250] sm:$0xff] %v927
  %1024 = vst [vmem:[#allocation2 + $0x258] sm:$0xff] %v928
  %1025 = vst [vmem:[#allocation2 + $0x260] sm:$0xff] %v929
  %1026 = vst [vmem:[#allocation2 + $0x268] sm:$0xff] %v930
  %1027 = vst [vmem:[#allocation2 + $0x270] sm:$0xff] %v931
  %1028 = vst [vmem:[#allocation2 + $0x278] sm:$0xff] %v932
  %1029 = vst [vmem:[#allocation2 + $0x280] sm:$0xff] %v933
  %1030 = vst [vmem:[#allocation2 + $0x288] sm:$0xff] %v934
  %1031 = vst [vmem:[#allocation2 + $0x290] sm:$0xff] %v935
  %1032 = vst [vmem:[#allocation2 + $0x298] sm:$0xff] %v936
  %1033 = vst [vmem:[#allocation2 + $0x2a0] sm:$0xff] %v937
  %1034 = vst [vmem:[#allocation2 + $0x2a8] sm:$0xff] %v938
  %1035 = vst [vmem:[#allocation2 + $0x2b0] sm:$0xff] %v939
  %1036 = vst [vmem:[#allocation2 + $0x2b8] sm:$0xff] %v940
  %1037 = vst [vmem:[#allocation2 + $0x2c0] sm:$0xff] %v941
  %1038 = vst [vmem:[#allocation2 + $0x2c8] sm:$0xff] %v942
  %1039 = vst [vmem:[#allocation2 + $0x2d0] sm:$0xff] %v943
  %1040 = vst [vmem:[#allocation2 + $0x2d8] sm:$0xff] %v944
  %1041 = vst [vmem:[#allocation2 + $0x2e0] sm:$0xff] %v945
  %1042 = vst [vmem:[#allocation2 + $0x2e8] sm:$0xff] %v946
  %1043 = vst [vmem:[#allocation2 + $0x2f0] sm:$0xff] %v947
  %1044 = vst [vmem:[#allocation2 + $0x2f8] sm:$0xff] %v948
  // Predicated region
  $region18: #{forward.13} parent=0 // pred_check
    %p1045 = pneg %p15
  $region19: #{forward.13} parent=0 // pred_check_branch
    %1047 = sbr.rel (%p1045) target = $region21
  $region20: #{forward.13} parent=0 // pred_region
    %v1048 = vld [vmem:[#allocation2] sm:$0xff]
    %v1049 = vld [vmem:[#allocation2 + $0x8] sm:$0xff]
    %v1050 = vld [vmem:[#allocation2 + $0x10] sm:$0xff]
    %v1051 = vld [vmem:[#allocation2 + $0x18] sm:$0xff]
    %v1052 = vld [vmem:[#allocation2 + $0x20] sm:$0xff]
    %v1053 = vld [vmem:[#allocation2 + $0x28] sm:$0xff]
    %v1054 = vld [vmem:[#allocation2 + $0x30] sm:$0xff]
    %v1055 = vld [vmem:[#allocation2 + $0x38] sm:$0xff]
    %v1056 = vld [vmem:[#allocation2 + $0x40] sm:$0xff]
    %v1057 = vld [vmem:[#allocation2 + $0x48] sm:$0xff]
    %v1058 = vld [vmem:[#allocation2 + $0x50] sm:$0xff]
    %v1059 = vld [vmem:[#allocation2 + $0x58] sm:$0xff]
    %v1060 = vld [vmem:[#allocation2 + $0x60] sm:$0xff]
    %v1061 = vld [vmem:[#allocation2 + $0x68] sm:$0xff]
    %v1062 = vld [vmem:[#allocation2 + $0x70] sm:$0xff]
    %v1063 = vld [vmem:[#allocation2 + $0x78] sm:$0xff]
    %v1064 = vld [vmem:[#allocation2 + $0x80] sm:$0xff]
    %v1065 = vld [vmem:[#allocation2 + $0x88] sm:$0xff]
    %v1066 = vld [vmem:[#allocation2 + $0x90] sm:$0xff]
    %v1067 = vld [vmem:[#allocation2 + $0x98] sm:$0xff]
    %v1068 = vld [vmem:[#allocation2 + $0xa0] sm:$0xff]
    %v1069 = vld [vmem:[#allocation2 + $0xa8] sm:$0xff]
    %v1070 = vld [vmem:[#allocation2 + $0xb0] sm:$0xff]
    %v1071 = vld [vmem:[#allocation2 + $0xb8] sm:$0xff]
    %v1072 = vld [vmem:[#allocation2 + $0xc0] sm:$0xff]
    %v1073 = vld [vmem:[#allocation2 + $0xc8] sm:$0xff]
    %v1074 = vld [vmem:[#allocation2 + $0xd0] sm:$0xff]
    %v1075 = vld [vmem:[#allocation2 + $0xd8] sm:$0xff]
    %v1076 = vld [vmem:[#allocation2 + $0xe0] sm:$0xff]
    %v1077 = vld [vmem:[#allocation2 + $0xe8] sm:$0xff]
    %v1078 = vld [vmem:[#allocation2 + $0xf0] sm:$0xff]
    %v1079 = vld [vmem:[#allocation2 + $0xf8] sm:$0xff]
    %v1080 = vld [vmem:[#allocation2 + $0x100] sm:$0xff]
    %v1081 = vld [vmem:[#allocation2 + $0x108] sm:$0xff]
    %v1082 = vld [vmem:[#allocation2 + $0x110] sm:$0xff]
    %v1083 = vld [vmem:[#allocation2 + $0x118] sm:$0xff]
    %v1084 = vld [vmem:[#allocation2 + $0x120] sm:$0xff]
    %v1085 = vld [vmem:[#allocation2 + $0x128] sm:$0xff]
    %v1086 = vld [vmem:[#allocation2 + $0x130] sm:$0xff]
    %v1087 = vld [vmem:[#allocation2 + $0x138] sm:$0xff]
    %v1088 = vld [vmem:[#allocation2 + $0x140] sm:$0xff]
    %v1089 = vld [vmem:[#allocation2 + $0x148] sm:$0xff]
    %v1090 = vld [vmem:[#allocation2 + $0x150] sm:$0xff]
    %v1091 = vld [vmem:[#allocation2 + $0x158] sm:$0xff]
    %v1092 = vld [vmem:[#allocation2 + $0x160] sm:$0xff]
    %v1093 = vld [vmem:[#allocation2 + $0x168] sm:$0xff]
    %v1094 = vld [vmem:[#allocation2 + $0x170] sm:$0xff]
    %v1095 = vld [vmem:[#allocation2 + $0x178] sm:$0xff]
    %v1096 = vld [vmem:[#allocation2 + $0x180] sm:$0xff]
    %v1097 = vld [vmem:[#allocation2 + $0x188] sm:$0xff]
    %v1098 = vld [vmem:[#allocation2 + $0x190] sm:$0xff]
    %v1099 = vld [vmem:[#allocation2 + $0x198] sm:$0xff]
    %v1100 = vld [vmem:[#allocation2 + $0x1a0] sm:$0xff]
    %v1101 = vld [vmem:[#allocation2 + $0x1a8] sm:$0xff]
    %v1102 = vld [vmem:[#allocation2 + $0x1b0] sm:$0xff]
    %v1103 = vld [vmem:[#allocation2 + $0x1b8] sm:$0xff]
    %v1104 = vld [vmem:[#allocation2 + $0x1c0] sm:$0xff]
    %v1105 = vld [vmem:[#allocation2 + $0x1c8] sm:$0xff]
    %v1106 = vld [vmem:[#allocation2 + $0x1d0] sm:$0xff]
    %v1107 = vld [vmem:[#allocation2 + $0x1d8] sm:$0xff]
    %v1108 = vld [vmem:[#allocation2 + $0x1e0] sm:$0xff]
    %v1109 = vld [vmem:[#allocation2 + $0x1e8] sm:$0xff]
    %v1110 = vld [vmem:[#allocation2 + $0x1f0] sm:$0xff]
    %v1111 = vld [vmem:[#allocation2 + $0x1f8] sm:$0xff]
    %v1112 = vld [vmem:[#allocation2 + $0x200] sm:$0xff]
    %v1113 = vld [vmem:[#allocation2 + $0x208] sm:$0xff]
    %v1114 = vld [vmem:[#allocation2 + $0x210] sm:$0xff]
    %v1115 = vld [vmem:[#allocation2 + $0x218] sm:$0xff]
    %v1116 = vld [vmem:[#allocation2 + $0x220] sm:$0xff]
    %v1117 = vld [vmem:[#allocation2 + $0x228] sm:$0xff]
    %v1118 = vld [vmem:[#allocation2 + $0x230] sm:$0xff]
    %v1119 = vld [vmem:[#allocation2 + $0x238] sm:$0xff]
    %v1120 = vld [vmem:[#allocation2 + $0x240] sm:$0xff]
    %v1121 = vld [vmem:[#allocation2 + $0x248] sm:$0xff]
    %v1122 = vld [vmem:[#allocation2 + $0x250] sm:$0xff]
    %v1123 = vld [vmem:[#allocation2 + $0x258] sm:$0xff]
    %v1124 = vld [vmem:[#allocation2 + $0x260] sm:$0xff]
    %v1125 = vld [vmem:[#allocation2 + $0x268] sm:$0xff]
    %v1126 = vld [vmem:[#allocation2 + $0x270] sm:$0xff]
    %v1127 = vld [vmem:[#allocation2 + $0x278] sm:$0xff]
    %v1128 = vld [vmem:[#allocation2 + $0x280] sm:$0xff]
    %v1129 = vld [vmem:[#allocation2 + $0x288] sm:$0xff]
    %v1130 = vld [vmem:[#allocation2 + $0x290] sm:$0xff]
    %v1131 = vld [vmem:[#allocation2 + $0x298] sm:$0xff]
    %v1132 = vld [vmem:[#allocation2 + $0x2a0] sm:$0xff]
    %v1133 = vld [vmem:[#allocation2 + $0x2a8] sm:$0xff]
    %v1134 = vld [vmem:[#allocation2 + $0x2b0] sm:$0xff]
    %v1135 = vld [vmem:[#allocation2 + $0x2b8] sm:$0xff]
    %v1136 = vld [vmem:[#allocation2 + $0x2c0] sm:$0xff]
    %v1137 = vld [vmem:[#allocation2 + $0x2c8] sm:$0xff]
    %v1138 = vld [vmem:[#allocation2 + $0x2d0] sm:$0xff]
    %v1139 = vld [vmem:[#allocation2 + $0x2d8] sm:$0xff]
    %v1140 = vld [vmem:[#allocation2 + $0x2e0] sm:$0xff]
    %v1141 = vld [vmem:[#allocation2 + $0x2e8] sm:$0xff]
    %v1142 = vld [vmem:[#allocation2 + $0x2f0] sm:$0xff]
    %v1143 = vld [vmem:[#allocation2 + $0x2f8] sm:$0xff]
    %v1144 = vld [vmem:[%s2] sm:$0x7]
    %v1146 = vlaneseq
    %v1147 = vshrl.u32 %v1146, 7
    %v1148 = vsub.s32 0, %v1147
    %v1149 = vrot.slane %v1144, %v1148
    %v1150 = vlaneseq
    %v1151 = vshrl.u32 %v1150, 7
    %v1152 = vsub.s32 1, %v1151
    %v1153 = vrot.slane %v1144, %v1152
    %v1154 = vlaneseq
    %v1155 = vshrl.u32 %v1154, 7
    %v1156 = vsub.s32 2, %v1155
    %v1157 = vrot.slane %v1144, %v1156
    %v1161 = vadd.f32 %v1048, %v1149
    %v1162 = vadd.f32 %v1049, %v1153
    %v1163 = vadd.f32 %v1050, %v1157
    %v1164 = vadd.f32 %v1051, %v1149
    %v1165 = vadd.f32 %v1052, %v1153
    %v1166 = vadd.f32 %v1053, %v1157
    %v1167 = vadd.f32 %v1054, %v1149
    %v1168 = vadd.f32 %v1055, %v1153
    %v1169 = vadd.f32 %v1056, %v1157
    %v1170 = vadd.f32 %v1057, %v1149
    %v1171 = vadd.f32 %v1058, %v1153
    %v1172 = vadd.f32 %v1059, %v1157
    %v1173 = vadd.f32 %v1060, %v1149
    %v1174 = vadd.f32 %v1061, %v1153
    %v1175 = vadd.f32 %v1062, %v1157
    %v1176 = vadd.f32 %v1063, %v1149
    %v1177 = vadd.f32 %v1064, %v1153
    %v1178 = vadd.f32 %v1065, %v1157
    %v1179 = vadd.f32 %v1066, %v1149
    %v1180 = vadd.f32 %v1067, %v1153
    %v1181 = vadd.f32 %v1068, %v1157
    %v1182 = vadd.f32 %v1069, %v1149
    %v1183 = vadd.f32 %v1070, %v1153
    %v1184 = vadd.f32 %v1071, %v1157
    %v1185 = vadd.f32 %v1072, %v1149
    %v1186 = vadd.f32 %v1073, %v1153
    %v1187 = vadd.f32 %v1074, %v1157
    %v1188 = vadd.f32 %v1075, %v1149
    %v1189 = vadd.f32 %v1076, %v1153
    %v1190 = vadd.f32 %v1077, %v1157
    %v1191 = vadd.f32 %v1078, %v1149
    %v1192 = vadd.f32 %v1079, %v1153
    %v1193 = vadd.f32 %v1080, %v1157
    %v1194 = vadd.f32 %v1081, %v1149
    %v1195 = vadd.f32 %v1082, %v1153
    %v1196 = vadd.f32 %v1083, %v1157
    %v1197 = vadd.f32 %v1084, %v1149
    %v1198 = vadd.f32 %v1085, %v1153
    %v1199 = vadd.f32 %v1086, %v1157
    %v1200 = vadd.f32 %v1087, %v1149
    %v1201 = vadd.f32 %v1088, %v1153
    %v1202 = vadd.f32 %v1089, %v1157
    %v1203 = vadd.f32 %v1090, %v1149
    %v1204 = vadd.f32 %v1091, %v1153
    %v1205 = vadd.f32 %v1092, %v1157
    %v1206 = vadd.f32 %v1093, %v1149
    %v1207 = vadd.f32 %v1094, %v1153
    %v1208 = vadd.f32 %v1095, %v1157
    %v1209 = vadd.f32 %v1096, %v1149
    %v1210 = vadd.f32 %v1097, %v1153
    %v1211 = vadd.f32 %v1098, %v1157
    %v1212 = vadd.f32 %v1099, %v1149
    %v1213 = vadd.f32 %v1100, %v1153
    %v1214 = vadd.f32 %v1101, %v1157
    %v1215 = vadd.f32 %v1102, %v1149
    %v1216 = vadd.f32 %v1103, %v1153
    %v1217 = vadd.f32 %v1104, %v1157
    %v1218 = vadd.f32 %v1105, %v1149
    %v1219 = vadd.f32 %v1106, %v1153
    %v1220 = vadd.f32 %v1107, %v1157
    %v1221 = vadd.f32 %v1108, %v1149
    %v1222 = vadd.f32 %v1109, %v1153
    %v1223 = vadd.f32 %v1110, %v1157
    %v1224 = vadd.f32 %v1111, %v1149
    %v1225 = vadd.f32 %v1112, %v1153
    %v1226 = vadd.f32 %v1113, %v1157
    %v1227 = vadd.f32 %v1114, %v1149
    %v1228 = vadd.f32 %v1115, %v1153
    %v1229 = vadd.f32 %v1116, %v1157
    %v1230 = vadd.f32 %v1117, %v1149
    %v1231 = vadd.f32 %v1118, %v1153
    %v1232 = vadd.f32 %v1119, %v1157
    %v1233 = vadd.f32 %v1120, %v1149
    %v1234 = vadd.f32 %v1121, %v1153
    %v1235 = vadd.f32 %v1122, %v1157
    %v1236 = vadd.f32 %v1123, %v1149
    %v1237 = vadd.f32 %v1124, %v1153
    %v1238 = vadd.f32 %v1125, %v1157
    %v1239 = vadd.f32 %v1126, %v1149
    %v1240 = vadd.f32 %v1127, %v1153
    %v1241 = vadd.f32 %v1128, %v1157
    %v1242 = vadd.f32 %v1129, %v1149
    %v1243 = vadd.f32 %v1130, %v1153
    %v1244 = vadd.f32 %v1131, %v1157
    %v1245 = vadd.f32 %v1132, %v1149
    %v1246 = vadd.f32 %v1133, %v1153
    %v1247 = vadd.f32 %v1134, %v1157
    %v1248 = vadd.f32 %v1135, %v1149
    %v1249 = vadd.f32 %v1136, %v1153
    %v1250 = vadd.f32 %v1137, %v1157
    %v1251 = vadd.f32 %v1138, %v1149
    %v1252 = vadd.f32 %v1139, %v1153
    %v1253 = vadd.f32 %v1140, %v1157
    %v1254 = vadd.f32 %v1141, %v1149
    %v1255 = vadd.f32 %v1142, %v1153
    %v1256 = vadd.f32 %v1143, %v1157
    %v1257 = vpack.c.bf16 %v1164, %v1161
    %v1258 = vpack.c.bf16 %v1165, %v1162
    %v1259 = vpack.c.bf16 %v1166, %v1163
    %v1260 = vpack.c.bf16 %v1170, %v1167
    %v1261 = vpack.c.bf16 %v1171, %v1168
    %v1262 = vpack.c.bf16 %v1172, %v1169
    %v1263 = vpack.c.bf16 %v1176, %v1173
    %v1264 = vpack.c.bf16 %v1177, %v1174
    %v1265 = vpack.c.bf16 %v1178, %v1175
    %v1266 = vpack.c.bf16 %v1182, %v1179
    %v1267 = vpack.c.bf16 %v1183, %v1180
    %v1268 = vpack.c.bf16 %v1184, %v1181
    %v1269 = vpack.c.bf16 %v1188, %v1185
    %v1270 = vpack.c.bf16 %v1189, %v1186
    %v1271 = vpack.c.bf16 %v1190, %v1187
    %v1272 = vpack.c.bf16 %v1194, %v1191
    %v1273 = vpack.c.bf16 %v1195, %v1192
    %v1274 = vpack.c.bf16 %v1196, %v1193
    %v1275 = vpack.c.bf16 %v1200, %v1197
    %v1276 = vpack.c.bf16 %v1201, %v1198
    %v1277 = vpack.c.bf16 %v1202, %v1199
    %v1278 = vpack.c.bf16 %v1206, %v1203
    %v1279 = vpack.c.bf16 %v1207, %v1204
    %v1280 = vpack.c.bf16 %v1208, %v1205
    %v1281 = vpack.c.bf16 %v1212, %v1209
    %v1282 = vpack.c.bf16 %v1213, %v1210
    %v1283 = vpack.c.bf16 %v1214, %v1211
    %v1284 = vpack.c.bf16 %v1218, %v1215
    %v1285 = vpack.c.bf16 %v1219, %v1216
    %v1286 = vpack.c.bf16 %v1220, %v1217
    %v1287 = vpack.c.bf16 %v1224, %v1221
    %v1288 = vpack.c.bf16 %v1225, %v1222
    %v1289 = vpack.c.bf16 %v1226, %v1223
    %v1290 = vpack.c.bf16 %v1230, %v1227
    %v1291 = vpack.c.bf16 %v1231, %v1228
    %v1292 = vpack.c.bf16 %v1232, %v1229
    %v1293 = vpack.c.bf16 %v1236, %v1233
    %v1294 = vpack.c.bf16 %v1237, %v1234
    %v1295 = vpack.c.bf16 %v1238, %v1235
    %v1296 = vpack.c.bf16 %v1242, %v1239
    %v1297 = vpack.c.bf16 %v1243, %v1240
    %v1298 = vpack.c.bf16 %v1244, %v1241
    %v1299 = vpack.c.bf16 %v1248, %v1245
    %v1300 = vpack.c.bf16 %v1249, %v1246
    %v1301 = vpack.c.bf16 %v1250, %v1247
    %v1302 = vpack.c.bf16 %v1254, %v1251
    %v1303 = vpack.c.bf16 %v1255, %v1252
    %v1304 = vpack.c.bf16 %v1256, %v1253
    %v1353 = vunpack.c.l.b16 %v1257
    %v1354 = vunpack.c.l.b16 %v1258
    %v1355 = vunpack.c.l.b16 %v1259
    %v1356 = vunpack.c.h.b16 %v1257
    %v1357 = vunpack.c.h.b16 %v1258
    %v1358 = vunpack.c.h.b16 %v1259
    %v1359 = vunpack.c.l.b16 %v1260
    %v1360 = vunpack.c.l.b16 %v1261
    %v1361 = vunpack.c.l.b16 %v1262
    %v1362 = vunpack.c.h.b16 %v1260
    %v1363 = vunpack.c.h.b16 %v1261
    %v1364 = vunpack.c.h.b16 %v1262
    %v1365 = vunpack.c.l.b16 %v1263
    %v1366 = vunpack.c.l.b16 %v1264
    %v1367 = vunpack.c.l.b16 %v1265
    %v1368 = vunpack.c.h.b16 %v1263
    %v1369 = vunpack.c.h.b16 %v1264
    %v1370 = vunpack.c.h.b16 %v1265
    %v1371 = vunpack.c.l.b16 %v1266
    %v1372 = vunpack.c.l.b16 %v1267
    %v1373 = vunpack.c.l.b16 %v1268
    %v1374 = vunpack.c.h.b16 %v1266
    %v1375 = vunpack.c.h.b16 %v1267
    %v1376 = vunpack.c.h.b16 %v1268
    %v1377 = vunpack.c.l.b16 %v1269
    %v1378 = vunpack.c.l.b16 %v1270
    %v1379 = vunpack.c.l.b16 %v1271
    %v1380 = vunpack.c.h.b16 %v1269
    %v1381 = vunpack.c.h.b16 %v1270
    %v1382 = vunpack.c.h.b16 %v1271
    %v1383 = vunpack.c.l.b16 %v1272
    %v1384 = vunpack.c.l.b16 %v1273
    %v1385 = vunpack.c.l.b16 %v1274
    %v1386 = vunpack.c.h.b16 %v1272
    %v1387 = vunpack.c.h.b16 %v1273
    %v1388 = vunpack.c.h.b16 %v1274
    %v1389 = vunpack.c.l.b16 %v1275
    %v1390 = vunpack.c.l.b16 %v1276
    %v1391 = vunpack.c.l.b16 %v1277
    %v1392 = vunpack.c.h.b16 %v1275
    %v1393 = vunpack.c.h.b16 %v1276
    %v1394 = vunpack.c.h.b16 %v1277
    %v1395 = vunpack.c.l.b16 %v1278
    %v1396 = vunpack.c.l.b16 %v1279
    %v1397 = vunpack.c.l.b16 %v1280
    %v1398 = vunpack.c.h.b16 %v1278
    %v1399 = vunpack.c.h.b16 %v1279
    %v1400 = vunpack.c.h.b16 %v1280
    %v1401 = vunpack.c.l.b16 %v1281
    %v1402 = vunpack.c.l.b16 %v1282
    %v1403 = vunpack.c.l.b16 %v1283
    %v1404 = vunpack.c.h.b16 %v1281
    %v1405 = vunpack.c.h.b16 %v1282
    %v1406 = vunpack.c.h.b16 %v1283
    %v1407 = vunpack.c.l.b16 %v1284
    %v1408 = vunpack.c.l.b16 %v1285
    %v1409 = vunpack.c.l.b16 %v1286
    %v1410 = vunpack.c.h.b16 %v1284
    %v1411 = vunpack.c.h.b16 %v1285
    %v1412 = vunpack.c.h.b16 %v1286
    %v1413 = vunpack.c.l.b16 %v1287
    %v1414 = vunpack.c.l.b16 %v1288
    %v1415 = vunpack.c.l.b16 %v1289
    %v1416 = vunpack.c.h.b16 %v1287
    %v1417 = vunpack.c.h.b16 %v1288
    %v1418 = vunpack.c.h.b16 %v1289
    %v1419 = vunpack.c.l.b16 %v1290
    %v1420 = vunpack.c.l.b16 %v1291
    %v1421 = vunpack.c.l.b16 %v1292
    %v1422 = vunpack.c.h.b16 %v1290
    %v1423 = vunpack.c.h.b16 %v1291
    %v1424 = vunpack.c.h.b16 %v1292
    %v1425 = vunpack.c.l.b16 %v1293
    %v1426 = vunpack.c.l.b16 %v1294
    %v1427 = vunpack.c.l.b16 %v1295
    %v1428 = vunpack.c.h.b16 %v1293
    %v1429 = vunpack.c.h.b16 %v1294
    %v1430 = vunpack.c.h.b16 %v1295
    %v1431 = vunpack.c.l.b16 %v1296
    %v1432 = vunpack.c.l.b16 %v1297
    %v1433 = vunpack.c.l.b16 %v1298
    %v1434 = vunpack.c.h.b16 %v1296
    %v1435 = vunpack.c.h.b16 %v1297
    %v1436 = vunpack.c.h.b16 %v1298
    %v1437 = vunpack.c.l.b16 %v1299
    %v1438 = vunpack.c.l.b16 %v1300
    %v1439 = vunpack.c.l.b16 %v1301
    %v1440 = vunpack.c.h.b16 %v1299
    %v1441 = vunpack.c.h.b16 %v1300
    %v1442 = vunpack.c.h.b16 %v1301
    %v1443 = vunpack.c.l.b16 %v1302
    %v1444 = vunpack.c.l.b16 %v1303
    %v1445 = vunpack.c.l.b16 %v1304
    %v1446 = vunpack.c.h.b16 %v1302
    %v1447 = vunpack.c.h.b16 %v1303
    %v1448 = vunpack.c.h.b16 %v1304
    %v1449 = vpack.c.b16 %v1354, %v1353
    %v1450 = vpack.c.b16 %v1355, %v1355
    %v1451 = vpack.c.b16 %v1357, %v1356
    %v1452 = vpack.c.b16 %v1358, %v1358
    %v1453 = vpack.c.b16 %v1360, %v1359
    %v1454 = vpack.c.b16 %v1361, %v1361
    %v1455 = vpack.c.b16 %v1363, %v1362
    %v1456 = vpack.c.b16 %v1364, %v1364
    %v1457 = vpack.c.b16 %v1366, %v1365
    %v1458 = vpack.c.b16 %v1367, %v1367
    %v1459 = vpack.c.b16 %v1369, %v1368
    %v1460 = vpack.c.b16 %v1370, %v1370
    %v1461 = vpack.c.b16 %v1372, %v1371
    %v1462 = vpack.c.b16 %v1373, %v1373
    %v1463 = vpack.c.b16 %v1375, %v1374
    %v1464 = vpack.c.b16 %v1376, %v1376
    %v1465 = vpack.c.b16 %v1378, %v1377
    %v1466 = vpack.c.b16 %v1379, %v1379
    %v1467 = vpack.c.b16 %v1381, %v1380
    %v1468 = vpack.c.b16 %v1382, %v1382
    %v1469 = vpack.c.b16 %v1384, %v1383
    %v1470 = vpack.c.b16 %v1385, %v1385
    %v1471 = vpack.c.b16 %v1387, %v1386
    %v1472 = vpack.c.b16 %v1388, %v1388
    %v1473 = vpack.c.b16 %v1390, %v1389
    %v1474 = vpack.c.b16 %v1391, %v1391
    %v1475 = vpack.c.b16 %v1393, %v1392
    %v1476 = vpack.c.b16 %v1394, %v1394
    %v1477 = vpack.c.b16 %v1396, %v1395
    %v1478 = vpack.c.b16 %v1397, %v1397
    %v1479 = vpack.c.b16 %v1399, %v1398
    %v1480 = vpack.c.b16 %v1400, %v1400
    %v1481 = vpack.c.b16 %v1402, %v1401
    %v1482 = vpack.c.b16 %v1403, %v1403
    %v1483 = vpack.c.b16 %v1405, %v1404
    %v1484 = vpack.c.b16 %v1406, %v1406
    %v1485 = vpack.c.b16 %v1408, %v1407
    %v1486 = vpack.c.b16 %v1409, %v1409
    %v1487 = vpack.c.b16 %v1411, %v1410
    %v1488 = vpack.c.b16 %v1412, %v1412
    %v1489 = vpack.c.b16 %v1414, %v1413
    %v1490 = vpack.c.b16 %v1415, %v1415
    %v1491 = vpack.c.b16 %v1417, %v1416
    %v1492 = vpack.c.b16 %v1418, %v1418
    %v1493 = vpack.c.b16 %v1420, %v1419
    %v1494 = vpack.c.b16 %v1421, %v1421
    %v1495 = vpack.c.b16 %v1423, %v1422
    %v1496 = vpack.c.b16 %v1424, %v1424
    %v1497 = vpack.c.b16 %v1426, %v1425
    %v1498 = vpack.c.b16 %v1427, %v1427
    %v1499 = vpack.c.b16 %v1429, %v1428
    %v1500 = vpack.c.b16 %v1430, %v1430
    %v1501 = vpack.c.b16 %v1432, %v1431
    %v1502 = vpack.c.b16 %v1433, %v1433
    %v1503 = vpack.c.b16 %v1435, %v1434
    %v1504 = vpack.c.b16 %v1436, %v1436
    %v1505 = vpack.c.b16 %v1438, %v1437
    %v1506 = vpack.c.b16 %v1439, %v1439
    %v1507 = vpack.c.b16 %v1441, %v1440
    %v1508 = vpack.c.b16 %v1442, %v1442
    %v1509 = vpack.c.b16 %v1444, %v1443
    %v1510 = vpack.c.b16 %v1445, %v1445
    %v1511 = vpack.c.b16 %v1447, %v1446
    %v1512 = vpack.c.b16 %v1448, %v1448
    %1577 = vst [vmem:[%s3] sm:$0xff] %v1449
    %1578 = vst [vmem:[%s3 + $0x8] sm:$0xf] %v1450
    %1579 = vst [vmem:[%s3 + $0xc] sm:$0xff] %v1451
    %1580 = vst [vmem:[%s3 + $0x14] sm:$0xf] %v1452
    %1581 = vst [vmem:[%s3 + $0x18] sm:$0xff] %v1453
    %1582 = vst [vmem:[%s3 + $0x20] sm:$0xf] %v1454
    %1583 = vst [vmem:[%s3 + $0x24] sm:$0xff] %v1455
    %1584 = vst [vmem:[%s3 + $0x2c] sm:$0xf] %v1456
    %1585 = vst [vmem:[%s3 + $0x30] sm:$0xff] %v1457
    %1586 = vst [vmem:[%s3 + $0x38] sm:$0xf] %v1458
    %1587 = vst [vmem:[%s3 + $0x3c] sm:$0xff] %v1459
    %1588 = vst [vmem:[%s3 + $0x44] sm:$0xf] %v1460
    %1589 = vst [vmem:[%s3 + $0x48] sm:$0xff] %v1461
    %1590 = vst [vmem:[%s3 + $0x50] sm:$0xf] %v1462
    %1591 = vst [vmem:[%s3 + $0x54] sm:$0xff] %v1463
    %1592 = vst [vmem:[%s3 + $0x5c] sm:$0xf] %v1464
    %1593 = vst [vmem:[%s3 + $0x60] sm:$0xff] %v1465
    %1594 = vst [vmem:[%s3 + $0x68] sm:$0xf] %v1466
    %1595 = vst [vmem:[%s3 + $0x6c] sm:$0xff] %v1467
    %1596 = vst [vmem:[%s3 + $0x74] sm:$0xf] %v1468
    %1597 = vst [vmem:[%s3 + $0x78] sm:$0xff] %v1469
    %1598 = vst [vmem:[%s3 + $0x80] sm:$0xf] %v1470
    %1599 = vst [vmem:[%s3 + $0x84] sm:$0xff] %v1471
    %1600 = vst [vmem:[%s3 + $0x8c] sm:$0xf] %v1472
    %1601 = vst [vmem:[%s3 + $0x90] sm:$0xff] %v1473
    %1602 = vst [vmem:[%s3 + $0x98] sm:$0xf] %v1474
    %1603 = vst [vmem:[%s3 + $0x9c] sm:$0xff] %v1475
    %1604 = vst [vmem:[%s3 + $0xa4] sm:$0xf] %v1476
    %1605 = vst [vmem:[%s3 + $0xa8] sm:$0xff] %v1477
    %1606 = vst [vmem:[%s3 + $0xb0] sm:$0xf] %v1478
    %1607 = vst [vmem:[%s3 + $0xb4] sm:$0xff] %v1479
    %1608 = vst [vmem:[%s3 + $0xbc] sm:$0xf] %v1480
    %1609 = vst [vmem:[%s3 + $0xc0] sm:$0xff] %v1481
    %1610 = vst [vmem:[%s3 + $0xc8] sm:$0xf] %v1482
    %1611 = vst [vmem:[%s3 + $0xcc] sm:$0xff] %v1483
    %1612 = vst [vmem:[%s3 + $0xd4] sm:$0xf] %v1484
    %1613 = vst [vmem:[%s3 + $0xd8] sm:$0xff] %v1485
    %1614 = vst [vmem:[%s3 + $0xe0] sm:$0xf] %v1486
    %1615 = vst [vmem:[%s3 + $0xe4] sm:$0xff] %v1487
    %1616 = vst [vmem:[%s3 + $0xec] sm:$0xf] %v1488
    %1617 = vst [vmem:[%s3 + $0xf0] sm:$0xff] %v1489
    %1618 = vst [vmem:[%s3 + $0xf8] sm:$0xf] %v1490
    %1619 = vst [vmem:[%s3 + $0xfc] sm:$0xff] %v1491
    %1620 = vst [vmem:[%s3 + $0x104] sm:$0xf] %v1492
    %1621 = vst [vmem:[%s3 + $0x108] sm:$0xff] %v1493
    %1622 = vst [vmem:[%s3 + $0x110] sm:$0xf] %v1494
    %1623 = vst [vmem:[%s3 + $0x114] sm:$0xff] %v1495
    %1624 = vst [vmem:[%s3 + $0x11c] sm:$0xf] %v1496
    %1625 = vst [vmem:[%s3 + $0x120] sm:$0xff] %v1497
    %1626 = vst [vmem:[%s3 + $0x128] sm:$0xf] %v1498
    %1627 = vst [vmem:[%s3 + $0x12c] sm:$0xff] %v1499
    %1628 = vst [vmem:[%s3 + $0x134] sm:$0xf] %v1500
    %1629 = vst [vmem:[%s3 + $0x138] sm:$0xff] %v1501
    %1630 = vst [vmem:[%s3 + $0x140] sm:$0xf] %v1502
    %1631 = vst [vmem:[%s3 + $0x144] sm:$0xff] %v1503
    %1632 = vst [vmem:[%s3 + $0x14c] sm:$0xf] %v1504
    %1633 = vst [vmem:[%s3 + $0x150] sm:$0xff] %v1505
    %1634 = vst [vmem:[%s3 + $0x158] sm:$0xf] %v1506
    %1635 = vst [vmem:[%s3 + $0x15c] sm:$0xff] %v1507
    %1636 = vst [vmem:[%s3 + $0x164] sm:$0xf] %v1508
    %1637 = vst [vmem:[%s3 + $0x168] sm:$0xff] %v1509
    %1638 = vst [vmem:[%s3 + $0x170] sm:$0xf] %v1510
    %1639 = vst [vmem:[%s3 + $0x174] sm:$0xff] %v1511
    %1640 = vst [vmem:[%s3 + $0x17c] sm:$0xf] %v1512
  $region21: #{forward.13} parent=0 // pred_fallthru
    _
  // Predicated region
  $region22: #{forward.13} parent=0 // pred_check
    _
  $region23: #{forward.13} parent=0 // pred_check_branch
    %1642 = sbr.rel (0) target = $region25
  $region24: #{forward.13} parent=0 // pred_region
    _
  $region25: #{forward.13} parent=0 // pred_fallthru
    _
  // Predicated region
  $region26: #{forward.13} parent=0 // pred_check
    _
  $region27: #{forward.13} parent=0 // pred_check_branch
    %1644 = sbr.rel (0) target = $region29
  $region28: #{forward.13} parent=0 // pred_region
    _
  $region29: #{forward.13} parent=0 // pred_fallthru
    _

// kernel: forward.15
$region0: #{forward.15}
  #allocation0 [shape = 'u32[]', space=smem, size = 0x4, offset = 0x4, fixed_abs, tag = 'smem constant byte address 0x4 - core index']
  #allocation1 [shape = 'u32[144,128]{1,0:T(1,128)}', space=vmem, size = 0x12000, scoped, tag = 'internal scratch']
  #allocation2 [shape = 'f32[256,128]{1,0:T(8,128)}', space=vmem, size = 0x20000, scoped, tag = 'scratch operand']
  %s0 = inlined_call_operand.vmem [shape: bf16[256,128], index: 0, kind: input, shape index: {}]
  %s1 = inlined_call_operand.vmem [shape: bf16[128,128], index: 1, kind: input, shape index: {}]
  %s2 = inlined_call_operand.vmem [shape: f32[1,128], index: 2, kind: input, shape index: {}]
  %s3 = inlined_call_operand.vmem [shape: bf16[256,128], index: 3, kind: input, shape index: {}]
  %s4 = inlined_call_operand.vmem [shape: f32[1,128], index: 4, kind: input, shape index: {}]
  %s5 = inlined_call_operand.vmem [shape: f32[1,128], index: 5, kind: input, shape index: {}]
  %s6 = inlined_call_operand.vmem [shape: bf16[256,128], index: 6, kind: output, shape index: {}]
  %s7 = sld [smem:[#allocation0]]
  $region42: #{forward.15} parent=0
    _
  %s9 = ssub.s32 1, %s7
  %s10 = scalar_select 0, %s9, %s7
  // Predicated region
  $region2: #{forward.15} parent=0 // pred_check
    _
  $region3: #{forward.15} parent=0 // pred_check_branch
    %12 = sbr.rel (0) target = $region5
  $region4: #{forward.15} parent=0 // pred_region
    _
  $region5: #{forward.15} parent=0 // pred_fallthru
    _
  // Predicated region
  $region6: #{forward.15} parent=0 // pred_check
    _
  $region7: #{forward.15} parent=0 // pred_check_branch
    %14 = sbr.rel (0) target = $region9
  $region8: #{forward.15} parent=0 // pred_region
    _
  $region9: #{forward.15} parent=0 // pred_fallthru
    _
  // Predicated region
  $region10: #{forward.15} parent=0 // pred_check
    _
  $region11: #{forward.15} parent=0 // pred_check_branch
    %16 = sbr.rel (0) target = $region13
  $region12: #{forward.15} parent=0 // pred_region
    _
  $region13: #{forward.15} parent=0 // pred_fallthru
    _
  // Predicated region
  $region14: #{forward.15} parent=0 // pred_check
    _
  $region15: #{forward.15} parent=0 // pred_check_branch
    %18 = sbr.rel (0) target = $region17
  $region16: #{forward.15} parent=0 // pred_region
    _
  $region17: #{forward.15} parent=0 // pred_fallthru
    _
  // Predicated region
  $region18: #{forward.15} parent=0 // pred_check
    _
  $region19: #{forward.15} parent=0 // pred_check_branch
    %20 = sbr.rel (0) target = $region21
  $region20: #{forward.15} parent=0 // pred_region
    _
  $region21: #{forward.15} parent=0 // pred_fallthru
    _
  // Predicated region
  $region22: #{forward.15} parent=0 // pred_check
    _
  $region23: #{forward.15} parent=0 // pred_check_branch
    %22 = sbr.rel (0) target = $region25
  $region24: #{forward.15} parent=0 // pred_region
    _
  $region25: #{forward.15} parent=0 // pred_fallthru
    _
  %p24 = scmp.eq.s32.totalorder 0, 0
  // Predicated region
  $region26: #{forward.15} parent=0 // pred_check
    %p25 = pneg %p24
  $region27: #{forward.15} parent=0 // pred_check_branch
    %27 = sbr.rel (%p25) target = $region29
  $region28: #{forward.15} parent=0 // pred_region
    %28 = vst [vmem:[#allocation2] sm:$0xff] 0.0
    %29 = vst [vmem:[#allocation2 + $0x8] sm:$0xff] 0.0
    %30 = vst [vmem:[#allocation2 + $0x10] sm:$0xff] 0.0
    %31 = vst [vmem:[#allocation2 + $0x18] sm:$0xff] 0.0
    %32 = vst [vmem:[#allocation2 + $0x20] sm:$0xff] 0.0
    %33 = vst [vmem:[#allocation2 + $0x28] sm:$0xff] 0.0
    %34 = vst [vmem:[#allocation2 + $0x30] sm:$0xff] 0.0
    %35 = vst [vmem:[#allocation2 + $0x38] sm:$0xff] 0.0
    %36 = vst [vmem:[#allocation2 + $0x40] sm:$0xff] 0.0
    %37 = vst [vmem:[#allocation2 + $0x48] sm:$0xff] 0.0
    %38 = vst [vmem:[#allocation2 + $0x50] sm:$0xff] 0.0
    %39 = vst [vmem:[#allocation2 + $0x58] sm:$0xff] 0.0
    %40 = vst [vmem:[#allocation2 + $0x60] sm:$0xff] 0.0
    %41 = vst [vmem:[#allocation2 + $0x68] sm:$0xff] 0.0
    %42 = vst [vmem:[#allocation2 + $0x70] sm:$0xff] 0.0
    %43 = vst [vmem:[#allocation2 + $0x78] sm:$0xff] 0.0
    %44 = vst [vmem:[#allocation2 + $0x80] sm:$0xff] 0.0
    %45 = vst [vmem:[#allocation2 + $0x88] sm:$0xff] 0.0
    %46 = vst [vmem:[#allocation2 + $0x90] sm:$0xff] 0.0
    %47 = vst [vmem:[#allocation2 + $0x98] sm:$0xff] 0.0
    %48 = vst [vmem:[#allocation2 + $0xa0] sm:$0xff] 0.0
    %49 = vst [vmem:[#allocation2 + $0xa8] sm:$0xff] 0.0
    %50 = vst [vmem:[#allocation2 + $0xb0] sm:$0xff] 0.0
    %51 = vst [vmem:[#allocation2 + $0xb8] sm:$0xff] 0.0
    %52 = vst [vmem:[#allocation2 + $0xc0] sm:$0xff] 0.0
    %53 = vst [vmem:[#allocation2 + $0xc8] sm:$0xff] 0.0
    %54 = vst [vmem:[#allocation2 + $0xd0] sm:$0xff] 0.0
    %55 = vst [vmem:[#allocation2 + $0xd8] sm:$0xff] 0.0
    %56 = vst [vmem:[#allocation2 + $0xe0] sm:$0xff] 0.0
    %57 = vst [vmem:[#allocation2 + $0xe8] sm:$0xff] 0.0
    %58 = vst [vmem:[#allocation2 + $0xf0] sm:$0xff] 0.0
    %59 = vst [vmem:[#allocation2 + $0xf8] sm:$0xff] 0.0
  $region29: #{forward.15} parent=0 // pred_fallthru
    _
  %v60 = vld [vmem:[#allocation2] sm:$0xff]
  %v61 = vld [vmem:[#allocation2 + $0x8] sm:$0xff]
  %v62 = vld [vmem:[#allocation2 + $0x10] sm:$0xff]
  %v63 = vld [vmem:[#allocation2 + $0x18] sm:$0xff]
  %v64 = vld [vmem:[#allocation2 + $0x20] sm:$0xff]
  %v65 = vld [vmem:[#allocation2 + $0x28] sm:$0xff]
  %v66 = vld [vmem:[#allocation2 + $0x30] sm:$0xff]
  %v67 = vld [vmem:[#allocation2 + $0x38] sm:$0xff]
  %v68 = vld [vmem:[#allocation2 + $0x40] sm:$0xff]
  %v69 = vld [vmem:[#allocation2 + $0x48] sm:$0xff]
  %v70 = vld [vmem:[#allocation2 + $0x50] sm:$0xff]
  %v71 = vld [vmem:[#allocation2 + $0x58] sm:$0xff]
  %v72 = vld [vmem:[#allocation2 + $0x60] sm:$0xff]
  %v73 = vld [vmem:[#allocation2 + $0x68] sm:$0xff]
  %v74 = vld [vmem:[#allocation2 + $0x70] sm:$0xff]
  %v75 = vld [vmem:[#allocation2 + $0x78] sm:$0xff]
  %v76 = vld [vmem:[#allocation2 + $0x80] sm:$0xff]
  %v77 = vld [vmem:[#allocation2 + $0x88] sm:$0xff]
  %v78 = vld [vmem:[#allocation2 + $0x90] sm:$0xff]
  %v79 = vld [vmem:[#allocation2 + $0x98] sm:$0xff]
  %v80 = vld [vmem:[#allocation2 + $0xa0] sm:$0xff]
  %v81 = vld [vmem:[#allocation2 + $0xa8] sm:$0xff]
  %v82 = vld [vmem:[#allocation2 + $0xb0] sm:$0xff]
  %v83 = vld [vmem:[#allocation2 + $0xb8] sm:$0xff]
  %v84 = vld [vmem:[#allocation2 + $0xc0] sm:$0xff]
  %v85 = vld [vmem:[#allocation2 + $0xc8] sm:$0xff]
  %v86 = vld [vmem:[#allocation2 + $0xd0] sm:$0xff]
  %v87 = vld [vmem:[#allocation2 + $0xd8] sm:$0xff]
  %v88 = vld [vmem:[#allocation2 + $0xe0] sm:$0xff]
  %v89 = vld [vmem:[#allocation2 + $0xe8] sm:$0xff]
  %v90 = vld [vmem:[#allocation2 + $0xf0] sm:$0xff]
  %v91 = vld [vmem:[#allocation2 + $0xf8] sm:$0xff]
  %v92 = vld [vmem:[%s0] sm:$0xf]
  %v93 = vld [vmem:[%s0 + $0x4] sm:$0xf]
  %v94 = vld [vmem:[%s0 + $0x8] sm:$0xf]
  %v95 = vld [vmem:[%s0 + $0xc] sm:$0xf]
  %v96 = vld [vmem:[%s0 + $0x10] sm:$0xf]
  %v97 = vld [vmem:[%s0 + $0x14] sm:$0xf]
  %v98 = vld [vmem:[%s0 + $0x18] sm:$0xf]
  %v99 = vld [vmem:[%s0 + $0x1c] sm:$0xf]
  %v100 = vld [vmem:[%s0 + $0x20] sm:$0xf]
  %v101 = vld [vmem:[%s0 + $0x24] sm:$0xf]
  %v102 = vld [vmem:[%s0 + $0x28] sm:$0xf]
  %v103 = vld [vmem:[%s0 + $0x2c] sm:$0xf]
  %v104 = vld [vmem:[%s0 + $0x30] sm:$0xf]
  %v105 = vld [vmem:[%s0 + $0x34] sm:$0xf]
  %v106 = vld [vmem:[%s0 + $0x38] sm:$0xf]
  %v107 = vld [vmem:[%s0 + $0x3c] sm:$0xf]
  %v108 = vld [vmem:[%s0 + $0x40] sm:$0xf]
  %v109 = vld [vmem:[%s0 + $0x44] sm:$0xf]
  %v110 = vld [vmem:[%s0 + $0x48] sm:$0xf]
  %v111 = vld [vmem:[%s0 + $0x4c] sm:$0xf]
  %v112 = vld [vmem:[%s0 + $0x50] sm:$0xf]
  %v113 = vld [vmem:[%s0 + $0x54] sm:$0xf]
  %v114 = vld [vmem:[%s0 + $0x58] sm:$0xf]
  %v115 = vld [vmem:[%s0 + $0x5c] sm:$0xf]
  %v116 = vld [vmem:[%s0 + $0x60] sm:$0xf]
  %v117 = vld [vmem:[%s0 + $0x64] sm:$0xf]
  %v118 = vld [vmem:[%s0 + $0x68] sm:$0xf]
  %v119 = vld [vmem:[%s0 + $0x6c] sm:$0xf]
  %v120 = vld [vmem:[%s0 + $0x70] sm:$0xf]
  %v121 = vld [vmem:[%s0 + $0x74] sm:$0xf]
  %v122 = vld [vmem:[%s0 + $0x78] sm:$0xf]
  %v123 = vld [vmem:[%s0 + $0x7c] sm:$0xf]
  %v124 = vld [vmem:[%s1] sm:$0xf]
  %v125 = vld [vmem:[%s1 + $0x4] sm:$0xf]
  %v126 = vld [vmem:[%s1 + $0x8] sm:$0xf]
  %v127 = vld [vmem:[%s1 + $0xc] sm:$0xf]
  %v128 = vld [vmem:[%s1 + $0x10] sm:$0xf]
  %v129 = vld [vmem:[%s1 + $0x14] sm:$0xf]
  %v130 = vld [vmem:[%s1 + $0x18] sm:$0xf]
  %v131 = vld [vmem:[%s1 + $0x1c] sm:$0xf]
  %v132 = vld [vmem:[%s1 + $0x20] sm:$0xf]
  %v133 = vld [vmem:[%s1 + $0x24] sm:$0xf]
  %v134 = vld [vmem:[%s1 + $0x28] sm:$0xf]
  %v135 = vld [vmem:[%s1 + $0x2c] sm:$0xf]
  %v136 = vld [vmem:[%s1 + $0x30] sm:$0xf]
  %v137 = vld [vmem:[%s1 + $0x34] sm:$0xf]
  %v138 = vld [vmem:[%s1 + $0x38] sm:$0xf]
  %v139 = vld [vmem:[%s1 + $0x3c] sm:$0xf]
  %v172 = vunpack.c.l.b16 %v92
  %v173 = vunpack.c.l.b16 %v93
  %v174 = vunpack.c.l.b16 %v94
  %v175 = vunpack.c.l.b16 %v95
  %v176 = vunpack.c.l.b16 %v96
  %v177 = vunpack.c.l.b16 %v97
  %v178 = vunpack.c.l.b16 %v98
  %v179 = vunpack.c.l.b16 %v99
  %v180 = vunpack.c.l.b16 %v100
  %v181 = vunpack.c.l.b16 %v101
  %v182 = vunpack.c.l.b16 %v102
  %v183 = vunpack.c.l.b16 %v103
  %v184 = vunpack.c.l.b16 %v104
  %v185 = vunpack.c.l.b16 %v105
  %v186 = vunpack.c.l.b16 %v106
  %v187 = vunpack.c.l.b16 %v107
  %v188 = vunpack.c.l.b16 %v108
  %v189 = vunpack.c.l.b16 %v109
  %v190 = vunpack.c.l.b16 %v110
  %v191 = vunpack.c.l.b16 %v111
  %v192 = vunpack.c.l.b16 %v112
  %v193 = vunpack.c.l.b16 %v113
  %v194 = vunpack.c.l.b16 %v114
  %v195 = vunpack.c.l.b16 %v115
  %v196 = vunpack.c.l.b16 %v116
  %v197 = vunpack.c.l.b16 %v117
  %v198 = vunpack.c.l.b16 %v118
  %v199 = vunpack.c.l.b16 %v119
  %v200 = vunpack.c.l.b16 %v120
  %v201 = vunpack.c.l.b16 %v121
  %v202 = vunpack.c.l.b16 %v122
  %v203 = vunpack.c.l.b16 %v123
  %v204 = vpack.c.b16 %v173, %v172
  %v205 = vpack.c.b16 %v175, %v174
  %v206 = vpack.c.b16 %v177, %v176
  %v207 = vpack.c.b16 %v179, %v178
  %v208 = vpack.c.b16 %v181, %v180
  %v209 = vpack.c.b16 %v183, %v182
  %v210 = vpack.c.b16 %v185, %v184
  %v211 = vpack.c.b16 %v187, %v186
  %v212 = vpack.c.b16 %v189, %v188
  %v213 = vpack.c.b16 %v191, %v190
  %v214 = vpack.c.b16 %v193, %v192
  %v215 = vpack.c.b16 %v195, %v194
  %v216 = vpack.c.b16 %v197, %v196
  %v217 = vpack.c.b16 %v199, %v198
  %v218 = vpack.c.b16 %v201, %v200
  %v219 = vpack.c.b16 %v203, %v202
  %v252 = vunpack.c.l.b16 %v124
  %v253 = vunpack.c.l.b16 %v125
  %v254 = vunpack.c.l.b16 %v126
  %v255 = vunpack.c.l.b16 %v127
  %v256 = vunpack.c.l.b16 %v128
  %v257 = vunpack.c.l.b16 %v129
  %v258 = vunpack.c.l.b16 %v130
  %v259 = vunpack.c.l.b16 %v131
  %v260 = vunpack.c.l.b16 %v132
  %v261 = vunpack.c.l.b16 %v133
  %v262 = vunpack.c.l.b16 %v134
  %v263 = vunpack.c.l.b16 %v135
  %v264 = vunpack.c.l.b16 %v136
  %v265 = vunpack.c.l.b16 %v137
  %v266 = vunpack.c.l.b16 %v138
  %v267 = vunpack.c.l.b16 %v139
  %v268 = vpack.c.b16 %v253, %v252
  %v269 = vpack.c.b16 %v255, %v254
  %v270 = vpack.c.b16 %v257, %v256
  %v271 = vpack.c.b16 %v259, %v258
  %v272 = vpack.c.b16 %v261, %v260
  %v273 = vpack.c.b16 %v263, %v262
  %v274 = vpack.c.b16 %v265, %v264
  %v275 = vpack.c.b16 %v267, %v266
  %284 = vmatprep.subr.bf16.mxu0 0
  %285 = vmatpush1.bf16.msra.mxu0 %v268
  %286 = vmatprep.subr.bf16.mxu0 0
  %287 = vmatpush1.bf16.msra.mxu0 %v269
  %288 = vmatprep.subr.bf16.mxu0 0
  %289 = vmatpush1.bf16.msra.mxu0 %v270
  %290 = vmatprep.subr.bf16.mxu0 0
  %291 = vmatpush1.bf16.msra.mxu0 %v271
  %292 = vmatprep.subr.bf16.mxu0 0
  %293 = vmatpush1.bf16.msra.mxu0 %v272
  %294 = vmatprep.subr.bf16.mxu0 0
  %295 = vmatpush1.bf16.msra.mxu0 %v273
  %296 = vmatprep.subr.bf16.mxu0 0
  %297 = vmatpush1.bf16.msra.mxu0 %v274
  %298 = vmatprep.subr.bf16.mxu0 0
  %299 = vmatpush1.bf16.msra.mxu0 %v275
  %300 = vmatprep.subr.bf16.mxu0 0
  %301 = vmatpush1.bf16.msra.mxu0 0
  %302 = vmatprep.subr.bf16.mxu0 0
  %303 = vmatpush1.bf16.msra.mxu0 0
  %304 = vmatprep.subr.bf16.mxu0 0
  %305 = vmatpush1.bf16.msra.mxu0 0
  %306 = vmatprep.subr.bf16.mxu0 0
  %307 = vmatpush1.bf16.msra.mxu0 0
  %308 = vmatprep.subr.bf16.mxu0 0
  %309 = vmatpush1.bf16.msra.mxu0 0
  %310 = vmatprep.subr.bf16.mxu0 0
  %311 = vmatpush1.bf16.msra.mxu0 0
  %312 = vmatprep.subr.bf16.mxu0 0
  %313 = vmatpush1.bf16.msra.mxu0 0
  %314 = vmatprep.subr.bf16.mxu0 0
  %315 = vmatpush1.bf16.msra.mxu0 0
  %316 = vmatprep.mubr.bf16.mxu0 0
  %317 = vmatmul.mubr.bf16.gmra.mrb[0].mxu0 %v204
  %v318 = vpop.f32.mrb[0].mxu0
  %v319 = vadd.f32 0.0, %v318
  %v320 = vpop.f32.mrb[0].mxu0
  %v321 = vpop.f32.mrb[0].mxu0
  %v322 = vadd.f32 0.0, %v321
  %v323 = vpop.f32.mrb[0].mxu0
  %324 = vmatprep.mubr.bf16.mxu0 0
  %325 = vmatmul.mubr.bf16.gmra.mrb[0].mxu0 %v205
  %v326 = vpop.f32.mrb[0].mxu0
  %v327 = vadd.f32 0.0, %v326
  %v328 = vpop.f32.mrb[0].mxu0
  %v329 = vpop.f32.mrb[0].mxu0
  %v330 = vadd.f32 0.0, %v329
  %v331 = vpop.f32.mrb[0].mxu0
  %332 = vmatprep.mubr.bf16.mxu0 0
  %333 = vmatmul.mubr.bf16.gmra.mrb[0].mxu0 %v206
  %v334 = vpop.f32.mrb[0].mxu0
  %v335 = vadd.f32 0.0, %v334
  %v336 = vpop.f32.mrb[0].mxu0
  %v337 = vpop.f32.mrb[0].mxu0
  %v338 = vadd.f32 0.0, %v337
  %v339 = vpop.f32.mrb[0].mxu0
  %340 = vmatprep.mubr.bf16.mxu0 0
  %341 = vmatmul.mubr.bf16.gmra.mrb[0].mxu0 %v207
  %v342 = vpop.f32.mrb[0].mxu0
  %v343 = vadd.f32 0.0, %v342
  %v344 = vpop.f32.mrb[0].mxu0
  %v345 = vpop.f32.mrb[0].mxu0
  %v346 = vadd.f32 0.0, %v345
  %v347 = vpop.f32.mrb[0].mxu0
  %348 = vmatprep.mubr.bf16.mxu0 0
  %349 = vmatmul.mubr.bf16.gmra.mrb[0].mxu0 %v208
  %v350 = vpop.f32.mrb[0].mxu0
  %v351 = vadd.f32 0.0, %v350
  %v352 = vpop.f32.mrb[0].mxu0
  %v353 = vpop.f32.mrb[0].mxu0
  %v354 = vadd.f32 0.0, %v353
  %v355 = vpop.f32.mrb[0].mxu0
  %356 = vmatprep.mubr.bf16.mxu0 0
  %357 = vmatmul.mubr.bf16.gmra.mrb[0].mxu0 %v209
  %v358 = vpop.f32.mrb[0].mxu0
  %v359 = vadd.f32 0.0, %v358
  %v360 = vpop.f32.mrb[0].mxu0
  %v361 = vpop.f32.mrb[0].mxu0
  %v362 = vadd.f32 0.0, %v361
  %v363 = vpop.f32.mrb[0].mxu0
  %364 = vmatprep.mubr.bf16.mxu0 0
  %365 = vmatmul.mubr.bf16.gmra.mrb[0].mxu0 %v210
  %v366 = vpop.f32.mrb[0].mxu0
  %v367 = vadd.f32 0.0, %v366
  %v368 = vpop.f32.mrb[0].mxu0
  %v369 = vpop.f32.mrb[0].mxu0
  %v370 = vadd.f32 0.0, %v369
  %v371 = vpop.f32.mrb[0].mxu0
  %372 = vmatprep.mubr.bf16.mxu0 0
  %373 = vmatmul.mubr.bf16.gmra.mrb[0].mxu0 %v211
  %v374 = vpop.f32.mrb[0].mxu0
  %v375 = vadd.f32 0.0, %v374
  %v376 = vpop.f32.mrb[0].mxu0
  %v377 = vpop.f32.mrb[0].mxu0
  %v378 = vadd.f32 0.0, %v377
  %v379 = vpop.f32.mrb[0].mxu0
  %380 = vmatprep.mubr.bf16.mxu0 0
  %381 = vmatmul.mubr.bf16.gmra.mrb[0].mxu0 %v212
  %v382 = vpop.f32.mrb[0].mxu0
  %v383 = vadd.f32 0.0, %v382
  %v384 = vpop.f32.mrb[0].mxu0
  %v385 = vpop.f32.mrb[0].mxu0
  %v386 = vadd.f32 0.0, %v385
  %v387 = vpop.f32.mrb[0].mxu0
  %388 = vmatprep.mubr.bf16.mxu0 0
  %389 = vmatmul.mubr.bf16.gmra.mrb[0].mxu0 %v213
  %v390 = vpop.f32.mrb[0].mxu0
  %v391 = vadd.f32 0.0, %v390
  %v392 = vpop.f32.mrb[0].mxu0
  %v393 = vpop.f32.mrb[0].mxu0
  %v394 = vadd.f32 0.0, %v393
  %v395 = vpop.f32.mrb[0].mxu0
  %396 = vmatprep.mubr.bf16.mxu0 0
  %397 = vmatmul.mubr.bf16.gmra.mrb[0].mxu0 %v214
  %v398 = vpop.f32.mrb[0].mxu0
  %v399 = vadd.f32 0.0, %v398
  %v400 = vpop.f32.mrb[0].mxu0
  %v401 = vpop.f32.mrb[0].mxu0
  %v402 = vadd.f32 0.0, %v401
  %v403 = vpop.f32.mrb[0].mxu0
  %404 = vmatprep.mubr.bf16.mxu0 0
  %405 = vmatmul.mubr.bf16.gmra.mrb[0].mxu0 %v215
  %v406 = vpop.f32.mrb[0].mxu0
  %v407 = vadd.f32 0.0, %v406
  %v408 = vpop.f32.mrb[0].mxu0
  %v409 = vpop.f32.mrb[0].mxu0
  %v410 = vadd.f32 0.0, %v409
  %v411 = vpop.f32.mrb[0].mxu0
  %412 = vmatprep.mubr.bf16.mxu0 0
  %413 = vmatmul.mubr.bf16.gmra.mrb[0].mxu0 %v216
  %v414 = vpop.f32.mrb[0].mxu0
  %v415 = vadd.f32 0.0, %v414
  %v416 = vpop.f32.mrb[0].mxu0
  %v417 = vpop.f32.mrb[0].mxu0
  %v418 = vadd.f32 0.0, %v417
  %v419 = vpop.f32.mrb[0].mxu0
  %420 = vmatprep.mubr.bf16.mxu0 0
  %421 = vmatmul.mubr.bf16.gmra.mrb[0].mxu0 %v217
  %v422 = vpop.f32.mrb[0].mxu0
  %v423 = vadd.f32 0.0, %v422
  %v424 = vpop.f32.mrb[0].mxu0
  %v425 = vpop.f32.mrb[0].mxu0
  %v426 = vadd.f32 0.0, %v425
  %v427 = vpop.f32.mrb[0].mxu0
  %428 = vmatprep.mubr.bf16.mxu0 0
  %429 = vmatmul.mubr.bf16.gmra.mrb[0].mxu0 %v218
  %v430 = vpop.f32.mrb[0].mxu0
  %v431 = vadd.f32 0.0, %v430
  %v432 = vpop.f32.mrb[0].mxu0
  %v433 = vpop.f32.mrb[0].mxu0
  %v434 = vadd.f32 0.0, %v433
  %v435 = vpop.f32.mrb[0].mxu0
  %436 = vmatprep.mubr.bf16.mxu0 0
  %437 = vmatmul.mubr.bf16.gmra.mrb[0].mxu0 %v219
  %v438 = vpop.f32.mrb[0].mxu0
  %v439 = vadd.f32 0.0, %v438
  %v440 = vpop.f32.mrb[0].mxu0
  %v441 = vpop.f32.mrb[0].mxu0
  %v442 = vadd.f32 0.0, %v441
  %v443 = vpop.f32.mrb[0].mxu0
  %444 = vdwg.mxu0
  %v445 = vadd.f32 %v60, %v319
  %v446 = vadd.f32 %v61, %v322
  %v447 = vadd.f32 %v62, %v327
  %v448 = vadd.f32 %v63, %v330
  %v449 = vadd.f32 %v64, %v335
  %v450 = vadd.f32 %v65, %v338
  %v451 = vadd.f32 %v66, %v343
  %v452 = vadd.f32 %v67, %v346
  %v453 = vadd.f32 %v68, %v351
  %v454 = vadd.f32 %v69, %v354
  %v455 = vadd.f32 %v70, %v359
  %v456 = vadd.f32 %v71, %v362
  %v457 = vadd.f32 %v72, %v367
  %v458 = vadd.f32 %v73, %v370
  %v459 = vadd.f32 %v74, %v375
  %v460 = vadd.f32 %v75, %v378
  %v461 = vadd.f32 %v76, %v383
  %v462 = vadd.f32 %v77, %v386
  %v463 = vadd.f32 %v78, %v391
  %v464 = vadd.f32 %v79, %v394
  %v465 = vadd.f32 %v80, %v399
  %v466 = vadd.f32 %v81, %v402
  %v467 = vadd.f32 %v82, %v407
  %v468 = vadd.f32 %v83, %v410
  %v469 = vadd.f32 %v84, %v415
  %v470 = vadd.f32 %v85, %v418
  %v471 = vadd.f32 %v86, %v423
  %v472 = vadd.f32 %v87, %v426
  %v473 = vadd.f32 %v88, %v431
  %v474 = vadd.f32 %v89, %v434
  %v475 = vadd.f32 %v90, %v439
  %v476 = vadd.f32 %v91, %v442
  %477 = vst [vmem:[#allocation2] sm:$0xff] %v445
  %478 = vst [vmem:[#allocation2 + $0x8] sm:$0xff] %v446
  %479 = vst [vmem:[#allocation2 + $0x10] sm:$0xff] %v447
  %480 = vst [vmem:[#allocation2 + $0x18] sm:$0xff] %v448
  %481 = vst [vmem:[#allocation2 + $0x20] sm:$0xff] %v449
  %482 = vst [vmem:[#allocation2 + $0x28] sm:$0xff] %v450
  %483 = vst [vmem:[#allocation2 + $0x30] sm:$0xff] %v451
  %484 = vst [vmem:[#allocation2 + $0x38] sm:$0xff] %v452
  %485 = vst [vmem:[#allocation2 + $0x40] sm:$0xff] %v453
  %486 = vst [vmem:[#allocation2 + $0x48] sm:$0xff] %v454
  %487 = vst [vmem:[#allocation2 + $0x50] sm:$0xff] %v455
  %488 = vst [vmem:[#allocation2 + $0x58] sm:$0xff] %v456
  %489 = vst [vmem:[#allocation2 + $0x60] sm:$0xff] %v457
  %490 = vst [vmem:[#allocation2 + $0x68] sm:$0xff] %v458
  %491 = vst [vmem:[#allocation2 + $0x70] sm:$0xff] %v459
  %492 = vst [vmem:[#allocation2 + $0x78] sm:$0xff] %v460
  %493 = vst [vmem:[#allocation2 + $0x80] sm:$0xff] %v461
  %494 = vst [vmem:[#allocation2 + $0x88] sm:$0xff] %v462
  %495 = vst [vmem:[#allocation2 + $0x90] sm:$0xff] %v463
  %496 = vst [vmem:[#allocation2 + $0x98] sm:$0xff] %v464
  %497 = vst [vmem:[#allocation2 + $0xa0] sm:$0xff] %v465
  %498 = vst [vmem:[#allocation2 + $0xa8] sm:$0xff] %v466
  %499 = vst [vmem:[#allocation2 + $0xb0] sm:$0xff] %v467
  %500 = vst [vmem:[#allocation2 + $0xb8] sm:$0xff] %v468
  %501 = vst [vmem:[#allocation2 + $0xc0] sm:$0xff] %v469
  %502 = vst [vmem:[#allocation2 + $0xc8] sm:$0xff] %v470
  %503 = vst [vmem:[#allocation2 + $0xd0] sm:$0xff] %v471
  %504 = vst [vmem:[#allocation2 + $0xd8] sm:$0xff] %v472
  %505 = vst [vmem:[#allocation2 + $0xe0] sm:$0xff] %v473
  %506 = vst [vmem:[#allocation2 + $0xe8] sm:$0xff] %v474
  %507 = vst [vmem:[#allocation2 + $0xf0] sm:$0xff] %v475
  %508 = vst [vmem:[#allocation2 + $0xf8] sm:$0xff] %v476
  // Predicated region
  $region30: #{forward.15} parent=0 // pred_check
    %p509 = pneg %p24
  $region31: #{forward.15} parent=0 // pred_check_branch
    %511 = sbr.rel (%p509) target = $region33
  $region32: #{forward.15} parent=0 // pred_region
    %v512 = vld [vmem:[#allocation2] sm:$0xff]
    %v513 = vld [vmem:[#allocation2 + $0x8] sm:$0xff]
    %v514 = vld [vmem:[#allocation2 + $0x10] sm:$0xff]
    %v515 = vld [vmem:[#allocation2 + $0x18] sm:$0xff]
    %v516 = vld [vmem:[#allocation2 + $0x20] sm:$0xff]
    %v517 = vld [vmem:[#allocation2 + $0x28] sm:$0xff]
    %v518 = vld [vmem:[#allocation2 + $0x30] sm:$0xff]
    %v519 = vld [vmem:[#allocation2 + $0x38] sm:$0xff]
    %v520 = vld [vmem:[#allocation2 + $0x40] sm:$0xff]
    %v521 = vld [vmem:[#allocation2 + $0x48] sm:$0xff]
    %v522 = vld [vmem:[#allocation2 + $0x50] sm:$0xff]
    %v523 = vld [vmem:[#allocation2 + $0x58] sm:$0xff]
    %v524 = vld [vmem:[#allocation2 + $0x60] sm:$0xff]
    %v525 = vld [vmem:[#allocation2 + $0x68] sm:$0xff]
    %v526 = vld [vmem:[#allocation2 + $0x70] sm:$0xff]
    %v527 = vld [vmem:[#allocation2 + $0x78] sm:$0xff]
    %v528 = vld [vmem:[#allocation2 + $0x80] sm:$0xff]
    %v529 = vld [vmem:[#allocation2 + $0x88] sm:$0xff]
    %v530 = vld [vmem:[#allocation2 + $0x90] sm:$0xff]
    %v531 = vld [vmem:[#allocation2 + $0x98] sm:$0xff]
    %v532 = vld [vmem:[#allocation2 + $0xa0] sm:$0xff]
    %v533 = vld [vmem:[#allocation2 + $0xa8] sm:$0xff]
    %v534 = vld [vmem:[#allocation2 + $0xb0] sm:$0xff]
    %v535 = vld [vmem:[#allocation2 + $0xb8] sm:$0xff]
    %v536 = vld [vmem:[#allocation2 + $0xc0] sm:$0xff]
    %v537 = vld [vmem:[#allocation2 + $0xc8] sm:$0xff]
    %v538 = vld [vmem:[#allocation2 + $0xd0] sm:$0xff]
    %v539 = vld [vmem:[#allocation2 + $0xd8] sm:$0xff]
    %v540 = vld [vmem:[#allocation2 + $0xe0] sm:$0xff]
    %v541 = vld [vmem:[#allocation2 + $0xe8] sm:$0xff]
    %v542 = vld [vmem:[#allocation2 + $0xf0] sm:$0xff]
    %v543 = vld [vmem:[#allocation2 + $0xf8] sm:$0xff]
    %v544 = vld [vmem:[%s2] sm:$0x1]
    %v546 = vlaneseq
    %v547 = vshrl.u32 %v546, 7
    %v548 = vsub.s32 0, %v547
    %v549 = vrot.slane %v544, %v548
    %v551 = vadd.f32 %v512, %v549
    %v552 = vadd.f32 %v513, %v549
    %v553 = vadd.f32 %v514, %v549
    %v554 = vadd.f32 %v515, %v549
    %v555 = vadd.f32 %v516, %v549
    %v556 = vadd.f32 %v517, %v549
    %v557 = vadd.f32 %v518, %v549
    %v558 = vadd.f32 %v519, %v549
    %v559 = vadd.f32 %v520, %v549
    %v560 = vadd.f32 %v521, %v549
    %v561 = vadd.f32 %v522, %v549
    %v562 = vadd.f32 %v523, %v549
    %v563 = vadd.f32 %v524, %v549
    %v564 = vadd.f32 %v525, %v549
    %v565 = vadd.f32 %v526, %v549
    %v566 = vadd.f32 %v527, %v549
    %v567 = vadd.f32 %v528, %v549
    %v568 = vadd.f32 %v529, %v549
    %v569 = vadd.f32 %v530, %v549
    %v570 = vadd.f32 %v531, %v549
    %v571 = vadd.f32 %v532, %v549
    %v572 = vadd.f32 %v533, %v549
    %v573 = vadd.f32 %v534, %v549
    %v574 = vadd.f32 %v535, %v549
    %v575 = vadd.f32 %v536, %v549
    %v576 = vadd.f32 %v537, %v549
    %v577 = vadd.f32 %v538, %v549
    %v578 = vadd.f32 %v539, %v549
    %v579 = vadd.f32 %v540, %v549
    %v580 = vadd.f32 %v541, %v549
    %v581 = vadd.f32 %v542, %v549
    %v582 = vadd.f32 %v543, %v549
    %v583 = vld [vmem:[%s3] sm:$0xf]
    %v584 = vld [vmem:[%s3 + $0x4] sm:$0xf]
    %v585 = vld [vmem:[%s3 + $0x8] sm:$0xf]
    %v586 = vld [vmem:[%s3 + $0xc] sm:$0xf]
    %v587 = vld [vmem:[%s3 + $0x10] sm:$0xf]
    %v588 = vld [vmem:[%s3 + $0x14] sm:$0xf]
    %v589 = vld [vmem:[%s3 + $0x18] sm:$0xf]
    %v590 = vld [vmem:[%s3 + $0x1c] sm:$0xf]
    %v591 = vld [vmem:[%s3 + $0x20] sm:$0xf]
    %v592 = vld [vmem:[%s3 + $0x24] sm:$0xf]
    %v593 = vld [vmem:[%s3 + $0x28] sm:$0xf]
    %v594 = vld [vmem:[%s3 + $0x2c] sm:$0xf]
    %v595 = vld [vmem:[%s3 + $0x30] sm:$0xf]
    %v596 = vld [vmem:[%s3 + $0x34] sm:$0xf]
    %v597 = vld [vmem:[%s3 + $0x38] sm:$0xf]
    %v598 = vld [vmem:[%s3 + $0x3c] sm:$0xf]
    %v599 = vld [vmem:[%s3 + $0x40] sm:$0xf]
    %v600 = vld [vmem:[%s3 + $0x44] sm:$0xf]
    %v601 = vld [vmem:[%s3 + $0x48] sm:$0xf]
    %v602 = vld [vmem:[%s3 + $0x4c] sm:$0xf]
    %v603 = vld [vmem:[%s3 + $0x50] sm:$0xf]
    %v604 = vld [vmem:[%s3 + $0x54] sm:$0xf]
    %v605 = vld [vmem:[%s3 + $0x58] sm:$0xf]
    %v606 = vld [vmem:[%s3 + $0x5c] sm:$0xf]
    %v607 = vld [vmem:[%s3 + $0x60] sm:$0xf]
    %v608 = vld [vmem:[%s3 + $0x64] sm:$0xf]
    %v609 = vld [vmem:[%s3 + $0x68] sm:$0xf]
    %v610 = vld [vmem:[%s3 + $0x6c] sm:$0xf]
    %v611 = vld [vmem:[%s3 + $0x70] sm:$0xf]
    %v612 = vld [vmem:[%s3 + $0x74] sm:$0xf]
    %v613 = vld [vmem:[%s3 + $0x78] sm:$0xf]
    %v614 = vld [vmem:[%s3 + $0x7c] sm:$0xf]
    %v615 = vunpack.c.l.bf16 %v583
    %v616 = vunpack.c.l.bf16 %v584
    %v617 = vunpack.c.l.bf16 %v585
    %v618 = vunpack.c.l.bf16 %v586
    %v619 = vunpack.c.l.bf16 %v587
    %v620 = vunpack.c.l.bf16 %v588
    %v621 = vunpack.c.l.bf16 %v589
    %v622 = vunpack.c.l.bf16 %v590
    %v623 = vunpack.c.l.bf16 %v591
    %v624 = vunpack.c.l.bf16 %v592
    %v625 = vunpack.c.l.bf16 %v593
    %v626 = vunpack.c.l.bf16 %v594
    %v627 = vunpack.c.l.bf16 %v595
    %v628 = vunpack.c.l.bf16 %v596
    %v629 = vunpack.c.l.bf16 %v597
    %v630 = vunpack.c.l.bf16 %v598
    %v631 = vunpack.c.l.bf16 %v599
    %v632 = vunpack.c.l.bf16 %v600
    %v633 = vunpack.c.l.bf16 %v601
    %v634 = vunpack.c.l.bf16 %v602
    %v635 = vunpack.c.l.bf16 %v603
    %v636 = vunpack.c.l.bf16 %v604
    %v637 = vunpack.c.l.bf16 %v605
    %v638 = vunpack.c.l.bf16 %v606
    %v639 = vunpack.c.l.bf16 %v607
    %v640 = vunpack.c.l.bf16 %v608
    %v641 = vunpack.c.l.bf16 %v609
    %v642 = vunpack.c.l.bf16 %v610
    %v643 = vunpack.c.l.bf16 %v611
    %v644 = vunpack.c.l.bf16 %v612
    %v645 = vunpack.c.l.bf16 %v613
    %v646 = vunpack.c.l.bf16 %v614
    %v647 = vadd.f32 %v551, %v615
    %v648 = vadd.f32 %v552, %v616
    %v649 = vadd.f32 %v553, %v617
    %v650 = vadd.f32 %v554, %v618
    %v651 = vadd.f32 %v555, %v619
    %v652 = vadd.f32 %v556, %v620
    %v653 = vadd.f32 %v557, %v621
    %v654 = vadd.f32 %v558, %v622
    %v655 = vadd.f32 %v559, %v623
    %v656 = vadd.f32 %v560, %v624
    %v657 = vadd.f32 %v561, %v625
    %v658 = vadd.f32 %v562, %v626
    %v659 = vadd.f32 %v563, %v627
    %v660 = vadd.f32 %v564, %v628
    %v661 = vadd.f32 %v565, %v629
    %v662 = vadd.f32 %v566, %v630
    %v663 = vadd.f32 %v567, %v631
    %v664 = vadd.f32 %v568, %v632
    %v665 = vadd.f32 %v569, %v633
    %v666 = vadd.f32 %v570, %v634
    %v667 = vadd.f32 %v571, %v635
    %v668 = vadd.f32 %v572, %v636
    %v669 = vadd.f32 %v573, %v637
    %v670 = vadd.f32 %v574, %v638
    %v671 = vadd.f32 %v575, %v639
    %v672 = vadd.f32 %v576, %v640
    %v673 = vadd.f32 %v577, %v641
    %v674 = vadd.f32 %v578, %v642
    %v675 = vadd.f32 %v579, %v643
    %v676 = vadd.f32 %v580, %v644
    %v677 = vadd.f32 %v581, %v645
    %v678 = vadd.f32 %v582, %v646
    %679 = vadd.xlane.f32.xlu0 %v647
    %v680 = vpop.xlane.xlu0 %679
    %681 = vadd.xlane.f32.xlu0 %v648
    %v682 = vpop.xlane.xlu0 %681
    %683 = vadd.xlane.f32.xlu0 %v649
    %v684 = vpop.xlane.xlu0 %683
    %685 = vadd.xlane.f32.xlu0 %v650
    %v686 = vpop.xlane.xlu0 %685
    %687 = vadd.xlane.f32.xlu0 %v651
    %v688 = vpop.xlane.xlu0 %687
    %689 = vadd.xlane.f32.xlu0 %v652
    %v690 = vpop.xlane.xlu0 %689
    %691 = vadd.xlane.f32.xlu0 %v653
    %v692 = vpop.xlane.xlu0 %691
    %693 = vadd.xlane.f32.xlu0 %v654
    %v694 = vpop.xlane.xlu0 %693
    %695 = vadd.xlane.f32.xlu0 %v655
    %v696 = vpop.xlane.xlu0 %695
    %697 = vadd.xlane.f32.xlu0 %v656
    %v698 = vpop.xlane.xlu0 %697
    %699 = vadd.xlane.f32.xlu0 %v657
    %v700 = vpop.xlane.xlu0 %699
    %701 = vadd.xlane.f32.xlu0 %v658
    %v702 = vpop.xlane.xlu0 %701
    %703 = vadd.xlane.f32.xlu0 %v659
    %v704 = vpop.xlane.xlu0 %703
    %705 = vadd.xlane.f32.xlu0 %v660
    %v706 = vpop.xlane.xlu0 %705
    %707 = vadd.xlane.f32.xlu0 %v661
    %v708 = vpop.xlane.xlu0 %707
    %709 = vadd.xlane.f32.xlu0 %v662
    %v710 = vpop.xlane.xlu0 %709
    %711 = vadd.xlane.f32.xlu0 %v663
    %v712 = vpop.xlane.xlu0 %711
    %713 = vadd.xlane.f32.xlu0 %v664
    %v714 = vpop.xlane.xlu0 %713
    %715 = vadd.xlane.f32.xlu0 %v665
    %v716 = vpop.xlane.xlu0 %715
    %717 = vadd.xlane.f32.xlu0 %v666
    %v718 = vpop.xlane.xlu0 %717
    %719 = vadd.xlane.f32.xlu0 %v667
    %v720 = vpop.xlane.xlu0 %719
    %721 = vadd.xlane.f32.xlu0 %v668
    %v722 = vpop.xlane.xlu0 %721
    %723 = vadd.xlane.f32.xlu0 %v669
    %v724 = vpop.xlane.xlu0 %723
    %725 = vadd.xlane.f32.xlu0 %v670
    %v726 = vpop.xlane.xlu0 %725
    %727 = vadd.xlane.f32.xlu0 %v671
    %v728 = vpop.xlane.xlu0 %727
    %729 = vadd.xlane.f32.xlu0 %v672
    %v730 = vpop.xlane.xlu0 %729
    %731 = vadd.xlane.f32.xlu0 %v673
    %v732 = vpop.xlane.xlu0 %731
    %733 = vadd.xlane.f32.xlu0 %v674
    %v734 = vpop.xlane.xlu0 %733
    %735 = vadd.xlane.f32.xlu0 %v675
    %v736 = vpop.xlane.xlu0 %735
    %737 = vadd.xlane.f32.xlu0 %v676
    %v738 = vpop.xlane.xlu0 %737
    %739 = vadd.xlane.f32.xlu0 %v677
    %v740 = vpop.xlane.xlu0 %739
    %741 = vadd.xlane.f32.xlu0 %v678
    %v742 = vpop.xlane.xlu0 %741
    %v743 = vrcp.pop 128.0
    %v744 = vmul.f32 %v680, %v743
    %v745 = vmul.f32 %v682, %v743
    %v746 = vmul.f32 %v684, %v743
    %v747 = vmul.f32 %v686, %v743
    %v748 = vmul.f32 %v688, %v743
    %v749 = vmul.f32 %v690, %v743
    %v750 = vmul.f32 %v692, %v743
    %v751 = vmul.f32 %v694, %v743
    %v752 = vmul.f32 %v696, %v743
    %v753 = vmul.f32 %v698, %v743
    %v754 = vmul.f32 %v700, %v743
    %v755 = vmul.f32 %v702, %v743
    %v756 = vmul.f32 %v704, %v743
    %v757 = vmul.f32 %v706, %v743
    %v758 = vmul.f32 %v708, %v743
    %v759 = vmul.f32 %v710, %v743
    %v760 = vmul.f32 %v712, %v743
    %v761 = vmul.f32 %v714, %v743
    %v762 = vmul.f32 %v716, %v743
    %v763 = vmul.f32 %v718, %v743
    %v764 = vmul.f32 %v720, %v743
    %v765 = vmul.f32 %v722, %v743
    %v766 = vmul.f32 %v724, %v743
    %v767 = vmul.f32 %v726, %v743
    %v768 = vmul.f32 %v728, %v743
    %v769 = vmul.f32 %v730, %v743
    %v770 = vmul.f32 %v732, %v743
    %v771 = vmul.f32 %v734, %v743
    %v772 = vmul.f32 %v736, %v743
    %v773 = vmul.f32 %v738, %v743
    %v774 = vmul.f32 %v740, %v743
    %v775 = vmul.f32 %v742, %v743
    %v776 = vsub.f32 %v647, %v744
    %v777 = vsub.f32 %v648, %v745
    %v778 = vsub.f32 %v649, %v746
    %v779 = vsub.f32 %v650, %v747
    %v780 = vsub.f32 %v651, %v748
    %v781 = vsub.f32 %v652, %v749
    %v782 = vsub.f32 %v653, %v750
    %v783 = vsub.f32 %v654, %v751
    %v784 = vsub.f32 %v655, %v752
    %v785 = vsub.f32 %v656, %v753
    %v786 = vsub.f32 %v657, %v754
    %v787 = vsub.f32 %v658, %v755
    %v788 = vsub.f32 %v659, %v756
    %v789 = vsub.f32 %v660, %v757
    %v790 = vsub.f32 %v661, %v758
    %v791 = vsub.f32 %v662, %v759
    %v792 = vsub.f32 %v663, %v760
    %v793 = vsub.f32 %v664, %v761
    %v794 = vsub.f32 %v665, %v762
    %v795 = vsub.f32 %v666, %v763
    %v796 = vsub.f32 %v667, %v764
    %v797 = vsub.f32 %v668, %v765
    %v798 = vsub.f32 %v669, %v766
    %v799 = vsub.f32 %v670, %v767
    %v800 = vsub.f32 %v671, %v768
    %v801 = vsub.f32 %v672, %v769
    %v802 = vsub.f32 %v673, %v770
    %v803 = vsub.f32 %v674, %v771
    %v804 = vsub.f32 %v675, %v772
    %v805 = vsub.f32 %v676, %v773
    %v806 = vsub.f32 %v677, %v774
    %v807 = vsub.f32 %v678, %v775
    %v808 = vmul.f32 %v776, %v776
    %v809 = vmul.f32 %v777, %v777
    %v810 = vmul.f32 %v778, %v778
    %v811 = vmul.f32 %v779, %v779
    %v812 = vmul.f32 %v780, %v780
    %v813 = vmul.f32 %v781, %v781
    %v814 = vmul.f32 %v782, %v782
    %v815 = vmul.f32 %v783, %v783
    %v816 = vmul.f32 %v784, %v784
    %v817 = vmul.f32 %v785, %v785
    %v818 = vmul.f32 %v786, %v786
    %v819 = vmul.f32 %v787, %v787
    %v820 = vmul.f32 %v788, %v788
    %v821 = vmul.f32 %v789, %v789
    %v822 = vmul.f32 %v790, %v790
    %v823 = vmul.f32 %v791, %v791
    %v824 = vmul.f32 %v792, %v792
    %v825 = vmul.f32 %v793, %v793
    %v826 = vmul.f32 %v794, %v794
    %v827 = vmul.f32 %v795, %v795
    %v828 = vmul.f32 %v796, %v796
    %v829 = vmul.f32 %v797, %v797
    %v830 = vmul.f32 %v798, %v798
    %v831 = vmul.f32 %v799, %v799
    %v832 = vmul.f32 %v800, %v800
    %v833 = vmul.f32 %v801, %v801
    %v834 = vmul.f32 %v802, %v802
    %v835 = vmul.f32 %v803, %v803
    %v836 = vmul.f32 %v804, %v804
    %v837 = vmul.f32 %v805, %v805
    %v838 = vmul.f32 %v806, %v806
    %v839 = vmul.f32 %v807, %v807
    %840 = vadd.xlane.f32.xlu0 %v808
    %v841 = vpop.xlane.xlu0 %840
    %842 = vadd.xlane.f32.xlu0 %v809
    %v843 = vpop.xlane.xlu0 %842
    %844 = vadd.xlane.f32.xlu0 %v810
    %v845 = vpop.xlane.xlu0 %844
    %846 = vadd.xlane.f32.xlu0 %v811
    %v847 = vpop.xlane.xlu0 %846
    %848 = vadd.xlane.f32.xlu0 %v812
    %v849 = vpop.xlane.xlu0 %848
    %850 = vadd.xlane.f32.xlu0 %v813
    %v851 = vpop.xlane.xlu0 %850
    %852 = vadd.xlane.f32.xlu0 %v814
    %v853 = vpop.xlane.xlu0 %852
    %854 = vadd.xlane.f32.xlu0 %v815
    %v855 = vpop.xlane.xlu0 %854
    %856 = vadd.xlane.f32.xlu0 %v816
    %v857 = vpop.xlane.xlu0 %856
    %858 = vadd.xlane.f32.xlu0 %v817
    %v859 = vpop.xlane.xlu0 %858
    %860 = vadd.xlane.f32.xlu0 %v818
    %v861 = vpop.xlane.xlu0 %860
    %862 = vadd.xlane.f32.xlu0 %v819
    %v863 = vpop.xlane.xlu0 %862
    %864 = vadd.xlane.f32.xlu0 %v820
    %v865 = vpop.xlane.xlu0 %864
    %866 = vadd.xlane.f32.xlu0 %v821
    %v867 = vpop.xlane.xlu0 %866
    %868 = vadd.xlane.f32.xlu0 %v822
    %v869 = vpop.xlane.xlu0 %868
    %870 = vadd.xlane.f32.xlu0 %v823
    %v871 = vpop.xlane.xlu0 %870
    %872 = vadd.xlane.f32.xlu0 %v824
    %v873 = vpop.xlane.xlu0 %872
    %874 = vadd.xlane.f32.xlu0 %v825
    %v875 = vpop.xlane.xlu0 %874
    %876 = vadd.xlane.f32.xlu0 %v826
    %v877 = vpop.xlane.xlu0 %876
    %878 = vadd.xlane.f32.xlu0 %v827
    %v879 = vpop.xlane.xlu0 %878
    %880 = vadd.xlane.f32.xlu0 %v828
    %v881 = vpop.xlane.xlu0 %880
    %882 = vadd.xlane.f32.xlu0 %v829
    %v883 = vpop.xlane.xlu0 %882
    %884 = vadd.xlane.f32.xlu0 %v830
    %v885 = vpop.xlane.xlu0 %884
    %886 = vadd.xlane.f32.xlu0 %v831
    %v887 = vpop.xlane.xlu0 %886
    %888 = vadd.xlane.f32.xlu0 %v832
    %v889 = vpop.xlane.xlu0 %888
    %890 = vadd.xlane.f32.xlu0 %v833
    %v891 = vpop.xlane.xlu0 %890
    %892 = vadd.xlane.f32.xlu0 %v834
    %v893 = vpop.xlane.xlu0 %892
    %894 = vadd.xlane.f32.xlu0 %v835
    %v895 = vpop.xlane.xlu0 %894
    %896 = vadd.xlane.f32.xlu0 %v836
    %v897 = vpop.xlane.xlu0 %896
    %898 = vadd.xlane.f32.xlu0 %v837
    %v899 = vpop.xlane.xlu0 %898
    %900 = vadd.xlane.f32.xlu0 %v838
    %v901 = vpop.xlane.xlu0 %900
    %902 = vadd.xlane.f32.xlu0 %v839
    %v903 = vpop.xlane.xlu0 %902
    %v904 = vmul.f32 %v841, %v743
    %v905 = vmul.f32 %v843, %v743
    %v906 = vmul.f32 %v845, %v743
    %v907 = vmul.f32 %v847, %v743
    %v908 = vmul.f32 %v849, %v743
    %v909 = vmul.f32 %v851, %v743
    %v910 = vmul.f32 %v853, %v743
    %v911 = vmul.f32 %v855, %v743
    %v912 = vmul.f32 %v857, %v743
    %v913 = vmul.f32 %v859, %v743
    %v914 = vmul.f32 %v861, %v743
    %v915 = vmul.f32 %v863, %v743
    %v916 = vmul.f32 %v865, %v743
    %v917 = vmul.f32 %v867, %v743
    %v918 = vmul.f32 %v869, %v743
    %v919 = vmul.f32 %v871, %v743
    %v920 = vmul.f32 %v873, %v743
    %v921 = vmul.f32 %v875, %v743
    %v922 = vmul.f32 %v877, %v743
    %v923 = vmul.f32 %v879, %v743
    %v924 = vmul.f32 %v881, %v743
    %v925 = vmul.f32 %v883, %v743
    %v926 = vmul.f32 %v885, %v743
    %v927 = vmul.f32 %v887, %v743
    %v928 = vmul.f32 %v889, %v743
    %v929 = vmul.f32 %v891, %v743
    %v930 = vmul.f32 %v893, %v743
    %v931 = vmul.f32 %v895, %v743
    %v932 = vmul.f32 %v897, %v743
    %v933 = vmul.f32 %v899, %v743
    %v934 = vmul.f32 %v901, %v743
    %v935 = vmul.f32 %v903, %v743
    %v936 = vadd.f32 %v904, 1e-05
    %v937 = vadd.f32 %v905, 1e-05
    %v938 = vadd.f32 %v906, 1e-05
    %v939 = vadd.f32 %v907, 1e-05
    %v940 = vadd.f32 %v908, 1e-05
    %v941 = vadd.f32 %v909, 1e-05
    %v942 = vadd.f32 %v910, 1e-05
    %v943 = vadd.f32 %v911, 1e-05
    %v944 = vadd.f32 %v912, 1e-05
    %v945 = vadd.f32 %v913, 1e-05
    %v946 = vadd.f32 %v914, 1e-05
    %v947 = vadd.f32 %v915, 1e-05
    %v948 = vadd.f32 %v916, 1e-05
    %v949 = vadd.f32 %v917, 1e-05
    %v950 = vadd.f32 %v918, 1e-05
    %v951 = vadd.f32 %v919, 1e-05
    %v952 = vadd.f32 %v920, 1e-05
    %v953 = vadd.f32 %v921, 1e-05
    %v954 = vadd.f32 %v922, 1e-05
    %v955 = vadd.f32 %v923, 1e-05
    %v956 = vadd.f32 %v924, 1e-05
    %v957 = vadd.f32 %v925, 1e-05
    %v958 = vadd.f32 %v926, 1e-05
    %v959 = vadd.f32 %v927, 1e-05
    %v960 = vadd.f32 %v928, 1e-05
    %v961 = vadd.f32 %v929, 1e-05
    %v962 = vadd.f32 %v930, 1e-05
    %v963 = vadd.f32 %v931, 1e-05
    %v964 = vadd.f32 %v932, 1e-05
    %v965 = vadd.f32 %v933, 1e-05
    %v966 = vadd.f32 %v934, 1e-05
    %v967 = vadd.f32 %v935, 1e-05
    %v968 = vrsqrt.pop %v936
    %v969 = vrsqrt.pop %v937
    %v970 = vrsqrt.pop %v938
    %v971 = vrsqrt.pop %v939
    %v972 = vrsqrt.pop %v940
    %v973 = vrsqrt.pop %v941
    %v974 = vrsqrt.pop %v942
    %v975 = vrsqrt.pop %v943
    %v976 = vrsqrt.pop %v944
    %v977 = vrsqrt.pop %v945
    %v978 = vrsqrt.pop %v946
    %v979 = vrsqrt.pop %v947
    %v980 = vrsqrt.pop %v948
    %v981 = vrsqrt.pop %v949
    %v982 = vrsqrt.pop %v950
    %v983 = vrsqrt.pop %v951
    %v984 = vrsqrt.pop %v952
    %v985 = vrsqrt.pop %v953
    %v986 = vrsqrt.pop %v954
    %v987 = vrsqrt.pop %v955
    %v988 = vrsqrt.pop %v956
    %v989 = vrsqrt.pop %v957
    %v990 = vrsqrt.pop %v958
    %v991 = vrsqrt.pop %v959
    %v992 = vrsqrt.pop %v960
    %v993 = vrsqrt.pop %v961
    %v994 = vrsqrt.pop %v962
    %v995 = vrsqrt.pop %v963
    %v996 = vrsqrt.pop %v964
    %v997 = vrsqrt.pop %v965
    %v998 = vrsqrt.pop %v966
    %v999 = vrsqrt.pop %v967
    %v1000 = vmul.f32 %v776, %v968
    %v1001 = vmul.f32 %v777, %v969
    %v1002 = vmul.f32 %v778, %v970
    %v1003 = vmul.f32 %v779, %v971
    %v1004 = vmul.f32 %v780, %v972
    %v1005 = vmul.f32 %v781, %v973
    %v1006 = vmul.f32 %v782, %v974
    %v1007 = vmul.f32 %v783, %v975
    %v1008 = vmul.f32 %v784, %v976
    %v1009 = vmul.f32 %v785, %v977
    %v1010 = vmul.f32 %v786, %v978
    %v1011 = vmul.f32 %v787, %v979
    %v1012 = vmul.f32 %v788, %v980
    %v1013 = vmul.f32 %v789, %v981
    %v1014 = vmul.f32 %v790, %v982
    %v1015 = vmul.f32 %v791, %v983
    %v1016 = vmul.f32 %v792, %v984
    %v1017 = vmul.f32 %v793, %v985
    %v1018 = vmul.f32 %v794, %v986
    %v1019 = vmul.f32 %v795, %v987
    %v1020 = vmul.f32 %v796, %v988
    %v1021 = vmul.f32 %v797, %v989
    %v1022 = vmul.f32 %v798, %v990
    %v1023 = vmul.f32 %v799, %v991
    %v1024 = vmul.f32 %v800, %v992
    %v1025 = vmul.f32 %v801, %v993
    %v1026 = vmul.f32 %v802, %v994
    %v1027 = vmul.f32 %v803, %v995
    %v1028 = vmul.f32 %v804, %v996
    %v1029 = vmul.f32 %v805, %v997
    %v1030 = vmul.f32 %v806, %v998
    %v1031 = vmul.f32 %v807, %v999
    %v1032 = vld [vmem:[%s4] sm:$0x1]
    %v1034 = vlaneseq
    %v1035 = vshrl.u32 %v1034, 7
    %v1036 = vsub.s32 0, %v1035
    %v1037 = vrot.slane %v1032, %v1036
    %v1039 = vmul.f32 %v1000, %v1037
    %v1040 = vmul.f32 %v1001, %v1037
    %v1041 = vmul.f32 %v1002, %v1037
    %v1042 = vmul.f32 %v1003, %v1037
    %v1043 = vmul.f32 %v1004, %v1037
    %v1044 = vmul.f32 %v1005, %v1037
    %v1045 = vmul.f32 %v1006, %v1037
    %v1046 = vmul.f32 %v1007, %v1037
    %v1047 = vmul.f32 %v1008, %v1037
    %v1048 = vmul.f32 %v1009, %v1037
    %v1049 = vmul.f32 %v1010, %v1037
    %v1050 = vmul.f32 %v1011, %v1037
    %v1051 = vmul.f32 %v1012, %v1037
    %v1052 = vmul.f32 %v1013, %v1037
    %v1053 = vmul.f32 %v1014, %v1037
    %v1054 = vmul.f32 %v1015, %v1037
    %v1055 = vmul.f32 %v1016, %v1037
    %v1056 = vmul.f32 %v1017, %v1037
    %v1057 = vmul.f32 %v1018, %v1037
    %v1058 = vmul.f32 %v1019, %v1037
    %v1059 = vmul.f32 %v1020, %v1037
    %v1060 = vmul.f32 %v1021, %v1037
    %v1061 = vmul.f32 %v1022, %v1037
    %v1062 = vmul.f32 %v1023, %v1037
    %v1063 = vmul.f32 %v1024, %v1037
    %v1064 = vmul.f32 %v1025, %v1037
    %v1065 = vmul.f32 %v1026, %v1037
    %v1066 = vmul.f32 %v1027, %v1037
    %v1067 = vmul.f32 %v1028, %v1037
    %v1068 = vmul.f32 %v1029, %v1037
    %v1069 = vmul.f32 %v1030, %v1037
    %v1070 = vmul.f32 %v1031, %v1037
    %v1071 = vld [vmem:[%s5] sm:$0x1]
    %v1073 = vlaneseq
    %v1074 = vshrl.u32 %v1073, 7
    %v1075 = vsub.s32 0, %v1074
    %v1076 = vrot.slane %v1071, %v1075
    %v1078 = vadd.f32 %v1039, %v1076
    %v1079 = vadd.f32 %v1040, %v1076
    %v1080 = vadd.f32 %v1041, %v1076
    %v1081 = vadd.f32 %v1042, %v1076
    %v1082 = vadd.f32 %v1043, %v1076
    %v1083 = vadd.f32 %v1044, %v1076
    %v1084 = vadd.f32 %v1045, %v1076
    %v1085 = vadd.f32 %v1046, %v1076
    %v1086 = vadd.f32 %v1047, %v1076
    %v1087 = vadd.f32 %v1048, %v1076
    %v1088 = vadd.f32 %v1049, %v1076
    %v1089 = vadd.f32 %v1050, %v1076
    %v1090 = vadd.f32 %v1051, %v1076
    %v1091 = vadd.f32 %v1052, %v1076
    %v1092 = vadd.f32 %v1053, %v1076
    %v1093 = vadd.f32 %v1054, %v1076
    %v1094 = vadd.f32 %v1055, %v1076
    %v1095 = vadd.f32 %v1056, %v1076
    %v1096 = vadd.f32 %v1057, %v1076
    %v1097 = vadd.f32 %v1058, %v1076
    %v1098 = vadd.f32 %v1059, %v1076
    %v1099 = vadd.f32 %v1060, %v1076
    %v1100 = vadd.f32 %v1061, %v1076
    %v1101 = vadd.f32 %v1062, %v1076
    %v1102 = vadd.f32 %v1063, %v1076
    %v1103 = vadd.f32 %v1064, %v1076
    %v1104 = vadd.f32 %v1065, %v1076
    %v1105 = vadd.f32 %v1066, %v1076
    %v1106 = vadd.f32 %v1067, %v1076
    %v1107 = vadd.f32 %v1068, %v1076
    %v1108 = vadd.f32 %v1069, %v1076
    %v1109 = vadd.f32 %v1070, %v1076
    %v1110 = vpack.c.bf16 %v1079, %v1078
    %v1111 = vpack.c.bf16 %v1081, %v1080
    %v1112 = vpack.c.bf16 %v1083, %v1082
    %v1113 = vpack.c.bf16 %v1085, %v1084
    %v1114 = vpack.c.bf16 %v1087, %v1086
    %v1115 = vpack.c.bf16 %v1089, %v1088
    %v1116 = vpack.c.bf16 %v1091, %v1090
    %v1117 = vpack.c.bf16 %v1093, %v1092
    %v1118 = vpack.c.bf16 %v1095, %v1094
    %v1119 = vpack.c.bf16 %v1097, %v1096
    %v1120 = vpack.c.bf16 %v1099, %v1098
    %v1121 = vpack.c.bf16 %v1101, %v1100
    %v1122 = vpack.c.bf16 %v1103, %v1102
    %v1123 = vpack.c.bf16 %v1105, %v1104
    %v1124 = vpack.c.bf16 %v1107, %v1106
    %v1125 = vpack.c.bf16 %v1109, %v1108
    %v1142 = vunpack.c.l.b16 %v1110
    %v1143 = vunpack.c.h.b16 %v1110
    %v1144 = vunpack.c.l.b16 %v1111
    %v1145 = vunpack.c.h.b16 %v1111
    %v1146 = vunpack.c.l.b16 %v1112
    %v1147 = vunpack.c.h.b16 %v1112
    %v1148 = vunpack.c.l.b16 %v1113
    %v1149 = vunpack.c.h.b16 %v1113
    %v1150 = vunpack.c.l.b16 %v1114
    %v1151 = vunpack.c.h.b16 %v1114
    %v1152 = vunpack.c.l.b16 %v1115
    %v1153 = vunpack.c.h.b16 %v1115
    %v1154 = vunpack.c.l.b16 %v1116
    %v1155 = vunpack.c.h.b16 %v1116
    %v1156 = vunpack.c.l.b16 %v1117
    %v1157 = vunpack.c.h.b16 %v1117
    %v1158 = vunpack.c.l.b16 %v1118
    %v1159 = vunpack.c.h.b16 %v1118
    %v1160 = vunpack.c.l.b16 %v1119
    %v1161 = vunpack.c.h.b16 %v1119
    %v1162 = vunpack.c.l.b16 %v1120
    %v1163 = vunpack.c.h.b16 %v1120
    %v1164 = vunpack.c.l.b16 %v1121
    %v1165 = vunpack.c.h.b16 %v1121
    %v1166 = vunpack.c.l.b16 %v1122
    %v1167 = vunpack.c.h.b16 %v1122
    %v1168 = vunpack.c.l.b16 %v1123
    %v1169 = vunpack.c.h.b16 %v1123
    %v1170 = vunpack.c.l.b16 %v1124
    %v1171 = vunpack.c.h.b16 %v1124
    %v1172 = vunpack.c.l.b16 %v1125
    %v1173 = vunpack.c.h.b16 %v1125
    %v1174 = vpack.c.b16 %v1142, %v1142
    %v1175 = vpack.c.b16 %v1143, %v1143
    %v1176 = vpack.c.b16 %v1144, %v1144
    %v1177 = vpack.c.b16 %v1145, %v1145
    %v1178 = vpack.c.b16 %v1146, %v1146
    %v1179 = vpack.c.b16 %v1147, %v1147
    %v1180 = vpack.c.b16 %v1148, %v1148
    %v1181 = vpack.c.b16 %v1149, %v1149
    %v1182 = vpack.c.b16 %v1150, %v1150
    %v1183 = vpack.c.b16 %v1151, %v1151
    %v1184 = vpack.c.b16 %v1152, %v1152
    %v1185 = vpack.c.b16 %v1153, %v1153
    %v1186 = vpack.c.b16 %v1154, %v1154
    %v1187 = vpack.c.b16 %v1155, %v1155
    %v1188 = vpack.c.b16 %v1156, %v1156
    %v1189 = vpack.c.b16 %v1157, %v1157
    %v1190 = vpack.c.b16 %v1158, %v1158
    %v1191 = vpack.c.b16 %v1159, %v1159
    %v1192 = vpack.c.b16 %v1160, %v1160
    %v1193 = vpack.c.b16 %v1161, %v1161
    %v1194 = vpack.c.b16 %v1162, %v1162
    %v1195 = vpack.c.b16 %v1163, %v1163
    %v1196 = vpack.c.b16 %v1164, %v1164
    %v1197 = vpack.c.b16 %v1165, %v1165
    %v1198 = vpack.c.b16 %v1166, %v1166
    %v1199 = vpack.c.b16 %v1167, %v1167
    %v1200 = vpack.c.b16 %v1168, %v1168
    %v1201 = vpack.c.b16 %v1169, %v1169
    %v1202 = vpack.c.b16 %v1170, %v1170
    %v1203 = vpack.c.b16 %v1171, %v1171
    %v1204 = vpack.c.b16 %v1172, %v1172
    %v1205 = vpack.c.b16 %v1173, %v1173
    %1238 = vst [vmem:[%s6] sm:$0xf] %v1174
    %1239 = vst [vmem:[%s6 + $0x4] sm:$0xf] %v1175
    %1240 = vst [vmem:[%s6 + $0x8] sm:$0xf] %v1176
    %1241 = vst [vmem:[%s6 + $0xc] sm:$0xf] %v1177
    %1242 = vst [vmem:[%s6 + $0x10] sm:$0xf] %v1178
    %1243 = vst [vmem:[%s6 + $0x14] sm:$0xf] %v1179
    %1244 = vst [vmem:[%s6 + $0x18] sm:$0xf] %v1180
    %1245 = vst [vmem:[%s6 + $0x1c] sm:$0xf] %v1181
    %1246 = vst [vmem:[%s6 + $0x20] sm:$0xf] %v1182
    %1247 = vst [vmem:[%s6 + $0x24] sm:$0xf] %v1183
    %1248 = vst [vmem:[%s6 + $0x28] sm:$0xf] %v1184
    %1249 = vst [vmem:[%s6 + $0x2c] sm:$0xf] %v1185
    %1250 = vst [vmem:[%s6 + $0x30] sm:$0xf] %v1186
    %1251 = vst [vmem:[%s6 + $0x34] sm:$0xf] %v1187
    %1252 = vst [vmem:[%s6 + $0x38] sm:$0xf] %v1188
    %1253 = vst [vmem:[%s6 + $0x3c] sm:$0xf] %v1189
    %1254 = vst [vmem:[%s6 + $0x40] sm:$0xf] %v1190
    %1255 = vst [vmem:[%s6 + $0x44] sm:$0xf] %v1191
    %1256 = vst [vmem:[%s6 + $0x48] sm:$0xf] %v1192
    %1257 = vst [vmem:[%s6 + $0x4c] sm:$0xf] %v1193
    %1258 = vst [vmem:[%s6 + $0x50] sm:$0xf] %v1194
    %1259 = vst [vmem:[%s6 + $0x54] sm:$0xf] %v1195
    %1260 = vst [vmem:[%s6 + $0x58] sm:$0xf] %v1196
    %1261 = vst [vmem:[%s6 + $0x5c] sm:$0xf] %v1197
    %1262 = vst [vmem:[%s6 + $0x60] sm:$0xf] %v1198
    %1263 = vst [vmem:[%s6 + $0x64] sm:$0xf] %v1199
    %1264 = vst [vmem:[%s6 + $0x68] sm:$0xf] %v1200
    %1265 = vst [vmem:[%s6 + $0x6c] sm:$0xf] %v1201
    %1266 = vst [vmem:[%s6 + $0x70] sm:$0xf] %v1202
    %1267 = vst [vmem:[%s6 + $0x74] sm:$0xf] %v1203
    %1268 = vst [vmem:[%s6 + $0x78] sm:$0xf] %v1204
    %1269 = vst [vmem:[%s6 + $0x7c] sm:$0xf] %v1205
  $region33: #{forward.15} parent=0 // pred_fallthru
    _
  // Predicated region
  $region34: #{forward.15} parent=0 // pred_check
    _
  $region35: #{forward.15} parent=0 // pred_check_branch
    %1271 = sbr.rel (0) target = $region37
  $region36: #{forward.15} parent=0 // pred_region
    _
  $region37: #{forward.15} parent=0 // pred_fallthru
    _
  // Predicated region
  $region38: #{forward.15} parent=0 // pred_check
    _
  $region39: #{forward.15} parent=0 // pred_check_branch
    %1273 = sbr.rel (0) target = $region41
  $region40: #{forward.15} parent=0 // pred_region
    _
  $region41: #{forward.15} parent=0 // pred_fallthru
    _

// kernel: forward.23
$region0: #{forward.23}
  #allocation0 [shape = 'u32[]', space=smem, size = 0x4, offset = 0x4, fixed_abs, tag = 'smem constant byte address 0x4 - core index']
  #allocation1 [shape = 'u32[144,128]{1,0:T(1,128)}', space=vmem, size = 0x12000, scoped, tag = 'internal scratch']
  #allocation2 [shape = 'f32[1,1]{1,0:T(1,128)S(1)}', space=vmem, size = 0x200, scoped, tag = 'scoped memory for forward.23']
  %s0 = inlined_call_operand.vmem [shape: bf16[2,128], index: 0, kind: input, shape index: {}]
  %s1 = inlined_call_operand.vmem [shape: bf16[128,128], index: 1, kind: input, shape index: {}]
  %s2 = inlined_call_operand.vmem [shape: f32[1,128], index: 2, kind: input, shape index: {}]
  %s3 = inlined_call_operand.vmem [shape: f32[1,128], index: 3, kind: input, shape index: {}]
  %s4 = inlined_call_operand.<no memory space> [shape: f32[1,1], index: 4, kind: input, shape index: {}]
  %s5 = inlined_call_operand.vmem [shape: f32[2,1], index: 5, kind: output, shape index: {}]
  %s6 = sld [smem:[#allocation0]]
  $region30: #{forward.23} parent=0
    _
  %s8 = ssub.s32 1, %s6
  %s9 = scalar_select 0, %s8, %s6
  %v10 = vstv %s4
  %11 = vst [vmem:[#allocation2] sm:$0x1] %v10
  // Predicated region
  $region2: #{forward.23} parent=0 // pred_check
    _
  $region3: #{forward.23} parent=0 // pred_check_branch
    %13 = sbr.rel (0) target = $region5
  $region4: #{forward.23} parent=0 // pred_region
    _
  $region5: #{forward.23} parent=0 // pred_fallthru
    _
  // Predicated region
  $region6: #{forward.23} parent=0 // pred_check
    _
  $region7: #{forward.23} parent=0 // pred_check_branch
    %15 = sbr.rel (0) target = $region9
  $region8: #{forward.23} parent=0 // pred_region
    _
  $region9: #{forward.23} parent=0 // pred_fallthru
    _
  // Predicated region
  $region10: #{forward.23} parent=0 // pred_check
    _
  $region11: #{forward.23} parent=0 // pred_check_branch
    %17 = sbr.rel (0) target = $region13
  $region12: #{forward.23} parent=0 // pred_region
    _
  $region13: #{forward.23} parent=0 // pred_fallthru
    _
  // Predicated region
  $region14: #{forward.23} parent=0 // pred_check
    _
  $region15: #{forward.23} parent=0 // pred_check_branch
    %19 = sbr.rel (0) target = $region17
  $region16: #{forward.23} parent=0 // pred_region
    _
  $region17: #{forward.23} parent=0 // pred_fallthru
    _
  // Predicated region
  $region18: #{forward.23} parent=0 // pred_check
    _
  $region19: #{forward.23} parent=0 // pred_check_branch
    %21 = sbr.rel (0) target = $region21
  $region20: #{forward.23} parent=0 // pred_region
    _
  $region21: #{forward.23} parent=0 // pred_fallthru
    _
  %v23 = vld [vmem:[%s0] sm:$0x1]
  %v24 = vld [vmem:[%s1] sm:$0xf]
  %v25 = vld [vmem:[%s1 + $0x4] sm:$0xf]
  %v26 = vld [vmem:[%s1 + $0x8] sm:$0xf]
  %v27 = vld [vmem:[%s1 + $0xc] sm:$0xf]
  %v28 = vld [vmem:[%s1 + $0x10] sm:$0xf]
  %v29 = vld [vmem:[%s1 + $0x14] sm:$0xf]
  %v30 = vld [vmem:[%s1 + $0x18] sm:$0xf]
  %v31 = vld [vmem:[%s1 + $0x1c] sm:$0xf]
  %v32 = vld [vmem:[%s1 + $0x20] sm:$0xf]
  %v33 = vld [vmem:[%s1 + $0x24] sm:$0xf]
  %v34 = vld [vmem:[%s1 + $0x28] sm:$0xf]
  %v35 = vld [vmem:[%s1 + $0x2c] sm:$0xf]
  %v36 = vld [vmem:[%s1 + $0x30] sm:$0xf]
  %v37 = vld [vmem:[%s1 + $0x34] sm:$0xf]
  %v38 = vld [vmem:[%s1 + $0x38] sm:$0xf]
  %v39 = vld [vmem:[%s1 + $0x3c] sm:$0xf]
  %v40 = vld [vmem:[%s2] sm:$0x1]
  %v42 = vlaneseq
  %v43 = vshrl.u32 %v42, 7
  %v44 = vsub.s32 0, %v43
  %v45 = vrot.slane %v40, %v44
  %v63 = vunpack.c.l.b16 %v24
  %v64 = vunpack.c.l.b16 %v25
  %v65 = vunpack.c.l.b16 %v26
  %v66 = vunpack.c.l.b16 %v27
  %v67 = vunpack.c.l.b16 %v28
  %v68 = vunpack.c.l.b16 %v29
  %v69 = vunpack.c.l.b16 %v30
  %v70 = vunpack.c.l.b16 %v31
  %v71 = vunpack.c.l.b16 %v32
  %v72 = vunpack.c.l.b16 %v33
  %v73 = vunpack.c.l.b16 %v34
  %v74 = vunpack.c.l.b16 %v35
  %v75 = vunpack.c.l.b16 %v36
  %v76 = vunpack.c.l.b16 %v37
  %v77 = vunpack.c.l.b16 %v38
  %v78 = vunpack.c.l.b16 %v39
  %v79 = vpack.c.b16 %v64, %v63
  %v80 = vpack.c.b16 %v66, %v65
  %v81 = vpack.c.b16 %v68, %v67
  %v82 = vpack.c.b16 %v70, %v69
  %v83 = vpack.c.b16 %v72, %v71
  %v84 = vpack.c.b16 %v74, %v73
  %v85 = vpack.c.b16 %v76, %v75
  %v86 = vpack.c.b16 %v78, %v77
  %95 = vmatprep.subr.bf16.mxu0 0
  %96 = vmatpush1.bf16.msra.mxu0 %v79
  %97 = vmatprep.subr.bf16.mxu0 0
  %98 = vmatpush1.bf16.msra.mxu0 %v80
  %99 = vmatprep.subr.bf16.mxu0 0
  %100 = vmatpush1.bf16.msra.mxu0 %v81
  %101 = vmatprep.subr.bf16.mxu0 0
  %102 = vmatpush1.bf16.msra.mxu0 %v82
  %103 = vmatprep.subr.bf16.mxu0 0
  %104 = vmatpush1.bf16.msra.mxu0 %v83
  %105 = vmatprep.subr.bf16.mxu0 0
  %106 = vmatpush1.bf16.msra.mxu0 %v84
  %107 = vmatprep.subr.bf16.mxu0 0
  %108 = vmatpush1.bf16.msra.mxu0 %v85
  %109 = vmatprep.subr.bf16.mxu0 0
  %110 = vmatpush1.bf16.msra.mxu0 %v86
  %111 = vmatprep.subr.bf16.mxu0 0
  %112 = vmatpush1.bf16.msra.mxu0 0
  %113 = vmatprep.subr.bf16.mxu0 0
  %114 = vmatpush1.bf16.msra.mxu0 0
  %115 = vmatprep.subr.bf16.mxu0 0
  %116 = vmatpush1.bf16.msra.mxu0 0
  %117 = vmatprep.subr.bf16.mxu0 0
  %118 = vmatpush1.bf16.msra.mxu0 0
  %119 = vmatprep.subr.bf16.mxu0 0
  %120 = vmatpush1.bf16.msra.mxu0 0
  %121 = vmatprep.subr.bf16.mxu0 0
  %122 = vmatpush1.bf16.msra.mxu0 0
  %123 = vmatprep.subr.bf16.mxu0 0
  %124 = vmatpush1.bf16.msra.mxu0 0
  %125 = vmatprep.subr.bf16.mxu0 0
  %126 = vmatpush1.bf16.msra.mxu0 0
  %127 = vmatprep.mubr.bf16.mxu0 0
  %128 = vmatmul.mubr.bf16.gmra.mrb[0].mxu0 %v23
  %v129 = vpop.f32.mrb[0].mxu0
  %v130 = vadd.f32 %v45, %v129
  %v131 = vpop.f32.mrb[0].mxu0
  %v132 = vpop.f32.mrb[0].mxu0
  %v133 = vpop.f32.mrb[0].mxu0
  %134 = vdwg.mxu0
  %v135 = vtanh.pop %v130
  %v136 = vld [vmem:[%s3] sm:$0x1]
  %v138 = vlaneseq
  %v139 = vshrl.u32 %v138, 7
  %v140 = vsub.s32 0, %v139
  %v141 = vrot.slane %v136, %v140
  %v143 = vmul.f32 %v135, %v141
  %vm144 = vcmask 1041408
  %v145 = vsel %vm144, %v143, 0.0
  %146 = vadd.xlane.f32.xlu0 %v145
  %v147 = vpop.xlane.xlu0 %146
  %v148 = vld [vmem:[#allocation2] sm:$0x1]
  %v150 = vlaneseq
  %v151 = vshrl.u32 %v150, 7
  %v152 = vsub.s32 0, %v151
  %v153 = vrot.slane %v148, %v152
  %v155 = vadd.f32 %v147, %v153
  %vm156 = vcmask 1024
  %157 = vst.msk [vmem:[%s5] sm:$0x3] %vm156, %v155
  // Predicated region
  $region22: #{forward.23} parent=0 // pred_check
    _
  $region23: #{forward.23} parent=0 // pred_check_branch
    %159 = sbr.rel (0) target = $region25
  $region24: #{forward.23} parent=0 // pred_region
    _
  $region25: #{forward.23} parent=0 // pred_fallthru
    _
  // Predicated region
  $region26: #{forward.23} parent=0 // pred_check
    _
  $region27: #{forward.23} parent=0 // pred_check_branch
    %161 = sbr.rel (0) target = $region29
  $region28: #{forward.23} parent=0 // pred_region
    _
  $region29: #{forward.23} parent=0 // pred_fallthru
    _

// kernel: forward.16
$region0: #{forward.16}
  #allocation0 [shape = 'u32[]', space=smem, size = 0x4, offset = 0x4, fixed_abs, tag = 'smem constant byte address 0x4 - core index']
  #allocation1 [shape = 'u32[144,128]{1,0:T(1,128)}', space=vmem, size = 0x12000, scoped, tag = 'internal scratch']
  #allocation2 [shape = 'f32[256,512]{1,0:T(8,128)}', space=vmem, size = 0x80000, scoped, tag = 'scratch operand']
  %s0 = inlined_call_operand.vmem [shape: bf16[256,128], index: 0, kind: input, shape index: {}]
  %s1 = inlined_call_operand.vmem [shape: bf16[128,512], index: 1, kind: input, shape index: {}]
  %s2 = inlined_call_operand.vmem [shape: f32[1,512], index: 2, kind: input, shape index: {}]
  %s3 = inlined_call_operand.vmem [shape: bf16[256,512], index: 3, kind: output, shape index: {}]
  %s4 = sld [smem:[#allocation0]]
  $region30: #{forward.16} parent=0
    _
  %s6 = ssub.s32 1, %s4
  %s7 = scalar_select 0, %s6, %s4
  // Predicated region
  $region2: #{forward.16} parent=0 // pred_check
    _
  $region3: #{forward.16} parent=0 // pred_check_branch
    %9 = sbr.rel (0) target = $region5
  $region4: #{forward.16} parent=0 // pred_region
    _
  $region5: #{forward.16} parent=0 // pred_fallthru
    _
  // Predicated region
  $region6: #{forward.16} parent=0 // pred_check
    _
  $region7: #{forward.16} parent=0 // pred_check_branch
    %11 = sbr.rel (0) target = $region9
  $region8: #{forward.16} parent=0 // pred_region
    _
  $region9: #{forward.16} parent=0 // pred_fallthru
    _
  // Predicated region
  $region10: #{forward.16} parent=0 // pred_check
    _
  $region11: #{forward.16} parent=0 // pred_check_branch
    %13 = sbr.rel (0) target = $region13
  $region12: #{forward.16} parent=0 // pred_region
    _
  $region13: #{forward.16} parent=0 // pred_fallthru
    _
  %p15 = scmp.eq.s32.totalorder 0, 0
  // Predicated region
  $region14: #{forward.16} parent=0 // pred_check
    %p16 = pneg %p15
  $region15: #{forward.16} parent=0 // pred_check_branch
    %18 = sbr.rel (%p16) target = $region17
  $region16: #{forward.16} parent=0 // pred_region
    %19 = vst [vmem:[#allocation2] sm:$0xff] 0.0
    %20 = vst [vmem:[#allocation2 + $0x8] sm:$0xff] 0.0
    %21 = vst [vmem:[#allocation2 + $0x10] sm:$0xff] 0.0
    %22 = vst [vmem:[#allocation2 + $0x18] sm:$0xff] 0.0
    %23 = vst [vmem:[#allocation2 + $0x20] sm:$0xff] 0.0
    %24 = vst [vmem:[#allocation2 + $0x28] sm:$0xff] 0.0
    %25 = vst [vmem:[#allocation2 + $0x30] sm:$0xff] 0.0
    %26 = vst [vmem:[#allocation2 + $0x38] sm:$0xff] 0.0
    %27 = vst [vmem:[#allocation2 + $0x40] sm:$0xff] 0.0
    %28 = vst [vmem:[#allocation2 + $0x48] sm:$0xff] 0.0
    %29 = vst [vmem:[#allocation2 + $0x50] sm:$0xff] 0.0
    %30 = vst [vmem:[#allocation2 + $0x58] sm:$0xff] 0.0
    %31 = vst [vmem:[#allocation2 + $0x60] sm:$0xff] 0.0
    %32 = vst [vmem:[#allocation2 + $0x68] sm:$0xff] 0.0
    %33 = vst [vmem:[#allocation2 + $0x70] sm:$0xff] 0.0
    %34 = vst [vmem:[#allocation2 + $0x78] sm:$0xff] 0.0
    %35 = vst [vmem:[#allocation2 + $0x80] sm:$0xff] 0.0
    %36 = vst [vmem:[#allocation2 + $0x88] sm:$0xff] 0.0
    %37 = vst [vmem:[#allocation2 + $0x90] sm:$0xff] 0.0
    %38 = vst [vmem:[#allocation2 + $0x98] sm:$0xff] 0.0
    %39 = vst [vmem:[#allocation2 + $0xa0] sm:$0xff] 0.0
    %40 = vst [vmem:[#allocation2 + $0xa8] sm:$0xff] 0.0
    %41 = vst [vmem:[#allocation2 + $0xb0] sm:$0xff] 0.0
    %42 = vst [vmem:[#allocation2 + $0xb8] sm:$0xff] 0.0
    %43 = vst [vmem:[#allocation2 + $0xc0] sm:$0xff] 0.0
    %44 = vst [vmem:[#allocation2 + $0xc8] sm:$0xff] 0.0
    %45 = vst [vmem:[#allocation2 + $0xd0] sm:$0xff] 0.0
    %46 = vst [vmem:[#allocation2 + $0xd8] sm:$0xff] 0.0
    %47 = vst [vmem:[#allocation2 + $0xe0] sm:$0xff] 0.0
    %48 = vst [vmem:[#allocation2 + $0xe8] sm:$0xff] 0.0
    %49 = vst [vmem:[#allocation2 + $0xf0] sm:$0xff] 0.0
    %50 = vst [vmem:[#allocation2 + $0xf8] sm:$0xff] 0.0
    %51 = vst [vmem:[#allocation2 + $0x100] sm:$0xff] 0.0
    %52 = vst [vmem:[#allocation2 + $0x108] sm:$0xff] 0.0
    %53 = vst [vmem:[#allocation2 + $0x110] sm:$0xff] 0.0
    %54 = vst [vmem:[#allocation2 + $0x118] sm:$0xff] 0.0
    %55 = vst [vmem:[#allocation2 + $0x120] sm:$0xff] 0.0
    %56 = vst [vmem:[#allocation2 + $0x128] sm:$0xff] 0.0
    %57 = vst [vmem:[#allocation2 + $0x130] sm:$0xff] 0.0
    %58 = vst [vmem:[#allocation2 + $0x138] sm:$0xff] 0.0
    %59 = vst [vmem:[#allocation2 + $0x140] sm:$0xff] 0.0
    %60 = vst [vmem:[#allocation2 + $0x148] sm:$0xff] 0.0
    %61 = vst [vmem:[#allocation2 + $0x150] sm:$0xff] 0.0
    %62 = vst [vmem:[#allocation2 + $0x158] sm:$0xff] 0.0
    %63 = vst [vmem:[#allocation2 + $0x160] sm:$0xff] 0.0
    %64 = vst [vmem:[#allocation2 + $0x168] sm:$0xff] 0.0
    %65 = vst [vmem:[#allocation2 + $0x170] sm:$0xff] 0.0
    %66 = vst [vmem:[#allocation2 + $0x178] sm:$0xff] 0.0
    %67 = vst [vmem:[#allocation2 + $0x180] sm:$0xff] 0.0
    %68 = vst [vmem:[#allocation2 + $0x188] sm:$0xff] 0.0
    %69 = vst [vmem:[#allocation2 + $0x190] sm:$0xff] 0.0
    %70 = vst [vmem:[#allocation2 + $0x198] sm:$0xff] 0.0
    %71 = vst [vmem:[#allocation2 + $0x1a0] sm:$0xff] 0.0
    %72 = vst [vmem:[#allocation2 + $0x1a8] sm:$0xff] 0.0
    %73 = vst [vmem:[#allocation2 + $0x1b0] sm:$0xff] 0.0
    %74 = vst [vmem:[#allocation2 + $0x1b8] sm:$0xff] 0.0
    %75 = vst [vmem:[#allocation2 + $0x1c0] sm:$0xff] 0.0
    %76 = vst [vmem:[#allocation2 + $0x1c8] sm:$0xff] 0.0
    %77 = vst [vmem:[#allocation2 + $0x1d0] sm:$0xff] 0.0
    %78 = vst [vmem:[#allocation2 + $0x1d8] sm:$0xff] 0.0
    %79 = vst [vmem:[#allocation2 + $0x1e0] sm:$0xff] 0.0
    %80 = vst [vmem:[#allocation2 + $0x1e8] sm:$0xff] 0.0
    %81 = vst [vmem:[#allocation2 + $0x1f0] sm:$0xff] 0.0
    %82 = vst [vmem:[#allocation2 + $0x1f8] sm:$0xff] 0.0
    %83 = vst [vmem:[#allocation2 + $0x200] sm:$0xff] 0.0
    %84 = vst [vmem:[#allocation2 + $0x208] sm:$0xff] 0.0
    %85 = vst [vmem:[#allocation2 + $0x210] sm:$0xff] 0.0
    %86 = vst [vmem:[#allocation2 + $0x218] sm:$0xff] 0.0
    %87 = vst [vmem:[#allocation2 + $0x220] sm:$0xff] 0.0
    %88 = vst [vmem:[#allocation2 + $0x228] sm:$0xff] 0.0
    %89 = vst [vmem:[#allocation2 + $0x230] sm:$0xff] 0.0
    %90 = vst [vmem:[#allocation2 + $0x238] sm:$0xff] 0.0
    %91 = vst [vmem:[#allocation2 + $0x240] sm:$0xff] 0.0
    %92 = vst [vmem:[#allocation2 + $0x248] sm:$0xff] 0.0
    %93 = vst [vmem:[#allocation2 + $0x250] sm:$0xff] 0.0
    %94 = vst [vmem:[#allocation2 + $0x258] sm:$0xff] 0.0
    %95 = vst [vmem:[#allocation2 + $0x260] sm:$0xff] 0.0
    %96 = vst [vmem:[#allocation2 + $0x268] sm:$0xff] 0.0
    %97 = vst [vmem:[#allocation2 + $0x270] sm:$0xff] 0.0
    %98 = vst [vmem:[#allocation2 + $0x278] sm:$0xff] 0.0
    %99 = vst [vmem:[#allocation2 + $0x280] sm:$0xff] 0.0
    %100 = vst [vmem:[#allocation2 + $0x288] sm:$0xff] 0.0
    %101 = vst [vmem:[#allocation2 + $0x290] sm:$0xff] 0.0
    %102 = vst [vmem:[#allocation2 + $0x298] sm:$0xff] 0.0
    %103 = vst [vmem:[#allocation2 + $0x2a0] sm:$0xff] 0.0
    %104 = vst [vmem:[#allocation2 + $0x2a8] sm:$0xff] 0.0
    %105 = vst [vmem:[#allocation2 + $0x2b0] sm:$0xff] 0.0
    %106 = vst [vmem:[#allocation2 + $0x2b8] sm:$0xff] 0.0
    %107 = vst [vmem:[#allocation2 + $0x2c0] sm:$0xff] 0.0
    %108 = vst [vmem:[#allocation2 + $0x2c8] sm:$0xff] 0.0
    %109 = vst [vmem:[#allocation2 + $0x2d0] sm:$0xff] 0.0
    %110 = vst [vmem:[#allocation2 + $0x2d8] sm:$0xff] 0.0
    %111 = vst [vmem:[#allocation2 + $0x2e0] sm:$0xff] 0.0
    %112 = vst [vmem:[#allocation2 + $0x2e8] sm:$0xff] 0.0
    %113 = vst [vmem:[#allocation2 + $0x2f0] sm:$0xff] 0.0
    %114 = vst [vmem:[#allocation2 + $0x2f8] sm:$0xff] 0.0
    %115 = vst [vmem:[#allocation2 + $0x300] sm:$0xff] 0.0
    %116 = vst [vmem:[#allocation2 + $0x308] sm:$0xff] 0.0
    %117 = vst [vmem:[#allocation2 + $0x310] sm:$0xff] 0.0
    %118 = vst [vmem:[#allocation2 + $0x318] sm:$0xff] 0.0
    %119 = vst [vmem:[#allocation2 + $0x320] sm:$0xff] 0.0
    %120 = vst [vmem:[#allocation2 + $0x328] sm:$0xff] 0.0
    %121 = vst [vmem:[#allocation2 + $0x330] sm:$0xff] 0.0
    %122 = vst [vmem:[#allocation2 + $0x338] sm:$0xff] 0.0
    %123 = vst [vmem:[#allocation2 + $0x340] sm:$0xff] 0.0
    %124 = vst [vmem:[#allocation2 + $0x348] sm:$0xff] 0.0
    %125 = vst [vmem:[#allocation2 + $0x350] sm:$0xff] 0.0
    %126 = vst [vmem:[#allocation2 + $0x358] sm:$0xff] 0.0
    %127 = vst [vmem:[#allocation2 + $0x360] sm:$0xff] 0.0
    %128 = vst [vmem:[#allocation2 + $0x368] sm:$0xff] 0.0
    %129 = vst [vmem:[#allocation2 + $0x370] sm:$0xff] 0.0
    %130 = vst [vmem:[#allocation2 + $0x378] sm:$0xff] 0.0
    %131 = vst [vmem:[#allocation2 + $0x380] sm:$0xff] 0.0
    %132 = vst [vmem:[#allocation2 + $0x388] sm:$0xff] 0.0
    %133 = vst [vmem:[#allocation2 + $0x390] sm:$0xff] 0.0
    %134 = vst [vmem:[#allocation2 + $0x398] sm:$0xff] 0.0
    %135 = vst [vmem:[#allocation2 + $0x3a0] sm:$0xff] 0.0
    %136 = vst [vmem:[#allocation2 + $0x3a8] sm:$0xff] 0.0
    %137 = vst [vmem:[#allocation2 + $0x3b0] sm:$0xff] 0.0
    %138 = vst [vmem:[#allocation2 + $0x3b8] sm:$0xff] 0.0
    %139 = vst [vmem:[#allocation2 + $0x3c0] sm:$0xff] 0.0
    %140 = vst [vmem:[#allocation2 + $0x3c8] sm:$0xff] 0.0
    %141 = vst [vmem:[#allocation2 + $0x3d0] sm:$0xff] 0.0
    %142 = vst [vmem:[#allocation2 + $0x3d8] sm:$0xff] 0.0
    %143 = vst [vmem:[#allocation2 + $0x3e0] sm:$0xff] 0.0
    %144 = vst [vmem:[#allocation2 + $0x3e8] sm:$0xff] 0.0
    %145 = vst [vmem:[#allocation2 + $0x3f0] sm:$0xff] 0.0
    %146 = vst [vmem:[#allocation2 + $0x3f8] sm:$0xff] 0.0
  $region17: #{forward.16} parent=0 // pred_fallthru
    _
  %v147 = vld [vmem:[#allocation2] sm:$0xff]
  %v148 = vld [vmem:[#allocation2 + $0x8] sm:$0xff]
  %v149 = vld [vmem:[#allocation2 + $0x10] sm:$0xff]
  %v150 = vld [vmem:[#allocation2 + $0x18] sm:$0xff]
  %v151 = vld [vmem:[#allocation2 + $0x20] sm:$0xff]
  %v152 = vld [vmem:[#allocation2 + $0x28] sm:$0xff]
  %v153 = vld [vmem:[#allocation2 + $0x30] sm:$0xff]
  %v154 = vld [vmem:[#allocation2 + $0x38] sm:$0xff]
  %v155 = vld [vmem:[#allocation2 + $0x40] sm:$0xff]
  %v156 = vld [vmem:[#allocation2 + $0x48] sm:$0xff]
  %v157 = vld [vmem:[#allocation2 + $0x50] sm:$0xff]
  %v158 = vld [vmem:[#allocation2 + $0x58] sm:$0xff]
  %v159 = vld [vmem:[#allocation2 + $0x60] sm:$0xff]
  %v160 = vld [vmem:[#allocation2 + $0x68] sm:$0xff]
  %v161 = vld [vmem:[#allocation2 + $0x70] sm:$0xff]
  %v162 = vld [vmem:[#allocation2 + $0x78] sm:$0xff]
  %v163 = vld [vmem:[#allocation2 + $0x80] sm:$0xff]
  %v164 = vld [vmem:[#allocation2 + $0x88] sm:$0xff]
  %v165 = vld [vmem:[#allocation2 + $0x90] sm:$0xff]
  %v166 = vld [vmem:[#allocation2 + $0x98] sm:$0xff]
  %v167 = vld [vmem:[#allocation2 + $0xa0] sm:$0xff]
  %v168 = vld [vmem:[#allocation2 + $0xa8] sm:$0xff]
  %v169 = vld [vmem:[#allocation2 + $0xb0] sm:$0xff]
  %v170 = vld [vmem:[#allocation2 + $0xb8] sm:$0xff]
  %v171 = vld [vmem:[#allocation2 + $0xc0] sm:$0xff]
  %v172 = vld [vmem:[#allocation2 + $0xc8] sm:$0xff]
  %v173 = vld [vmem:[#allocation2 + $0xd0] sm:$0xff]
  %v174 = vld [vmem:[#allocation2 + $0xd8] sm:$0xff]
  %v175 = vld [vmem:[#allocation2 + $0xe0] sm:$0xff]
  %v176 = vld [vmem:[#allocation2 + $0xe8] sm:$0xff]
  %v177 = vld [vmem:[#allocation2 + $0xf0] sm:$0xff]
  %v178 = vld [vmem:[#allocation2 + $0xf8] sm:$0xff]
  %v179 = vld [vmem:[#allocation2 + $0x100] sm:$0xff]
  %v180 = vld [vmem:[#allocation2 + $0x108] sm:$0xff]
  %v181 = vld [vmem:[#allocation2 + $0x110] sm:$0xff]
  %v182 = vld [vmem:[#allocation2 + $0x118] sm:$0xff]
  %v183 = vld [vmem:[#allocation2 + $0x120] sm:$0xff]
  %v184 = vld [vmem:[#allocation2 + $0x128] sm:$0xff]
  %v185 = vld [vmem:[#allocation2 + $0x130] sm:$0xff]
  %v186 = vld [vmem:[#allocation2 + $0x138] sm:$0xff]
  %v187 = vld [vmem:[#allocation2 + $0x140] sm:$0xff]
  %v188 = vld [vmem:[#allocation2 + $0x148] sm:$0xff]
  %v189 = vld [vmem:[#allocation2 + $0x150] sm:$0xff]
  %v190 = vld [vmem:[#allocation2 + $0x158] sm:$0xff]
  %v191 = vld [vmem:[#allocation2 + $0x160] sm:$0xff]
  %v192 = vld [vmem:[#allocation2 + $0x168] sm:$0xff]
  %v193 = vld [vmem:[#allocation2 + $0x170] sm:$0xff]
  %v194 = vld [vmem:[#allocation2 + $0x178] sm:$0xff]
  %v195 = vld [vmem:[#allocation2 + $0x180] sm:$0xff]
  %v196 = vld [vmem:[#allocation2 + $0x188] sm:$0xff]
  %v197 = vld [vmem:[#allocation2 + $0x190] sm:$0xff]
  %v198 = vld [vmem:[#allocation2 + $0x198] sm:$0xff]
  %v199 = vld [vmem:[#allocation2 + $0x1a0] sm:$0xff]
  %v200 = vld [vmem:[#allocation2 + $0x1a8] sm:$0xff]
  %v201 = vld [vmem:[#allocation2 + $0x1b0] sm:$0xff]
  %v202 = vld [vmem:[#allocation2 + $0x1b8] sm:$0xff]
  %v203 = vld [vmem:[#allocation2 + $0x1c0] sm:$0xff]
  %v204 = vld [vmem:[#allocation2 + $0x1c8] sm:$0xff]
  %v205 = vld [vmem:[#allocation2 + $0x1d0] sm:$0xff]
  %v206 = vld [vmem:[#allocation2 + $0x1d8] sm:$0xff]
  %v207 = vld [vmem:[#allocation2 + $0x1e0] sm:$0xff]
  %v208 = vld [vmem:[#allocation2 + $0x1e8] sm:$0xff]
  %v209 = vld [vmem:[#allocation2 + $0x1f0] sm:$0xff]
  %v210 = vld [vmem:[#allocation2 + $0x1f8] sm:$0xff]
  %v211 = vld [vmem:[#allocation2 + $0x200] sm:$0xff]
  %v212 = vld [vmem:[#allocation2 + $0x208] sm:$0xff]
  %v213 = vld [vmem:[#allocation2 + $0x210] sm:$0xff]
  %v214 = vld [vmem:[#allocation2 + $0x218] sm:$0xff]
  %v215 = vld [vmem:[#allocation2 + $0x220] sm:$0xff]
  %v216 = vld [vmem:[#allocation2 + $0x228] sm:$0xff]
  %v217 = vld [vmem:[#allocation2 + $0x230] sm:$0xff]
  %v218 = vld [vmem:[#allocation2 + $0x238] sm:$0xff]
  %v219 = vld [vmem:[#allocation2 + $0x240] sm:$0xff]
  %v220 = vld [vmem:[#allocation2 + $0x248] sm:$0xff]
  %v221 = vld [vmem:[#allocation2 + $0x250] sm:$0xff]
  %v222 = vld [vmem:[#allocation2 + $0x258] sm:$0xff]
  %v223 = vld [vmem:[#allocation2 + $0x260] sm:$0xff]
  %v224 = vld [vmem:[#allocation2 + $0x268] sm:$0xff]
  %v225 = vld [vmem:[#allocation2 + $0x270] sm:$0xff]
  %v226 = vld [vmem:[#allocation2 + $0x278] sm:$0xff]
  %v227 = vld [vmem:[#allocation2 + $0x280] sm:$0xff]
  %v228 = vld [vmem:[#allocation2 + $0x288] sm:$0xff]
  %v229 = vld [vmem:[#allocation2 + $0x290] sm:$0xff]
  %v230 = vld [vmem:[#allocation2 + $0x298] sm:$0xff]
  %v231 = vld [vmem:[#allocation2 + $0x2a0] sm:$0xff]
  %v232 = vld [vmem:[#allocation2 + $0x2a8] sm:$0xff]
  %v233 = vld [vmem:[#allocation2 + $0x2b0] sm:$0xff]
  %v234 = vld [vmem:[#allocation2 + $0x2b8] sm:$0xff]
  %v235 = vld [vmem:[#allocation2 + $0x2c0] sm:$0xff]
  %v236 = vld [vmem:[#allocation2 + $0x2c8] sm:$0xff]
  %v237 = vld [vmem:[#allocation2 + $0x2d0] sm:$0xff]
  %v238 = vld [vmem:[#allocation2 + $0x2d8] sm:$0xff]
  %v239 = vld [vmem:[#allocation2 + $0x2e0] sm:$0xff]
  %v240 = vld [vmem:[#allocation2 + $0x2e8] sm:$0xff]
  %v241 = vld [vmem:[#allocation2 + $0x2f0] sm:$0xff]
  %v242 = vld [vmem:[#allocation2 + $0x2f8] sm:$0xff]
  %v243 = vld [vmem:[#allocation2 + $0x300] sm:$0xff]
  %v244 = vld [vmem:[#allocation2 + $0x308] sm:$0xff]
  %v245 = vld [vmem:[#allocation2 + $0x310] sm:$0xff]
  %v246 = vld [vmem:[#allocation2 + $0x318] sm:$0xff]
  %v247 = vld [vmem:[#allocation2 + $0x320] sm:$0xff]
  %v248 = vld [vmem:[#allocation2 + $0x328] sm:$0xff]
  %v249 = vld [vmem:[#allocation2 + $0x330] sm:$0xff]
  %v250 = vld [vmem:[#allocation2 + $0x338] sm:$0xff]
  %v251 = vld [vmem:[#allocation2 + $0x340] sm:$0xff]
  %v252 = vld [vmem:[#allocation2 + $0x348] sm:$0xff]
  %v253 = vld [vmem:[#allocation2 + $0x350] sm:$0xff]
  %v254 = vld [vmem:[#allocation2 + $0x358] sm:$0xff]
  %v255 = vld [vmem:[#allocation2 + $0x360] sm:$0xff]
  %v256 = vld [vmem:[#allocation2 + $0x368] sm:$0xff]
  %v257 = vld [vmem:[#allocation2 + $0x370] sm:$0xff]
  %v258 = vld [vmem:[#allocation2 + $0x378] sm:$0xff]
  %v259 = vld [vmem:[#allocation2 + $0x380] sm:$0xff]
  %v260 = vld [vmem:[#allocation2 + $0x388] sm:$0xff]
  %v261 = vld [vmem:[#allocation2 + $0x390] sm:$0xff]
  %v262 = vld [vmem:[#allocation2 + $0x398] sm:$0xff]
  %v263 = vld [vmem:[#allocation2 + $0x3a0] sm:$0xff]
  %v264 = vld [vmem:[#allocation2 + $0x3a8] sm:$0xff]
  %v265 = vld [vmem:[#allocation2 + $0x3b0] sm:$0xff]
  %v266 = vld [vmem:[#allocation2 + $0x3b8] sm:$0xff]
  %v267 = vld [vmem:[#allocation2 + $0x3c0] sm:$0xff]
  %v268 = vld [vmem:[#allocation2 + $0x3c8] sm:$0xff]
  %v269 = vld [vmem:[#allocation2 + $0x3d0] sm:$0xff]
  %v270 = vld [vmem:[#allocation2 + $0x3d8] sm:$0xff]
  %v271 = vld [vmem:[#allocation2 + $0x3e0] sm:$0xff]
  %v272 = vld [vmem:[#allocation2 + $0x3e8] sm:$0xff]
  %v273 = vld [vmem:[#allocation2 + $0x3f0] sm:$0xff]
  %v274 = vld [vmem:[#allocation2 + $0x3f8] sm:$0xff]
  %v275 = vld [vmem:[%s0] sm:$0xf]
  %v276 = vld [vmem:[%s0 + $0x4] sm:$0xf]
  %v277 = vld [vmem:[%s0 + $0x8] sm:$0xf]
  %v278 = vld [vmem:[%s0 + $0xc] sm:$0xf]
  %v279 = vld [vmem:[%s0 + $0x10] sm:$0xf]
  %v280 = vld [vmem:[%s0 + $0x14] sm:$0xf]
  %v281 = vld [vmem:[%s0 + $0x18] sm:$0xf]
  %v282 = vld [vmem:[%s0 + $0x1c] sm:$0xf]
  %v283 = vld [vmem:[%s0 + $0x20] sm:$0xf]
  %v284 = vld [vmem:[%s0 + $0x24] sm:$0xf]
  %v285 = vld [vmem:[%s0 + $0x28] sm:$0xf]
  %v286 = vld [vmem:[%s0 + $0x2c] sm:$0xf]
  %v287 = vld [vmem:[%s0 + $0x30] sm:$0xf]
  %v288 = vld [vmem:[%s0 + $0x34] sm:$0xf]
  %v289 = vld [vmem:[%s0 + $0x38] sm:$0xf]
  %v290 = vld [vmem:[%s0 + $0x3c] sm:$0xf]
  %v291 = vld [vmem:[%s0 + $0x40] sm:$0xf]
  %v292 = vld [vmem:[%s0 + $0x44] sm:$0xf]
  %v293 = vld [vmem:[%s0 + $0x48] sm:$0xf]
  %v294 = vld [vmem:[%s0 + $0x4c] sm:$0xf]
  %v295 = vld [vmem:[%s0 + $0x50] sm:$0xf]
  %v296 = vld [vmem:[%s0 + $0x54] sm:$0xf]
  %v297 = vld [vmem:[%s0 + $0x58] sm:$0xf]
  %v298 = vld [vmem:[%s0 + $0x5c] sm:$0xf]
  %v299 = vld [vmem:[%s0 + $0x60] sm:$0xf]
  %v300 = vld [vmem:[%s0 + $0x64] sm:$0xf]
  %v301 = vld [vmem:[%s0 + $0x68] sm:$0xf]
  %v302 = vld [vmem:[%s0 + $0x6c] sm:$0xf]
  %v303 = vld [vmem:[%s0 + $0x70] sm:$0xf]
  %v304 = vld [vmem:[%s0 + $0x74] sm:$0xf]
  %v305 = vld [vmem:[%s0 + $0x78] sm:$0xf]
  %v306 = vld [vmem:[%s0 + $0x7c] sm:$0xf]
  %v307 = vld [vmem:[%s1] sm:$0xff]
  %v308 = vld [vmem:[%s1 + $0x8] sm:$0xff]
  %v309 = vld [vmem:[%s1 + $0x10] sm:$0xff]
  %v310 = vld [vmem:[%s1 + $0x18] sm:$0xff]
  %v311 = vld [vmem:[%s1 + $0x20] sm:$0xff]
  %v312 = vld [vmem:[%s1 + $0x28] sm:$0xff]
  %v313 = vld [vmem:[%s1 + $0x30] sm:$0xff]
  %v314 = vld [vmem:[%s1 + $0x38] sm:$0xff]
  %v315 = vld [vmem:[%s1 + $0x40] sm:$0xff]
  %v316 = vld [vmem:[%s1 + $0x48] sm:$0xff]
  %v317 = vld [vmem:[%s1 + $0x50] sm:$0xff]
  %v318 = vld [vmem:[%s1 + $0x58] sm:$0xff]
  %v319 = vld [vmem:[%s1 + $0x60] sm:$0xff]
  %v320 = vld [vmem:[%s1 + $0x68] sm:$0xff]
  %v321 = vld [vmem:[%s1 + $0x70] sm:$0xff]
  %v322 = vld [vmem:[%s1 + $0x78] sm:$0xff]
  %v323 = vld [vmem:[%s1 + $0x80] sm:$0xff]
  %v324 = vld [vmem:[%s1 + $0x88] sm:$0xff]
  %v325 = vld [vmem:[%s1 + $0x90] sm:$0xff]
  %v326 = vld [vmem:[%s1 + $0x98] sm:$0xff]
  %v327 = vld [vmem:[%s1 + $0xa0] sm:$0xff]
  %v328 = vld [vmem:[%s1 + $0xa8] sm:$0xff]
  %v329 = vld [vmem:[%s1 + $0xb0] sm:$0xff]
  %v330 = vld [vmem:[%s1 + $0xb8] sm:$0xff]
  %v331 = vld [vmem:[%s1 + $0xc0] sm:$0xff]
  %v332 = vld [vmem:[%s1 + $0xc8] sm:$0xff]
  %v333 = vld [vmem:[%s1 + $0xd0] sm:$0xff]
  %v334 = vld [vmem:[%s1 + $0xd8] sm:$0xff]
  %v335 = vld [vmem:[%s1 + $0xe0] sm:$0xff]
  %v336 = vld [vmem:[%s1 + $0xe8] sm:$0xff]
  %v337 = vld [vmem:[%s1 + $0xf0] sm:$0xff]
  %v338 = vld [vmem:[%s1 + $0xf8] sm:$0xff]
  %v371 = vunpack.c.l.b16 %v275
  %v372 = vunpack.c.l.b16 %v276
  %v373 = vunpack.c.l.b16 %v277
  %v374 = vunpack.c.l.b16 %v278
  %v375 = vunpack.c.l.b16 %v279
  %v376 = vunpack.c.l.b16 %v280
  %v377 = vunpack.c.l.b16 %v281
  %v378 = vunpack.c.l.b16 %v282
  %v379 = vunpack.c.l.b16 %v283
  %v380 = vunpack.c.l.b16 %v284
  %v381 = vunpack.c.l.b16 %v285
  %v382 = vunpack.c.l.b16 %v286
  %v383 = vunpack.c.l.b16 %v287
  %v384 = vunpack.c.l.b16 %v288
  %v385 = vunpack.c.l.b16 %v289
  %v386 = vunpack.c.l.b16 %v290
  %v387 = vunpack.c.l.b16 %v291
  %v388 = vunpack.c.l.b16 %v292
  %v389 = vunpack.c.l.b16 %v293
  %v390 = vunpack.c.l.b16 %v294
  %v391 = vunpack.c.l.b16 %v295
  %v392 = vunpack.c.l.b16 %v296
  %v393 = vunpack.c.l.b16 %v297
  %v394 = vunpack.c.l.b16 %v298
  %v395 = vunpack.c.l.b16 %v299
  %v396 = vunpack.c.l.b16 %v300
  %v397 = vunpack.c.l.b16 %v301
  %v398 = vunpack.c.l.b16 %v302
  %v399 = vunpack.c.l.b16 %v303
  %v400 = vunpack.c.l.b16 %v304
  %v401 = vunpack.c.l.b16 %v305
  %v402 = vunpack.c.l.b16 %v306
  %v403 = vpack.c.b16 %v372, %v371
  %v404 = vpack.c.b16 %v374, %v373
  %v405 = vpack.c.b16 %v376, %v375
  %v406 = vpack.c.b16 %v378, %v377
  %v407 = vpack.c.b16 %v380, %v379
  %v408 = vpack.c.b16 %v382, %v381
  %v409 = vpack.c.b16 %v384, %v383
  %v410 = vpack.c.b16 %v386, %v385
  %v411 = vpack.c.b16 %v388, %v387
  %v412 = vpack.c.b16 %v390, %v389
  %v413 = vpack.c.b16 %v392, %v391
  %v414 = vpack.c.b16 %v394, %v393
  %v415 = vpack.c.b16 %v396, %v395
  %v416 = vpack.c.b16 %v398, %v397
  %v417 = vpack.c.b16 %v400, %v399
  %v418 = vpack.c.b16 %v402, %v401
  %v467 = vunpack.c.l.b16 %v307
  %v468 = vunpack.c.h.b16 %v307
  %v469 = vunpack.c.l.b16 %v308
  %v470 = vunpack.c.h.b16 %v308
  %v471 = vunpack.c.l.b16 %v309
  %v472 = vunpack.c.h.b16 %v309
  %v473 = vunpack.c.l.b16 %v310
  %v474 = vunpack.c.h.b16 %v310
  %v475 = vunpack.c.l.b16 %v311
  %v476 = vunpack.c.h.b16 %v311
  %v477 = vunpack.c.l.b16 %v312
  %v478 = vunpack.c.h.b16 %v312
  %v479 = vunpack.c.l.b16 %v313
  %v480 = vunpack.c.h.b16 %v313
  %v481 = vunpack.c.l.b16 %v314
  %v482 = vunpack.c.h.b16 %v314
  %v483 = vunpack.c.l.b16 %v315
  %v484 = vunpack.c.h.b16 %v315
  %v485 = vunpack.c.l.b16 %v316
  %v486 = vunpack.c.h.b16 %v316
  %v487 = vunpack.c.l.b16 %v317
  %v488 = vunpack.c.h.b16 %v317
  %v489 = vunpack.c.l.b16 %v318
  %v490 = vunpack.c.h.b16 %v318
  %v491 = vunpack.c.l.b16 %v319
  %v492 = vunpack.c.h.b16 %v319
  %v493 = vunpack.c.l.b16 %v320
  %v494 = vunpack.c.h.b16 %v320
  %v495 = vunpack.c.l.b16 %v321
  %v496 = vunpack.c.h.b16 %v321
  %v497 = vunpack.c.l.b16 %v322
  %v498 = vunpack.c.h.b16 %v322
  %v499 = vunpack.c.l.b16 %v323
  %v500 = vunpack.c.h.b16 %v323
  %v501 = vunpack.c.l.b16 %v324
  %v502 = vunpack.c.h.b16 %v324
  %v503 = vunpack.c.l.b16 %v325
  %v504 = vunpack.c.h.b16 %v325
  %v505 = vunpack.c.l.b16 %v326
  %v506 = vunpack.c.h.b16 %v326
  %v507 = vunpack.c.l.b16 %v327
  %v508 = vunpack.c.h.b16 %v327
  %v509 = vunpack.c.l.b16 %v328
  %v510 = vunpack.c.h.b16 %v328
  %v511 = vunpack.c.l.b16 %v329
  %v512 = vunpack.c.h.b16 %v329
  %v513 = vunpack.c.l.b16 %v330
  %v514 = vunpack.c.h.b16 %v330
  %v515 = vunpack.c.l.b16 %v331
  %v516 = vunpack.c.h.b16 %v331
  %v517 = vunpack.c.l.b16 %v332
  %v518 = vunpack.c.h.b16 %v332
  %v519 = vunpack.c.l.b16 %v333
  %v520 = vunpack.c.h.b16 %v333
  %v521 = vunpack.c.l.b16 %v334
  %v522 = vunpack.c.h.b16 %v334
  %v523 = vunpack.c.l.b16 %v335
  %v524 = vunpack.c.h.b16 %v335
  %v525 = vunpack.c.l.b16 %v336
  %v526 = vunpack.c.h.b16 %v336
  %v527 = vunpack.c.l.b16 %v337
  %v528 = vunpack.c.h.b16 %v337
  %v529 = vunpack.c.l.b16 %v338
  %v530 = vunpack.c.h.b16 %v338
  %v531 = vpack.c.b16 %v471, %v467
  %v532 = vpack.c.b16 %v472, %v468
  %v533 = vpack.c.b16 %v473, %v469
  %v534 = vpack.c.b16 %v474, %v470
  %v535 = vpack.c.b16 %v479, %v475
  %v536 = vpack.c.b16 %v480, %v476
  %v537 = vpack.c.b16 %v481, %v477
  %v538 = vpack.c.b16 %v482, %v478
  %v539 = vpack.c.b16 %v487, %v483
  %v540 = vpack.c.b16 %v488, %v484
  %v541 = vpack.c.b16 %v489, %v485
  %v542 = vpack.c.b16 %v490, %v486
  %v543 = vpack.c.b16 %v495, %v491
  %v544 = vpack.c.b16 %v496, %v492
  %v545 = vpack.c.b16 %v497, %v493
  %v546 = vpack.c.b16 %v498, %v494
  %v547 = vpack.c.b16 %v503, %v499
  %v548 = vpack.c.b16 %v504, %v500
  %v549 = vpack.c.b16 %v505, %v501
  %v550 = vpack.c.b16 %v506, %v502
  %v551 = vpack.c.b16 %v511, %v507
  %v552 = vpack.c.b16 %v512, %v508
  %v553 = vpack.c.b16 %v513, %v509
  %v554 = vpack.c.b16 %v514, %v510
  %v555 = vpack.c.b16 %v519, %v515
  %v556 = vpack.c.b16 %v520, %v516
  %v557 = vpack.c.b16 %v521, %v517
  %v558 = vpack.c.b16 %v522, %v518
  %v559 = vpack.c.b16 %v527, %v523
  %v560 = vpack.c.b16 %v528, %v524
  %v561 = vpack.c.b16 %v529, %v525
  %v562 = vpack.c.b16 %v530, %v526
  %595 = vmatprep.subr.bf16.mxu0 %v532
  %596 = vmatpush1.bf16.msra.mxu0 %v531
  %597 = vmatprep.subr.bf16.mxu0 %v536
  %598 = vmatpush1.bf16.msra.mxu0 %v535
  %599 = vmatprep.subr.bf16.mxu0 %v540
  %600 = vmatpush1.bf16.msra.mxu0 %v539
  %601 = vmatprep.subr.bf16.mxu0 %v544
  %602 = vmatpush1.bf16.msra.mxu0 %v543
  %603 = vmatprep.subr.bf16.mxu0 %v548
  %604 = vmatpush1.bf16.msra.mxu0 %v547
  %605 = vmatprep.subr.bf16.mxu0 %v552
  %606 = vmatpush1.bf16.msra.mxu0 %v551
  %607 = vmatprep.subr.bf16.mxu0 %v556
  %608 = vmatpush1.bf16.msra.mxu0 %v555
  %609 = vmatprep.subr.bf16.mxu0 %v560
  %610 = vmatpush1.bf16.msra.mxu0 %v559
  %611 = vmatprep.subr.bf16.mxu0 0
  %612 = vmatpush1.bf16.msra.mxu0 0
  %613 = vmatprep.subr.bf16.mxu0 0
  %614 = vmatpush1.bf16.msra.mxu0 0
  %615 = vmatprep.subr.bf16.mxu0 0
  %616 = vmatpush1.bf16.msra.mxu0 0
  %617 = vmatprep.subr.bf16.mxu0 0
  %618 = vmatpush1.bf16.msra.mxu0 0
  %619 = vmatprep.subr.bf16.mxu0 0
  %620 = vmatpush1.bf16.msra.mxu0 0
  %621 = vmatprep.subr.bf16.mxu0 0
  %622 = vmatpush1.bf16.msra.mxu0 0
  %623 = vmatprep.subr.bf16.mxu0 0
  %624 = vmatpush1.bf16.msra.mxu0 0
  %625 = vmatprep.subr.bf16.mxu0 0
  %626 = vmatpush1.bf16.msra.mxu0 0
  %627 = vmatprep.mubr.bf16.mxu0 0
  %628 = vmatmul.mubr.bf16.gmra.mrb[0].mxu0 %v403
  %v629 = vpop.f32.mrb[0].mxu0
  %v630 = vadd.f32 0.0, %v629
  %v631 = vpop.f32.mrb[0].mxu0
  %v632 = vadd.f32 0.0, %v631
  %v633 = vpop.f32.mrb[0].mxu0
  %v634 = vadd.f32 0.0, %v633
  %v635 = vpop.f32.mrb[0].mxu0
  %v636 = vadd.f32 0.0, %v635
  %637 = vmatprep.mubr.bf16.mxu0 0
  %638 = vmatmul.mubr.bf16.gmra.mrb[0].mxu0 %v404
  %v639 = vpop.f32.mrb[0].mxu0
  %v640 = vadd.f32 0.0, %v639
  %v641 = vpop.f32.mrb[0].mxu0
  %v642 = vadd.f32 0.0, %v641
  %v643 = vpop.f32.mrb[0].mxu0
  %v644 = vadd.f32 0.0, %v643
  %v645 = vpop.f32.mrb[0].mxu0
  %v646 = vadd.f32 0.0, %v645
  %647 = vmatprep.mubr.bf16.mxu0 0
  %648 = vmatmul.mubr.bf16.gmra.mrb[0].mxu0 %v405
  %v649 = vpop.f32.mrb[0].mxu0
  %v650 = vadd.f32 0.0, %v649
  %v651 = vpop.f32.mrb[0].mxu0
  %v652 = vadd.f32 0.0, %v651
  %v653 = vpop.f32.mrb[0].mxu0
  %v654 = vadd.f32 0.0, %v653
  %v655 = vpop.f32.mrb[0].mxu0
  %v656 = vadd.f32 0.0, %v655
  %657 = vmatprep.mubr.bf16.mxu0 0
  %658 = vmatmul.mubr.bf16.gmra.mrb[0].mxu0 %v406
  %v659 = vpop.f32.mrb[0].mxu0
  %v660 = vadd.f32 0.0, %v659
  %v661 = vpop.f32.mrb[0].mxu0
  %v662 = vadd.f32 0.0, %v661
  %v663 = vpop.f32.mrb[0].mxu0
  %v664 = vadd.f32 0.0, %v663
  %v665 = vpop.f32.mrb[0].mxu0
  %v666 = vadd.f32 0.0, %v665
  %667 = vmatprep.mubr.bf16.mxu0 0
  %668 = vmatmul.mubr.bf16.gmra.mrb[0].mxu0 %v407
  %v669 = vpop.f32.mrb[0].mxu0
  %v670 = vadd.f32 0.0, %v669
  %v671 = vpop.f32.mrb[0].mxu0
  %v672 = vadd.f32 0.0, %v671
  %v673 = vpop.f32.mrb[0].mxu0
  %v674 = vadd.f32 0.0, %v673
  %v675 = vpop.f32.mrb[0].mxu0
  %v676 = vadd.f32 0.0, %v675
  %677 = vmatprep.mubr.bf16.mxu0 0
  %678 = vmatmul.mubr.bf16.gmra.mrb[0].mxu0 %v408
  %v679 = vpop.f32.mrb[0].mxu0
  %v680 = vadd.f32 0.0, %v679
  %v681 = vpop.f32.mrb[0].mxu0
  %v682 = vadd.f32 0.0, %v681
  %v683 = vpop.f32.mrb[0].mxu0
  %v684 = vadd.f32 0.0, %v683
  %v685 = vpop.f32.mrb[0].mxu0
  %v686 = vadd.f32 0.0, %v685
  %687 = vmatprep.mubr.bf16.mxu0 0
  %688 = vmatmul.mubr.bf16.gmra.mrb[0].mxu0 %v409
  %v689 = vpop.f32.mrb[0].mxu0
  %v690 = vadd.f32 0.0, %v689
  %v691 = vpop.f32.mrb[0].mxu0
  %v692 = vadd.f32 0.0, %v691
  %v693 = vpop.f32.mrb[0].mxu0
  %v694 = vadd.f32 0.0, %v693
  %v695 = vpop.f32.mrb[0].mxu0
  %v696 = vadd.f32 0.0, %v695
  %697 = vmatprep.mubr.bf16.mxu0 0
  %698 = vmatmul.mubr.bf16.gmra.mrb[0].mxu0 %v410
  %v699 = vpop.f32.mrb[0].mxu0
  %v700 = vadd.f32 0.0, %v699
  %v701 = vpop.f32.mrb[0].mxu0
  %v702 = vadd.f32 0.0, %v701
  %v703 = vpop.f32.mrb[0].mxu0
  %v704 = vadd.f32 0.0, %v703
  %v705 = vpop.f32.mrb[0].mxu0
  %v706 = vadd.f32 0.0, %v705
  %707 = vmatprep.mubr.bf16.mxu0 0
  %708 = vmatmul.mubr.bf16.gmra.mrb[0].mxu0 %v411
  %v709 = vpop.f32.mrb[0].mxu0
  %v710 = vadd.f32 0.0, %v709
  %v711 = vpop.f32.mrb[0].mxu0
  %v712 = vadd.f32 0.0, %v711
  %v713 = vpop.f32.mrb[0].mxu0
  %v714 = vadd.f32 0.0, %v713
  %v715 = vpop.f32.mrb[0].mxu0
  %v716 = vadd.f32 0.0, %v715
  %717 = vmatprep.mubr.bf16.mxu0 0
  %718 = vmatmul.mubr.bf16.gmra.mrb[0].mxu0 %v412
  %v719 = vpop.f32.mrb[0].mxu0
  %v720 = vadd.f32 0.0, %v719
  %v721 = vpop.f32.mrb[0].mxu0
  %v722 = vadd.f32 0.0, %v721
  %v723 = vpop.f32.mrb[0].mxu0
  %v724 = vadd.f32 0.0, %v723
  %v725 = vpop.f32.mrb[0].mxu0
  %v726 = vadd.f32 0.0, %v725
  %727 = vmatprep.mubr.bf16.mxu0 0
  %728 = vmatmul.mubr.bf16.gmra.mrb[0].mxu0 %v413
  %v729 = vpop.f32.mrb[0].mxu0
  %v730 = vadd.f32 0.0, %v729
  %v731 = vpop.f32.mrb[0].mxu0
  %v732 = vadd.f32 0.0, %v731
  %v733 = vpop.f32.mrb[0].mxu0
  %v734 = vadd.f32 0.0, %v733
  %v735 = vpop.f32.mrb[0].mxu0
  %v736 = vadd.f32 0.0, %v735
  %737 = vmatprep.mubr.bf16.mxu0 0
  %738 = vmatmul.mubr.bf16.gmra.mrb[0].mxu0 %v414
  %v739 = vpop.f32.mrb[0].mxu0
  %v740 = vadd.f32 0.0, %v739
  %v741 = vpop.f32.mrb[0].mxu0
  %v742 = vadd.f32 0.0, %v741
  %v743 = vpop.f32.mrb[0].mxu0
  %v744 = vadd.f32 0.0, %v743
  %v745 = vpop.f32.mrb[0].mxu0
  %v746 = vadd.f32 0.0, %v745
  %747 = vmatprep.mubr.bf16.mxu0 0
  %748 = vmatmul.mubr.bf16.gmra.mrb[0].mxu0 %v415
  %v749 = vpop.f32.mrb[0].mxu0
  %v750 = vadd.f32 0.0, %v749
  %v751 = vpop.f32.mrb[0].mxu0
  %v752 = vadd.f32 0.0, %v751
  %v753 = vpop.f32.mrb[0].mxu0
  %v754 = vadd.f32 0.0, %v753
  %v755 = vpop.f32.mrb[0].mxu0
  %v756 = vadd.f32 0.0, %v755
  %757 = vmatprep.mubr.bf16.mxu0 0
  %758 = vmatmul.mubr.bf16.gmra.mrb[0].mxu0 %v416
  %v759 = vpop.f32.mrb[0].mxu0
  %v760 = vadd.f32 0.0, %v759
  %v761 = vpop.f32.mrb[0].mxu0
  %v762 = vadd.f32 0.0, %v761
  %v763 = vpop.f32.mrb[0].mxu0
  %v764 = vadd.f32 0.0, %v763
  %v765 = vpop.f32.mrb[0].mxu0
  %v766 = vadd.f32 0.0, %v765
  %767 = vmatprep.mubr.bf16.mxu0 0
  %768 = vmatmul.mubr.bf16.gmra.mrb[0].mxu0 %v417
  %v769 = vpop.f32.mrb[0].mxu0
  %v770 = vadd.f32 0.0, %v769
  %v771 = vpop.f32.mrb[0].mxu0
  %v772 = vadd.f32 0.0, %v771
  %v773 = vpop.f32.mrb[0].mxu0
  %v774 = vadd.f32 0.0, %v773
  %v775 = vpop.f32.mrb[0].mxu0
  %v776 = vadd.f32 0.0, %v775
  %777 = vmatprep.mubr.bf16.mxu0 0
  %778 = vmatmul.mubr.bf16.gmra.mrb[0].mxu0 %v418
  %v779 = vpop.f32.mrb[0].mxu0
  %v780 = vadd.f32 0.0, %v779
  %v781 = vpop.f32.mrb[0].mxu0
  %v782 = vadd.f32 0.0, %v781
  %v783 = vpop.f32.mrb[0].mxu0
  %v784 = vadd.f32 0.0, %v783
  %v785 = vpop.f32.mrb[0].mxu0
  %v786 = vadd.f32 0.0, %v785
  %787 = vdwg.mxu0
  %788 = vmatprep.subr.bf16.mxu0 %v534
  %789 = vmatpush1.bf16.msra.mxu0 %v533
  %790 = vmatprep.subr.bf16.mxu0 %v538
  %791 = vmatpush1.bf16.msra.mxu0 %v537
  %792 = vmatprep.subr.bf16.mxu0 %v542
  %793 = vmatpush1.bf16.msra.mxu0 %v541
  %794 = vmatprep.subr.bf16.mxu0 %v546
  %795 = vmatpush1.bf16.msra.mxu0 %v545
  %796 = vmatprep.subr.bf16.mxu0 %v550
  %797 = vmatpush1.bf16.msra.mxu0 %v549
  %798 = vmatprep.subr.bf16.mxu0 %v554
  %799 = vmatpush1.bf16.msra.mxu0 %v553
  %800 = vmatprep.subr.bf16.mxu0 %v558
  %801 = vmatpush1.bf16.msra.mxu0 %v557
  %802 = vmatprep.subr.bf16.mxu0 %v562
  %803 = vmatpush1.bf16.msra.mxu0 %v561
  %804 = vmatprep.subr.bf16.mxu0 0
  %805 = vmatpush1.bf16.msra.mxu0 0
  %806 = vmatprep.subr.bf16.mxu0 0
  %807 = vmatpush1.bf16.msra.mxu0 0
  %808 = vmatprep.subr.bf16.mxu0 0
  %809 = vmatpush1.bf16.msra.mxu0 0
  %810 = vmatprep.subr.bf16.mxu0 0
  %811 = vmatpush1.bf16.msra.mxu0 0
  %812 = vmatprep.subr.bf16.mxu0 0
  %813 = vmatpush1.bf16.msra.mxu0 0
  %814 = vmatprep.subr.bf16.mxu0 0
  %815 = vmatpush1.bf16.msra.mxu0 0
  %816 = vmatprep.subr.bf16.mxu0 0
  %817 = vmatpush1.bf16.msra.mxu0 0
  %818 = vmatprep.subr.bf16.mxu0 0
  %819 = vmatpush1.bf16.msra.mxu0 0
  %820 = vmatprep.mubr.bf16.mxu0 0
  %821 = vmatmul.mubr.bf16.gmra.mrb[0].mxu0 %v403
  %v822 = vpop.f32.mrb[0].mxu0
  %v823 = vadd.f32 0.0, %v822
  %v824 = vpop.f32.mrb[0].mxu0
  %v825 = vadd.f32 0.0, %v824
  %v826 = vpop.f32.mrb[0].mxu0
  %v827 = vadd.f32 0.0, %v826
  %v828 = vpop.f32.mrb[0].mxu0
  %v829 = vadd.f32 0.0, %v828
  %830 = vmatprep.mubr.bf16.mxu0 0
  %831 = vmatmul.mubr.bf16.gmra.mrb[0].mxu0 %v404
  %v832 = vpop.f32.mrb[0].mxu0
  %v833 = vadd.f32 0.0, %v832
  %v834 = vpop.f32.mrb[0].mxu0
  %v835 = vadd.f32 0.0, %v834
  %v836 = vpop.f32.mrb[0].mxu0
  %v837 = vadd.f32 0.0, %v836
  %v838 = vpop.f32.mrb[0].mxu0
  %v839 = vadd.f32 0.0, %v838
  %840 = vmatprep.mubr.bf16.mxu0 0
  %841 = vmatmul.mubr.bf16.gmra.mrb[0].mxu0 %v405
  %v842 = vpop.f32.mrb[0].mxu0
  %v843 = vadd.f32 0.0, %v842
  %v844 = vpop.f32.mrb[0].mxu0
  %v845 = vadd.f32 0.0, %v844
  %v846 = vpop.f32.mrb[0].mxu0
  %v847 = vadd.f32 0.0, %v846
  %v848 = vpop.f32.mrb[0].mxu0
  %v849 = vadd.f32 0.0, %v848
  %850 = vmatprep.mubr.bf16.mxu0 0
  %851 = vmatmul.mubr.bf16.gmra.mrb[0].mxu0 %v406
  %v852 = vpop.f32.mrb[0].mxu0
  %v853 = vadd.f32 0.0, %v852
  %v854 = vpop.f32.mrb[0].mxu0
  %v855 = vadd.f32 0.0, %v854
  %v856 = vpop.f32.mrb[0].mxu0
  %v857 = vadd.f32 0.0, %v856
  %v858 = vpop.f32.mrb[0].mxu0
  %v859 = vadd.f32 0.0, %v858
  %860 = vmatprep.mubr.bf16.mxu0 0
  %861 = vmatmul.mubr.bf16.gmra.mrb[0].mxu0 %v407
  %v862 = vpop.f32.mrb[0].mxu0
  %v863 = vadd.f32 0.0, %v862
  %v864 = vpop.f32.mrb[0].mxu0
  %v865 = vadd.f32 0.0, %v864
  %v866 = vpop.f32.mrb[0].mxu0
  %v867 = vadd.f32 0.0, %v866
  %v868 = vpop.f32.mrb[0].mxu0
  %v869 = vadd.f32 0.0, %v868
  %870 = vmatprep.mubr.bf16.mxu0 0
  %871 = vmatmul.mubr.bf16.gmra.mrb[0].mxu0 %v408
  %v872 = vpop.f32.mrb[0].mxu0
  %v873 = vadd.f32 0.0, %v872
  %v874 = vpop.f32.mrb[0].mxu0
  %v875 = vadd.f32 0.0, %v874
  %v876 = vpop.f32.mrb[0].mxu0
  %v877 = vadd.f32 0.0, %v876
  %v878 = vpop.f32.mrb[0].mxu0
  %v879 = vadd.f32 0.0, %v878
  %880 = vmatprep.mubr.bf16.mxu0 0
  %881 = vmatmul.mubr.bf16.gmra.mrb[0].mxu0 %v409
  %v882 = vpop.f32.mrb[0].mxu0
  %v883 = vadd.f32 0.0, %v882
  %v884 = vpop.f32.mrb[0].mxu0
  %v885 = vadd.f32 0.0, %v884
  %v886 = vpop.f32.mrb[0].mxu0
  %v887 = vadd.f32 0.0, %v886
  %v888 = vpop.f32.mrb[0].mxu0
  %v889 = vadd.f32 0.0, %v888
  %890 = vmatprep.mubr.bf16.mxu0 0
  %891 = vmatmul.mubr.bf16.gmra.mrb[0].mxu0 %v410
  %v892 = vpop.f32.mrb[0].mxu0
  %v893 = vadd.f32 0.0, %v892
  %v894 = vpop.f32.mrb[0].mxu0
  %v895 = vadd.f32 0.0, %v894
  %v896 = vpop.f32.mrb[0].mxu0
  %v897 = vadd.f32 0.0, %v896
  %v898 = vpop.f32.mrb[0].mxu0
  %v899 = vadd.f32 0.0, %v898
  %900 = vmatprep.mubr.bf16.mxu0 0
  %901 = vmatmul.mubr.bf16.gmra.mrb[0].mxu0 %v411
  %v902 = vpop.f32.mrb[0].mxu0
  %v903 = vadd.f32 0.0, %v902
  %v904 = vpop.f32.mrb[0].mxu0
  %v905 = vadd.f32 0.0, %v904
  %v906 = vpop.f32.mrb[0].mxu0
  %v907 = vadd.f32 0.0, %v906
  %v908 = vpop.f32.mrb[0].mxu0
  %v909 = vadd.f32 0.0, %v908
  %910 = vmatprep.mubr.bf16.mxu0 0
  %911 = vmatmul.mubr.bf16.gmra.mrb[0].mxu0 %v412
  %v912 = vpop.f32.mrb[0].mxu0
  %v913 = vadd.f32 0.0, %v912
  %v914 = vpop.f32.mrb[0].mxu0
  %v915 = vadd.f32 0.0, %v914
  %v916 = vpop.f32.mrb[0].mxu0
  %v917 = vadd.f32 0.0, %v916
  %v918 = vpop.f32.mrb[0].mxu0
  %v919 = vadd.f32 0.0, %v918
  %920 = vmatprep.mubr.bf16.mxu0 0
  %921 = vmatmul.mubr.bf16.gmra.mrb[0].mxu0 %v413
  %v922 = vpop.f32.mrb[0].mxu0
  %v923 = vadd.f32 0.0, %v922
  %v924 = vpop.f32.mrb[0].mxu0
  %v925 = vadd.f32 0.0, %v924
  %v926 = vpop.f32.mrb[0].mxu0
  %v927 = vadd.f32 0.0, %v926
  %v928 = vpop.f32.mrb[0].mxu0
  %v929 = vadd.f32 0.0, %v928
  %930 = vmatprep.mubr.bf16.mxu0 0
  %931 = vmatmul.mubr.bf16.gmra.mrb[0].mxu0 %v414
  %v932 = vpop.f32.mrb[0].mxu0
  %v933 = vadd.f32 0.0, %v932
  %v934 = vpop.f32.mrb[0].mxu0
  %v935 = vadd.f32 0.0, %v934
  %v936 = vpop.f32.mrb[0].mxu0
  %v937 = vadd.f32 0.0, %v936
  %v938 = vpop.f32.mrb[0].mxu0
  %v939 = vadd.f32 0.0, %v938
  %940 = vmatprep.mubr.bf16.mxu0 0
  %941 = vmatmul.mubr.bf16.gmra.mrb[0].mxu0 %v415
  %v942 = vpop.f32.mrb[0].mxu0
  %v943 = vadd.f32 0.0, %v942
  %v944 = vpop.f32.mrb[0].mxu0
  %v945 = vadd.f32 0.0, %v944
  %v946 = vpop.f32.mrb[0].mxu0
  %v947 = vadd.f32 0.0, %v946
  %v948 = vpop.f32.mrb[0].mxu0
  %v949 = vadd.f32 0.0, %v948
  %950 = vmatprep.mubr.bf16.mxu0 0
  %951 = vmatmul.mubr.bf16.gmra.mrb[0].mxu0 %v416
  %v952 = vpop.f32.mrb[0].mxu0
  %v953 = vadd.f32 0.0, %v952
  %v954 = vpop.f32.mrb[0].mxu0
  %v955 = vadd.f32 0.0, %v954
  %v956 = vpop.f32.mrb[0].mxu0
  %v957 = vadd.f32 0.0, %v956
  %v958 = vpop.f32.mrb[0].mxu0
  %v959 = vadd.f32 0.0, %v958
  %960 = vmatprep.mubr.bf16.mxu0 0
  %961 = vmatmul.mubr.bf16.gmra.mrb[0].mxu0 %v417
  %v962 = vpop.f32.mrb[0].mxu0
  %v963 = vadd.f32 0.0, %v962
  %v964 = vpop.f32.mrb[0].mxu0
  %v965 = vadd.f32 0.0, %v964
  %v966 = vpop.f32.mrb[0].mxu0
  %v967 = vadd.f32 0.0, %v966
  %v968 = vpop.f32.mrb[0].mxu0
  %v969 = vadd.f32 0.0, %v968
  %970 = vmatprep.mubr.bf16.mxu0 0
  %971 = vmatmul.mubr.bf16.gmra.mrb[0].mxu0 %v418
  %v972 = vpop.f32.mrb[0].mxu0
  %v973 = vadd.f32 0.0, %v972
  %v974 = vpop.f32.mrb[0].mxu0
  %v975 = vadd.f32 0.0, %v974
  %v976 = vpop.f32.mrb[0].mxu0
  %v977 = vadd.f32 0.0, %v976
  %v978 = vpop.f32.mrb[0].mxu0
  %v979 = vadd.f32 0.0, %v978
  %980 = vdwg.mxu0
  %v981 = vadd.f32 %v147, %v630
  %v982 = vadd.f32 %v148, %v632
  %v983 = vadd.f32 %v149, %v823
  %v984 = vadd.f32 %v150, %v825
  %v985 = vadd.f32 %v151, %v634
  %v986 = vadd.f32 %v152, %v636
  %v987 = vadd.f32 %v153, %v827
  %v988 = vadd.f32 %v154, %v829
  %v989 = vadd.f32 %v155, %v640
  %v990 = vadd.f32 %v156, %v642
  %v991 = vadd.f32 %v157, %v833
  %v992 = vadd.f32 %v158, %v835
  %v993 = vadd.f32 %v159, %v644
  %v994 = vadd.f32 %v160, %v646
  %v995 = vadd.f32 %v161, %v837
  %v996 = vadd.f32 %v162, %v839
  %v997 = vadd.f32 %v163, %v650
  %v998 = vadd.f32 %v164, %v652
  %v999 = vadd.f32 %v165, %v843
  %v1000 = vadd.f32 %v166, %v845
  %v1001 = vadd.f32 %v167, %v654
  %v1002 = vadd.f32 %v168, %v656
  %v1003 = vadd.f32 %v169, %v847
  %v1004 = vadd.f32 %v170, %v849
  %v1005 = vadd.f32 %v171, %v660
  %v1006 = vadd.f32 %v172, %v662
  %v1007 = vadd.f32 %v173, %v853
  %v1008 = vadd.f32 %v174, %v855
  %v1009 = vadd.f32 %v175, %v664
  %v1010 = vadd.f32 %v176, %v666
  %v1011 = vadd.f32 %v177, %v857
  %v1012 = vadd.f32 %v178, %v859
  %v1013 = vadd.f32 %v179, %v670
  %v1014 = vadd.f32 %v180, %v672
  %v1015 = vadd.f32 %v181, %v863
  %v1016 = vadd.f32 %v182, %v865
  %v1017 = vadd.f32 %v183, %v674
  %v1018 = vadd.f32 %v184, %v676
  %v1019 = vadd.f32 %v185, %v867
  %v1020 = vadd.f32 %v186, %v869
  %v1021 = vadd.f32 %v187, %v680
  %v1022 = vadd.f32 %v188, %v682
  %v1023 = vadd.f32 %v189, %v873
  %v1024 = vadd.f32 %v190, %v875
  %v1025 = vadd.f32 %v191, %v684
  %v1026 = vadd.f32 %v192, %v686
  %v1027 = vadd.f32 %v193, %v877
  %v1028 = vadd.f32 %v194, %v879
  %v1029 = vadd.f32 %v195, %v690
  %v1030 = vadd.f32 %v196, %v692
  %v1031 = vadd.f32 %v197, %v883
  %v1032 = vadd.f32 %v198, %v885
  %v1033 = vadd.f32 %v199, %v694
  %v1034 = vadd.f32 %v200, %v696
  %v1035 = vadd.f32 %v201, %v887
  %v1036 = vadd.f32 %v202, %v889
  %v1037 = vadd.f32 %v203, %v700
  %v1038 = vadd.f32 %v204, %v702
  %v1039 = vadd.f32 %v205, %v893
  %v1040 = vadd.f32 %v206, %v895
  %v1041 = vadd.f32 %v207, %v704
  %v1042 = vadd.f32 %v208, %v706
  %v1043 = vadd.f32 %v209, %v897
  %v1044 = vadd.f32 %v210, %v899
  %v1045 = vadd.f32 %v211, %v710
  %v1046 = vadd.f32 %v212, %v712
  %v1047 = vadd.f32 %v213, %v903
  %v1048 = vadd.f32 %v214, %v905
  %v1049 = vadd.f32 %v215, %v714
  %v1050 = vadd.f32 %v216, %v716
  %v1051 = vadd.f32 %v217, %v907
  %v1052 = vadd.f32 %v218, %v909
  %v1053 = vadd.f32 %v219, %v720
  %v1054 = vadd.f32 %v220, %v722
  %v1055 = vadd.f32 %v221, %v913
  %v1056 = vadd.f32 %v222, %v915
  %v1057 = vadd.f32 %v223, %v724
  %v1058 = vadd.f32 %v224, %v726
  %v1059 = vadd.f32 %v225, %v917
  %v1060 = vadd.f32 %v226, %v919
  %v1061 = vadd.f32 %v227, %v730
  %v1062 = vadd.f32 %v228, %v732
  %v1063 = vadd.f32 %v229, %v923
  %v1064 = vadd.f32 %v230, %v925
  %v1065 = vadd.f32 %v231, %v734
  %v1066 = vadd.f32 %v232, %v736
  %v1067 = vadd.f32 %v233, %v927
  %v1068 = vadd.f32 %v234, %v929
  %v1069 = vadd.f32 %v235, %v740
  %v1070 = vadd.f32 %v236, %v742
  %v1071 = vadd.f32 %v237, %v933
  %v1072 = vadd.f32 %v238, %v935
  %v1073 = vadd.f32 %v239, %v744
  %v1074 = vadd.f32 %v240, %v746
  %v1075 = vadd.f32 %v241, %v937
  %v1076 = vadd.f32 %v242, %v939
  %v1077 = vadd.f32 %v243, %v750
  %v1078 = vadd.f32 %v244, %v752
  %v1079 = vadd.f32 %v245, %v943
  %v1080 = vadd.f32 %v246, %v945
  %v1081 = vadd.f32 %v247, %v754
  %v1082 = vadd.f32 %v248, %v756
  %v1083 = vadd.f32 %v249, %v947
  %v1084 = vadd.f32 %v250, %v949
  %v1085 = vadd.f32 %v251, %v760
  %v1086 = vadd.f32 %v252, %v762
  %v1087 = vadd.f32 %v253, %v953
  %v1088 = vadd.f32 %v254, %v955
  %v1089 = vadd.f32 %v255, %v764
  %v1090 = vadd.f32 %v256, %v766
  %v1091 = vadd.f32 %v257, %v957
  %v1092 = vadd.f32 %v258, %v959
  %v1093 = vadd.f32 %v259, %v770
  %v1094 = vadd.f32 %v260, %v772
  %v1095 = vadd.f32 %v261, %v963
  %v1096 = vadd.f32 %v262, %v965
  %v1097 = vadd.f32 %v263, %v774
  %v1098 = vadd.f32 %v264, %v776
  %v1099 = vadd.f32 %v265, %v967
  %v1100 = vadd.f32 %v266, %v969
  %v1101 = vadd.f32 %v267, %v780
  %v1102 = vadd.f32 %v268, %v782
  %v1103 = vadd.f32 %v269, %v973
  %v1104 = vadd.f32 %v270, %v975
  %v1105 = vadd.f32 %v271, %v784
  %v1106 = vadd.f32 %v272, %v786
  %v1107 = vadd.f32 %v273, %v977
  %v1108 = vadd.f32 %v274, %v979
  %1109 = vst [vmem:[#allocation2] sm:$0xff] %v981
  %1110 = vst [vmem:[#allocation2 + $0x8] sm:$0xff] %v982
  %1111 = vst [vmem:[#allocation2 + $0x10] sm:$0xff] %v983
  %1112 = vst [vmem:[#allocation2 + $0x18] sm:$0xff] %v984
  %1113 = vst [vmem:[#allocation2 + $0x20] sm:$0xff] %v985
  %1114 = vst [vmem:[#allocation2 + $0x28] sm:$0xff] %v986
  %1115 = vst [vmem:[#allocation2 + $0x30] sm:$0xff] %v987
  %1116 = vst [vmem:[#allocation2 + $0x38] sm:$0xff] %v988
  %1117 = vst [vmem:[#allocation2 + $0x40] sm:$0xff] %v989
  %1118 = vst [vmem:[#allocation2 + $0x48] sm:$0xff] %v990
  %1119 = vst [vmem:[#allocation2 + $0x50] sm:$0xff] %v991
  %1120 = vst [vmem:[#allocation2 + $0x58] sm:$0xff] %v992
  %1121 = vst [vmem:[#allocation2 + $0x60] sm:$0xff] %v993
  %1122 = vst [vmem:[#allocation2 + $0x68] sm:$0xff] %v994
  %1123 = vst [vmem:[#allocation2 + $0x70] sm:$0xff] %v995
  %1124 = vst [vmem:[#allocation2 + $0x78] sm:$0xff] %v996
  %1125 = vst [vmem:[#allocation2 + $0x80] sm:$0xff] %v997
  %1126 = vst [vmem:[#allocation2 + $0x88] sm:$0xff] %v998
  %1127 = vst [vmem:[#allocation2 + $0x90] sm:$0xff] %v999
  %1128 = vst [vmem:[#allocation2 + $0x98] sm:$0xff] %v1000
  %1129 = vst [vmem:[#allocation2 + $0xa0] sm:$0xff] %v1001
  %1130 = vst [vmem:[#allocation2 + $0xa8] sm:$0xff] %v1002
  %1131 = vst [vmem:[#allocation2 + $0xb0] sm:$0xff] %v1003
  %1132 = vst [vmem:[#allocation2 + $0xb8] sm:$0xff] %v1004
  %1133 = vst [vmem:[#allocation2 + $0xc0] sm:$0xff] %v1005
  %1134 = vst [vmem:[#allocation2 + $0xc8] sm:$0xff] %v1006
  %1135 = vst [vmem:[#allocation2 + $0xd0] sm:$0xff] %v1007
  %1136 = vst [vmem:[#allocation2 + $0xd8] sm:$0xff] %v1008
  %1137 = vst [vmem:[#allocation2 + $0xe0] sm:$0xff] %v1009
  %1138 = vst [vmem:[#allocation2 + $0xe8] sm:$0xff] %v1010
  %1139 = vst [vmem:[#allocation2 + $0xf0] sm:$0xff] %v1011
  %1140 = vst [vmem:[#allocation2 + $0xf8] sm:$0xff] %v1012
  %1141 = vst [vmem:[#allocation2 + $0x100] sm:$0xff] %v1013
  %1142 = vst [vmem:[#allocation2 + $0x108] sm:$0xff] %v1014
  %1143 = vst [vmem:[#allocation2 + $0x110] sm:$0xff] %v1015
  %1144 = vst [vmem:[#allocation2 + $0x118] sm:$0xff] %v1016
  %1145 = vst [vmem:[#allocation2 + $0x120] sm:$0xff] %v1017
  %1146 = vst [vmem:[#allocation2 + $0x128] sm:$0xff] %v1018
  %1147 = vst [vmem:[#allocation2 + $0x130] sm:$0xff] %v1019
  %1148 = vst [vmem:[#allocation2 + $0x138] sm:$0xff] %v1020
  %1149 = vst [vmem:[#allocation2 + $0x140] sm:$0xff] %v1021
  %1150 = vst [vmem:[#allocation2 + $0x148] sm:$0xff] %v1022
  %1151 = vst [vmem:[#allocation2 + $0x150] sm:$0xff] %v1023
  %1152 = vst [vmem:[#allocation2 + $0x158] sm:$0xff] %v1024
  %1153 = vst [vmem:[#allocation2 + $0x160] sm:$0xff] %v1025
  %1154 = vst [vmem:[#allocation2 + $0x168] sm:$0xff] %v1026
  %1155 = vst [vmem:[#allocation2 + $0x170] sm:$0xff] %v1027
  %1156 = vst [vmem:[#allocation2 + $0x178] sm:$0xff] %v1028
  %1157 = vst [vmem:[#allocation2 + $0x180] sm:$0xff] %v1029
  %1158 = vst [vmem:[#allocation2 + $0x188] sm:$0xff] %v1030
  %1159 = vst [vmem:[#allocation2 + $0x190] sm:$0xff] %v1031
  %1160 = vst [vmem:[#allocation2 + $0x198] sm:$0xff] %v1032
  %1161 = vst [vmem:[#allocation2 + $0x1a0] sm:$0xff] %v1033
  %1162 = vst [vmem:[#allocation2 + $0x1a8] sm:$0xff] %v1034
  %1163 = vst [vmem:[#allocation2 + $0x1b0] sm:$0xff] %v1035
  %1164 = vst [vmem:[#allocation2 + $0x1b8] sm:$0xff] %v1036
  %1165 = vst [vmem:[#allocation2 + $0x1c0] sm:$0xff] %v1037
  %1166 = vst [vmem:[#allocation2 + $0x1c8] sm:$0xff] %v1038
  %1167 = vst [vmem:[#allocation2 + $0x1d0] sm:$0xff] %v1039
  %1168 = vst [vmem:[#allocation2 + $0x1d8] sm:$0xff] %v1040
  %1169 = vst [vmem:[#allocation2 + $0x1e0] sm:$0xff] %v1041
  %1170 = vst [vmem:[#allocation2 + $0x1e8] sm:$0xff] %v1042
  %1171 = vst [vmem:[#allocation2 + $0x1f0] sm:$0xff] %v1043
  %1172 = vst [vmem:[#allocation2 + $0x1f8] sm:$0xff] %v1044
  %1173 = vst [vmem:[#allocation2 + $0x200] sm:$0xff] %v1045
  %1174 = vst [vmem:[#allocation2 + $0x208] sm:$0xff] %v1046
  %1175 = vst [vmem:[#allocation2 + $0x210] sm:$0xff] %v1047
  %1176 = vst [vmem:[#allocation2 + $0x218] sm:$0xff] %v1048
  %1177 = vst [vmem:[#allocation2 + $0x220] sm:$0xff] %v1049
  %1178 = vst [vmem:[#allocation2 + $0x228] sm:$0xff] %v1050
  %1179 = vst [vmem:[#allocation2 + $0x230] sm:$0xff] %v1051
  %1180 = vst [vmem:[#allocation2 + $0x238] sm:$0xff] %v1052
  %1181 = vst [vmem:[#allocation2 + $0x240] sm:$0xff] %v1053
  %1182 = vst [vmem:[#allocation2 + $0x248] sm:$0xff] %v1054
  %1183 = vst [vmem:[#allocation2 + $0x250] sm:$0xff] %v1055
  %1184 = vst [vmem:[#allocation2 + $0x258] sm:$0xff] %v1056
  %1185 = vst [vmem:[#allocation2 + $0x260] sm:$0xff] %v1057
  %1186 = vst [vmem:[#allocation2 + $0x268] sm:$0xff] %v1058
  %1187 = vst [vmem:[#allocation2 + $0x270] sm:$0xff] %v1059
  %1188 = vst [vmem:[#allocation2 + $0x278] sm:$0xff] %v1060
  %1189 = vst [vmem:[#allocation2 + $0x280] sm:$0xff] %v1061
  %1190 = vst [vmem:[#allocation2 + $0x288] sm:$0xff] %v1062
  %1191 = vst [vmem:[#allocation2 + $0x290] sm:$0xff] %v1063
  %1192 = vst [vmem:[#allocation2 + $0x298] sm:$0xff] %v1064
  %1193 = vst [vmem:[#allocation2 + $0x2a0] sm:$0xff] %v1065
  %1194 = vst [vmem:[#allocation2 + $0x2a8] sm:$0xff] %v1066
  %1195 = vst [vmem:[#allocation2 + $0x2b0] sm:$0xff] %v1067
  %1196 = vst [vmem:[#allocation2 + $0x2b8] sm:$0xff] %v1068
  %1197 = vst [vmem:[#allocation2 + $0x2c0] sm:$0xff] %v1069
  %1198 = vst [vmem:[#allocation2 + $0x2c8] sm:$0xff] %v1070
  %1199 = vst [vmem:[#allocation2 + $0x2d0] sm:$0xff] %v1071
  %1200 = vst [vmem:[#allocation2 + $0x2d8] sm:$0xff] %v1072
  %1201 = vst [vmem:[#allocation2 + $0x2e0] sm:$0xff] %v1073
  %1202 = vst [vmem:[#allocation2 + $0x2e8] sm:$0xff] %v1074
  %1203 = vst [vmem:[#allocation2 + $0x2f0] sm:$0xff] %v1075
  %1204 = vst [vmem:[#allocation2 + $0x2f8] sm:$0xff] %v1076
  %1205 = vst [vmem:[#allocation2 + $0x300] sm:$0xff] %v1077
  %1206 = vst [vmem:[#allocation2 + $0x308] sm:$0xff] %v1078
  %1207 = vst [vmem:[#allocation2 + $0x310] sm:$0xff] %v1079
  %1208 = vst [vmem:[#allocation2 + $0x318] sm:$0xff] %v1080
  %1209 = vst [vmem:[#allocation2 + $0x320] sm:$0xff] %v1081
  %1210 = vst [vmem:[#allocation2 + $0x328] sm:$0xff] %v1082
  %1211 = vst [vmem:[#allocation2 + $0x330] sm:$0xff] %v1083
  %1212 = vst [vmem:[#allocation2 + $0x338] sm:$0xff] %v1084
  %1213 = vst [vmem:[#allocation2 + $0x340] sm:$0xff] %v1085
  %1214 = vst [vmem:[#allocation2 + $0x348] sm:$0xff] %v1086
  %1215 = vst [vmem:[#allocation2 + $0x350] sm:$0xff] %v1087
  %1216 = vst [vmem:[#allocation2 + $0x358] sm:$0xff] %v1088
  %1217 = vst [vmem:[#allocation2 + $0x360] sm:$0xff] %v1089
  %1218 = vst [vmem:[#allocation2 + $0x368] sm:$0xff] %v1090
  %1219 = vst [vmem:[#allocation2 + $0x370] sm:$0xff] %v1091
  %1220 = vst [vmem:[#allocation2 + $0x378] sm:$0xff] %v1092
  %1221 = vst [vmem:[#allocation2 + $0x380] sm:$0xff] %v1093
  %1222 = vst [vmem:[#allocation2 + $0x388] sm:$0xff] %v1094
  %1223 = vst [vmem:[#allocation2 + $0x390] sm:$0xff] %v1095
  %1224 = vst [vmem:[#allocation2 + $0x398] sm:$0xff] %v1096
  %1225 = vst [vmem:[#allocation2 + $0x3a0] sm:$0xff] %v1097
  %1226 = vst [vmem:[#allocation2 + $0x3a8] sm:$0xff] %v1098
  %1227 = vst [vmem:[#allocation2 + $0x3b0] sm:$0xff] %v1099
  %1228 = vst [vmem:[#allocation2 + $0x3b8] sm:$0xff] %v1100
  %1229 = vst [vmem:[#allocation2 + $0x3c0] sm:$0xff] %v1101
  %1230 = vst [vmem:[#allocation2 + $0x3c8] sm:$0xff] %v1102
  %1231 = vst [vmem:[#allocation2 + $0x3d0] sm:$0xff] %v1103
  %1232 = vst [vmem:[#allocation2 + $0x3d8] sm:$0xff] %v1104
  %1233 = vst [vmem:[#allocation2 + $0x3e0] sm:$0xff] %v1105
  %1234 = vst [vmem:[#allocation2 + $0x3e8] sm:$0xff] %v1106
  %1235 = vst [vmem:[#allocation2 + $0x3f0] sm:$0xff] %v1107
  %1236 = vst [vmem:[#allocation2 + $0x3f8] sm:$0xff] %v1108
  // Predicated region
  $region18: #{forward.16} parent=0 // pred_check
    %p1237 = pneg %p15
  $region19: #{forward.16} parent=0 // pred_check_branch
    %1239 = sbr.rel (%p1237) target = $region21
  $region20: #{forward.16} parent=0 // pred_region
    %v1240 = vld [vmem:[#allocation2] sm:$0xff]
    %v1241 = vld [vmem:[#allocation2 + $0x8] sm:$0xff]
    %v1242 = vld [vmem:[#allocation2 + $0x10] sm:$0xff]
    %v1243 = vld [vmem:[#allocation2 + $0x18] sm:$0xff]
    %v1244 = vld [vmem:[#allocation2 + $0x20] sm:$0xff]
    %v1245 = vld [vmem:[#allocation2 + $0x28] sm:$0xff]
    %v1246 = vld [vmem:[#allocation2 + $0x30] sm:$0xff]
    %v1247 = vld [vmem:[#allocation2 + $0x38] sm:$0xff]
    %v1248 = vld [vmem:[#allocation2 + $0x40] sm:$0xff]
    %v1249 = vld [vmem:[#allocation2 + $0x48] sm:$0xff]
    %v1250 = vld [vmem:[#allocation2 + $0x50] sm:$0xff]
    %v1251 = vld [vmem:[#allocation2 + $0x58] sm:$0xff]
    %v1252 = vld [vmem:[#allocation2 + $0x60] sm:$0xff]
    %v1253 = vld [vmem:[#allocation2 + $0x68] sm:$0xff]
    %v1254 = vld [vmem:[#allocation2 + $0x70] sm:$0xff]
    %v1255 = vld [vmem:[#allocation2 + $0x78] sm:$0xff]
    %v1256 = vld [vmem:[#allocation2 + $0x80] sm:$0xff]
    %v1257 = vld [vmem:[#allocation2 + $0x88] sm:$0xff]
    %v1258 = vld [vmem:[#allocation2 + $0x90] sm:$0xff]
    %v1259 = vld [vmem:[#allocation2 + $0x98] sm:$0xff]
    %v1260 = vld [vmem:[#allocation2 + $0xa0] sm:$0xff]
    %v1261 = vld [vmem:[#allocation2 + $0xa8] sm:$0xff]
    %v1262 = vld [vmem:[#allocation2 + $0xb0] sm:$0xff]
    %v1263 = vld [vmem:[#allocation2 + $0xb8] sm:$0xff]
    %v1264 = vld [vmem:[#allocation2 + $0xc0] sm:$0xff]
    %v1265 = vld [vmem:[#allocation2 + $0xc8] sm:$0xff]
    %v1266 = vld [vmem:[#allocation2 + $0xd0] sm:$0xff]
    %v1267 = vld [vmem:[#allocation2 + $0xd8] sm:$0xff]
    %v1268 = vld [vmem:[#allocation2 + $0xe0] sm:$0xff]
    %v1269 = vld [vmem:[#allocation2 + $0xe8] sm:$0xff]
    %v1270 = vld [vmem:[#allocation2 + $0xf0] sm:$0xff]
    %v1271 = vld [vmem:[#allocation2 + $0xf8] sm:$0xff]
    %v1272 = vld [vmem:[#allocation2 + $0x100] sm:$0xff]
    %v1273 = vld [vmem:[#allocation2 + $0x108] sm:$0xff]
    %v1274 = vld [vmem:[#allocation2 + $0x110] sm:$0xff]
    %v1275 = vld [vmem:[#allocation2 + $0x118] sm:$0xff]
    %v1276 = vld [vmem:[#allocation2 + $0x120] sm:$0xff]
    %v1277 = vld [vmem:[#allocation2 + $0x128] sm:$0xff]
    %v1278 = vld [vmem:[#allocation2 + $0x130] sm:$0xff]
    %v1279 = vld [vmem:[#allocation2 + $0x138] sm:$0xff]
    %v1280 = vld [vmem:[#allocation2 + $0x140] sm:$0xff]
    %v1281 = vld [vmem:[#allocation2 + $0x148] sm:$0xff]
    %v1282 = vld [vmem:[#allocation2 + $0x150] sm:$0xff]
    %v1283 = vld [vmem:[#allocation2 + $0x158] sm:$0xff]
    %v1284 = vld [vmem:[#allocation2 + $0x160] sm:$0xff]
    %v1285 = vld [vmem:[#allocation2 + $0x168] sm:$0xff]
    %v1286 = vld [vmem:[#allocation2 + $0x170] sm:$0xff]
    %v1287 = vld [vmem:[#allocation2 + $0x178] sm:$0xff]
    %v1288 = vld [vmem:[#allocation2 + $0x180] sm:$0xff]
    %v1289 = vld [vmem:[#allocation2 + $0x188] sm:$0xff]
    %v1290 = vld [vmem:[#allocation2 + $0x190] sm:$0xff]
    %v1291 = vld [vmem:[#allocation2 + $0x198] sm:$0xff]
    %v1292 = vld [vmem:[#allocation2 + $0x1a0] sm:$0xff]
    %v1293 = vld [vmem:[#allocation2 + $0x1a8] sm:$0xff]
    %v1294 = vld [vmem:[#allocation2 + $0x1b0] sm:$0xff]
    %v1295 = vld [vmem:[#allocation2 + $0x1b8] sm:$0xff]
    %v1296 = vld [vmem:[#allocation2 + $0x1c0] sm:$0xff]
    %v1297 = vld [vmem:[#allocation2 + $0x1c8] sm:$0xff]
    %v1298 = vld [vmem:[#allocation2 + $0x1d0] sm:$0xff]
    %v1299 = vld [vmem:[#allocation2 + $0x1d8] sm:$0xff]
    %v1300 = vld [vmem:[#allocation2 + $0x1e0] sm:$0xff]
    %v1301 = vld [vmem:[#allocation2 + $0x1e8] sm:$0xff]
    %v1302 = vld [vmem:[#allocation2 + $0x1f0] sm:$0xff]
    %v1303 = vld [vmem:[#allocation2 + $0x1f8] sm:$0xff]
    %v1304 = vld [vmem:[#allocation2 + $0x200] sm:$0xff]
    %v1305 = vld [vmem:[#allocation2 + $0x208] sm:$0xff]
    %v1306 = vld [vmem:[#allocation2 + $0x210] sm:$0xff]
    %v1307 = vld [vmem:[#allocation2 + $0x218] sm:$0xff]
    %v1308 = vld [vmem:[#allocation2 + $0x220] sm:$0xff]
    %v1309 = vld [vmem:[#allocation2 + $0x228] sm:$0xff]
    %v1310 = vld [vmem:[#allocation2 + $0x230] sm:$0xff]
    %v1311 = vld [vmem:[#allocation2 + $0x238] sm:$0xff]
    %v1312 = vld [vmem:[#allocation2 + $0x240] sm:$0xff]
    %v1313 = vld [vmem:[#allocation2 + $0x248] sm:$0xff]
    %v1314 = vld [vmem:[#allocation2 + $0x250] sm:$0xff]
    %v1315 = vld [vmem:[#allocation2 + $0x258] sm:$0xff]
    %v1316 = vld [vmem:[#allocation2 + $0x260] sm:$0xff]
    %v1317 = vld [vmem:[#allocation2 + $0x268] sm:$0xff]
    %v1318 = vld [vmem:[#allocation2 + $0x270] sm:$0xff]
    %v1319 = vld [vmem:[#allocation2 + $0x278] sm:$0xff]
    %v1320 = vld [vmem:[#allocation2 + $0x280] sm:$0xff]
    %v1321 = vld [vmem:[#allocation2 + $0x288] sm:$0xff]
    %v1322 = vld [vmem:[#allocation2 + $0x290] sm:$0xff]
    %v1323 = vld [vmem:[#allocation2 + $0x298] sm:$0xff]
    %v1324 = vld [vmem:[#allocation2 + $0x2a0] sm:$0xff]
    %v1325 = vld [vmem:[#allocation2 + $0x2a8] sm:$0xff]
    %v1326 = vld [vmem:[#allocation2 + $0x2b0] sm:$0xff]
    %v1327 = vld [vmem:[#allocation2 + $0x2b8] sm:$0xff]
    %v1328 = vld [vmem:[#allocation2 + $0x2c0] sm:$0xff]
    %v1329 = vld [vmem:[#allocation2 + $0x2c8] sm:$0xff]
    %v1330 = vld [vmem:[#allocation2 + $0x2d0] sm:$0xff]
    %v1331 = vld [vmem:[#allocation2 + $0x2d8] sm:$0xff]
    %v1332 = vld [vmem:[#allocation2 + $0x2e0] sm:$0xff]
    %v1333 = vld [vmem:[#allocation2 + $0x2e8] sm:$0xff]
    %v1334 = vld [vmem:[#allocation2 + $0x2f0] sm:$0xff]
    %v1335 = vld [vmem:[#allocation2 + $0x2f8] sm:$0xff]
    %v1336 = vld [vmem:[#allocation2 + $0x300] sm:$0xff]
    %v1337 = vld [vmem:[#allocation2 + $0x308] sm:$0xff]
    %v1338 = vld [vmem:[#allocation2 + $0x310] sm:$0xff]
    %v1339 = vld [vmem:[#allocation2 + $0x318] sm:$0xff]
    %v1340 = vld [vmem:[#allocation2 + $0x320] sm:$0xff]
    %v1341 = vld [vmem:[#allocation2 + $0x328] sm:$0xff]
    %v1342 = vld [vmem:[#allocation2 + $0x330] sm:$0xff]
    %v1343 = vld [vmem:[#allocation2 + $0x338] sm:$0xff]
    %v1344 = vld [vmem:[#allocation2 + $0x340] sm:$0xff]
    %v1345 = vld [vmem:[#allocation2 + $0x348] sm:$0xff]
    %v1346 = vld [vmem:[#allocation2 + $0x350] sm:$0xff]
    %v1347 = vld [vmem:[#allocation2 + $0x358] sm:$0xff]
    %v1348 = vld [vmem:[#allocation2 + $0x360] sm:$0xff]
    %v1349 = vld [vmem:[#allocation2 + $0x368] sm:$0xff]
    %v1350 = vld [vmem:[#allocation2 + $0x370] sm:$0xff]
    %v1351 = vld [vmem:[#allocation2 + $0x378] sm:$0xff]
    %v1352 = vld [vmem:[#allocation2 + $0x380] sm:$0xff]
    %v1353 = vld [vmem:[#allocation2 + $0x388] sm:$0xff]
    %v1354 = vld [vmem:[#allocation2 + $0x390] sm:$0xff]
    %v1355 = vld [vmem:[#allocation2 + $0x398] sm:$0xff]
    %v1356 = vld [vmem:[#allocation2 + $0x3a0] sm:$0xff]
    %v1357 = vld [vmem:[#allocation2 + $0x3a8] sm:$0xff]
    %v1358 = vld [vmem:[#allocation2 + $0x3b0] sm:$0xff]
    %v1359 = vld [vmem:[#allocation2 + $0x3b8] sm:$0xff]
    %v1360 = vld [vmem:[#allocation2 + $0x3c0] sm:$0xff]
    %v1361 = vld [vmem:[#allocation2 + $0x3c8] sm:$0xff]
    %v1362 = vld [vmem:[#allocation2 + $0x3d0] sm:$0xff]
    %v1363 = vld [vmem:[#allocation2 + $0x3d8] sm:$0xff]
    %v1364 = vld [vmem:[#allocation2 + $0x3e0] sm:$0xff]
    %v1365 = vld [vmem:[#allocation2 + $0x3e8] sm:$0xff]
    %v1366 = vld [vmem:[#allocation2 + $0x3f0] sm:$0xff]
    %v1367 = vld [vmem:[#allocation2 + $0x3f8] sm:$0xff]
    %v1368 = vld [vmem:[%s2] sm:$0xf]
    %v1370 = vlaneseq
    %v1371 = vshrl.u32 %v1370, 7
    %v1372 = vsub.s32 0, %v1371
    %v1373 = vrot.slane %v1368, %v1372
    %v1374 = vlaneseq
    %v1375 = vshrl.u32 %v1374, 7
    %v1376 = vsub.s32 1, %v1375
    %v1377 = vrot.slane %v1368, %v1376
    %v1378 = vlaneseq
    %v1379 = vshrl.u32 %v1378, 7
    %v1380 = vsub.s32 2, %v1379
    %v1381 = vrot.slane %v1368, %v1380
    %v1382 = vlaneseq
    %v1383 = vshrl.u32 %v1382, 7
    %v1384 = vsub.s32 3, %v1383
    %v1385 = vrot.slane %v1368, %v1384
    %v1390 = vadd.f32 %v1240, %v1373
    %v1391 = vadd.f32 %v1241, %v1377
    %v1392 = vadd.f32 %v1242, %v1381
    %v1393 = vadd.f32 %v1243, %v1385
    %v1394 = vadd.f32 %v1244, %v1373
    %v1395 = vadd.f32 %v1245, %v1377
    %v1396 = vadd.f32 %v1246, %v1381
    %v1397 = vadd.f32 %v1247, %v1385
    %v1398 = vadd.f32 %v1248, %v1373
    %v1399 = vadd.f32 %v1249, %v1377
    %v1400 = vadd.f32 %v1250, %v1381
    %v1401 = vadd.f32 %v1251, %v1385
    %v1402 = vadd.f32 %v1252, %v1373
    %v1403 = vadd.f32 %v1253, %v1377
    %v1404 = vadd.f32 %v1254, %v1381
    %v1405 = vadd.f32 %v1255, %v1385
    %v1406 = vadd.f32 %v1256, %v1373
    %v1407 = vadd.f32 %v1257, %v1377
    %v1408 = vadd.f32 %v1258, %v1381
    %v1409 = vadd.f32 %v1259, %v1385
    %v1410 = vadd.f32 %v1260, %v1373
    %v1411 = vadd.f32 %v1261, %v1377
    %v1412 = vadd.f32 %v1262, %v1381
    %v1413 = vadd.f32 %v1263, %v1385
    %v1414 = vadd.f32 %v1264, %v1373
    %v1415 = vadd.f32 %v1265, %v1377
    %v1416 = vadd.f32 %v1266, %v1381
    %v1417 = vadd.f32 %v1267, %v1385
    %v1418 = vadd.f32 %v1268, %v1373
    %v1419 = vadd.f32 %v1269, %v1377
    %v1420 = vadd.f32 %v1270, %v1381
    %v1421 = vadd.f32 %v1271, %v1385
    %v1422 = vadd.f32 %v1272, %v1373
    %v1423 = vadd.f32 %v1273, %v1377
    %v1424 = vadd.f32 %v1274, %v1381
    %v1425 = vadd.f32 %v1275, %v1385
    %v1426 = vadd.f32 %v1276, %v1373
    %v1427 = vadd.f32 %v1277, %v1377
    %v1428 = vadd.f32 %v1278, %v1381
    %v1429 = vadd.f32 %v1279, %v1385
    %v1430 = vadd.f32 %v1280, %v1373
    %v1431 = vadd.f32 %v1281, %v1377
    %v1432 = vadd.f32 %v1282, %v1381
    %v1433 = vadd.f32 %v1283, %v1385
    %v1434 = vadd.f32 %v1284, %v1373
    %v1435 = vadd.f32 %v1285, %v1377
    %v1436 = vadd.f32 %v1286, %v1381
    %v1437 = vadd.f32 %v1287, %v1385
    %v1438 = vadd.f32 %v1288, %v1373
    %v1439 = vadd.f32 %v1289, %v1377
    %v1440 = vadd.f32 %v1290, %v1381
    %v1441 = vadd.f32 %v1291, %v1385
    %v1442 = vadd.f32 %v1292, %v1373
    %v1443 = vadd.f32 %v1293, %v1377
    %v1444 = vadd.f32 %v1294, %v1381
    %v1445 = vadd.f32 %v1295, %v1385
    %v1446 = vadd.f32 %v1296, %v1373
    %v1447 = vadd.f32 %v1297, %v1377
    %v1448 = vadd.f32 %v1298, %v1381
    %v1449 = vadd.f32 %v1299, %v1385
    %v1450 = vadd.f32 %v1300, %v1373
    %v1451 = vadd.f32 %v1301, %v1377
    %v1452 = vadd.f32 %v1302, %v1381
    %v1453 = vadd.f32 %v1303, %v1385
    %v1454 = vadd.f32 %v1304, %v1373
    %v1455 = vadd.f32 %v1305, %v1377
    %v1456 = vadd.f32 %v1306, %v1381
    %v1457 = vadd.f32 %v1307, %v1385
    %v1458 = vadd.f32 %v1308, %v1373
    %v1459 = vadd.f32 %v1309, %v1377
    %v1460 = vadd.f32 %v1310, %v1381
    %v1461 = vadd.f32 %v1311, %v1385
    %v1462 = vadd.f32 %v1312, %v1373
    %v1463 = vadd.f32 %v1313, %v1377
    %v1464 = vadd.f32 %v1314, %v1381
    %v1465 = vadd.f32 %v1315, %v1385
    %v1466 = vadd.f32 %v1316, %v1373
    %v1467 = vadd.f32 %v1317, %v1377
    %v1468 = vadd.f32 %v1318, %v1381
    %v1469 = vadd.f32 %v1319, %v1385
    %v1470 = vadd.f32 %v1320, %v1373
    %v1471 = vadd.f32 %v1321, %v1377
    %v1472 = vadd.f32 %v1322, %v1381
    %v1473 = vadd.f32 %v1323, %v1385
    %v1474 = vadd.f32 %v1324, %v1373
    %v1475 = vadd.f32 %v1325, %v1377
    %v1476 = vadd.f32 %v1326, %v1381
    %v1477 = vadd.f32 %v1327, %v1385
    %v1478 = vadd.f32 %v1328, %v1373
    %v1479 = vadd.f32 %v1329, %v1377
    %v1480 = vadd.f32 %v1330, %v1381
    %v1481 = vadd.f32 %v1331, %v1385
    %v1482 = vadd.f32 %v1332, %v1373
    %v1483 = vadd.f32 %v1333, %v1377
    %v1484 = vadd.f32 %v1334, %v1381
    %v1485 = vadd.f32 %v1335, %v1385
    %v1486 = vadd.f32 %v1336, %v1373
    %v1487 = vadd.f32 %v1337, %v1377
    %v1488 = vadd.f32 %v1338, %v1381
    %v1489 = vadd.f32 %v1339, %v1385
    %v1490 = vadd.f32 %v1340, %v1373
    %v1491 = vadd.f32 %v1341, %v1377
    %v1492 = vadd.f32 %v1342, %v1381
    %v1493 = vadd.f32 %v1343, %v1385
    %v1494 = vadd.f32 %v1344, %v1373
    %v1495 = vadd.f32 %v1345, %v1377
    %v1496 = vadd.f32 %v1346, %v1381
    %v1497 = vadd.f32 %v1347, %v1385
    %v1498 = vadd.f32 %v1348, %v1373
    %v1499 = vadd.f32 %v1349, %v1377
    %v1500 = vadd.f32 %v1350, %v1381
    %v1501 = vadd.f32 %v1351, %v1385
    %v1502 = vadd.f32 %v1352, %v1373
    %v1503 = vadd.f32 %v1353, %v1377
    %v1504 = vadd.f32 %v1354, %v1381
    %v1505 = vadd.f32 %v1355, %v1385
    %v1506 = vadd.f32 %v1356, %v1373
    %v1507 = vadd.f32 %v1357, %v1377
    %v1508 = vadd.f32 %v1358, %v1381
    %v1509 = vadd.f32 %v1359, %v1385
    %v1510 = vadd.f32 %v1360, %v1373
    %v1511 = vadd.f32 %v1361, %v1377
    %v1512 = vadd.f32 %v1362, %v1381
    %v1513 = vadd.f32 %v1363, %v1385
    %v1514 = vadd.f32 %v1364, %v1373
    %v1515 = vadd.f32 %v1365, %v1377
    %v1516 = vadd.f32 %v1366, %v1381
    %v1517 = vadd.f32 %v1367, %v1385
    %v1518 = vmul.f32 %v1390, 0.5
    %v1519 = vmul.f32 %v1391, 0.5
    %v1520 = vmul.f32 %v1392, 0.5
    %v1521 = vmul.f32 %v1393, 0.5
    %v1522 = vmul.f32 %v1394, 0.5
    %v1523 = vmul.f32 %v1395, 0.5
    %v1524 = vmul.f32 %v1396, 0.5
    %v1525 = vmul.f32 %v1397, 0.5
    %v1526 = vmul.f32 %v1398, 0.5
    %v1527 = vmul.f32 %v1399, 0.5
    %v1528 = vmul.f32 %v1400, 0.5
    %v1529 = vmul.f32 %v1401, 0.5
    %v1530 = vmul.f32 %v1402, 0.5
    %v1531 = vmul.f32 %v1403, 0.5
    %v1532 = vmul.f32 %v1404, 0.5
    %v1533 = vmul.f32 %v1405, 0.5
    %v1534 = vmul.f32 %v1406, 0.5
    %v1535 = vmul.f32 %v1407, 0.5
    %v1536 = vmul.f32 %v1408, 0.5
    %v1537 = vmul.f32 %v1409, 0.5
    %v1538 = vmul.f32 %v1410, 0.5
    %v1539 = vmul.f32 %v1411, 0.5
    %v1540 = vmul.f32 %v1412, 0.5
    %v1541 = vmul.f32 %v1413, 0.5
    %v1542 = vmul.f32 %v1414, 0.5
    %v1543 = vmul.f32 %v1415, 0.5
    %v1544 = vmul.f32 %v1416, 0.5
    %v1545 = vmul.f32 %v1417, 0.5
    %v1546 = vmul.f32 %v1418, 0.5
    %v1547 = vmul.f32 %v1419, 0.5
    %v1548 = vmul.f32 %v1420, 0.5
    %v1549 = vmul.f32 %v1421, 0.5
    %v1550 = vmul.f32 %v1422, 0.5
    %v1551 = vmul.f32 %v1423, 0.5
    %v1552 = vmul.f32 %v1424, 0.5
    %v1553 = vmul.f32 %v1425, 0.5
    %v1554 = vmul.f32 %v1426, 0.5
    %v1555 = vmul.f32 %v1427, 0.5
    %v1556 = vmul.f32 %v1428, 0.5
    %v1557 = vmul.f32 %v1429, 0.5
    %v1558 = vmul.f32 %v1430, 0.5
    %v1559 = vmul.f32 %v1431, 0.5
    %v1560 = vmul.f32 %v1432, 0.5
    %v1561 = vmul.f32 %v1433, 0.5
    %v1562 = vmul.f32 %v1434, 0.5
    %v1563 = vmul.f32 %v1435, 0.5
    %v1564 = vmul.f32 %v1436, 0.5
    %v1565 = vmul.f32 %v1437, 0.5
    %v1566 = vmul.f32 %v1438, 0.5
    %v1567 = vmul.f32 %v1439, 0.5
    %v1568 = vmul.f32 %v1440, 0.5
    %v1569 = vmul.f32 %v1441, 0.5
    %v1570 = vmul.f32 %v1442, 0.5
    %v1571 = vmul.f32 %v1443, 0.5
    %v1572 = vmul.f32 %v1444, 0.5
    %v1573 = vmul.f32 %v1445, 0.5
    %v1574 = vmul.f32 %v1446, 0.5
    %v1575 = vmul.f32 %v1447, 0.5
    %v1576 = vmul.f32 %v1448, 0.5
    %v1577 = vmul.f32 %v1449, 0.5
    %v1578 = vmul.f32 %v1450, 0.5
    %v1579 = vmul.f32 %v1451, 0.5
    %v1580 = vmul.f32 %v1452, 0.5
    %v1581 = vmul.f32 %v1453, 0.5
    %v1582 = vmul.f32 %v1454, 0.5
    %v1583 = vmul.f32 %v1455, 0.5
    %v1584 = vmul.f32 %v1456, 0.5
    %v1585 = vmul.f32 %v1457, 0.5
    %v1586 = vmul.f32 %v1458, 0.5
    %v1587 = vmul.f32 %v1459, 0.5
    %v1588 = vmul.f32 %v1460, 0.5
    %v1589 = vmul.f32 %v1461, 0.5
    %v1590 = vmul.f32 %v1462, 0.5
    %v1591 = vmul.f32 %v1463, 0.5
    %v1592 = vmul.f32 %v1464, 0.5
    %v1593 = vmul.f32 %v1465, 0.5
    %v1594 = vmul.f32 %v1466, 0.5
    %v1595 = vmul.f32 %v1467, 0.5
    %v1596 = vmul.f32 %v1468, 0.5
    %v1597 = vmul.f32 %v1469, 0.5
    %v1598 = vmul.f32 %v1470, 0.5
    %v1599 = vmul.f32 %v1471, 0.5
    %v1600 = vmul.f32 %v1472, 0.5
    %v1601 = vmul.f32 %v1473, 0.5
    %v1602 = vmul.f32 %v1474, 0.5
    %v1603 = vmul.f32 %v1475, 0.5
    %v1604 = vmul.f32 %v1476, 0.5
    %v1605 = vmul.f32 %v1477, 0.5
    %v1606 = vmul.f32 %v1478, 0.5
    %v1607 = vmul.f32 %v1479, 0.5
    %v1608 = vmul.f32 %v1480, 0.5
    %v1609 = vmul.f32 %v1481, 0.5
    %v1610 = vmul.f32 %v1482, 0.5
    %v1611 = vmul.f32 %v1483, 0.5
    %v1612 = vmul.f32 %v1484, 0.5
    %v1613 = vmul.f32 %v1485, 0.5
    %v1614 = vmul.f32 %v1486, 0.5
    %v1615 = vmul.f32 %v1487, 0.5
    %v1616 = vmul.f32 %v1488, 0.5
    %v1617 = vmul.f32 %v1489, 0.5
    %v1618 = vmul.f32 %v1490, 0.5
    %v1619 = vmul.f32 %v1491, 0.5
    %v1620 = vmul.f32 %v1492, 0.5
    %v1621 = vmul.f32 %v1493, 0.5
    %v1622 = vmul.f32 %v1494, 0.5
    %v1623 = vmul.f32 %v1495, 0.5
    %v1624 = vmul.f32 %v1496, 0.5
    %v1625 = vmul.f32 %v1497, 0.5
    %v1626 = vmul.f32 %v1498, 0.5
    %v1627 = vmul.f32 %v1499, 0.5
    %v1628 = vmul.f32 %v1500, 0.5
    %v1629 = vmul.f32 %v1501, 0.5
    %v1630 = vmul.f32 %v1502, 0.5
    %v1631 = vmul.f32 %v1503, 0.5
    %v1632 = vmul.f32 %v1504, 0.5
    %v1633 = vmul.f32 %v1505, 0.5
    %v1634 = vmul.f32 %v1506, 0.5
    %v1635 = vmul.f32 %v1507, 0.5
    %v1636 = vmul.f32 %v1508, 0.5
    %v1637 = vmul.f32 %v1509, 0.5
    %v1638 = vmul.f32 %v1510, 0.5
    %v1639 = vmul.f32 %v1511, 0.5
    %v1640 = vmul.f32 %v1512, 0.5
    %v1641 = vmul.f32 %v1513, 0.5
    %v1642 = vmul.f32 %v1514, 0.5
    %v1643 = vmul.f32 %v1515, 0.5
    %v1644 = vmul.f32 %v1516, 0.5
    %v1645 = vmul.f32 %v1517, 0.5
    %v1646 = vmul.f32 %v1390, 0.044715
    %v1647 = vmul.f32 %v1391, 0.044715
    %v1648 = vmul.f32 %v1392, 0.044715
    %v1649 = vmul.f32 %v1393, 0.044715
    %v1650 = vmul.f32 %v1394, 0.044715
    %v1651 = vmul.f32 %v1395, 0.044715
    %v1652 = vmul.f32 %v1396, 0.044715
    %v1653 = vmul.f32 %v1397, 0.044715
    %v1654 = vmul.f32 %v1398, 0.044715
    %v1655 = vmul.f32 %v1399, 0.044715
    %v1656 = vmul.f32 %v1400, 0.044715
    %v1657 = vmul.f32 %v1401, 0.044715
    %v1658 = vmul.f32 %v1402, 0.044715
    %v1659 = vmul.f32 %v1403, 0.044715
    %v1660 = vmul.f32 %v1404, 0.044715
    %v1661 = vmul.f32 %v1405, 0.044715
    %v1662 = vmul.f32 %v1406, 0.044715
    %v1663 = vmul.f32 %v1407, 0.044715
    %v1664 = vmul.f32 %v1408, 0.044715
    %v1665 = vmul.f32 %v1409, 0.044715
    %v1666 = vmul.f32 %v1410, 0.044715
    %v1667 = vmul.f32 %v1411, 0.044715
    %v1668 = vmul.f32 %v1412, 0.044715
    %v1669 = vmul.f32 %v1413, 0.044715
    %v1670 = vmul.f32 %v1414, 0.044715
    %v1671 = vmul.f32 %v1415, 0.044715
    %v1672 = vmul.f32 %v1416, 0.044715
    %v1673 = vmul.f32 %v1417, 0.044715
    %v1674 = vmul.f32 %v1418, 0.044715
    %v1675 = vmul.f32 %v1419, 0.044715
    %v1676 = vmul.f32 %v1420, 0.044715
    %v1677 = vmul.f32 %v1421, 0.044715
    %v1678 = vmul.f32 %v1422, 0.044715
    %v1679 = vmul.f32 %v1423, 0.044715
    %v1680 = vmul.f32 %v1424, 0.044715
    %v1681 = vmul.f32 %v1425, 0.044715
    %v1682 = vmul.f32 %v1426, 0.044715
    %v1683 = vmul.f32 %v1427, 0.044715
    %v1684 = vmul.f32 %v1428, 0.044715
    %v1685 = vmul.f32 %v1429, 0.044715
    %v1686 = vmul.f32 %v1430, 0.044715
    %v1687 = vmul.f32 %v1431, 0.044715
    %v1688 = vmul.f32 %v1432, 0.044715
    %v1689 = vmul.f32 %v1433, 0.044715
    %v1690 = vmul.f32 %v1434, 0.044715
    %v1691 = vmul.f32 %v1435, 0.044715
    %v1692 = vmul.f32 %v1436, 0.044715
    %v1693 = vmul.f32 %v1437, 0.044715
    %v1694 = vmul.f32 %v1438, 0.044715
    %v1695 = vmul.f32 %v1439, 0.044715
    %v1696 = vmul.f32 %v1440, 0.044715
    %v1697 = vmul.f32 %v1441, 0.044715
    %v1698 = vmul.f32 %v1442, 0.044715
    %v1699 = vmul.f32 %v1443, 0.044715
    %v1700 = vmul.f32 %v1444, 0.044715
    %v1701 = vmul.f32 %v1445, 0.044715
    %v1702 = vmul.f32 %v1446, 0.044715
    %v1703 = vmul.f32 %v1447, 0.044715
    %v1704 = vmul.f32 %v1448, 0.044715
    %v1705 = vmul.f32 %v1449, 0.044715
    %v1706 = vmul.f32 %v1450, 0.044715
    %v1707 = vmul.f32 %v1451, 0.044715
    %v1708 = vmul.f32 %v1452, 0.044715
    %v1709 = vmul.f32 %v1453, 0.044715
    %v1710 = vmul.f32 %v1454, 0.044715
    %v1711 = vmul.f32 %v1455, 0.044715
    %v1712 = vmul.f32 %v1456, 0.044715
    %v1713 = vmul.f32 %v1457, 0.044715
    %v1714 = vmul.f32 %v1458, 0.044715
    %v1715 = vmul.f32 %v1459, 0.044715
    %v1716 = vmul.f32 %v1460, 0.044715
    %v1717 = vmul.f32 %v1461, 0.044715
    %v1718 = vmul.f32 %v1462, 0.044715
    %v1719 = vmul.f32 %v1463, 0.044715
    %v1720 = vmul.f32 %v1464, 0.044715
    %v1721 = vmul.f32 %v1465, 0.044715
    %v1722 = vmul.f32 %v1466, 0.044715
    %v1723 = vmul.f32 %v1467, 0.044715
    %v1724 = vmul.f32 %v1468, 0.044715
    %v1725 = vmul.f32 %v1469, 0.044715
    %v1726 = vmul.f32 %v1470, 0.044715
    %v1727 = vmul.f32 %v1471, 0.044715
    %v1728 = vmul.f32 %v1472, 0.044715
    %v1729 = vmul.f32 %v1473, 0.044715
    %v1730 = vmul.f32 %v1474, 0.044715
    %v1731 = vmul.f32 %v1475, 0.044715
    %v1732 = vmul.f32 %v1476, 0.044715
    %v1733 = vmul.f32 %v1477, 0.044715
    %v1734 = vmul.f32 %v1478, 0.044715
    %v1735 = vmul.f32 %v1479, 0.044715
    %v1736 = vmul.f32 %v1480, 0.044715
    %v1737 = vmul.f32 %v1481, 0.044715
    %v1738 = vmul.f32 %v1482, 0.044715
    %v1739 = vmul.f32 %v1483, 0.044715
    %v1740 = vmul.f32 %v1484, 0.044715
    %v1741 = vmul.f32 %v1485, 0.044715
    %v1742 = vmul.f32 %v1486, 0.044715
    %v1743 = vmul.f32 %v1487, 0.044715
    %v1744 = vmul.f32 %v1488, 0.044715
    %v1745 = vmul.f32 %v1489, 0.044715
    %v1746 = vmul.f32 %v1490, 0.044715
    %v1747 = vmul.f32 %v1491, 0.044715
    %v1748 = vmul.f32 %v1492, 0.044715
    %v1749 = vmul.f32 %v1493, 0.044715
    %v1750 = vmul.f32 %v1494, 0.044715
    %v1751 = vmul.f32 %v1495, 0.044715
    %v1752 = vmul.f32 %v1496, 0.044715
    %v1753 = vmul.f32 %v1497, 0.044715
    %v1754 = vmul.f32 %v1498, 0.044715
    %v1755 = vmul.f32 %v1499, 0.044715
    %v1756 = vmul.f32 %v1500, 0.044715
    %v1757 = vmul.f32 %v1501, 0.044715
    %v1758 = vmul.f32 %v1502, 0.044715
    %v1759 = vmul.f32 %v1503, 0.044715
    %v1760 = vmul.f32 %v1504, 0.044715
    %v1761 = vmul.f32 %v1505, 0.044715
    %v1762 = vmul.f32 %v1506, 0.044715
    %v1763 = vmul.f32 %v1507, 0.044715
    %v1764 = vmul.f32 %v1508, 0.044715
    %v1765 = vmul.f32 %v1509, 0.044715
    %v1766 = vmul.f32 %v1510, 0.044715
    %v1767 = vmul.f32 %v1511, 0.044715
    %v1768 = vmul.f32 %v1512, 0.044715
    %v1769 = vmul.f32 %v1513, 0.044715
    %v1770 = vmul.f32 %v1514, 0.044715
    %v1771 = vmul.f32 %v1515, 0.044715
    %v1772 = vmul.f32 %v1516, 0.044715
    %v1773 = vmul.f32 %v1517, 0.044715
    %v1774 = vmul.f32 %v1646, %v1390
    %v1775 = vmul.f32 %v1647, %v1391
    %v1776 = vmul.f32 %v1648, %v1392
    %v1777 = vmul.f32 %v1649, %v1393
    %v1778 = vmul.f32 %v1650, %v1394
    %v1779 = vmul.f32 %v1651, %v1395
    %v1780 = vmul.f32 %v1652, %v1396
    %v1781 = vmul.f32 %v1653, %v1397
    %v1782 = vmul.f32 %v1654, %v1398
    %v1783 = vmul.f32 %v1655, %v1399
    %v1784 = vmul.f32 %v1656, %v1400
    %v1785 = vmul.f32 %v1657, %v1401
    %v1786 = vmul.f32 %v1658, %v1402
    %v1787 = vmul.f32 %v1659, %v1403
    %v1788 = vmul.f32 %v1660, %v1404
    %v1789 = vmul.f32 %v1661, %v1405
    %v1790 = vmul.f32 %v1662, %v1406
    %v1791 = vmul.f32 %v1663, %v1407
    %v1792 = vmul.f32 %v1664, %v1408
    %v1793 = vmul.f32 %v1665, %v1409
    %v1794 = vmul.f32 %v1666, %v1410
    %v1795 = vmul.f32 %v1667, %v1411
    %v1796 = vmul.f32 %v1668, %v1412
    %v1797 = vmul.f32 %v1669, %v1413
    %v1798 = vmul.f32 %v1670, %v1414
    %v1799 = vmul.f32 %v1671, %v1415
    %v1800 = vmul.f32 %v1672, %v1416
    %v1801 = vmul.f32 %v1673, %v1417
    %v1802 = vmul.f32 %v1674, %v1418
    %v1803 = vmul.f32 %v1675, %v1419
    %v1804 = vmul.f32 %v1676, %v1420
    %v1805 = vmul.f32 %v1677, %v1421
    %v1806 = vmul.f32 %v1678, %v1422
    %v1807 = vmul.f32 %v1679, %v1423
    %v1808 = vmul.f32 %v1680, %v1424
    %v1809 = vmul.f32 %v1681, %v1425
    %v1810 = vmul.f32 %v1682, %v1426
    %v1811 = vmul.f32 %v1683, %v1427
    %v1812 = vmul.f32 %v1684, %v1428
    %v1813 = vmul.f32 %v1685, %v1429
    %v1814 = vmul.f32 %v1686, %v1430
    %v1815 = vmul.f32 %v1687, %v1431
    %v1816 = vmul.f32 %v1688, %v1432
    %v1817 = vmul.f32 %v1689, %v1433
    %v1818 = vmul.f32 %v1690, %v1434
    %v1819 = vmul.f32 %v1691, %v1435
    %v1820 = vmul.f32 %v1692, %v1436
    %v1821 = vmul.f32 %v1693, %v1437
    %v1822 = vmul.f32 %v1694, %v1438
    %v1823 = vmul.f32 %v1695, %v1439
    %v1824 = vmul.f32 %v1696, %v1440
    %v1825 = vmul.f32 %v1697, %v1441
    %v1826 = vmul.f32 %v1698, %v1442
    %v1827 = vmul.f32 %v1699, %v1443
    %v1828 = vmul.f32 %v1700, %v1444
    %v1829 = vmul.f32 %v1701, %v1445
    %v1830 = vmul.f32 %v1702, %v1446
    %v1831 = vmul.f32 %v1703, %v1447
    %v1832 = vmul.f32 %v1704, %v1448
    %v1833 = vmul.f32 %v1705, %v1449
    %v1834 = vmul.f32 %v1706, %v1450
    %v1835 = vmul.f32 %v1707, %v1451
    %v1836 = vmul.f32 %v1708, %v1452
    %v1837 = vmul.f32 %v1709, %v1453
    %v1838 = vmul.f32 %v1710, %v1454
    %v1839 = vmul.f32 %v1711, %v1455
    %v1840 = vmul.f32 %v1712, %v1456
    %v1841 = vmul.f32 %v1713, %v1457
    %v1842 = vmul.f32 %v1714, %v1458
    %v1843 = vmul.f32 %v1715, %v1459
    %v1844 = vmul.f32 %v1716, %v1460
    %v1845 = vmul.f32 %v1717, %v1461
    %v1846 = vmul.f32 %v1718, %v1462
    %v1847 = vmul.f32 %v1719, %v1463
    %v1848 = vmul.f32 %v1720, %v1464
    %v1849 = vmul.f32 %v1721, %v1465
    %v1850 = vmul.f32 %v1722, %v1466
    %v1851 = vmul.f32 %v1723, %v1467
    %v1852 = vmul.f32 %v1724, %v1468
    %v1853 = vmul.f32 %v1725, %v1469
    %v1854 = vmul.f32 %v1726, %v1470
    %v1855 = vmul.f32 %v1727, %v1471
    %v1856 = vmul.f32 %v1728, %v1472
    %v1857 = vmul.f32 %v1729, %v1473
    %v1858 = vmul.f32 %v1730, %v1474
    %v1859 = vmul.f32 %v1731, %v1475
    %v1860 = vmul.f32 %v1732, %v1476
    %v1861 = vmul.f32 %v1733, %v1477
    %v1862 = vmul.f32 %v1734, %v1478
    %v1863 = vmul.f32 %v1735, %v1479
    %v1864 = vmul.f32 %v1736, %v1480
    %v1865 = vmul.f32 %v1737, %v1481
    %v1866 = vmul.f32 %v1738, %v1482
    %v1867 = vmul.f32 %v1739, %v1483
    %v1868 = vmul.f32 %v1740, %v1484
    %v1869 = vmul.f32 %v1741, %v1485
    %v1870 = vmul.f32 %v1742, %v1486
    %v1871 = vmul.f32 %v1743, %v1487
    %v1872 = vmul.f32 %v1744, %v1488
    %v1873 = vmul.f32 %v1745, %v1489
    %v1874 = vmul.f32 %v1746, %v1490
    %v1875 = vmul.f32 %v1747, %v1491
    %v1876 = vmul.f32 %v1748, %v1492
    %v1877 = vmul.f32 %v1749, %v1493
    %v1878 = vmul.f32 %v1750, %v1494
    %v1879 = vmul.f32 %v1751, %v1495
    %v1880 = vmul.f32 %v1752, %v1496
    %v1881 = vmul.f32 %v1753, %v1497
    %v1882 = vmul.f32 %v1754, %v1498
    %v1883 = vmul.f32 %v1755, %v1499
    %v1884 = vmul.f32 %v1756, %v1500
    %v1885 = vmul.f32 %v1757, %v1501
    %v1886 = vmul.f32 %v1758, %v1502
    %v1887 = vmul.f32 %v1759, %v1503
    %v1888 = vmul.f32 %v1760, %v1504
    %v1889 = vmul.f32 %v1761, %v1505
    %v1890 = vmul.f32 %v1762, %v1506
    %v1891 = vmul.f32 %v1763, %v1507
    %v1892 = vmul.f32 %v1764, %v1508
    %v1893 = vmul.f32 %v1765, %v1509
    %v1894 = vmul.f32 %v1766, %v1510
    %v1895 = vmul.f32 %v1767, %v1511
    %v1896 = vmul.f32 %v1768, %v1512
    %v1897 = vmul.f32 %v1769, %v1513
    %v1898 = vmul.f32 %v1770, %v1514
    %v1899 = vmul.f32 %v1771, %v1515
    %v1900 = vmul.f32 %v1772, %v1516
    %v1901 = vmul.f32 %v1773, %v1517
    %v1902 = vmul.f32 %v1774, %v1390
    %v1903 = vmul.f32 %v1775, %v1391
    %v1904 = vmul.f32 %v1776, %v1392
    %v1905 = vmul.f32 %v1777, %v1393
    %v1906 = vmul.f32 %v1778, %v1394
    %v1907 = vmul.f32 %v1779, %v1395
    %v1908 = vmul.f32 %v1780, %v1396
    %v1909 = vmul.f32 %v1781, %v1397
    %v1910 = vmul.f32 %v1782, %v1398
    %v1911 = vmul.f32 %v1783, %v1399
    %v1912 = vmul.f32 %v1784, %v1400
    %v1913 = vmul.f32 %v1785, %v1401
    %v1914 = vmul.f32 %v1786, %v1402
    %v1915 = vmul.f32 %v1787, %v1403
    %v1916 = vmul.f32 %v1788, %v1404
    %v1917 = vmul.f32 %v1789, %v1405
    %v1918 = vmul.f32 %v1790, %v1406
    %v1919 = vmul.f32 %v1791, %v1407
    %v1920 = vmul.f32 %v1792, %v1408
    %v1921 = vmul.f32 %v1793, %v1409
    %v1922 = vmul.f32 %v1794, %v1410
    %v1923 = vmul.f32 %v1795, %v1411
    %v1924 = vmul.f32 %v1796, %v1412
    %v1925 = vmul.f32 %v1797, %v1413
    %v1926 = vmul.f32 %v1798, %v1414
    %v1927 = vmul.f32 %v1799, %v1415
    %v1928 = vmul.f32 %v1800, %v1416
    %v1929 = vmul.f32 %v1801, %v1417
    %v1930 = vmul.f32 %v1802, %v1418
    %v1931 = vmul.f32 %v1803, %v1419
    %v1932 = vmul.f32 %v1804, %v1420
    %v1933 = vmul.f32 %v1805, %v1421
    %v1934 = vmul.f32 %v1806, %v1422
    %v1935 = vmul.f32 %v1807, %v1423
    %v1936 = vmul.f32 %v1808, %v1424
    %v1937 = vmul.f32 %v1809, %v1425
    %v1938 = vmul.f32 %v1810, %v1426
    %v1939 = vmul.f32 %v1811, %v1427
    %v1940 = vmul.f32 %v1812, %v1428
    %v1941 = vmul.f32 %v1813, %v1429
    %v1942 = vmul.f32 %v1814, %v1430
    %v1943 = vmul.f32 %v1815, %v1431
    %v1944 = vmul.f32 %v1816, %v1432
    %v1945 = vmul.f32 %v1817, %v1433
    %v1946 = vmul.f32 %v1818, %v1434
    %v1947 = vmul.f32 %v1819, %v1435
    %v1948 = vmul.f32 %v1820, %v1436
    %v1949 = vmul.f32 %v1821, %v1437
    %v1950 = vmul.f32 %v1822, %v1438
    %v1951 = vmul.f32 %v1823, %v1439
    %v1952 = vmul.f32 %v1824, %v1440
    %v1953 = vmul.f32 %v1825, %v1441
    %v1954 = vmul.f32 %v1826, %v1442
    %v1955 = vmul.f32 %v1827, %v1443
    %v1956 = vmul.f32 %v1828, %v1444
    %v1957 = vmul.f32 %v1829, %v1445
    %v1958 = vmul.f32 %v1830, %v1446
    %v1959 = vmul.f32 %v1831, %v1447
    %v1960 = vmul.f32 %v1832, %v1448
    %v1961 = vmul.f32 %v1833, %v1449
    %v1962 = vmul.f32 %v1834, %v1450
    %v1963 = vmul.f32 %v1835, %v1451
    %v1964 = vmul.f32 %v1836, %v1452
    %v1965 = vmul.f32 %v1837, %v1453
    %v1966 = vmul.f32 %v1838, %v1454
    %v1967 = vmul.f32 %v1839, %v1455
    %v1968 = vmul.f32 %v1840, %v1456
    %v1969 = vmul.f32 %v1841, %v1457
    %v1970 = vmul.f32 %v1842, %v1458
    %v1971 = vmul.f32 %v1843, %v1459
    %v1972 = vmul.f32 %v1844, %v1460
    %v1973 = vmul.f32 %v1845, %v1461
    %v1974 = vmul.f32 %v1846, %v1462
    %v1975 = vmul.f32 %v1847, %v1463
    %v1976 = vmul.f32 %v1848, %v1464
    %v1977 = vmul.f32 %v1849, %v1465
    %v1978 = vmul.f32 %v1850, %v1466
    %v1979 = vmul.f32 %v1851, %v1467
    %v1980 = vmul.f32 %v1852, %v1468
    %v1981 = vmul.f32 %v1853, %v1469
    %v1982 = vmul.f32 %v1854, %v1470
    %v1983 = vmul.f32 %v1855, %v1471
    %v1984 = vmul.f32 %v1856, %v1472
    %v1985 = vmul.f32 %v1857, %v1473
    %v1986 = vmul.f32 %v1858, %v1474
    %v1987 = vmul.f32 %v1859, %v1475
    %v1988 = vmul.f32 %v1860, %v1476
    %v1989 = vmul.f32 %v1861, %v1477
    %v1990 = vmul.f32 %v1862, %v1478
    %v1991 = vmul.f32 %v1863, %v1479
    %v1992 = vmul.f32 %v1864, %v1480
    %v1993 = vmul.f32 %v1865, %v1481
    %v1994 = vmul.f32 %v1866, %v1482
    %v1995 = vmul.f32 %v1867, %v1483
    %v1996 = vmul.f32 %v1868, %v1484
    %v1997 = vmul.f32 %v1869, %v1485
    %v1998 = vmul.f32 %v1870, %v1486
    %v1999 = vmul.f32 %v1871, %v1487
    %v2000 = vmul.f32 %v1872, %v1488
    %v2001 = vmul.f32 %v1873, %v1489
    %v2002 = vmul.f32 %v1874, %v1490
    %v2003 = vmul.f32 %v1875, %v1491
    %v2004 = vmul.f32 %v1876, %v1492
    %v2005 = vmul.f32 %v1877, %v1493
    %v2006 = vmul.f32 %v1878, %v1494
    %v2007 = vmul.f32 %v1879, %v1495
    %v2008 = vmul.f32 %v1880, %v1496
    %v2009 = vmul.f32 %v1881, %v1497
    %v2010 = vmul.f32 %v1882, %v1498
    %v2011 = vmul.f32 %v1883, %v1499
    %v2012 = vmul.f32 %v1884, %v1500
    %v2013 = vmul.f32 %v1885, %v1501
    %v2014 = vmul.f32 %v1886, %v1502
    %v2015 = vmul.f32 %v1887, %v1503
    %v2016 = vmul.f32 %v1888, %v1504
    %v2017 = vmul.f32 %v1889, %v1505
    %v2018 = vmul.f32 %v1890, %v1506
    %v2019 = vmul.f32 %v1891, %v1507
    %v2020 = vmul.f32 %v1892, %v1508
    %v2021 = vmul.f32 %v1893, %v1509
    %v2022 = vmul.f32 %v1894, %v1510
    %v2023 = vmul.f32 %v1895, %v1511
    %v2024 = vmul.f32 %v1896, %v1512
    %v2025 = vmul.f32 %v1897, %v1513
    %v2026 = vmul.f32 %v1898, %v1514
    %v2027 = vmul.f32 %v1899, %v1515
    %v2028 = vmul.f32 %v1900, %v1516
    %v2029 = vmul.f32 %v1901, %v1517
    %v2030 = vadd.f32 %v1390, %v1902
    %v2031 = vadd.f32 %v1391, %v1903
    %v2032 = vadd.f32 %v1392, %v1904
    %v2033 = vadd.f32 %v1393, %v1905
    %v2034 = vadd.f32 %v1394, %v1906
    %v2035 = vadd.f32 %v1395, %v1907
    %v2036 = vadd.f32 %v1396, %v1908
    %v2037 = vadd.f32 %v1397, %v1909
    %v2038 = vadd.f32 %v1398, %v1910
    %v2039 = vadd.f32 %v1399, %v1911
    %v2040 = vadd.f32 %v1400, %v1912
    %v2041 = vadd.f32 %v1401, %v1913
    %v2042 = vadd.f32 %v1402, %v1914
    %v2043 = vadd.f32 %v1403, %v1915
    %v2044 = vadd.f32 %v1404, %v1916
    %v2045 = vadd.f32 %v1405, %v1917
    %v2046 = vadd.f32 %v1406, %v1918
    %v2047 = vadd.f32 %v1407, %v1919
    %v2048 = vadd.f32 %v1408, %v1920
    %v2049 = vadd.f32 %v1409, %v1921
    %v2050 = vadd.f32 %v1410, %v1922
    %v2051 = vadd.f32 %v1411, %v1923
    %v2052 = vadd.f32 %v1412, %v1924
    %v2053 = vadd.f32 %v1413, %v1925
    %v2054 = vadd.f32 %v1414, %v1926
    %v2055 = vadd.f32 %v1415, %v1927
    %v2056 = vadd.f32 %v1416, %v1928
    %v2057 = vadd.f32 %v1417, %v1929
    %v2058 = vadd.f32 %v1418, %v1930
    %v2059 = vadd.f32 %v1419, %v1931
    %v2060 = vadd.f32 %v1420, %v1932
    %v2061 = vadd.f32 %v1421, %v1933
    %v2062 = vadd.f32 %v1422, %v1934
    %v2063 = vadd.f32 %v1423, %v1935
    %v2064 = vadd.f32 %v1424, %v1936
    %v2065 = vadd.f32 %v1425, %v1937
    %v2066 = vadd.f32 %v1426, %v1938
    %v2067 = vadd.f32 %v1427, %v1939
    %v2068 = vadd.f32 %v1428, %v1940
    %v2069 = vadd.f32 %v1429, %v1941
    %v2070 = vadd.f32 %v1430, %v1942
    %v2071 = vadd.f32 %v1431, %v1943
    %v2072 = vadd.f32 %v1432, %v1944
    %v2073 = vadd.f32 %v1433, %v1945
    %v2074 = vadd.f32 %v1434, %v1946
    %v2075 = vadd.f32 %v1435, %v1947
    %v2076 = vadd.f32 %v1436, %v1948
    %v2077 = vadd.f32 %v1437, %v1949
    %v2078 = vadd.f32 %v1438, %v1950
    %v2079 = vadd.f32 %v1439, %v1951
    %v2080 = vadd.f32 %v1440, %v1952
    %v2081 = vadd.f32 %v1441, %v1953
    %v2082 = vadd.f32 %v1442, %v1954
    %v2083 = vadd.f32 %v1443, %v1955
    %v2084 = vadd.f32 %v1444, %v1956
    %v2085 = vadd.f32 %v1445, %v1957
    %v2086 = vadd.f32 %v1446, %v1958
    %v2087 = vadd.f32 %v1447, %v1959
    %v2088 = vadd.f32 %v1448, %v1960
    %v2089 = vadd.f32 %v1449, %v1961
    %v2090 = vadd.f32 %v1450, %v1962
    %v2091 = vadd.f32 %v1451, %v1963
    %v2092 = vadd.f32 %v1452, %v1964
    %v2093 = vadd.f32 %v1453, %v1965
    %v2094 = vadd.f32 %v1454, %v1966
    %v2095 = vadd.f32 %v1455, %v1967
    %v2096 = vadd.f32 %v1456, %v1968
    %v2097 = vadd.f32 %v1457, %v1969
    %v2098 = vadd.f32 %v1458, %v1970
    %v2099 = vadd.f32 %v1459, %v1971
    %v2100 = vadd.f32 %v1460, %v1972
    %v2101 = vadd.f32 %v1461, %v1973
    %v2102 = vadd.f32 %v1462, %v1974
    %v2103 = vadd.f32 %v1463, %v1975
    %v2104 = vadd.f32 %v1464, %v1976
    %v2105 = vadd.f32 %v1465, %v1977
    %v2106 = vadd.f32 %v1466, %v1978
    %v2107 = vadd.f32 %v1467, %v1979
    %v2108 = vadd.f32 %v1468, %v1980
    %v2109 = vadd.f32 %v1469, %v1981
    %v2110 = vadd.f32 %v1470, %v1982
    %v2111 = vadd.f32 %v1471, %v1983
    %v2112 = vadd.f32 %v1472, %v1984
    %v2113 = vadd.f32 %v1473, %v1985
    %v2114 = vadd.f32 %v1474, %v1986
    %v2115 = vadd.f32 %v1475, %v1987
    %v2116 = vadd.f32 %v1476, %v1988
    %v2117 = vadd.f32 %v1477, %v1989
    %v2118 = vadd.f32 %v1478, %v1990
    %v2119 = vadd.f32 %v1479, %v1991
    %v2120 = vadd.f32 %v1480, %v1992
    %v2121 = vadd.f32 %v1481, %v1993
    %v2122 = vadd.f32 %v1482, %v1994
    %v2123 = vadd.f32 %v1483, %v1995
    %v2124 = vadd.f32 %v1484, %v1996
    %v2125 = vadd.f32 %v1485, %v1997
    %v2126 = vadd.f32 %v1486, %v1998
    %v2127 = vadd.f32 %v1487, %v1999
    %v2128 = vadd.f32 %v1488, %v2000
    %v2129 = vadd.f32 %v1489, %v2001
    %v2130 = vadd.f32 %v1490, %v2002
    %v2131 = vadd.f32 %v1491, %v2003
    %v2132 = vadd.f32 %v1492, %v2004
    %v2133 = vadd.f32 %v1493, %v2005
    %v2134 = vadd.f32 %v1494, %v2006
    %v2135 = vadd.f32 %v1495, %v2007
    %v2136 = vadd.f32 %v1496, %v2008
    %v2137 = vadd.f32 %v1497, %v2009
    %v2138 = vadd.f32 %v1498, %v2010
    %v2139 = vadd.f32 %v1499, %v2011
    %v2140 = vadd.f32 %v1500, %v2012
    %v2141 = vadd.f32 %v1501, %v2013
    %v2142 = vadd.f32 %v1502, %v2014
    %v2143 = vadd.f32 %v1503, %v2015
    %v2144 = vadd.f32 %v1504, %v2016
    %v2145 = vadd.f32 %v1505, %v2017
    %v2146 = vadd.f32 %v1506, %v2018
    %v2147 = vadd.f32 %v1507, %v2019
    %v2148 = vadd.f32 %v1508, %v2020
    %v2149 = vadd.f32 %v1509, %v2021
    %v2150 = vadd.f32 %v1510, %v2022
    %v2151 = vadd.f32 %v1511, %v2023
    %v2152 = vadd.f32 %v1512, %v2024
    %v2153 = vadd.f32 %v1513, %v2025
    %v2154 = vadd.f32 %v1514, %v2026
    %v2155 = vadd.f32 %v1515, %v2027
    %v2156 = vadd.f32 %v1516, %v2028
    %v2157 = vadd.f32 %v1517, %v2029
    %v2158 = vmul.f32 %v2030, 0.7978845
    %v2159 = vmul.f32 %v2031, 0.7978845
    %v2160 = vmul.f32 %v2032, 0.7978845
    %v2161 = vmul.f32 %v2033, 0.7978845
    %v2162 = vmul.f32 %v2034, 0.7978845
    %v2163 = vmul.f32 %v2035, 0.7978845
    %v2164 = vmul.f32 %v2036, 0.7978845
    %v2165 = vmul.f32 %v2037, 0.7978845
    %v2166 = vmul.f32 %v2038, 0.7978845
    %v2167 = vmul.f32 %v2039, 0.7978845
    %v2168 = vmul.f32 %v2040, 0.7978845
    %v2169 = vmul.f32 %v2041, 0.7978845
    %v2170 = vmul.f32 %v2042, 0.7978845
    %v2171 = vmul.f32 %v2043, 0.7978845
    %v2172 = vmul.f32 %v2044, 0.7978845
    %v2173 = vmul.f32 %v2045, 0.7978845
    %v2174 = vmul.f32 %v2046, 0.7978845
    %v2175 = vmul.f32 %v2047, 0.7978845
    %v2176 = vmul.f32 %v2048, 0.7978845
    %v2177 = vmul.f32 %v2049, 0.7978845
    %v2178 = vmul.f32 %v2050, 0.7978845
    %v2179 = vmul.f32 %v2051, 0.7978845
    %v2180 = vmul.f32 %v2052, 0.7978845
    %v2181 = vmul.f32 %v2053, 0.7978845
    %v2182 = vmul.f32 %v2054, 0.7978845
    %v2183 = vmul.f32 %v2055, 0.7978845
    %v2184 = vmul.f32 %v2056, 0.7978845
    %v2185 = vmul.f32 %v2057, 0.7978845
    %v2186 = vmul.f32 %v2058, 0.7978845
    %v2187 = vmul.f32 %v2059, 0.7978845
    %v2188 = vmul.f32 %v2060, 0.7978845
    %v2189 = vmul.f32 %v2061, 0.7978845
    %v2190 = vmul.f32 %v2062, 0.7978845
    %v2191 = vmul.f32 %v2063, 0.7978845
    %v2192 = vmul.f32 %v2064, 0.7978845
    %v2193 = vmul.f32 %v2065, 0.7978845
    %v2194 = vmul.f32 %v2066, 0.7978845
    %v2195 = vmul.f32 %v2067, 0.7978845
    %v2196 = vmul.f32 %v2068, 0.7978845
    %v2197 = vmul.f32 %v2069, 0.7978845
    %v2198 = vmul.f32 %v2070, 0.7978845
    %v2199 = vmul.f32 %v2071, 0.7978845
    %v2200 = vmul.f32 %v2072, 0.7978845
    %v2201 = vmul.f32 %v2073, 0.7978845
    %v2202 = vmul.f32 %v2074, 0.7978845
    %v2203 = vmul.f32 %v2075, 0.7978845
    %v2204 = vmul.f32 %v2076, 0.7978845
    %v2205 = vmul.f32 %v2077, 0.7978845
    %v2206 = vmul.f32 %v2078, 0.7978845
    %v2207 = vmul.f32 %v2079, 0.7978845
    %v2208 = vmul.f32 %v2080, 0.7978845
    %v2209 = vmul.f32 %v2081, 0.7978845
    %v2210 = vmul.f32 %v2082, 0.7978845
    %v2211 = vmul.f32 %v2083, 0.7978845
    %v2212 = vmul.f32 %v2084, 0.7978845
    %v2213 = vmul.f32 %v2085, 0.7978845
    %v2214 = vmul.f32 %v2086, 0.7978845
    %v2215 = vmul.f32 %v2087, 0.7978845
    %v2216 = vmul.f32 %v2088, 0.7978845
    %v2217 = vmul.f32 %v2089, 0.7978845
    %v2218 = vmul.f32 %v2090, 0.7978845
    %v2219 = vmul.f32 %v2091, 0.7978845
    %v2220 = vmul.f32 %v2092, 0.7978845
    %v2221 = vmul.f32 %v2093, 0.7978845
    %v2222 = vmul.f32 %v2094, 0.7978845
    %v2223 = vmul.f32 %v2095, 0.7978845
    %v2224 = vmul.f32 %v2096, 0.7978845
    %v2225 = vmul.f32 %v2097, 0.7978845
    %v2226 = vmul.f32 %v2098, 0.7978845
    %v2227 = vmul.f32 %v2099, 0.7978845
    %v2228 = vmul.f32 %v2100, 0.7978845
    %v2229 = vmul.f32 %v2101, 0.7978845
    %v2230 = vmul.f32 %v2102, 0.7978845
    %v2231 = vmul.f32 %v2103, 0.7978845
    %v2232 = vmul.f32 %v2104, 0.7978845
    %v2233 = vmul.f32 %v2105, 0.7978845
    %v2234 = vmul.f32 %v2106, 0.7978845
    %v2235 = vmul.f32 %v2107, 0.7978845
    %v2236 = vmul.f32 %v2108, 0.7978845
    %v2237 = vmul.f32 %v2109, 0.7978845
    %v2238 = vmul.f32 %v2110, 0.7978845
    %v2239 = vmul.f32 %v2111, 0.7978845
    %v2240 = vmul.f32 %v2112, 0.7978845
    %v2241 = vmul.f32 %v2113, 0.7978845
    %v2242 = vmul.f32 %v2114, 0.7978845
    %v2243 = vmul.f32 %v2115, 0.7978845
    %v2244 = vmul.f32 %v2116, 0.7978845
    %v2245 = vmul.f32 %v2117, 0.7978845
    %v2246 = vmul.f32 %v2118, 0.7978845
    %v2247 = vmul.f32 %v2119, 0.7978845
    %v2248 = vmul.f32 %v2120, 0.7978845
    %v2249 = vmul.f32 %v2121, 0.7978845
    %v2250 = vmul.f32 %v2122, 0.7978845
    %v2251 = vmul.f32 %v2123, 0.7978845
    %v2252 = vmul.f32 %v2124, 0.7978845
    %v2253 = vmul.f32 %v2125, 0.7978845
    %v2254 = vmul.f32 %v2126, 0.7978845
    %v2255 = vmul.f32 %v2127, 0.7978845
    %v2256 = vmul.f32 %v2128, 0.7978845
    %v2257 = vmul.f32 %v2129, 0.7978845
    %v2258 = vmul.f32 %v2130, 0.7978845
    %v2259 = vmul.f32 %v2131, 0.7978845
    %v2260 = vmul.f32 %v2132, 0.7978845
    %v2261 = vmul.f32 %v2133, 0.7978845
    %v2262 = vmul.f32 %v2134, 0.7978845
    %v2263 = vmul.f32 %v2135, 0.7978845
    %v2264 = vmul.f32 %v2136, 0.7978845
    %v2265 = vmul.f32 %v2137, 0.7978845
    %v2266 = vmul.f32 %v2138, 0.7978845
    %v2267 = vmul.f32 %v2139, 0.7978845
    %v2268 = vmul.f32 %v2140, 0.7978845
    %v2269 = vmul.f32 %v2141, 0.7978845
    %v2270 = vmul.f32 %v2142, 0.7978845
    %v2271 = vmul.f32 %v2143, 0.7978845
    %v2272 = vmul.f32 %v2144, 0.7978845
    %v2273 = vmul.f32 %v2145, 0.7978845
    %v2274 = vmul.f32 %v2146, 0.7978845
    %v2275 = vmul.f32 %v2147, 0.7978845
    %v2276 = vmul.f32 %v2148, 0.7978845
    %v2277 = vmul.f32 %v2149, 0.7978845
    %v2278 = vmul.f32 %v2150, 0.7978845
    %v2279 = vmul.f32 %v2151, 0.7978845
    %v2280 = vmul.f32 %v2152, 0.7978845
    %v2281 = vmul.f32 %v2153, 0.7978845
    %v2282 = vmul.f32 %v2154, 0.7978845
    %v2283 = vmul.f32 %v2155, 0.7978845
    %v2284 = vmul.f32 %v2156, 0.7978845
    %v2285 = vmul.f32 %v2157, 0.7978845
    %v2286 = vtanh.pop %v2158
    %v2287 = vtanh.pop %v2159
    %v2288 = vtanh.pop %v2160
    %v2289 = vtanh.pop %v2161
    %v2290 = vtanh.pop %v2162
    %v2291 = vtanh.pop %v2163
    %v2292 = vtanh.pop %v2164
    %v2293 = vtanh.pop %v2165
    %v2294 = vtanh.pop %v2166
    %v2295 = vtanh.pop %v2167
    %v2296 = vtanh.pop %v2168
    %v2297 = vtanh.pop %v2169
    %v2298 = vtanh.pop %v2170
    %v2299 = vtanh.pop %v2171
    %v2300 = vtanh.pop %v2172
    %v2301 = vtanh.pop %v2173
    %v2302 = vtanh.pop %v2174
    %v2303 = vtanh.pop %v2175
    %v2304 = vtanh.pop %v2176
    %v2305 = vtanh.pop %v2177
    %v2306 = vtanh.pop %v2178
    %v2307 = vtanh.pop %v2179
    %v2308 = vtanh.pop %v2180
    %v2309 = vtanh.pop %v2181
    %v2310 = vtanh.pop %v2182
    %v2311 = vtanh.pop %v2183
    %v2312 = vtanh.pop %v2184
    %v2313 = vtanh.pop %v2185
    %v2314 = vtanh.pop %v2186
    %v2315 = vtanh.pop %v2187
    %v2316 = vtanh.pop %v2188
    %v2317 = vtanh.pop %v2189
    %v2318 = vtanh.pop %v2190
    %v2319 = vtanh.pop %v2191
    %v2320 = vtanh.pop %v2192
    %v2321 = vtanh.pop %v2193
    %v2322 = vtanh.pop %v2194
    %v2323 = vtanh.pop %v2195
    %v2324 = vtanh.pop %v2196
    %v2325 = vtanh.pop %v2197
    %v2326 = vtanh.pop %v2198
    %v2327 = vtanh.pop %v2199
    %v2328 = vtanh.pop %v2200
    %v2329 = vtanh.pop %v2201
    %v2330 = vtanh.pop %v2202
    %v2331 = vtanh.pop %v2203
    %v2332 = vtanh.pop %v2204
    %v2333 = vtanh.pop %v2205
    %v2334 = vtanh.pop %v2206
    %v2335 = vtanh.pop %v2207
    %v2336 = vtanh.pop %v2208
    %v2337 = vtanh.pop %v2209
    %v2338 = vtanh.pop %v2210
    %v2339 = vtanh.pop %v2211
    %v2340 = vtanh.pop %v2212
    %v2341 = vtanh.pop %v2213
    %v2342 = vtanh.pop %v2214
    %v2343 = vtanh.pop %v2215
    %v2344 = vtanh.pop %v2216
    %v2345 = vtanh.pop %v2217
    %v2346 = vtanh.pop %v2218
    %v2347 = vtanh.pop %v2219
    %v2348 = vtanh.pop %v2220
    %v2349 = vtanh.pop %v2221
    %v2350 = vtanh.pop %v2222
    %v2351 = vtanh.pop %v2223
    %v2352 = vtanh.pop %v2224
    %v2353 = vtanh.pop %v2225
    %v2354 = vtanh.pop %v2226
    %v2355 = vtanh.pop %v2227
    %v2356 = vtanh.pop %v2228
    %v2357 = vtanh.pop %v2229
    %v2358 = vtanh.pop %v2230
    %v2359 = vtanh.pop %v2231
    %v2360 = vtanh.pop %v2232
    %v2361 = vtanh.pop %v2233
    %v2362 = vtanh.pop %v2234
    %v2363 = vtanh.pop %v2235
    %v2364 = vtanh.pop %v2236
    %v2365 = vtanh.pop %v2237
    %v2366 = vtanh.pop %v2238
    %v2367 = vtanh.pop %v2239
    %v2368 = vtanh.pop %v2240
    %v2369 = vtanh.pop %v2241
    %v2370 = vtanh.pop %v2242
    %v2371 = vtanh.pop %v2243
    %v2372 = vtanh.pop %v2244
    %v2373 = vtanh.pop %v2245
    %v2374 = vtanh.pop %v2246
    %v2375 = vtanh.pop %v2247
    %v2376 = vtanh.pop %v2248
    %v2377 = vtanh.pop %v2249
    %v2378 = vtanh.pop %v2250
    %v2379 = vtanh.pop %v2251
    %v2380 = vtanh.pop %v2252
    %v2381 = vtanh.pop %v2253
    %v2382 = vtanh.pop %v2254
    %v2383 = vtanh.pop %v2255
    %v2384 = vtanh.pop %v2256
    %v2385 = vtanh.pop %v2257
    %v2386 = vtanh.pop %v2258
    %v2387 = vtanh.pop %v2259
    %v2388 = vtanh.pop %v2260
    %v2389 = vtanh.pop %v2261
    %v2390 = vtanh.pop %v2262
    %v2391 = vtanh.pop %v2263
    %v2392 = vtanh.pop %v2264
    %v2393 = vtanh.pop %v2265
    %v2394 = vtanh.pop %v2266
    %v2395 = vtanh.pop %v2267
    %v2396 = vtanh.pop %v2268
    %v2397 = vtanh.pop %v2269
    %v2398 = vtanh.pop %v2270
    %v2399 = vtanh.pop %v2271
    %v2400 = vtanh.pop %v2272
    %v2401 = vtanh.pop %v2273
    %v2402 = vtanh.pop %v2274
    %v2403 = vtanh.pop %v2275
    %v2404 = vtanh.pop %v2276
    %v2405 = vtanh.pop %v2277
    %v2406 = vtanh.pop %v2278
    %v2407 = vtanh.pop %v2279
    %v2408 = vtanh.pop %v2280
    %v2409 = vtanh.pop %v2281
    %v2410 = vtanh.pop %v2282
    %v2411 = vtanh.pop %v2283
    %v2412 = vtanh.pop %v2284
    %v2413 = vtanh.pop %v2285
    %v2414 = vadd.f32 %v2286, 1.0
    %v2415 = vadd.f32 %v2287, 1.0
    %v2416 = vadd.f32 %v2288, 1.0
    %v2417 = vadd.f32 %v2289, 1.0
    %v2418 = vadd.f32 %v2290, 1.0
    %v2419 = vadd.f32 %v2291, 1.0
    %v2420 = vadd.f32 %v2292, 1.0
    %v2421 = vadd.f32 %v2293, 1.0
    %v2422 = vadd.f32 %v2294, 1.0
    %v2423 = vadd.f32 %v2295, 1.0
    %v2424 = vadd.f32 %v2296, 1.0
    %v2425 = vadd.f32 %v2297, 1.0
    %v2426 = vadd.f32 %v2298, 1.0
    %v2427 = vadd.f32 %v2299, 1.0
    %v2428 = vadd.f32 %v2300, 1.0
    %v2429 = vadd.f32 %v2301, 1.0
    %v2430 = vadd.f32 %v2302, 1.0
    %v2431 = vadd.f32 %v2303, 1.0
    %v2432 = vadd.f32 %v2304, 1.0
    %v2433 = vadd.f32 %v2305, 1.0
    %v2434 = vadd.f32 %v2306, 1.0
    %v2435 = vadd.f32 %v2307, 1.0
    %v2436 = vadd.f32 %v2308, 1.0
    %v2437 = vadd.f32 %v2309, 1.0
    %v2438 = vadd.f32 %v2310, 1.0
    %v2439 = vadd.f32 %v2311, 1.0
    %v2440 = vadd.f32 %v2312, 1.0
    %v2441 = vadd.f32 %v2313, 1.0
    %v2442 = vadd.f32 %v2314, 1.0
    %v2443 = vadd.f32 %v2315, 1.0
    %v2444 = vadd.f32 %v2316, 1.0
    %v2445 = vadd.f32 %v2317, 1.0
    %v2446 = vadd.f32 %v2318, 1.0
    %v2447 = vadd.f32 %v2319, 1.0
    %v2448 = vadd.f32 %v2320, 1.0
    %v2449 = vadd.f32 %v2321, 1.0
    %v2450 = vadd.f32 %v2322, 1.0
    %v2451 = vadd.f32 %v2323, 1.0
    %v2452 = vadd.f32 %v2324, 1.0
    %v2453 = vadd.f32 %v2325, 1.0
    %v2454 = vadd.f32 %v2326, 1.0
    %v2455 = vadd.f32 %v2327, 1.0
    %v2456 = vadd.f32 %v2328, 1.0
    %v2457 = vadd.f32 %v2329, 1.0
    %v2458 = vadd.f32 %v2330, 1.0
    %v2459 = vadd.f32 %v2331, 1.0
    %v2460 = vadd.f32 %v2332, 1.0
    %v2461 = vadd.f32 %v2333, 1.0
    %v2462 = vadd.f32 %v2334, 1.0
    %v2463 = vadd.f32 %v2335, 1.0
    %v2464 = vadd.f32 %v2336, 1.0
    %v2465 = vadd.f32 %v2337, 1.0
    %v2466 = vadd.f32 %v2338, 1.0
    %v2467 = vadd.f32 %v2339, 1.0
    %v2468 = vadd.f32 %v2340, 1.0
    %v2469 = vadd.f32 %v2341, 1.0
    %v2470 = vadd.f32 %v2342, 1.0
    %v2471 = vadd.f32 %v2343, 1.0
    %v2472 = vadd.f32 %v2344, 1.0
    %v2473 = vadd.f32 %v2345, 1.0
    %v2474 = vadd.f32 %v2346, 1.0
    %v2475 = vadd.f32 %v2347, 1.0
    %v2476 = vadd.f32 %v2348, 1.0
    %v2477 = vadd.f32 %v2349, 1.0
    %v2478 = vadd.f32 %v2350, 1.0
    %v2479 = vadd.f32 %v2351, 1.0
    %v2480 = vadd.f32 %v2352, 1.0
    %v2481 = vadd.f32 %v2353, 1.0
    %v2482 = vadd.f32 %v2354, 1.0
    %v2483 = vadd.f32 %v2355, 1.0
    %v2484 = vadd.f32 %v2356, 1.0
    %v2485 = vadd.f32 %v2357, 1.0
    %v2486 = vadd.f32 %v2358, 1.0
    %v2487 = vadd.f32 %v2359, 1.0
    %v2488 = vadd.f32 %v2360, 1.0
    %v2489 = vadd.f32 %v2361, 1.0
    %v2490 = vadd.f32 %v2362, 1.0
    %v2491 = vadd.f32 %v2363, 1.0
    %v2492 = vadd.f32 %v2364, 1.0
    %v2493 = vadd.f32 %v2365, 1.0
    %v2494 = vadd.f32 %v2366, 1.0
    %v2495 = vadd.f32 %v2367, 1.0
    %v2496 = vadd.f32 %v2368, 1.0
    %v2497 = vadd.f32 %v2369, 1.0
    %v2498 = vadd.f32 %v2370, 1.0
    %v2499 = vadd.f32 %v2371, 1.0
    %v2500 = vadd.f32 %v2372, 1.0
    %v2501 = vadd.f32 %v2373, 1.0
    %v2502 = vadd.f32 %v2374, 1.0
    %v2503 = vadd.f32 %v2375, 1.0
    %v2504 = vadd.f32 %v2376, 1.0
    %v2505 = vadd.f32 %v2377, 1.0
    %v2506 = vadd.f32 %v2378, 1.0
    %v2507 = vadd.f32 %v2379, 1.0
    %v2508 = vadd.f32 %v2380, 1.0
    %v2509 = vadd.f32 %v2381, 1.0
    %v2510 = vadd.f32 %v2382, 1.0
    %v2511 = vadd.f32 %v2383, 1.0
    %v2512 = vadd.f32 %v2384, 1.0
    %v2513 = vadd.f32 %v2385, 1.0
    %v2514 = vadd.f32 %v2386, 1.0
    %v2515 = vadd.f32 %v2387, 1.0
    %v2516 = vadd.f32 %v2388, 1.0
    %v2517 = vadd.f32 %v2389, 1.0
    %v2518 = vadd.f32 %v2390, 1.0
    %v2519 = vadd.f32 %v2391, 1.0
    %v2520 = vadd.f32 %v2392, 1.0
    %v2521 = vadd.f32 %v2393, 1.0
    %v2522 = vadd.f32 %v2394, 1.0
    %v2523 = vadd.f32 %v2395, 1.0
    %v2524 = vadd.f32 %v2396, 1.0
    %v2525 = vadd.f32 %v2397, 1.0
    %v2526 = vadd.f32 %v2398, 1.0
    %v2527 = vadd.f32 %v2399, 1.0
    %v2528 = vadd.f32 %v2400, 1.0
    %v2529 = vadd.f32 %v2401, 1.0
    %v2530 = vadd.f32 %v2402, 1.0
    %v2531 = vadd.f32 %v2403, 1.0
    %v2532 = vadd.f32 %v2404, 1.0
    %v2533 = vadd.f32 %v2405, 1.0
    %v2534 = vadd.f32 %v2406, 1.0
    %v2535 = vadd.f32 %v2407, 1.0
    %v2536 = vadd.f32 %v2408, 1.0
    %v2537 = vadd.f32 %v2409, 1.0
    %v2538 = vadd.f32 %v2410, 1.0
    %v2539 = vadd.f32 %v2411, 1.0
    %v2540 = vadd.f32 %v2412, 1.0
    %v2541 = vadd.f32 %v2413, 1.0
    %v2542 = vmul.f32 %v1518, %v2414
    %v2543 = vmul.f32 %v1519, %v2415
    %v2544 = vmul.f32 %v1520, %v2416
    %v2545 = vmul.f32 %v1521, %v2417
    %v2546 = vmul.f32 %v1522, %v2418
    %v2547 = vmul.f32 %v1523, %v2419
    %v2548 = vmul.f32 %v1524, %v2420
    %v2549 = vmul.f32 %v1525, %v2421
    %v2550 = vmul.f32 %v1526, %v2422
    %v2551 = vmul.f32 %v1527, %v2423
    %v2552 = vmul.f32 %v1528, %v2424
    %v2553 = vmul.f32 %v1529, %v2425
    %v2554 = vmul.f32 %v1530, %v2426
    %v2555 = vmul.f32 %v1531, %v2427
    %v2556 = vmul.f32 %v1532, %v2428
    %v2557 = vmul.f32 %v1533, %v2429
    %v2558 = vmul.f32 %v1534, %v2430
    %v2559 = vmul.f32 %v1535, %v2431
    %v2560 = vmul.f32 %v1536, %v2432
    %v2561 = vmul.f32 %v1537, %v2433
    %v2562 = vmul.f32 %v1538, %v2434
    %v2563 = vmul.f32 %v1539, %v2435
    %v2564 = vmul.f32 %v1540, %v2436
    %v2565 = vmul.f32 %v1541, %v2437
    %v2566 = vmul.f32 %v1542, %v2438
    %v2567 = vmul.f32 %v1543, %v2439
    %v2568 = vmul.f32 %v1544, %v2440
    %v2569 = vmul.f32 %v1545, %v2441
    %v2570 = vmul.f32 %v1546, %v2442
    %v2571 = vmul.f32 %v1547, %v2443
    %v2572 = vmul.f32 %v1548, %v2444
    %v2573 = vmul.f32 %v1549, %v2445
    %v2574 = vmul.f32 %v1550, %v2446
    %v2575 = vmul.f32 %v1551, %v2447
    %v2576 = vmul.f32 %v1552, %v2448
    %v2577 = vmul.f32 %v1553, %v2449
    %v2578 = vmul.f32 %v1554, %v2450
    %v2579 = vmul.f32 %v1555, %v2451
    %v2580 = vmul.f32 %v1556, %v2452
    %v2581 = vmul.f32 %v1557, %v2453
    %v2582 = vmul.f32 %v1558, %v2454
    %v2583 = vmul.f32 %v1559, %v2455
    %v2584 = vmul.f32 %v1560, %v2456
    %v2585 = vmul.f32 %v1561, %v2457
    %v2586 = vmul.f32 %v1562, %v2458
    %v2587 = vmul.f32 %v1563, %v2459
    %v2588 = vmul.f32 %v1564, %v2460
    %v2589 = vmul.f32 %v1565, %v2461
    %v2590 = vmul.f32 %v1566, %v2462
    %v2591 = vmul.f32 %v1567, %v2463
    %v2592 = vmul.f32 %v1568, %v2464
    %v2593 = vmul.f32 %v1569, %v2465
    %v2594 = vmul.f32 %v1570, %v2466
    %v2595 = vmul.f32 %v1571, %v2467
    %v2596 = vmul.f32 %v1572, %v2468
    %v2597 = vmul.f32 %v1573, %v2469
    %v2598 = vmul.f32 %v1574, %v2470
    %v2599 = vmul.f32 %v1575, %v2471
    %v2600 = vmul.f32 %v1576, %v2472
    %v2601 = vmul.f32 %v1577, %v2473
    %v2602 = vmul.f32 %v1578, %v2474
    %v2603 = vmul.f32 %v1579, %v2475
    %v2604 = vmul.f32 %v1580, %v2476
    %v2605 = vmul.f32 %v1581, %v2477
    %v2606 = vmul.f32 %v1582, %v2478
    %v2607 = vmul.f32 %v1583, %v2479
    %v2608 = vmul.f32 %v1584, %v2480
    %v2609 = vmul.f32 %v1585, %v2481
    %v2610 = vmul.f32 %v1586, %v2482
    %v2611 = vmul.f32 %v1587, %v2483
    %v2612 = vmul.f32 %v1588, %v2484
    %v2613 = vmul.f32 %v1589, %v2485
    %v2614 = vmul.f32 %v1590, %v2486
    %v2615 = vmul.f32 %v1591, %v2487
    %v2616 = vmul.f32 %v1592, %v2488
    %v2617 = vmul.f32 %v1593, %v2489
    %v2618 = vmul.f32 %v1594, %v2490
    %v2619 = vmul.f32 %v1595, %v2491
    %v2620 = vmul.f32 %v1596, %v2492
    %v2621 = vmul.f32 %v1597, %v2493
    %v2622 = vmul.f32 %v1598, %v2494
    %v2623 = vmul.f32 %v1599, %v2495
    %v2624 = vmul.f32 %v1600, %v2496
    %v2625 = vmul.f32 %v1601, %v2497
    %v2626 = vmul.f32 %v1602, %v2498
    %v2627 = vmul.f32 %v1603, %v2499
    %v2628 = vmul.f32 %v1604, %v2500
    %v2629 = vmul.f32 %v1605, %v2501
    %v2630 = vmul.f32 %v1606, %v2502
    %v2631 = vmul.f32 %v1607, %v2503
    %v2632 = vmul.f32 %v1608, %v2504
    %v2633 = vmul.f32 %v1609, %v2505
    %v2634 = vmul.f32 %v1610, %v2506
    %v2635 = vmul.f32 %v1611, %v2507
    %v2636 = vmul.f32 %v1612, %v2508
    %v2637 = vmul.f32 %v1613, %v2509
    %v2638 = vmul.f32 %v1614, %v2510
    %v2639 = vmul.f32 %v1615, %v2511
    %v2640 = vmul.f32 %v1616, %v2512
    %v2641 = vmul.f32 %v1617, %v2513
    %v2642 = vmul.f32 %v1618, %v2514
    %v2643 = vmul.f32 %v1619, %v2515
    %v2644 = vmul.f32 %v1620, %v2516
    %v2645 = vmul.f32 %v1621, %v2517
    %v2646 = vmul.f32 %v1622, %v2518
    %v2647 = vmul.f32 %v1623, %v2519
    %v2648 = vmul.f32 %v1624, %v2520
    %v2649 = vmul.f32 %v1625, %v2521
    %v2650 = vmul.f32 %v1626, %v2522
    %v2651 = vmul.f32 %v1627, %v2523
    %v2652 = vmul.f32 %v1628, %v2524
    %v2653 = vmul.f32 %v1629, %v2525
    %v2654 = vmul.f32 %v1630, %v2526
    %v2655 = vmul.f32 %v1631, %v2527
    %v2656 = vmul.f32 %v1632, %v2528
    %v2657 = vmul.f32 %v1633, %v2529
    %v2658 = vmul.f32 %v1634, %v2530
    %v2659 = vmul.f32 %v1635, %v2531
    %v2660 = vmul.f32 %v1636, %v2532
    %v2661 = vmul.f32 %v1637, %v2533
    %v2662 = vmul.f32 %v1638, %v2534
    %v2663 = vmul.f32 %v1639, %v2535
    %v2664 = vmul.f32 %v1640, %v2536
    %v2665 = vmul.f32 %v1641, %v2537
    %v2666 = vmul.f32 %v1642, %v2538
    %v2667 = vmul.f32 %v1643, %v2539
    %v2668 = vmul.f32 %v1644, %v2540
    %v2669 = vmul.f32 %v1645, %v2541
    %v2670 = vpack.c.bf16 %v2546, %v2542
    %v2671 = vpack.c.bf16 %v2547, %v2543
    %v2672 = vpack.c.bf16 %v2548, %v2544
    %v2673 = vpack.c.bf16 %v2549, %v2545
    %v2674 = vpack.c.bf16 %v2554, %v2550
    %v2675 = vpack.c.bf16 %v2555, %v2551
    %v2676 = vpack.c.bf16 %v2556, %v2552
    %v2677 = vpack.c.bf16 %v2557, %v2553
    %v2678 = vpack.c.bf16 %v2562, %v2558
    %v2679 = vpack.c.bf16 %v2563, %v2559
    %v2680 = vpack.c.bf16 %v2564, %v2560
    %v2681 = vpack.c.bf16 %v2565, %v2561
    %v2682 = vpack.c.bf16 %v2570, %v2566
    %v2683 = vpack.c.bf16 %v2571, %v2567
    %v2684 = vpack.c.bf16 %v2572, %v2568
    %v2685 = vpack.c.bf16 %v2573, %v2569
    %v2686 = vpack.c.bf16 %v2578, %v2574
    %v2687 = vpack.c.bf16 %v2579, %v2575
    %v2688 = vpack.c.bf16 %v2580, %v2576
    %v2689 = vpack.c.bf16 %v2581, %v2577
    %v2690 = vpack.c.bf16 %v2586, %v2582
    %v2691 = vpack.c.bf16 %v2587, %v2583
    %v2692 = vpack.c.bf16 %v2588, %v2584
    %v2693 = vpack.c.bf16 %v2589, %v2585
    %v2694 = vpack.c.bf16 %v2594, %v2590
    %v2695 = vpack.c.bf16 %v2595, %v2591
    %v2696 = vpack.c.bf16 %v2596, %v2592
    %v2697 = vpack.c.bf16 %v2597, %v2593
    %v2698 = vpack.c.bf16 %v2602, %v2598
    %v2699 = vpack.c.bf16 %v2603, %v2599
    %v2700 = vpack.c.bf16 %v2604, %v2600
    %v2701 = vpack.c.bf16 %v2605, %v2601
    %v2702 = vpack.c.bf16 %v2610, %v2606
    %v2703 = vpack.c.bf16 %v2611, %v2607
    %v2704 = vpack.c.bf16 %v2612, %v2608
    %v2705 = vpack.c.bf16 %v2613, %v2609
    %v2706 = vpack.c.bf16 %v2618, %v2614
    %v2707 = vpack.c.bf16 %v2619, %v2615
    %v2708 = vpack.c.bf16 %v2620, %v2616
    %v2709 = vpack.c.bf16 %v2621, %v2617
    %v2710 = vpack.c.bf16 %v2626, %v2622
    %v2711 = vpack.c.bf16 %v2627, %v2623
    %v2712 = vpack.c.bf16 %v2628, %v2624
    %v2713 = vpack.c.bf16 %v2629, %v2625
    %v2714 = vpack.c.bf16 %v2634, %v2630
    %v2715 = vpack.c.bf16 %v2635, %v2631
    %v2716 = vpack.c.bf16 %v2636, %v2632
    %v2717 = vpack.c.bf16 %v2637, %v2633
    %v2718 = vpack.c.bf16 %v2642, %v2638
    %v2719 = vpack.c.bf16 %v2643, %v2639
    %v2720 = vpack.c.bf16 %v2644, %v2640
    %v2721 = vpack.c.bf16 %v2645, %v2641
    %v2722 = vpack.c.bf16 %v2650, %v2646
    %v2723 = vpack.c.bf16 %v2651, %v2647
    %v2724 = vpack.c.bf16 %v2652, %v2648
    %v2725 = vpack.c.bf16 %v2653, %v2649
    %v2726 = vpack.c.bf16 %v2658, %v2654
    %v2727 = vpack.c.bf16 %v2659, %v2655
    %v2728 = vpack.c.bf16 %v2660, %v2656
    %v2729 = vpack.c.bf16 %v2661, %v2657
    %v2730 = vpack.c.bf16 %v2666, %v2662
    %v2731 = vpack.c.bf16 %v2667, %v2663
    %v2732 = vpack.c.bf16 %v2668, %v2664
    %v2733 = vpack.c.bf16 %v2669, %v2665
    %v2798 = vunpack.c.l.b16 %v2670
    %v2799 = vunpack.c.l.b16 %v2671
    %v2800 = vunpack.c.l.b16 %v2672
    %v2801 = vunpack.c.l.b16 %v2673
    %v2802 = vunpack.c.h.b16 %v2670
    %v2803 = vunpack.c.h.b16 %v2671
    %v2804 = vunpack.c.h.b16 %v2672
    %v2805 = vunpack.c.h.b16 %v2673
    %v2806 = vunpack.c.l.b16 %v2674
    %v2807 = vunpack.c.l.b16 %v2675
    %v2808 = vunpack.c.l.b16 %v2676
    %v2809 = vunpack.c.l.b16 %v2677
    %v2810 = vunpack.c.h.b16 %v2674
    %v2811 = vunpack.c.h.b16 %v2675
    %v2812 = vunpack.c.h.b16 %v2676
    %v2813 = vunpack.c.h.b16 %v2677
    %v2814 = vunpack.c.l.b16 %v2678
    %v2815 = vunpack.c.l.b16 %v2679
    %v2816 = vunpack.c.l.b16 %v2680
    %v2817 = vunpack.c.l.b16 %v2681
    %v2818 = vunpack.c.h.b16 %v2678
    %v2819 = vunpack.c.h.b16 %v2679
    %v2820 = vunpack.c.h.b16 %v2680
    %v2821 = vunpack.c.h.b16 %v2681
    %v2822 = vunpack.c.l.b16 %v2682
    %v2823 = vunpack.c.l.b16 %v2683
    %v2824 = vunpack.c.l.b16 %v2684
    %v2825 = vunpack.c.l.b16 %v2685
    %v2826 = vunpack.c.h.b16 %v2682
    %v2827 = vunpack.c.h.b16 %v2683
    %v2828 = vunpack.c.h.b16 %v2684
    %v2829 = vunpack.c.h.b16 %v2685
    %v2830 = vunpack.c.l.b16 %v2686
    %v2831 = vunpack.c.l.b16 %v2687
    %v2832 = vunpack.c.l.b16 %v2688
    %v2833 = vunpack.c.l.b16 %v2689
    %v2834 = vunpack.c.h.b16 %v2686
    %v2835 = vunpack.c.h.b16 %v2687
    %v2836 = vunpack.c.h.b16 %v2688
    %v2837 = vunpack.c.h.b16 %v2689
    %v2838 = vunpack.c.l.b16 %v2690
    %v2839 = vunpack.c.l.b16 %v2691
    %v2840 = vunpack.c.l.b16 %v2692
    %v2841 = vunpack.c.l.b16 %v2693
    %v2842 = vunpack.c.h.b16 %v2690
    %v2843 = vunpack.c.h.b16 %v2691
    %v2844 = vunpack.c.h.b16 %v2692
    %v2845 = vunpack.c.h.b16 %v2693
    %v2846 = vunpack.c.l.b16 %v2694
    %v2847 = vunpack.c.l.b16 %v2695
    %v2848 = vunpack.c.l.b16 %v2696
    %v2849 = vunpack.c.l.b16 %v2697
    %v2850 = vunpack.c.h.b16 %v2694
    %v2851 = vunpack.c.h.b16 %v2695
    %v2852 = vunpack.c.h.b16 %v2696
    %v2853 = vunpack.c.h.b16 %v2697
    %v2854 = vunpack.c.l.b16 %v2698
    %v2855 = vunpack.c.l.b16 %v2699
    %v2856 = vunpack.c.l.b16 %v2700
    %v2857 = vunpack.c.l.b16 %v2701
    %v2858 = vunpack.c.h.b16 %v2698
    %v2859 = vunpack.c.h.b16 %v2699
    %v2860 = vunpack.c.h.b16 %v2700
    %v2861 = vunpack.c.h.b16 %v2701
    %v2862 = vunpack.c.l.b16 %v2702
    %v2863 = vunpack.c.l.b16 %v2703
    %v2864 = vunpack.c.l.b16 %v2704
    %v2865 = vunpack.c.l.b16 %v2705
    %v2866 = vunpack.c.h.b16 %v2702
    %v2867 = vunpack.c.h.b16 %v2703
    %v2868 = vunpack.c.h.b16 %v2704
    %v2869 = vunpack.c.h.b16 %v2705
    %v2870 = vunpack.c.l.b16 %v2706
    %v2871 = vunpack.c.l.b16 %v2707
    %v2872 = vunpack.c.l.b16 %v2708
    %v2873 = vunpack.c.l.b16 %v2709
    %v2874 = vunpack.c.h.b16 %v2706
    %v2875 = vunpack.c.h.b16 %v2707
    %v2876 = vunpack.c.h.b16 %v2708
    %v2877 = vunpack.c.h.b16 %v2709
    %v2878 = vunpack.c.l.b16 %v2710
    %v2879 = vunpack.c.l.b16 %v2711
    %v2880 = vunpack.c.l.b16 %v2712
    %v2881 = vunpack.c.l.b16 %v2713
    %v2882 = vunpack.c.h.b16 %v2710
    %v2883 = vunpack.c.h.b16 %v2711
    %v2884 = vunpack.c.h.b16 %v2712
    %v2885 = vunpack.c.h.b16 %v2713
    %v2886 = vunpack.c.l.b16 %v2714
    %v2887 = vunpack.c.l.b16 %v2715
    %v2888 = vunpack.c.l.b16 %v2716
    %v2889 = vunpack.c.l.b16 %v2717
    %v2890 = vunpack.c.h.b16 %v2714
    %v2891 = vunpack.c.h.b16 %v2715
    %v2892 = vunpack.c.h.b16 %v2716
    %v2893 = vunpack.c.h.b16 %v2717
    %v2894 = vunpack.c.l.b16 %v2718
    %v2895 = vunpack.c.l.b16 %v2719
    %v2896 = vunpack.c.l.b16 %v2720
    %v2897 = vunpack.c.l.b16 %v2721
    %v2898 = vunpack.c.h.b16 %v2718
    %v2899 = vunpack.c.h.b16 %v2719
    %v2900 = vunpack.c.h.b16 %v2720
    %v2901 = vunpack.c.h.b16 %v2721
    %v2902 = vunpack.c.l.b16 %v2722
    %v2903 = vunpack.c.l.b16 %v2723
    %v2904 = vunpack.c.l.b16 %v2724
    %v2905 = vunpack.c.l.b16 %v2725
    %v2906 = vunpack.c.h.b16 %v2722
    %v2907 = vunpack.c.h.b16 %v2723
    %v2908 = vunpack.c.h.b16 %v2724
    %v2909 = vunpack.c.h.b16 %v2725
    %v2910 = vunpack.c.l.b16 %v2726
    %v2911 = vunpack.c.l.b16 %v2727
    %v2912 = vunpack.c.l.b16 %v2728
    %v2913 = vunpack.c.l.b16 %v2729
    %v2914 = vunpack.c.h.b16 %v2726
    %v2915 = vunpack.c.h.b16 %v2727
    %v2916 = vunpack.c.h.b16 %v2728
    %v2917 = vunpack.c.h.b16 %v2729
    %v2918 = vunpack.c.l.b16 %v2730
    %v2919 = vunpack.c.l.b16 %v2731
    %v2920 = vunpack.c.l.b16 %v2732
    %v2921 = vunpack.c.l.b16 %v2733
    %v2922 = vunpack.c.h.b16 %v2730
    %v2923 = vunpack.c.h.b16 %v2731
    %v2924 = vunpack.c.h.b16 %v2732
    %v2925 = vunpack.c.h.b16 %v2733
    %v2926 = vpack.c.b16 %v2799, %v2798
    %v2927 = vpack.c.b16 %v2801, %v2800
    %v2928 = vpack.c.b16 %v2803, %v2802
    %v2929 = vpack.c.b16 %v2805, %v2804
    %v2930 = vpack.c.b16 %v2807, %v2806
    %v2931 = vpack.c.b16 %v2809, %v2808
    %v2932 = vpack.c.b16 %v2811, %v2810
    %v2933 = vpack.c.b16 %v2813, %v2812
    %v2934 = vpack.c.b16 %v2815, %v2814
    %v2935 = vpack.c.b16 %v2817, %v2816
    %v2936 = vpack.c.b16 %v2819, %v2818
    %v2937 = vpack.c.b16 %v2821, %v2820
    %v2938 = vpack.c.b16 %v2823, %v2822
    %v2939 = vpack.c.b16 %v2825, %v2824
    %v2940 = vpack.c.b16 %v2827, %v2826
    %v2941 = vpack.c.b16 %v2829, %v2828
    %v2942 = vpack.c.b16 %v2831, %v2830
    %v2943 = vpack.c.b16 %v2833, %v2832
    %v2944 = vpack.c.b16 %v2835, %v2834
    %v2945 = vpack.c.b16 %v2837, %v2836
    %v2946 = vpack.c.b16 %v2839, %v2838
    %v2947 = vpack.c.b16 %v2841, %v2840
    %v2948 = vpack.c.b16 %v2843, %v2842
    %v2949 = vpack.c.b16 %v2845, %v2844
    %v2950 = vpack.c.b16 %v2847, %v2846
    %v2951 = vpack.c.b16 %v2849, %v2848
    %v2952 = vpack.c.b16 %v2851, %v2850
    %v2953 = vpack.c.b16 %v2853, %v2852
    %v2954 = vpack.c.b16 %v2855, %v2854
    %v2955 = vpack.c.b16 %v2857, %v2856
    %v2956 = vpack.c.b16 %v2859, %v2858
    %v2957 = vpack.c.b16 %v2861, %v2860
    %v2958 = vpack.c.b16 %v2863, %v2862
    %v2959 = vpack.c.b16 %v2865, %v2864
    %v2960 = vpack.c.b16 %v2867, %v2866
    %v2961 = vpack.c.b16 %v2869, %v2868
    %v2962 = vpack.c.b16 %v2871, %v2870
    %v2963 = vpack.c.b16 %v2873, %v2872
    %v2964 = vpack.c.b16 %v2875, %v2874
    %v2965 = vpack.c.b16 %v2877, %v2876
    %v2966 = vpack.c.b16 %v2879, %v2878
    %v2967 = vpack.c.b16 %v2881, %v2880
    %v2968 = vpack.c.b16 %v2883, %v2882
    %v2969 = vpack.c.b16 %v2885, %v2884
    %v2970 = vpack.c.b16 %v2887, %v2886
    %v2971 = vpack.c.b16 %v2889, %v2888
    %v2972 = vpack.c.b16 %v2891, %v2890
    %v2973 = vpack.c.b16 %v2893, %v2892
    %v2974 = vpack.c.b16 %v2895, %v2894
    %v2975 = vpack.c.b16 %v2897, %v2896
    %v2976 = vpack.c.b16 %v2899, %v2898
    %v2977 = vpack.c.b16 %v2901, %v2900
    %v2978 = vpack.c.b16 %v2903, %v2902
    %v2979 = vpack.c.b16 %v2905, %v2904
    %v2980 = vpack.c.b16 %v2907, %v2906
    %v2981 = vpack.c.b16 %v2909, %v2908
    %v2982 = vpack.c.b16 %v2911, %v2910
    %v2983 = vpack.c.b16 %v2913, %v2912
    %v2984 = vpack.c.b16 %v2915, %v2914
    %v2985 = vpack.c.b16 %v2917, %v2916
    %v2986 = vpack.c.b16 %v2919, %v2918
    %v2987 = vpack.c.b16 %v2921, %v2920
    %v2988 = vpack.c.b16 %v2923, %v2922
    %v2989 = vpack.c.b16 %v2925, %v2924
    %3054 = vst [vmem:[%s3] sm:$0xff] %v2926
    %3055 = vst [vmem:[%s3 + $0x8] sm:$0xff] %v2927
    %3056 = vst [vmem:[%s3 + $0x10] sm:$0xff] %v2928
    %3057 = vst [vmem:[%s3 + $0x18] sm:$0xff] %v2929
    %3058 = vst [vmem:[%s3 + $0x20] sm:$0xff] %v2930
    %3059 = vst [vmem:[%s3 + $0x28] sm:$0xff] %v2931
    %3060 = vst [vmem:[%s3 + $0x30] sm:$0xff] %v2932
    %3061 = vst [vmem:[%s3 + $0x38] sm:$0xff] %v2933
    %3062 = vst [vmem:[%s3 + $0x40] sm:$0xff] %v2934
    %3063 = vst [vmem:[%s3 + $0x48] sm:$0xff] %v2935
    %3064 = vst [vmem:[%s3 + $0x50] sm:$0xff] %v2936
    %3065 = vst [vmem:[%s3 + $0x58] sm:$0xff] %v2937
    %3066 = vst [vmem:[%s3 + $0x60] sm:$0xff] %v2938
    %3067 = vst [vmem:[%s3 + $0x68] sm:$0xff] %v2939
    %3068 = vst [vmem:[%s3 + $0x70] sm:$0xff] %v2940
    %3069 = vst [vmem:[%s3 + $0x78] sm:$0xff] %v2941
    %3070 = vst [vmem:[%s3 + $0x80] sm:$0xff] %v2942
    %3071 = vst [vmem:[%s3 + $0x88] sm:$0xff] %v2943
    %3072 = vst [vmem:[%s3 + $0x90] sm:$0xff] %v2944
    %3073 = vst [vmem:[%s3 + $0x98] sm:$0xff] %v2945
    %3074 = vst [vmem:[%s3 + $0xa0] sm:$0xff] %v2946
    %3075 = vst [vmem:[%s3 + $0xa8] sm:$0xff] %v2947
    %3076 = vst [vmem:[%s3 + $0xb0] sm:$0xff] %v2948
    %3077 = vst [vmem:[%s3 + $0xb8] sm:$0xff] %v2949
    %3078 = vst [vmem:[%s3 + $0xc0] sm:$0xff] %v2950
    %3079 = vst [vmem:[%s3 + $0xc8] sm:$0xff] %v2951
    %3080 = vst [vmem:[%s3 + $0xd0] sm:$0xff] %v2952
    %3081 = vst [vmem:[%s3 + $0xd8] sm:$0xff] %v2953
    %3082 = vst [vmem:[%s3 + $0xe0] sm:$0xff] %v2954
    %3083 = vst [vmem:[%s3 + $0xe8] sm:$0xff] %v2955
    %3084 = vst [vmem:[%s3 + $0xf0] sm:$0xff] %v2956
    %3085 = vst [vmem:[%s3 + $0xf8] sm:$0xff] %v2957
    %3086 = vst [vmem:[%s3 + $0x100] sm:$0xff] %v2958
    %3087 = vst [vmem:[%s3 + $0x108] sm:$0xff] %v2959
    %3088 = vst [vmem:[%s3 + $0x110] sm:$0xff] %v2960
    %3089 = vst [vmem:[%s3 + $0x118] sm:$0xff] %v2961
    %3090 = vst [vmem:[%s3 + $0x120] sm:$0xff] %v2962
    %3091 = vst [vmem:[%s3 + $0x128] sm:$0xff] %v2963
    %3092 = vst [vmem:[%s3 + $0x130] sm:$0xff] %v2964
    %3093 = vst [vmem:[%s3 + $0x138] sm:$0xff] %v2965
    %3094 = vst [vmem:[%s3 + $0x140] sm:$0xff] %v2966
    %3095 = vst [vmem:[%s3 + $0x148] sm:$0xff] %v2967
    %3096 = vst [vmem:[%s3 + $0x150] sm:$0xff] %v2968
    %3097 = vst [vmem:[%s3 + $0x158] sm:$0xff] %v2969
    %3098 = vst [vmem:[%s3 + $0x160] sm:$0xff] %v2970
    %3099 = vst [vmem:[%s3 + $0x168] sm:$0xff] %v2971
    %3100 = vst [vmem:[%s3 + $0x170] sm:$0xff] %v2972
    %3101 = vst [vmem:[%s3 + $0x178] sm:$0xff] %v2973
    %3102 = vst [vmem:[%s3 + $0x180] sm:$0xff] %v2974
    %3103 = vst [vmem:[%s3 + $0x188] sm:$0xff] %v2975
    %3104 = vst [vmem:[%s3 + $0x190] sm:$0xff] %v2976
    %3105 = vst [vmem:[%s3 + $0x198] sm:$0xff] %v2977
    %3106 = vst [vmem:[%s3 + $0x1a0] sm:$0xff] %v2978
    %3107 = vst [vmem:[%s3 + $0x1a8] sm:$0xff] %v2979
    %3108 = vst [vmem:[%s3 + $0x1b0] sm:$0xff] %v2980
    %3109 = vst [vmem:[%s3 + $0x1b8] sm:$0xff] %v2981
    %3110 = vst [vmem:[%s3 + $0x1c0] sm:$0xff] %v2982
    %3111 = vst [vmem:[%s3 + $0x1c8] sm:$0xff] %v2983
    %3112 = vst [vmem:[%s3 + $0x1d0] sm:$0xff] %v2984
    %3113 = vst [vmem:[%s3 + $0x1d8] sm:$0xff] %v2985
    %3114 = vst [vmem:[%s3 + $0x1e0] sm:$0xff] %v2986
    %3115 = vst [vmem:[%s3 + $0x1e8] sm:$0xff] %v2987
    %3116 = vst [vmem:[%s3 + $0x1f0] sm:$0xff] %v2988
    %3117 = vst [vmem:[%s3 + $0x1f8] sm:$0xff] %v2989
  $region21: #{forward.16} parent=0 // pred_fallthru
    _
  // Predicated region
  $region22: #{forward.16} parent=0 // pred_check
    _
  $region23: #{forward.16} parent=0 // pred_check_branch
    %3119 = sbr.rel (0) target = $region25
  $region24: #{forward.16} parent=0 // pred_region
    _
  $region25: #{forward.16} parent=0 // pred_fallthru
    _
  // Predicated region
  $region26: #{forward.16} parent=0 // pred_check
    _
  $region27: #{forward.16} parent=0 // pred_check_branch
    %3121 = sbr.rel (0) target = $region29
  $region28: #{forward.16} parent=0 // pred_region
    _
  $region29: #{forward.16} parent=0 // pred_fallthru
    _

// kernel: forward.17
$region0: #{forward.17}
  #allocation0 [shape = 'u32[]', space=smem, size = 0x4, offset = 0x4, fixed_abs, tag = 'smem constant byte address 0x4 - core index']
  #allocation1 [shape = 'u32[144,128]{1,0:T(1,128)}', space=vmem, size = 0x12000, scoped, tag = 'internal scratch']
  #allocation2 [shape = 'f32[256,128]{1,0:T(8,128)}', space=vmem, size = 0x20000, scoped, tag = 'scratch operand']
  %s0 = inlined_call_operand.vmem [shape: bf16[256,512], index: 0, kind: input, shape index: {}]
  %s1 = inlined_call_operand.vmem [shape: bf16[512,128], index: 1, kind: input, shape index: {}]
  %s2 = inlined_call_operand.vmem [shape: f32[1,128], index: 2, kind: input, shape index: {}]
  %s3 = inlined_call_operand.vmem [shape: bf16[256,128], index: 3, kind: input, shape index: {}]
  %s4 = inlined_call_operand.vmem [shape: f32[1,128], index: 4, kind: input, shape index: {}]
  %s5 = inlined_call_operand.vmem [shape: f32[1,128], index: 5, kind: input, shape index: {}]
  %s6 = inlined_call_operand.vmem [shape: bf16[256,128], index: 6, kind: output, shape index: {}]
  %s7 = sld [smem:[#allocation0]]
  $region42: #{forward.17} parent=0
    _
  %s9 = ssub.s32 1, %s7
  %s10 = scalar_select 0, %s9, %s7
  // Predicated region
  $region2: #{forward.17} parent=0 // pred_check
    _
  $region3: #{forward.17} parent=0 // pred_check_branch
    %12 = sbr.rel (0) target = $region5
  $region4: #{forward.17} parent=0 // pred_region
    _
  $region5: #{forward.17} parent=0 // pred_fallthru
    _
  // Predicated region
  $region6: #{forward.17} parent=0 // pred_check
    _
  $region7: #{forward.17} parent=0 // pred_check_branch
    %14 = sbr.rel (0) target = $region9
  $region8: #{forward.17} parent=0 // pred_region
    _
  $region9: #{forward.17} parent=0 // pred_fallthru
    _
  // Predicated region
  $region10: #{forward.17} parent=0 // pred_check
    _
  $region11: #{forward.17} parent=0 // pred_check_branch
    %16 = sbr.rel (0) target = $region13
  $region12: #{forward.17} parent=0 // pred_region
    _
  $region13: #{forward.17} parent=0 // pred_fallthru
    _
  // Predicated region
  $region14: #{forward.17} parent=0 // pred_check
    _
  $region15: #{forward.17} parent=0 // pred_check_branch
    %18 = sbr.rel (0) target = $region17
  $region16: #{forward.17} parent=0 // pred_region
    _
  $region17: #{forward.17} parent=0 // pred_fallthru
    _
  // Predicated region
  $region18: #{forward.17} parent=0 // pred_check
    _
  $region19: #{forward.17} parent=0 // pred_check_branch
    %20 = sbr.rel (0) target = $region21
  $region20: #{forward.17} parent=0 // pred_region
    _
  $region21: #{forward.17} parent=0 // pred_fallthru
    _
  // Predicated region
  $region22: #{forward.17} parent=0 // pred_check
    _
  $region23: #{forward.17} parent=0 // pred_check_branch
    %22 = sbr.rel (0) target = $region25
  $region24: #{forward.17} parent=0 // pred_region
    _
  $region25: #{forward.17} parent=0 // pred_fallthru
    _
  %p24 = scmp.eq.s32.totalorder 0, 0
  // Predicated region
  $region26: #{forward.17} parent=0 // pred_check
    %p25 = pneg %p24
  $region27: #{forward.17} parent=0 // pred_check_branch
    %27 = sbr.rel (%p25) target = $region29
  $region28: #{forward.17} parent=0 // pred_region
    %28 = vst [vmem:[#allocation2] sm:$0xff] 0.0
    %29 = vst [vmem:[#allocation2 + $0x8] sm:$0xff] 0.0
    %30 = vst [vmem:[#allocation2 + $0x10] sm:$0xff] 0.0
    %31 = vst [vmem:[#allocation2 + $0x18] sm:$0xff] 0.0
    %32 = vst [vmem:[#allocation2 + $0x20] sm:$0xff] 0.0
    %33 = vst [vmem:[#allocation2 + $0x28] sm:$0xff] 0.0
    %34 = vst [vmem:[#allocation2 + $0x30] sm:$0xff] 0.0
    %35 = vst [vmem:[#allocation2 + $0x38] sm:$0xff] 0.0
    %36 = vst [vmem:[#allocation2 + $0x40] sm:$0xff] 0.0
    %37 = vst [vmem:[#allocation2 + $0x48] sm:$0xff] 0.0
    %38 = vst [vmem:[#allocation2 + $0x50] sm:$0xff] 0.0
    %39 = vst [vmem:[#allocation2 + $0x58] sm:$0xff] 0.0
    %40 = vst [vmem:[#allocation2 + $0x60] sm:$0xff] 0.0
    %41 = vst [vmem:[#allocation2 + $0x68] sm:$0xff] 0.0
    %42 = vst [vmem:[#allocation2 + $0x70] sm:$0xff] 0.0
    %43 = vst [vmem:[#allocation2 + $0x78] sm:$0xff] 0.0
    %44 = vst [vmem:[#allocation2 + $0x80] sm:$0xff] 0.0
    %45 = vst [vmem:[#allocation2 + $0x88] sm:$0xff] 0.0
    %46 = vst [vmem:[#allocation2 + $0x90] sm:$0xff] 0.0
    %47 = vst [vmem:[#allocation2 + $0x98] sm:$0xff] 0.0
    %48 = vst [vmem:[#allocation2 + $0xa0] sm:$0xff] 0.0
    %49 = vst [vmem:[#allocation2 + $0xa8] sm:$0xff] 0.0
    %50 = vst [vmem:[#allocation2 + $0xb0] sm:$0xff] 0.0
    %51 = vst [vmem:[#allocation2 + $0xb8] sm:$0xff] 0.0
    %52 = vst [vmem:[#allocation2 + $0xc0] sm:$0xff] 0.0
    %53 = vst [vmem:[#allocation2 + $0xc8] sm:$0xff] 0.0
    %54 = vst [vmem:[#allocation2 + $0xd0] sm:$0xff] 0.0
    %55 = vst [vmem:[#allocation2 + $0xd8] sm:$0xff] 0.0
    %56 = vst [vmem:[#allocation2 + $0xe0] sm:$0xff] 0.0
    %57 = vst [vmem:[#allocation2 + $0xe8] sm:$0xff] 0.0
    %58 = vst [vmem:[#allocation2 + $0xf0] sm:$0xff] 0.0
    %59 = vst [vmem:[#allocation2 + $0xf8] sm:$0xff] 0.0
  $region29: #{forward.17} parent=0 // pred_fallthru
    _
  %v60 = vld [vmem:[#allocation2] sm:$0xff]
  %v61 = vld [vmem:[#allocation2 + $0x8] sm:$0xff]
  %v62 = vld [vmem:[#allocation2 + $0x10] sm:$0xff]
  %v63 = vld [vmem:[#allocation2 + $0x18] sm:$0xff]
  %v64 = vld [vmem:[#allocation2 + $0x20] sm:$0xff]
  %v65 = vld [vmem:[#allocation2 + $0x28] sm:$0xff]
  %v66 = vld [vmem:[#allocation2 + $0x30] sm:$0xff]
  %v67 = vld [vmem:[#allocation2 + $0x38] sm:$0xff]
  %v68 = vld [vmem:[#allocation2 + $0x40] sm:$0xff]
  %v69 = vld [vmem:[#allocation2 + $0x48] sm:$0xff]
  %v70 = vld [vmem:[#allocation2 + $0x50] sm:$0xff]
  %v71 = vld [vmem:[#allocation2 + $0x58] sm:$0xff]
  %v72 = vld [vmem:[#allocation2 + $0x60] sm:$0xff]
  %v73 = vld [vmem:[#allocation2 + $0x68] sm:$0xff]
  %v74 = vld [vmem:[#allocation2 + $0x70] sm:$0xff]
  %v75 = vld [vmem:[#allocation2 + $0x78] sm:$0xff]
  %v76 = vld [vmem:[#allocation2 + $0x80] sm:$0xff]
  %v77 = vld [vmem:[#allocation2 + $0x88] sm:$0xff]
  %v78 = vld [vmem:[#allocation2 + $0x90] sm:$0xff]
  %v79 = vld [vmem:[#allocation2 + $0x98] sm:$0xff]
  %v80 = vld [vmem:[#allocation2 + $0xa0] sm:$0xff]
  %v81 = vld [vmem:[#allocation2 + $0xa8] sm:$0xff]
  %v82 = vld [vmem:[#allocation2 + $0xb0] sm:$0xff]
  %v83 = vld [vmem:[#allocation2 + $0xb8] sm:$0xff]
  %v84 = vld [vmem:[#allocation2 + $0xc0] sm:$0xff]
  %v85 = vld [vmem:[#allocation2 + $0xc8] sm:$0xff]
  %v86 = vld [vmem:[#allocation2 + $0xd0] sm:$0xff]
  %v87 = vld [vmem:[#allocation2 + $0xd8] sm:$0xff]
  %v88 = vld [vmem:[#allocation2 + $0xe0] sm:$0xff]
  %v89 = vld [vmem:[#allocation2 + $0xe8] sm:$0xff]
  %v90 = vld [vmem:[#allocation2 + $0xf0] sm:$0xff]
  %v91 = vld [vmem:[#allocation2 + $0xf8] sm:$0xff]
  %v92 = vld [vmem:[%s0] sm:$0xff]
  %v93 = vld [vmem:[%s0 + $0x8] sm:$0xff]
  %v94 = vld [vmem:[%s0 + $0x10] sm:$0xff]
  %v95 = vld [vmem:[%s0 + $0x18] sm:$0xff]
  %v96 = vld [vmem:[%s0 + $0x20] sm:$0xff]
  %v97 = vld [vmem:[%s0 + $0x28] sm:$0xff]
  %v98 = vld [vmem:[%s0 + $0x30] sm:$0xff]
  %v99 = vld [vmem:[%s0 + $0x38] sm:$0xff]
  %v100 = vld [vmem:[%s0 + $0x40] sm:$0xff]
  %v101 = vld [vmem:[%s0 + $0x48] sm:$0xff]
  %v102 = vld [vmem:[%s0 + $0x50] sm:$0xff]
  %v103 = vld [vmem:[%s0 + $0x58] sm:$0xff]
  %v104 = vld [vmem:[%s0 + $0x60] sm:$0xff]
  %v105 = vld [vmem:[%s0 + $0x68] sm:$0xff]
  %v106 = vld [vmem:[%s0 + $0x70] sm:$0xff]
  %v107 = vld [vmem:[%s0 + $0x78] sm:$0xff]
  %v108 = vld [vmem:[%s0 + $0x80] sm:$0xff]
  %v109 = vld [vmem:[%s0 + $0x88] sm:$0xff]
  %v110 = vld [vmem:[%s0 + $0x90] sm:$0xff]
  %v111 = vld [vmem:[%s0 + $0x98] sm:$0xff]
  %v112 = vld [vmem:[%s0 + $0xa0] sm:$0xff]
  %v113 = vld [vmem:[%s0 + $0xa8] sm:$0xff]
  %v114 = vld [vmem:[%s0 + $0xb0] sm:$0xff]
  %v115 = vld [vmem:[%s0 + $0xb8] sm:$0xff]
  %v116 = vld [vmem:[%s0 + $0xc0] sm:$0xff]
  %v117 = vld [vmem:[%s0 + $0xc8] sm:$0xff]
  %v118 = vld [vmem:[%s0 + $0xd0] sm:$0xff]
  %v119 = vld [vmem:[%s0 + $0xd8] sm:$0xff]
  %v120 = vld [vmem:[%s0 + $0xe0] sm:$0xff]
  %v121 = vld [vmem:[%s0 + $0xe8] sm:$0xff]
  %v122 = vld [vmem:[%s0 + $0xf0] sm:$0xff]
  %v123 = vld [vmem:[%s0 + $0xf8] sm:$0xff]
  %v124 = vld [vmem:[%s0 + $0x100] sm:$0xff]
  %v125 = vld [vmem:[%s0 + $0x108] sm:$0xff]
  %v126 = vld [vmem:[%s0 + $0x110] sm:$0xff]
  %v127 = vld [vmem:[%s0 + $0x118] sm:$0xff]
  %v128 = vld [vmem:[%s0 + $0x120] sm:$0xff]
  %v129 = vld [vmem:[%s0 + $0x128] sm:$0xff]
  %v130 = vld [vmem:[%s0 + $0x130] sm:$0xff]
  %v131 = vld [vmem:[%s0 + $0x138] sm:$0xff]
  %v132 = vld [vmem:[%s0 + $0x140] sm:$0xff]
  %v133 = vld [vmem:[%s0 + $0x148] sm:$0xff]
  %v134 = vld [vmem:[%s0 + $0x150] sm:$0xff]
  %v135 = vld [vmem:[%s0 + $0x158] sm:$0xff]
  %v136 = vld [vmem:[%s0 + $0x160] sm:$0xff]
  %v137 = vld [vmem:[%s0 + $0x168] sm:$0xff]
  %v138 = vld [vmem:[%s0 + $0x170] sm:$0xff]
  %v139 = vld [vmem:[%s0 + $0x178] sm:$0xff]
  %v140 = vld [vmem:[%s0 + $0x180] sm:$0xff]
  %v141 = vld [vmem:[%s0 + $0x188] sm:$0xff]
  %v142 = vld [vmem:[%s0 + $0x190] sm:$0xff]
  %v143 = vld [vmem:[%s0 + $0x198] sm:$0xff]
  %v144 = vld [vmem:[%s0 + $0x1a0] sm:$0xff]
  %v145 = vld [vmem:[%s0 + $0x1a8] sm:$0xff]
  %v146 = vld [vmem:[%s0 + $0x1b0] sm:$0xff]
  %v147 = vld [vmem:[%s0 + $0x1b8] sm:$0xff]
  %v148 = vld [vmem:[%s0 + $0x1c0] sm:$0xff]
  %v149 = vld [vmem:[%s0 + $0x1c8] sm:$0xff]
  %v150 = vld [vmem:[%s0 + $0x1d0] sm:$0xff]
  %v151 = vld [vmem:[%s0 + $0x1d8] sm:$0xff]
  %v152 = vld [vmem:[%s0 + $0x1e0] sm:$0xff]
  %v153 = vld [vmem:[%s0 + $0x1e8] sm:$0xff]
  %v154 = vld [vmem:[%s0 + $0x1f0] sm:$0xff]
  %v155 = vld [vmem:[%s0 + $0x1f8] sm:$0xff]
  %v156 = vld [vmem:[%s1] sm:$0xf]
  %v157 = vld [vmem:[%s1 + $0x4] sm:$0xf]
  %v158 = vld [vmem:[%s1 + $0x8] sm:$0xf]
  %v159 = vld [vmem:[%s1 + $0xc] sm:$0xf]
  %v160 = vld [vmem:[%s1 + $0x10] sm:$0xf]
  %v161 = vld [vmem:[%s1 + $0x14] sm:$0xf]
  %v162 = vld [vmem:[%s1 + $0x18] sm:$0xf]
  %v163 = vld [vmem:[%s1 + $0x1c] sm:$0xf]
  %v164 = vld [vmem:[%s1 + $0x20] sm:$0xf]
  %v165 = vld [vmem:[%s1 + $0x24] sm:$0xf]
  %v166 = vld [vmem:[%s1 + $0x28] sm:$0xf]
  %v167 = vld [vmem:[%s1 + $0x2c] sm:$0xf]
  %v168 = vld [vmem:[%s1 + $0x30] sm:$0xf]
  %v169 = vld [vmem:[%s1 + $0x34] sm:$0xf]
  %v170 = vld [vmem:[%s1 + $0x38] sm:$0xf]
  %v171 = vld [vmem:[%s1 + $0x3c] sm:$0xf]
  %v172 = vld [vmem:[%s1 + $0x40] sm:$0xf]
  %v173 = vld [vmem:[%s1 + $0x44] sm:$0xf]
  %v174 = vld [vmem:[%s1 + $0x48] sm:$0xf]
  %v175 = vld [vmem:[%s1 + $0x4c] sm:$0xf]
  %v176 = vld [vmem:[%s1 + $0x50] sm:$0xf]
  %v177 = vld [vmem:[%s1 + $0x54] sm:$0xf]
  %v178 = vld [vmem:[%s1 + $0x58] sm:$0xf]
  %v179 = vld [vmem:[%s1 + $0x5c] sm:$0xf]
  %v180 = vld [vmem:[%s1 + $0x60] sm:$0xf]
  %v181 = vld [vmem:[%s1 + $0x64] sm:$0xf]
  %v182 = vld [vmem:[%s1 + $0x68] sm:$0xf]
  %v183 = vld [vmem:[%s1 + $0x6c] sm:$0xf]
  %v184 = vld [vmem:[%s1 + $0x70] sm:$0xf]
  %v185 = vld [vmem:[%s1 + $0x74] sm:$0xf]
  %v186 = vld [vmem:[%s1 + $0x78] sm:$0xf]
  %v187 = vld [vmem:[%s1 + $0x7c] sm:$0xf]
  %v188 = vld [vmem:[%s1 + $0x80] sm:$0xf]
  %v189 = vld [vmem:[%s1 + $0x84] sm:$0xf]
  %v190 = vld [vmem:[%s1 + $0x88] sm:$0xf]
  %v191 = vld [vmem:[%s1 + $0x8c] sm:$0xf]
  %v192 = vld [vmem:[%s1 + $0x90] sm:$0xf]
  %v193 = vld [vmem:[%s1 + $0x94] sm:$0xf]
  %v194 = vld [vmem:[%s1 + $0x98] sm:$0xf]
  %v195 = vld [vmem:[%s1 + $0x9c] sm:$0xf]
  %v196 = vld [vmem:[%s1 + $0xa0] sm:$0xf]
  %v197 = vld [vmem:[%s1 + $0xa4] sm:$0xf]
  %v198 = vld [vmem:[%s1 + $0xa8] sm:$0xf]
  %v199 = vld [vmem:[%s1 + $0xac] sm:$0xf]
  %v200 = vld [vmem:[%s1 + $0xb0] sm:$0xf]
  %v201 = vld [vmem:[%s1 + $0xb4] sm:$0xf]
  %v202 = vld [vmem:[%s1 + $0xb8] sm:$0xf]
  %v203 = vld [vmem:[%s1 + $0xbc] sm:$0xf]
  %v204 = vld [vmem:[%s1 + $0xc0] sm:$0xf]
  %v205 = vld [vmem:[%s1 + $0xc4] sm:$0xf]
  %v206 = vld [vmem:[%s1 + $0xc8] sm:$0xf]
  %v207 = vld [vmem:[%s1 + $0xcc] sm:$0xf]
  %v208 = vld [vmem:[%s1 + $0xd0] sm:$0xf]
  %v209 = vld [vmem:[%s1 + $0xd4] sm:$0xf]
  %v210 = vld [vmem:[%s1 + $0xd8] sm:$0xf]
  %v211 = vld [vmem:[%s1 + $0xdc] sm:$0xf]
  %v212 = vld [vmem:[%s1 + $0xe0] sm:$0xf]
  %v213 = vld [vmem:[%s1 + $0xe4] sm:$0xf]
  %v214 = vld [vmem:[%s1 + $0xe8] sm:$0xf]
  %v215 = vld [vmem:[%s1 + $0xec] sm:$0xf]
  %v216 = vld [vmem:[%s1 + $0xf0] sm:$0xf]
  %v217 = vld [vmem:[%s1 + $0xf4] sm:$0xf]
  %v218 = vld [vmem:[%s1 + $0xf8] sm:$0xf]
  %v219 = vld [vmem:[%s1 + $0xfc] sm:$0xf]
  %v284 = vunpack.c.l.b16 %v92
  %v285 = vunpack.c.h.b16 %v92
  %v286 = vunpack.c.l.b16 %v93
  %v287 = vunpack.c.h.b16 %v93
  %v288 = vunpack.c.l.b16 %v94
  %v289 = vunpack.c.h.b16 %v94
  %v290 = vunpack.c.l.b16 %v95
  %v291 = vunpack.c.h.b16 %v95
  %v292 = vunpack.c.l.b16 %v96
  %v293 = vunpack.c.h.b16 %v96
  %v294 = vunpack.c.l.b16 %v97
  %v295 = vunpack.c.h.b16 %v97
  %v296 = vunpack.c.l.b16 %v98
  %v297 = vunpack.c.h.b16 %v98
  %v298 = vunpack.c.l.b16 %v99
  %v299 = vunpack.c.h.b16 %v99
  %v300 = vunpack.c.l.b16 %v100
  %v301 = vunpack.c.h.b16 %v100
  %v302 = vunpack.c.l.b16 %v101
  %v303 = vunpack.c.h.b16 %v101
  %v304 = vunpack.c.l.b16 %v102
  %v305 = vunpack.c.h.b16 %v102
  %v306 = vunpack.c.l.b16 %v103
  %v307 = vunpack.c.h.b16 %v103
  %v308 = vunpack.c.l.b16 %v104
  %v309 = vunpack.c.h.b16 %v104
  %v310 = vunpack.c.l.b16 %v105
  %v311 = vunpack.c.h.b16 %v105
  %v312 = vunpack.c.l.b16 %v106
  %v313 = vunpack.c.h.b16 %v106
  %v314 = vunpack.c.l.b16 %v107
  %v315 = vunpack.c.h.b16 %v107
  %v316 = vunpack.c.l.b16 %v108
  %v317 = vunpack.c.h.b16 %v108
  %v318 = vunpack.c.l.b16 %v109
  %v319 = vunpack.c.h.b16 %v109
  %v320 = vunpack.c.l.b16 %v110
  %v321 = vunpack.c.h.b16 %v110
  %v322 = vunpack.c.l.b16 %v111
  %v323 = vunpack.c.h.b16 %v111
  %v324 = vunpack.c.l.b16 %v112
  %v325 = vunpack.c.h.b16 %v112
  %v326 = vunpack.c.l.b16 %v113
  %v327 = vunpack.c.h.b16 %v113
  %v328 = vunpack.c.l.b16 %v114
  %v329 = vunpack.c.h.b16 %v114
  %v330 = vunpack.c.l.b16 %v115
  %v331 = vunpack.c.h.b16 %v115
  %v332 = vunpack.c.l.b16 %v116
  %v333 = vunpack.c.h.b16 %v116
  %v334 = vunpack.c.l.b16 %v117
  %v335 = vunpack.c.h.b16 %v117
  %v336 = vunpack.c.l.b16 %v118
  %v337 = vunpack.c.h.b16 %v118
  %v338 = vunpack.c.l.b16 %v119
  %v339 = vunpack.c.h.b16 %v119
  %v340 = vunpack.c.l.b16 %v120
  %v341 = vunpack.c.h.b16 %v120
  %v342 = vunpack.c.l.b16 %v121
  %v343 = vunpack.c.h.b16 %v121
  %v344 = vunpack.c.l.b16 %v122
  %v345 = vunpack.c.h.b16 %v122
  %v346 = vunpack.c.l.b16 %v123
  %v347 = vunpack.c.h.b16 %v123
  %v348 = vunpack.c.l.b16 %v124
  %v349 = vunpack.c.h.b16 %v124
  %v350 = vunpack.c.l.b16 %v125
  %v351 = vunpack.c.h.b16 %v125
  %v352 = vunpack.c.l.b16 %v126
  %v353 = vunpack.c.h.b16 %v126
  %v354 = vunpack.c.l.b16 %v127
  %v355 = vunpack.c.h.b16 %v127
  %v356 = vunpack.c.l.b16 %v128
  %v357 = vunpack.c.h.b16 %v128
  %v358 = vunpack.c.l.b16 %v129
  %v359 = vunpack.c.h.b16 %v129
  %v360 = vunpack.c.l.b16 %v130
  %v361 = vunpack.c.h.b16 %v130
  %v362 = vunpack.c.l.b16 %v131
  %v363 = vunpack.c.h.b16 %v131
  %v364 = vunpack.c.l.b16 %v132
  %v365 = vunpack.c.h.b16 %v132
  %v366 = vunpack.c.l.b16 %v133
  %v367 = vunpack.c.h.b16 %v133
  %v368 = vunpack.c.l.b16 %v134
  %v369 = vunpack.c.h.b16 %v134
  %v370 = vunpack.c.l.b16 %v135
  %v371 = vunpack.c.h.b16 %v135
  %v372 = vunpack.c.l.b16 %v136
  %v373 = vunpack.c.h.b16 %v136
  %v374 = vunpack.c.l.b16 %v137
  %v375 = vunpack.c.h.b16 %v137
  %v376 = vunpack.c.l.b16 %v138
  %v377 = vunpack.c.h.b16 %v138
  %v378 = vunpack.c.l.b16 %v139
  %v379 = vunpack.c.h.b16 %v139
  %v380 = vunpack.c.l.b16 %v140
  %v381 = vunpack.c.h.b16 %v140
  %v382 = vunpack.c.l.b16 %v141
  %v383 = vunpack.c.h.b16 %v141
  %v384 = vunpack.c.l.b16 %v142
  %v385 = vunpack.c.h.b16 %v142
  %v386 = vunpack.c.l.b16 %v143
  %v387 = vunpack.c.h.b16 %v143
  %v388 = vunpack.c.l.b16 %v144
  %v389 = vunpack.c.h.b16 %v144
  %v390 = vunpack.c.l.b16 %v145
  %v391 = vunpack.c.h.b16 %v145
  %v392 = vunpack.c.l.b16 %v146
  %v393 = vunpack.c.h.b16 %v146
  %v394 = vunpack.c.l.b16 %v147
  %v395 = vunpack.c.h.b16 %v147
  %v396 = vunpack.c.l.b16 %v148
  %v397 = vunpack.c.h.b16 %v148
  %v398 = vunpack.c.l.b16 %v149
  %v399 = vunpack.c.h.b16 %v149
  %v400 = vunpack.c.l.b16 %v150
  %v401 = vunpack.c.h.b16 %v150
  %v402 = vunpack.c.l.b16 %v151
  %v403 = vunpack.c.h.b16 %v151
  %v404 = vunpack.c.l.b16 %v152
  %v405 = vunpack.c.h.b16 %v152
  %v406 = vunpack.c.l.b16 %v153
  %v407 = vunpack.c.h.b16 %v153
  %v408 = vunpack.c.l.b16 %v154
  %v409 = vunpack.c.h.b16 %v154
  %v410 = vunpack.c.l.b16 %v155
  %v411 = vunpack.c.h.b16 %v155
  %v412 = vpack.c.b16 %v288, %v284
  %v413 = vpack.c.b16 %v289, %v285
  %v414 = vpack.c.b16 %v290, %v286
  %v415 = vpack.c.b16 %v291, %v287
  %v416 = vpack.c.b16 %v296, %v292
  %v417 = vpack.c.b16 %v297, %v293
  %v418 = vpack.c.b16 %v298, %v294
  %v419 = vpack.c.b16 %v299, %v295
  %v420 = vpack.c.b16 %v304, %v300
  %v421 = vpack.c.b16 %v305, %v301
  %v422 = vpack.c.b16 %v306, %v302
  %v423 = vpack.c.b16 %v307, %v303
  %v424 = vpack.c.b16 %v312, %v308
  %v425 = vpack.c.b16 %v313, %v309
  %v426 = vpack.c.b16 %v314, %v310
  %v427 = vpack.c.b16 %v315, %v311
  %v428 = vpack.c.b16 %v320, %v316
  %v429 = vpack.c.b16 %v321, %v317
  %v430 = vpack.c.b16 %v322, %v318
  %v431 = vpack.c.b16 %v323, %v319
  %v432 = vpack.c.b16 %v328, %v324
  %v433 = vpack.c.b16 %v329, %v325
  %v434 = vpack.c.b16 %v330, %v326
  %v435 = vpack.c.b16 %v331, %v327
  %v436 = vpack.c.b16 %v336, %v332
  %v437 = vpack.c.b16 %v337, %v333
  %v438 = vpack.c.b16 %v338, %v334
  %v439 = vpack.c.b16 %v339, %v335
  %v440 = vpack.c.b16 %v344, %v340
  %v441 = vpack.c.b16 %v345, %v341
  %v442 = vpack.c.b16 %v346, %v342
  %v443 = vpack.c.b16 %v347, %v343
  %v444 = vpack.c.b16 %v352, %v348
  %v445 = vpack.c.b16 %v353, %v349
  %v446 = vpack.c.b16 %v354, %v350
  %v447 = vpack.c.b16 %v355, %v351
  %v448 = vpack.c.b16 %v360, %v356
  %v449 = vpack.c.b16 %v361, %v357
  %v450 = vpack.c.b16 %v362, %v358
  %v451 = vpack.c.b16 %v363, %v359
  %v452 = vpack.c.b16 %v368, %v364
  %v453 = vpack.c.b16 %v369, %v365
  %v454 = vpack.c.b16 %v370, %v366
  %v455 = vpack.c.b16 %v371, %v367
  %v456 = vpack.c.b16 %v376, %v372
  %v457 = vpack.c.b16 %v377, %v373
  %v458 = vpack.c.b16 %v378, %v374
  %v459 = vpack.c.b16 %v379, %v375
  %v460 = vpack.c.b16 %v384, %v380
  %v461 = vpack.c.b16 %v385, %v381
  %v462 = vpack.c.b16 %v386, %v382
  %v463 = vpack.c.b16 %v387, %v383
  %v464 = vpack.c.b16 %v392, %v388
  %v465 = vpack.c.b16 %v393, %v389
  %v466 = vpack.c.b16 %v394, %v390
  %v467 = vpack.c.b16 %v395, %v391
  %v468 = vpack.c.b16 %v400, %v396
  %v469 = vpack.c.b16 %v401, %v397
  %v470 = vpack.c.b16 %v402, %v398
  %v471 = vpack.c.b16 %v403, %v399
  %v472 = vpack.c.b16 %v408, %v404
  %v473 = vpack.c.b16 %v409, %v405
  %v474 = vpack.c.b16 %v410, %v406
  %v475 = vpack.c.b16 %v411, %v407
  %v604 = vunpack.c.l.b16 %v156
  %v605 = vunpack.c.l.b16 %v157
  %v606 = vunpack.c.l.b16 %v158
  %v607 = vunpack.c.l.b16 %v159
  %v608 = vunpack.c.l.b16 %v160
  %v609 = vunpack.c.l.b16 %v161
  %v610 = vunpack.c.l.b16 %v162
  %v611 = vunpack.c.l.b16 %v163
  %v612 = vunpack.c.l.b16 %v164
  %v613 = vunpack.c.l.b16 %v165
  %v614 = vunpack.c.l.b16 %v166
  %v615 = vunpack.c.l.b16 %v167
  %v616 = vunpack.c.l.b16 %v168
  %v617 = vunpack.c.l.b16 %v169
  %v618 = vunpack.c.l.b16 %v170
  %v619 = vunpack.c.l.b16 %v171
  %v620 = vunpack.c.l.b16 %v172
  %v621 = vunpack.c.l.b16 %v173
  %v622 = vunpack.c.l.b16 %v174
  %v623 = vunpack.c.l.b16 %v175
  %v624 = vunpack.c.l.b16 %v176
  %v625 = vunpack.c.l.b16 %v177
  %v626 = vunpack.c.l.b16 %v178
  %v627 = vunpack.c.l.b16 %v179
  %v628 = vunpack.c.l.b16 %v180
  %v629 = vunpack.c.l.b16 %v181
  %v630 = vunpack.c.l.b16 %v182
  %v631 = vunpack.c.l.b16 %v183
  %v632 = vunpack.c.l.b16 %v184
  %v633 = vunpack.c.l.b16 %v185
  %v634 = vunpack.c.l.b16 %v186
  %v635 = vunpack.c.l.b16 %v187
  %v636 = vunpack.c.l.b16 %v188
  %v637 = vunpack.c.l.b16 %v189
  %v638 = vunpack.c.l.b16 %v190
  %v639 = vunpack.c.l.b16 %v191
  %v640 = vunpack.c.l.b16 %v192
  %v641 = vunpack.c.l.b16 %v193
  %v642 = vunpack.c.l.b16 %v194
  %v643 = vunpack.c.l.b16 %v195
  %v644 = vunpack.c.l.b16 %v196
  %v645 = vunpack.c.l.b16 %v197
  %v646 = vunpack.c.l.b16 %v198
  %v647 = vunpack.c.l.b16 %v199
  %v648 = vunpack.c.l.b16 %v200
  %v649 = vunpack.c.l.b16 %v201
  %v650 = vunpack.c.l.b16 %v202
  %v651 = vunpack.c.l.b16 %v203
  %v652 = vunpack.c.l.b16 %v204
  %v653 = vunpack.c.l.b16 %v205
  %v654 = vunpack.c.l.b16 %v206
  %v655 = vunpack.c.l.b16 %v207
  %v656 = vunpack.c.l.b16 %v208
  %v657 = vunpack.c.l.b16 %v209
  %v658 = vunpack.c.l.b16 %v210
  %v659 = vunpack.c.l.b16 %v211
  %v660 = vunpack.c.l.b16 %v212
  %v661 = vunpack.c.l.b16 %v213
  %v662 = vunpack.c.l.b16 %v214
  %v663 = vunpack.c.l.b16 %v215
  %v664 = vunpack.c.l.b16 %v216
  %v665 = vunpack.c.l.b16 %v217
  %v666 = vunpack.c.l.b16 %v218
  %v667 = vunpack.c.l.b16 %v219
  %v668 = vpack.c.b16 %v605, %v604
  %v669 = vpack.c.b16 %v607, %v606
  %v670 = vpack.c.b16 %v609, %v608
  %v671 = vpack.c.b16 %v611, %v610
  %v672 = vpack.c.b16 %v613, %v612
  %v673 = vpack.c.b16 %v615, %v614
  %v674 = vpack.c.b16 %v617, %v616
  %v675 = vpack.c.b16 %v619, %v618
  %v676 = vpack.c.b16 %v621, %v620
  %v677 = vpack.c.b16 %v623, %v622
  %v678 = vpack.c.b16 %v625, %v624
  %v679 = vpack.c.b16 %v627, %v626
  %v680 = vpack.c.b16 %v629, %v628
  %v681 = vpack.c.b16 %v631, %v630
  %v682 = vpack.c.b16 %v633, %v632
  %v683 = vpack.c.b16 %v635, %v634
  %v684 = vpack.c.b16 %v637, %v636
  %v685 = vpack.c.b16 %v639, %v638
  %v686 = vpack.c.b16 %v641, %v640
  %v687 = vpack.c.b16 %v643, %v642
  %v688 = vpack.c.b16 %v645, %v644
  %v689 = vpack.c.b16 %v647, %v646
  %v690 = vpack.c.b16 %v649, %v648
  %v691 = vpack.c.b16 %v651, %v650
  %v692 = vpack.c.b16 %v653, %v652
  %v693 = vpack.c.b16 %v655, %v654
  %v694 = vpack.c.b16 %v657, %v656
  %v695 = vpack.c.b16 %v659, %v658
  %v696 = vpack.c.b16 %v661, %v660
  %v697 = vpack.c.b16 %v663, %v662
  %v698 = vpack.c.b16 %v665, %v664
  %v699 = vpack.c.b16 %v667, %v666
  %732 = vmatprep.subr.bf16.mxu0 0
  %733 = vmatpush1.bf16.msra.mxu0 %v668
  %734 = vmatprep.subr.bf16.mxu0 0
  %735 = vmatpush1.bf16.msra.mxu0 %v669
  %736 = vmatprep.subr.bf16.mxu0 0
  %737 = vmatpush1.bf16.msra.mxu0 %v670
  %738 = vmatprep.subr.bf16.mxu0 0
  %739 = vmatpush1.bf16.msra.mxu0 %v671
  %740 = vmatprep.subr.bf16.mxu0 0
  %741 = vmatpush1.bf16.msra.mxu0 %v672
  %742 = vmatprep.subr.bf16.mxu0 0
  %743 = vmatpush1.bf16.msra.mxu0 %v673
  %744 = vmatprep.subr.bf16.mxu0 0
  %745 = vmatpush1.bf16.msra.mxu0 %v674
  %746 = vmatprep.subr.bf16.mxu0 0
  %747 = vmatpush1.bf16.msra.mxu0 %v675
  %748 = vmatprep.subr.bf16.mxu0 0
  %749 = vmatpush1.bf16.msra.mxu0 %v676
  %750 = vmatprep.subr.bf16.mxu0 0
  %751 = vmatpush1.bf16.msra.mxu0 %v677
  %752 = vmatprep.subr.bf16.mxu0 0
  %753 = vmatpush1.bf16.msra.mxu0 %v678
  %754 = vmatprep.subr.bf16.mxu0 0
  %755 = vmatpush1.bf16.msra.mxu0 %v679
  %756 = vmatprep.subr.bf16.mxu0 0
  %757 = vmatpush1.bf16.msra.mxu0 %v680
  %758 = vmatprep.subr.bf16.mxu0 0
  %759 = vmatpush1.bf16.msra.mxu0 %v681
  %760 = vmatprep.subr.bf16.mxu0 0
  %761 = vmatpush1.bf16.msra.mxu0 %v682
  %762 = vmatprep.subr.bf16.mxu0 0
  %763 = vmatpush1.bf16.msra.mxu0 %v683
  %764 = vmatprep.mubr.bf16.mxu0 %v413
  %765 = vmatmul.mubr.bf16.gmra.mrb[0].mxu0 %v412
  %v766 = vpop.f32.mrb[0].mxu0
  %v767 = vadd.f32 0.0, %v766
  %v768 = vpop.f32.mrb[0].mxu0
  %v769 = vpop.f32.mrb[0].mxu0
  %v770 = vadd.f32 0.0, %v769
  %v771 = vpop.f32.mrb[0].mxu0
  %772 = vmatprep.mubr.bf16.mxu0 %v417
  %773 = vmatmul.mubr.bf16.gmra.mrb[0].mxu0 %v416
  %v774 = vpop.f32.mrb[0].mxu0
  %v775 = vadd.f32 0.0, %v774
  %v776 = vpop.f32.mrb[0].mxu0
  %v777 = vpop.f32.mrb[0].mxu0
  %v778 = vadd.f32 0.0, %v777
  %v779 = vpop.f32.mrb[0].mxu0
  %780 = vmatprep.mubr.bf16.mxu0 %v421
  %781 = vmatmul.mubr.bf16.gmra.mrb[0].mxu0 %v420
  %v782 = vpop.f32.mrb[0].mxu0
  %v783 = vadd.f32 0.0, %v782
  %v784 = vpop.f32.mrb[0].mxu0
  %v785 = vpop.f32.mrb[0].mxu0
  %v786 = vadd.f32 0.0, %v785
  %v787 = vpop.f32.mrb[0].mxu0
  %788 = vmatprep.mubr.bf16.mxu0 %v425
  %789 = vmatmul.mubr.bf16.gmra.mrb[0].mxu0 %v424
  %v790 = vpop.f32.mrb[0].mxu0
  %v791 = vadd.f32 0.0, %v790
  %v792 = vpop.f32.mrb[0].mxu0
  %v793 = vpop.f32.mrb[0].mxu0
  %v794 = vadd.f32 0.0, %v793
  %v795 = vpop.f32.mrb[0].mxu0
  %796 = vmatprep.mubr.bf16.mxu0 %v429
  %797 = vmatmul.mubr.bf16.gmra.mrb[0].mxu0 %v428
  %v798 = vpop.f32.mrb[0].mxu0
  %v799 = vadd.f32 0.0, %v798
  %v800 = vpop.f32.mrb[0].mxu0
  %v801 = vpop.f32.mrb[0].mxu0
  %v802 = vadd.f32 0.0, %v801
  %v803 = vpop.f32.mrb[0].mxu0
  %804 = vmatprep.mubr.bf16.mxu0 %v433
  %805 = vmatmul.mubr.bf16.gmra.mrb[0].mxu0 %v432
  %v806 = vpop.f32.mrb[0].mxu0
  %v807 = vadd.f32 0.0, %v806
  %v808 = vpop.f32.mrb[0].mxu0
  %v809 = vpop.f32.mrb[0].mxu0
  %v810 = vadd.f32 0.0, %v809
  %v811 = vpop.f32.mrb[0].mxu0
  %812 = vmatprep.mubr.bf16.mxu0 %v437
  %813 = vmatmul.mubr.bf16.gmra.mrb[0].mxu0 %v436
  %v814 = vpop.f32.mrb[0].mxu0
  %v815 = vadd.f32 0.0, %v814
  %v816 = vpop.f32.mrb[0].mxu0
  %v817 = vpop.f32.mrb[0].mxu0
  %v818 = vadd.f32 0.0, %v817
  %v819 = vpop.f32.mrb[0].mxu0
  %820 = vmatprep.mubr.bf16.mxu0 %v441
  %821 = vmatmul.mubr.bf16.gmra.mrb[0].mxu0 %v440
  %v822 = vpop.f32.mrb[0].mxu0
  %v823 = vadd.f32 0.0, %v822
  %v824 = vpop.f32.mrb[0].mxu0
  %v825 = vpop.f32.mrb[0].mxu0
  %v826 = vadd.f32 0.0, %v825
  %v827 = vpop.f32.mrb[0].mxu0
  %828 = vmatprep.mubr.bf16.mxu0 %v445
  %829 = vmatmul.mubr.bf16.gmra.mrb[0].mxu0 %v444
  %v830 = vpop.f32.mrb[0].mxu0
  %v831 = vadd.f32 0.0, %v830
  %v832 = vpop.f32.mrb[0].mxu0
  %v833 = vpop.f32.mrb[0].mxu0
  %v834 = vadd.f32 0.0, %v833
  %v835 = vpop.f32.mrb[0].mxu0
  %836 = vmatprep.mubr.bf16.mxu0 %v449
  %837 = vmatmul.mubr.bf16.gmra.mrb[0].mxu0 %v448
  %v838 = vpop.f32.mrb[0].mxu0
  %v839 = vadd.f32 0.0, %v838
  %v840 = vpop.f32.mrb[0].mxu0
  %v841 = vpop.f32.mrb[0].mxu0
  %v842 = vadd.f32 0.0, %v841
  %v843 = vpop.f32.mrb[0].mxu0
  %844 = vmatprep.mubr.bf16.mxu0 %v453
  %845 = vmatmul.mubr.bf16.gmra.mrb[0].mxu0 %v452
  %v846 = vpop.f32.mrb[0].mxu0
  %v847 = vadd.f32 0.0, %v846
  %v848 = vpop.f32.mrb[0].mxu0
  %v849 = vpop.f32.mrb[0].mxu0
  %v850 = vadd.f32 0.0, %v849
  %v851 = vpop.f32.mrb[0].mxu0
  %852 = vmatprep.mubr.bf16.mxu0 %v457
  %853 = vmatmul.mubr.bf16.gmra.mrb[0].mxu0 %v456
  %v854 = vpop.f32.mrb[0].mxu0
  %v855 = vadd.f32 0.0, %v854
  %v856 = vpop.f32.mrb[0].mxu0
  %v857 = vpop.f32.mrb[0].mxu0
  %v858 = vadd.f32 0.0, %v857
  %v859 = vpop.f32.mrb[0].mxu0
  %860 = vmatprep.mubr.bf16.mxu0 %v461
  %861 = vmatmul.mubr.bf16.gmra.mrb[0].mxu0 %v460
  %v862 = vpop.f32.mrb[0].mxu0
  %v863 = vadd.f32 0.0, %v862
  %v864 = vpop.f32.mrb[0].mxu0
  %v865 = vpop.f32.mrb[0].mxu0
  %v866 = vadd.f32 0.0, %v865
  %v867 = vpop.f32.mrb[0].mxu0
  %868 = vmatprep.mubr.bf16.mxu0 %v465
  %869 = vmatmul.mubr.bf16.gmra.mrb[0].mxu0 %v464
  %v870 = vpop.f32.mrb[0].mxu0
  %v871 = vadd.f32 0.0, %v870
  %v872 = vpop.f32.mrb[0].mxu0
  %v873 = vpop.f32.mrb[0].mxu0
  %v874 = vadd.f32 0.0, %v873
  %v875 = vpop.f32.mrb[0].mxu0
  %876 = vmatprep.mubr.bf16.mxu0 %v469
  %877 = vmatmul.mubr.bf16.gmra.mrb[0].mxu0 %v468
  %v878 = vpop.f32.mrb[0].mxu0
  %v879 = vadd.f32 0.0, %v878
  %v880 = vpop.f32.mrb[0].mxu0
  %v881 = vpop.f32.mrb[0].mxu0
  %v882 = vadd.f32 0.0, %v881
  %v883 = vpop.f32.mrb[0].mxu0
  %884 = vmatprep.mubr.bf16.mxu0 %v473
  %885 = vmatmul.mubr.bf16.gmra.mrb[0].mxu0 %v472
  %v886 = vpop.f32.mrb[0].mxu0
  %v887 = vadd.f32 0.0, %v886
  %v888 = vpop.f32.mrb[0].mxu0
  %v889 = vpop.f32.mrb[0].mxu0
  %v890 = vadd.f32 0.0, %v889
  %v891 = vpop.f32.mrb[0].mxu0
  %892 = vdwg.mxu0
  %893 = vmatprep.subr.bf16.mxu0 0
  %894 = vmatpush1.bf16.msra.mxu0 %v684
  %895 = vmatprep.subr.bf16.mxu0 0
  %896 = vmatpush1.bf16.msra.mxu0 %v685
  %897 = vmatprep.subr.bf16.mxu0 0
  %898 = vmatpush1.bf16.msra.mxu0 %v686
  %899 = vmatprep.subr.bf16.mxu0 0
  %900 = vmatpush1.bf16.msra.mxu0 %v687
  %901 = vmatprep.subr.bf16.mxu0 0
  %902 = vmatpush1.bf16.msra.mxu0 %v688
  %903 = vmatprep.subr.bf16.mxu0 0
  %904 = vmatpush1.bf16.msra.mxu0 %v689
  %905 = vmatprep.subr.bf16.mxu0 0
  %906 = vmatpush1.bf16.msra.mxu0 %v690
  %907 = vmatprep.subr.bf16.mxu0 0
  %908 = vmatpush1.bf16.msra.mxu0 %v691
  %909 = vmatprep.subr.bf16.mxu0 0
  %910 = vmatpush1.bf16.msra.mxu0 %v692
  %911 = vmatprep.subr.bf16.mxu0 0
  %912 = vmatpush1.bf16.msra.mxu0 %v693
  %913 = vmatprep.subr.bf16.mxu0 0
  %914 = vmatpush1.bf16.msra.mxu0 %v694
  %915 = vmatprep.subr.bf16.mxu0 0
  %916 = vmatpush1.bf16.msra.mxu0 %v695
  %917 = vmatprep.subr.bf16.mxu0 0
  %918 = vmatpush1.bf16.msra.mxu0 %v696
  %919 = vmatprep.subr.bf16.mxu0 0
  %920 = vmatpush1.bf16.msra.mxu0 %v697
  %921 = vmatprep.subr.bf16.mxu0 0
  %922 = vmatpush1.bf16.msra.mxu0 %v698
  %923 = vmatprep.subr.bf16.mxu0 0
  %924 = vmatpush1.bf16.msra.mxu0 %v699
  %925 = vmatprep.mubr.bf16.mxu0 %v415
  %926 = vmatmul.mubr.bf16.gmra.mrb[0].mxu0 %v414
  %v927 = vpop.f32.mrb[0].mxu0
  %v928 = vadd.f32 %v767, %v927
  %v929 = vpop.f32.mrb[0].mxu0
  %v930 = vpop.f32.mrb[0].mxu0
  %v931 = vadd.f32 %v770, %v930
  %v932 = vpop.f32.mrb[0].mxu0
  %933 = vmatprep.mubr.bf16.mxu0 %v419
  %934 = vmatmul.mubr.bf16.gmra.mrb[0].mxu0 %v418
  %v935 = vpop.f32.mrb[0].mxu0
  %v936 = vadd.f32 %v775, %v935
  %v937 = vpop.f32.mrb[0].mxu0
  %v938 = vpop.f32.mrb[0].mxu0
  %v939 = vadd.f32 %v778, %v938
  %v940 = vpop.f32.mrb[0].mxu0
  %941 = vmatprep.mubr.bf16.mxu0 %v423
  %942 = vmatmul.mubr.bf16.gmra.mrb[0].mxu0 %v422
  %v943 = vpop.f32.mrb[0].mxu0
  %v944 = vadd.f32 %v783, %v943
  %v945 = vpop.f32.mrb[0].mxu0
  %v946 = vpop.f32.mrb[0].mxu0
  %v947 = vadd.f32 %v786, %v946
  %v948 = vpop.f32.mrb[0].mxu0
  %949 = vmatprep.mubr.bf16.mxu0 %v427
  %950 = vmatmul.mubr.bf16.gmra.mrb[0].mxu0 %v426
  %v951 = vpop.f32.mrb[0].mxu0
  %v952 = vadd.f32 %v791, %v951
  %v953 = vpop.f32.mrb[0].mxu0
  %v954 = vpop.f32.mrb[0].mxu0
  %v955 = vadd.f32 %v794, %v954
  %v956 = vpop.f32.mrb[0].mxu0
  %957 = vmatprep.mubr.bf16.mxu0 %v431
  %958 = vmatmul.mubr.bf16.gmra.mrb[0].mxu0 %v430
  %v959 = vpop.f32.mrb[0].mxu0
  %v960 = vadd.f32 %v799, %v959
  %v961 = vpop.f32.mrb[0].mxu0
  %v962 = vpop.f32.mrb[0].mxu0
  %v963 = vadd.f32 %v802, %v962
  %v964 = vpop.f32.mrb[0].mxu0
  %965 = vmatprep.mubr.bf16.mxu0 %v435
  %966 = vmatmul.mubr.bf16.gmra.mrb[0].mxu0 %v434
  %v967 = vpop.f32.mrb[0].mxu0
  %v968 = vadd.f32 %v807, %v967
  %v969 = vpop.f32.mrb[0].mxu0
  %v970 = vpop.f32.mrb[0].mxu0
  %v971 = vadd.f32 %v810, %v970
  %v972 = vpop.f32.mrb[0].mxu0
  %973 = vmatprep.mubr.bf16.mxu0 %v439
  %974 = vmatmul.mubr.bf16.gmra.mrb[0].mxu0 %v438
  %v975 = vpop.f32.mrb[0].mxu0
  %v976 = vadd.f32 %v815, %v975
  %v977 = vpop.f32.mrb[0].mxu0
  %v978 = vpop.f32.mrb[0].mxu0
  %v979 = vadd.f32 %v818, %v978
  %v980 = vpop.f32.mrb[0].mxu0
  %981 = vmatprep.mubr.bf16.mxu0 %v443
  %982 = vmatmul.mubr.bf16.gmra.mrb[0].mxu0 %v442
  %v983 = vpop.f32.mrb[0].mxu0
  %v984 = vadd.f32 %v823, %v983
  %v985 = vpop.f32.mrb[0].mxu0
  %v986 = vpop.f32.mrb[0].mxu0
  %v987 = vadd.f32 %v826, %v986
  %v988 = vpop.f32.mrb[0].mxu0
  %989 = vmatprep.mubr.bf16.mxu0 %v447
  %990 = vmatmul.mubr.bf16.gmra.mrb[0].mxu0 %v446
  %v991 = vpop.f32.mrb[0].mxu0
  %v992 = vadd.f32 %v831, %v991
  %v993 = vpop.f32.mrb[0].mxu0
  %v994 = vpop.f32.mrb[0].mxu0
  %v995 = vadd.f32 %v834, %v994
  %v996 = vpop.f32.mrb[0].mxu0
  %997 = vmatprep.mubr.bf16.mxu0 %v451
  %998 = vmatmul.mubr.bf16.gmra.mrb[0].mxu0 %v450
  %v999 = vpop.f32.mrb[0].mxu0
  %v1000 = vadd.f32 %v839, %v999
  %v1001 = vpop.f32.mrb[0].mxu0
  %v1002 = vpop.f32.mrb[0].mxu0
  %v1003 = vadd.f32 %v842, %v1002
  %v1004 = vpop.f32.mrb[0].mxu0
  %1005 = vmatprep.mubr.bf16.mxu0 %v455
  %1006 = vmatmul.mubr.bf16.gmra.mrb[0].mxu0 %v454
  %v1007 = vpop.f32.mrb[0].mxu0
  %v1008 = vadd.f32 %v847, %v1007
  %v1009 = vpop.f32.mrb[0].mxu0
  %v1010 = vpop.f32.mrb[0].mxu0
  %v1011 = vadd.f32 %v850, %v1010
  %v1012 = vpop.f32.mrb[0].mxu0
  %1013 = vmatprep.mubr.bf16.mxu0 %v459
  %1014 = vmatmul.mubr.bf16.gmra.mrb[0].mxu0 %v458
  %v1015 = vpop.f32.mrb[0].mxu0
  %v1016 = vadd.f32 %v855, %v1015
  %v1017 = vpop.f32.mrb[0].mxu0
  %v1018 = vpop.f32.mrb[0].mxu0
  %v1019 = vadd.f32 %v858, %v1018
  %v1020 = vpop.f32.mrb[0].mxu0
  %1021 = vmatprep.mubr.bf16.mxu0 %v463
  %1022 = vmatmul.mubr.bf16.gmra.mrb[0].mxu0 %v462
  %v1023 = vpop.f32.mrb[0].mxu0
  %v1024 = vadd.f32 %v863, %v1023
  %v1025 = vpop.f32.mrb[0].mxu0
  %v1026 = vpop.f32.mrb[0].mxu0
  %v1027 = vadd.f32 %v866, %v1026
  %v1028 = vpop.f32.mrb[0].mxu0
  %1029 = vmatprep.mubr.bf16.mxu0 %v467
  %1030 = vmatmul.mubr.bf16.gmra.mrb[0].mxu0 %v466
  %v1031 = vpop.f32.mrb[0].mxu0
  %v1032 = vadd.f32 %v871, %v1031
  %v1033 = vpop.f32.mrb[0].mxu0
  %v1034 = vpop.f32.mrb[0].mxu0
  %v1035 = vadd.f32 %v874, %v1034
  %v1036 = vpop.f32.mrb[0].mxu0
  %1037 = vmatprep.mubr.bf16.mxu0 %v471
  %1038 = vmatmul.mubr.bf16.gmra.mrb[0].mxu0 %v470
  %v1039 = vpop.f32.mrb[0].mxu0
  %v1040 = vadd.f32 %v879, %v1039
  %v1041 = vpop.f32.mrb[0].mxu0
  %v1042 = vpop.f32.mrb[0].mxu0
  %v1043 = vadd.f32 %v882, %v1042
  %v1044 = vpop.f32.mrb[0].mxu0
  %1045 = vmatprep.mubr.bf16.mxu0 %v475
  %1046 = vmatmul.mubr.bf16.gmra.mrb[0].mxu0 %v474
  %v1047 = vpop.f32.mrb[0].mxu0
  %v1048 = vadd.f32 %v887, %v1047
  %v1049 = vpop.f32.mrb[0].mxu0
  %v1050 = vpop.f32.mrb[0].mxu0
  %v1051 = vadd.f32 %v890, %v1050
  %v1052 = vpop.f32.mrb[0].mxu0
  %1053 = vdwg.mxu0
  %v1054 = vadd.f32 %v60, %v928
  %v1055 = vadd.f32 %v61, %v931
  %v1056 = vadd.f32 %v62, %v936
  %v1057 = vadd.f32 %v63, %v939
  %v1058 = vadd.f32 %v64, %v944
  %v1059 = vadd.f32 %v65, %v947
  %v1060 = vadd.f32 %v66, %v952
  %v1061 = vadd.f32 %v67, %v955
  %v1062 = vadd.f32 %v68, %v960
  %v1063 = vadd.f32 %v69, %v963
  %v1064 = vadd.f32 %v70, %v968
  %v1065 = vadd.f32 %v71, %v971
  %v1066 = vadd.f32 %v72, %v976
  %v1067 = vadd.f32 %v73, %v979
  %v1068 = vadd.f32 %v74, %v984
  %v1069 = vadd.f32 %v75, %v987
  %v1070 = vadd.f32 %v76, %v992
  %v1071 = vadd.f32 %v77, %v995
  %v1072 = vadd.f32 %v78, %v1000
  %v1073 = vadd.f32 %v79, %v1003
  %v1074 = vadd.f32 %v80, %v1008
  %v1075 = vadd.f32 %v81, %v1011
  %v1076 = vadd.f32 %v82, %v1016
  %v1077 = vadd.f32 %v83, %v1019
  %v1078 = vadd.f32 %v84, %v1024
  %v1079 = vadd.f32 %v85, %v1027
  %v1080 = vadd.f32 %v86, %v1032
  %v1081 = vadd.f32 %v87, %v1035
  %v1082 = vadd.f32 %v88, %v1040
  %v1083 = vadd.f32 %v89, %v1043
  %v1084 = vadd.f32 %v90, %v1048
  %v1085 = vadd.f32 %v91, %v1051
  %1086 = vst [vmem:[#allocation2] sm:$0xff] %v1054
  %1087 = vst [vmem:[#allocation2 + $0x8] sm:$0xff] %v1055
  %1088 = vst [vmem:[#allocation2 + $0x10] sm:$0xff] %v1056
  %1089 = vst [vmem:[#allocation2 + $0x18] sm:$0xff] %v1057
  %1090 = vst [vmem:[#allocation2 + $0x20] sm:$0xff] %v1058
  %1091 = vst [vmem:[#allocation2 + $0x28] sm:$0xff] %v1059
  %1092 = vst [vmem:[#allocation2 + $0x30] sm:$0xff] %v1060
  %1093 = vst [vmem:[#allocation2 + $0x38] sm:$0xff] %v1061
  %1094 = vst [vmem:[#allocation2 + $0x40] sm:$0xff] %v1062
  %1095 = vst [vmem:[#allocation2 + $0x48] sm:$0xff] %v1063
  %1096 = vst [vmem:[#allocation2 + $0x50] sm:$0xff] %v1064
  %1097 = vst [vmem:[#allocation2 + $0x58] sm:$0xff] %v1065
  %1098 = vst [vmem:[#allocation2 + $0x60] sm:$0xff] %v1066
  %1099 = vst [vmem:[#allocation2 + $0x68] sm:$0xff] %v1067
  %1100 = vst [vmem:[#allocation2 + $0x70] sm:$0xff] %v1068
  %1101 = vst [vmem:[#allocation2 + $0x78] sm:$0xff] %v1069
  %1102 = vst [vmem:[#allocation2 + $0x80] sm:$0xff] %v1070
  %1103 = vst [vmem:[#allocation2 + $0x88] sm:$0xff] %v1071
  %1104 = vst [vmem:[#allocation2 + $0x90] sm:$0xff] %v1072
  %1105 = vst [vmem:[#allocation2 + $0x98] sm:$0xff] %v1073
  %1106 = vst [vmem:[#allocation2 + $0xa0] sm:$0xff] %v1074
  %1107 = vst [vmem:[#allocation2 + $0xa8] sm:$0xff] %v1075
  %1108 = vst [vmem:[#allocation2 + $0xb0] sm:$0xff] %v1076
  %1109 = vst [vmem:[#allocation2 + $0xb8] sm:$0xff] %v1077
  %1110 = vst [vmem:[#allocation2 + $0xc0] sm:$0xff] %v1078
  %1111 = vst [vmem:[#allocation2 + $0xc8] sm:$0xff] %v1079
  %1112 = vst [vmem:[#allocation2 + $0xd0] sm:$0xff] %v1080
  %1113 = vst [vmem:[#allocation2 + $0xd8] sm:$0xff] %v1081
  %1114 = vst [vmem:[#allocation2 + $0xe0] sm:$0xff] %v1082
  %1115 = vst [vmem:[#allocation2 + $0xe8] sm:$0xff] %v1083
  %1116 = vst [vmem:[#allocation2 + $0xf0] sm:$0xff] %v1084
  %1117 = vst [vmem:[#allocation2 + $0xf8] sm:$0xff] %v1085
  // Predicated region
  $region30: #{forward.17} parent=0 // pred_check
    %p1118 = pneg %p24
  $region31: #{forward.17} parent=0 // pred_check_branch
    %1120 = sbr.rel (%p1118) target = $region33
  $region32: #{forward.17} parent=0 // pred_region
    %v1121 = vld [vmem:[#allocation2] sm:$0xff]
    %v1122 = vld [vmem:[#allocation2 + $0x8] sm:$0xff]
    %v1123 = vld [vmem:[#allocation2 + $0x10] sm:$0xff]
    %v1124 = vld [vmem:[#allocation2 + $0x18] sm:$0xff]
    %v1125 = vld [vmem:[#allocation2 + $0x20] sm:$0xff]
    %v1126 = vld [vmem:[#allocation2 + $0x28] sm:$0xff]
    %v1127 = vld [vmem:[#allocation2 + $0x30] sm:$0xff]
    %v1128 = vld [vmem:[#allocation2 + $0x38] sm:$0xff]
    %v1129 = vld [vmem:[#allocation2 + $0x40] sm:$0xff]
    %v1130 = vld [vmem:[#allocation2 + $0x48] sm:$0xff]
    %v1131 = vld [vmem:[#allocation2 + $0x50] sm:$0xff]
    %v1132 = vld [vmem:[#allocation2 + $0x58] sm:$0xff]
    %v1133 = vld [vmem:[#allocation2 + $0x60] sm:$0xff]
    %v1134 = vld [vmem:[#allocation2 + $0x68] sm:$0xff]
    %v1135 = vld [vmem:[#allocation2 + $0x70] sm:$0xff]
    %v1136 = vld [vmem:[#allocation2 + $0x78] sm:$0xff]
    %v1137 = vld [vmem:[#allocation2 + $0x80] sm:$0xff]
    %v1138 = vld [vmem:[#allocation2 + $0x88] sm:$0xff]
    %v1139 = vld [vmem:[#allocation2 + $0x90] sm:$0xff]
    %v1140 = vld [vmem:[#allocation2 + $0x98] sm:$0xff]
    %v1141 = vld [vmem:[#allocation2 + $0xa0] sm:$0xff]
    %v1142 = vld [vmem:[#allocation2 + $0xa8] sm:$0xff]
    %v1143 = vld [vmem:[#allocation2 + $0xb0] sm:$0xff]
    %v1144 = vld [vmem:[#allocation2 + $0xb8] sm:$0xff]
    %v1145 = vld [vmem:[#allocation2 + $0xc0] sm:$0xff]
    %v1146 = vld [vmem:[#allocation2 + $0xc8] sm:$0xff]
    %v1147 = vld [vmem:[#allocation2 + $0xd0] sm:$0xff]
    %v1148 = vld [vmem:[#allocation2 + $0xd8] sm:$0xff]
    %v1149 = vld [vmem:[#allocation2 + $0xe0] sm:$0xff]
    %v1150 = vld [vmem:[#allocation2 + $0xe8] sm:$0xff]
    %v1151 = vld [vmem:[#allocation2 + $0xf0] sm:$0xff]
    %v1152 = vld [vmem:[#allocation2 + $0xf8] sm:$0xff]
    %v1153 = vld [vmem:[%s2] sm:$0x1]
    %v1155 = vlaneseq
    %v1156 = vshrl.u32 %v1155, 7
    %v1157 = vsub.s32 0, %v1156
    %v1158 = vrot.slane %v1153, %v1157
    %v1160 = vadd.f32 %v1121, %v1158
    %v1161 = vadd.f32 %v1122, %v1158
    %v1162 = vadd.f32 %v1123, %v1158
    %v1163 = vadd.f32 %v1124, %v1158
    %v1164 = vadd.f32 %v1125, %v1158
    %v1165 = vadd.f32 %v1126, %v1158
    %v1166 = vadd.f32 %v1127, %v1158
    %v1167 = vadd.f32 %v1128, %v1158
    %v1168 = vadd.f32 %v1129, %v1158
    %v1169 = vadd.f32 %v1130, %v1158
    %v1170 = vadd.f32 %v1131, %v1158
    %v1171 = vadd.f32 %v1132, %v1158
    %v1172 = vadd.f32 %v1133, %v1158
    %v1173 = vadd.f32 %v1134, %v1158
    %v1174 = vadd.f32 %v1135, %v1158
    %v1175 = vadd.f32 %v1136, %v1158
    %v1176 = vadd.f32 %v1137, %v1158
    %v1177 = vadd.f32 %v1138, %v1158
    %v1178 = vadd.f32 %v1139, %v1158
    %v1179 = vadd.f32 %v1140, %v1158
    %v1180 = vadd.f32 %v1141, %v1158
    %v1181 = vadd.f32 %v1142, %v1158
    %v1182 = vadd.f32 %v1143, %v1158
    %v1183 = vadd.f32 %v1144, %v1158
    %v1184 = vadd.f32 %v1145, %v1158
    %v1185 = vadd.f32 %v1146, %v1158
    %v1186 = vadd.f32 %v1147, %v1158
    %v1187 = vadd.f32 %v1148, %v1158
    %v1188 = vadd.f32 %v1149, %v1158
    %v1189 = vadd.f32 %v1150, %v1158
    %v1190 = vadd.f32 %v1151, %v1158
    %v1191 = vadd.f32 %v1152, %v1158
    %v1192 = vld [vmem:[%s3] sm:$0xf]
    %v1193 = vld [vmem:[%s3 + $0x4] sm:$0xf]
    %v1194 = vld [vmem:[%s3 + $0x8] sm:$0xf]
    %v1195 = vld [vmem:[%s3 + $0xc] sm:$0xf]
    %v1196 = vld [vmem:[%s3 + $0x10] sm:$0xf]
    %v1197 = vld [vmem:[%s3 + $0x14] sm:$0xf]
    %v1198 = vld [vmem:[%s3 + $0x18] sm:$0xf]
    %v1199 = vld [vmem:[%s3 + $0x1c] sm:$0xf]
    %v1200 = vld [vmem:[%s3 + $0x20] sm:$0xf]
    %v1201 = vld [vmem:[%s3 + $0x24] sm:$0xf]
    %v1202 = vld [vmem:[%s3 + $0x28] sm:$0xf]
    %v1203 = vld [vmem:[%s3 + $0x2c] sm:$0xf]
    %v1204 = vld [vmem:[%s3 + $0x30] sm:$0xf]
    %v1205 = vld [vmem:[%s3 + $0x34] sm:$0xf]
    %v1206 = vld [vmem:[%s3 + $0x38] sm:$0xf]
    %v1207 = vld [vmem:[%s3 + $0x3c] sm:$0xf]
    %v1208 = vld [vmem:[%s3 + $0x40] sm:$0xf]
    %v1209 = vld [vmem:[%s3 + $0x44] sm:$0xf]
    %v1210 = vld [vmem:[%s3 + $0x48] sm:$0xf]
    %v1211 = vld [vmem:[%s3 + $0x4c] sm:$0xf]
    %v1212 = vld [vmem:[%s3 + $0x50] sm:$0xf]
    %v1213 = vld [vmem:[%s3 + $0x54] sm:$0xf]
    %v1214 = vld [vmem:[%s3 + $0x58] sm:$0xf]
    %v1215 = vld [vmem:[%s3 + $0x5c] sm:$0xf]
    %v1216 = vld [vmem:[%s3 + $0x60] sm:$0xf]
    %v1217 = vld [vmem:[%s3 + $0x64] sm:$0xf]
    %v1218 = vld [vmem:[%s3 + $0x68] sm:$0xf]
    %v1219 = vld [vmem:[%s3 + $0x6c] sm:$0xf]
    %v1220 = vld [vmem:[%s3 + $0x70] sm:$0xf]
    %v1221 = vld [vmem:[%s3 + $0x74] sm:$0xf]
    %v1222 = vld [vmem:[%s3 + $0x78] sm:$0xf]
    %v1223 = vld [vmem:[%s3 + $0x7c] sm:$0xf]
    %v1224 = vunpack.c.l.bf16 %v1192
    %v1225 = vunpack.c.l.bf16 %v1193
    %v1226 = vunpack.c.l.bf16 %v1194
    %v1227 = vunpack.c.l.bf16 %v1195
    %v1228 = vunpack.c.l.bf16 %v1196
    %v1229 = vunpack.c.l.bf16 %v1197
    %v1230 = vunpack.c.l.bf16 %v1198
    %v1231 = vunpack.c.l.bf16 %v1199
    %v1232 = vunpack.c.l.bf16 %v1200
    %v1233 = vunpack.c.l.bf16 %v1201
    %v1234 = vunpack.c.l.bf16 %v1202
    %v1235 = vunpack.c.l.bf16 %v1203
    %v1236 = vunpack.c.l.bf16 %v1204
    %v1237 = vunpack.c.l.bf16 %v1205
    %v1238 = vunpack.c.l.bf16 %v1206
    %v1239 = vunpack.c.l.bf16 %v1207
    %v1240 = vunpack.c.l.bf16 %v1208
    %v1241 = vunpack.c.l.bf16 %v1209
    %v1242 = vunpack.c.l.bf16 %v1210
    %v1243 = vunpack.c.l.bf16 %v1211
    %v1244 = vunpack.c.l.bf16 %v1212
    %v1245 = vunpack.c.l.bf16 %v1213
    %v1246 = vunpack.c.l.bf16 %v1214
    %v1247 = vunpack.c.l.bf16 %v1215
    %v1248 = vunpack.c.l.bf16 %v1216
    %v1249 = vunpack.c.l.bf16 %v1217
    %v1250 = vunpack.c.l.bf16 %v1218
    %v1251 = vunpack.c.l.bf16 %v1219
    %v1252 = vunpack.c.l.bf16 %v1220
    %v1253 = vunpack.c.l.bf16 %v1221
    %v1254 = vunpack.c.l.bf16 %v1222
    %v1255 = vunpack.c.l.bf16 %v1223
    %v1256 = vadd.f32 %v1160, %v1224
    %v1257 = vadd.f32 %v1161, %v1225
    %v1258 = vadd.f32 %v1162, %v1226
    %v1259 = vadd.f32 %v1163, %v1227
    %v1260 = vadd.f32 %v1164, %v1228
    %v1261 = vadd.f32 %v1165, %v1229
    %v1262 = vadd.f32 %v1166, %v1230
    %v1263 = vadd.f32 %v1167, %v1231
    %v1264 = vadd.f32 %v1168, %v1232
    %v1265 = vadd.f32 %v1169, %v1233
    %v1266 = vadd.f32 %v1170, %v1234
    %v1267 = vadd.f32 %v1171, %v1235
    %v1268 = vadd.f32 %v1172, %v1236
    %v1269 = vadd.f32 %v1173, %v1237
    %v1270 = vadd.f32 %v1174, %v1238
    %v1271 = vadd.f32 %v1175, %v1239
    %v1272 = vadd.f32 %v1176, %v1240
    %v1273 = vadd.f32 %v1177, %v1241
    %v1274 = vadd.f32 %v1178, %v1242
    %v1275 = vadd.f32 %v1179, %v1243
    %v1276 = vadd.f32 %v1180, %v1244
    %v1277 = vadd.f32 %v1181, %v1245
    %v1278 = vadd.f32 %v1182, %v1246
    %v1279 = vadd.f32 %v1183, %v1247
    %v1280 = vadd.f32 %v1184, %v1248
    %v1281 = vadd.f32 %v1185, %v1249
    %v1282 = vadd.f32 %v1186, %v1250
    %v1283 = vadd.f32 %v1187, %v1251
    %v1284 = vadd.f32 %v1188, %v1252
    %v1285 = vadd.f32 %v1189, %v1253
    %v1286 = vadd.f32 %v1190, %v1254
    %v1287 = vadd.f32 %v1191, %v1255
    %1288 = vadd.xlane.f32.xlu0 %v1256
    %v1289 = vpop.xlane.xlu0 %1288
    %1290 = vadd.xlane.f32.xlu0 %v1257
    %v1291 = vpop.xlane.xlu0 %1290
    %1292 = vadd.xlane.f32.xlu0 %v1258
    %v1293 = vpop.xlane.xlu0 %1292
    %1294 = vadd.xlane.f32.xlu0 %v1259
    %v1295 = vpop.xlane.xlu0 %1294
    %1296 = vadd.xlane.f32.xlu0 %v1260
    %v1297 = vpop.xlane.xlu0 %1296
    %1298 = vadd.xlane.f32.xlu0 %v1261
    %v1299 = vpop.xlane.xlu0 %1298
    %1300 = vadd.xlane.f32.xlu0 %v1262
    %v1301 = vpop.xlane.xlu0 %1300
    %1302 = vadd.xlane.f32.xlu0 %v1263
    %v1303 = vpop.xlane.xlu0 %1302
    %1304 = vadd.xlane.f32.xlu0 %v1264
    %v1305 = vpop.xlane.xlu0 %1304
    %1306 = vadd.xlane.f32.xlu0 %v1265
    %v1307 = vpop.xlane.xlu0 %1306
    %1308 = vadd.xlane.f32.xlu0 %v1266
    %v1309 = vpop.xlane.xlu0 %1308
    %1310 = vadd.xlane.f32.xlu0 %v1267
    %v1311 = vpop.xlane.xlu0 %1310
    %1312 = vadd.xlane.f32.xlu0 %v1268
    %v1313 = vpop.xlane.xlu0 %1312
    %1314 = vadd.xlane.f32.xlu0 %v1269
    %v1315 = vpop.xlane.xlu0 %1314
    %1316 = vadd.xlane.f32.xlu0 %v1270
    %v1317 = vpop.xlane.xlu0 %1316
    %1318 = vadd.xlane.f32.xlu0 %v1271
    %v1319 = vpop.xlane.xlu0 %1318
    %1320 = vadd.xlane.f32.xlu0 %v1272
    %v1321 = vpop.xlane.xlu0 %1320
    %1322 = vadd.xlane.f32.xlu0 %v1273
    %v1323 = vpop.xlane.xlu0 %1322
    %1324 = vadd.xlane.f32.xlu0 %v1274
    %v1325 = vpop.xlane.xlu0 %1324
    %1326 = vadd.xlane.f32.xlu0 %v1275
    %v1327 = vpop.xlane.xlu0 %1326
    %1328 = vadd.xlane.f32.xlu0 %v1276
    %v1329 = vpop.xlane.xlu0 %1328
    %1330 = vadd.xlane.f32.xlu0 %v1277
    %v1331 = vpop.xlane.xlu0 %1330
    %1332 = vadd.xlane.f32.xlu0 %v1278
    %v1333 = vpop.xlane.xlu0 %1332
    %1334 = vadd.xlane.f32.xlu0 %v1279
    %v1335 = vpop.xlane.xlu0 %1334
    %1336 = vadd.xlane.f32.xlu0 %v1280
    %v1337 = vpop.xlane.xlu0 %1336
    %1338 = vadd.xlane.f32.xlu0 %v1281
    %v1339 = vpop.xlane.xlu0 %1338
    %1340 = vadd.xlane.f32.xlu0 %v1282
    %v1341 = vpop.xlane.xlu0 %1340
    %1342 = vadd.xlane.f32.xlu0 %v1283
    %v1343 = vpop.xlane.xlu0 %1342
    %1344 = vadd.xlane.f32.xlu0 %v1284
    %v1345 = vpop.xlane.xlu0 %1344
    %1346 = vadd.xlane.f32.xlu0 %v1285
    %v1347 = vpop.xlane.xlu0 %1346
    %1348 = vadd.xlane.f32.xlu0 %v1286
    %v1349 = vpop.xlane.xlu0 %1348
    %1350 = vadd.xlane.f32.xlu0 %v1287
    %v1351 = vpop.xlane.xlu0 %1350
    %v1352 = vrcp.pop 128.0
    %v1353 = vmul.f32 %v1289, %v1352
    %v1354 = vmul.f32 %v1291, %v1352
    %v1355 = vmul.f32 %v1293, %v1352
    %v1356 = vmul.f32 %v1295, %v1352
    %v1357 = vmul.f32 %v1297, %v1352
    %v1358 = vmul.f32 %v1299, %v1352
    %v1359 = vmul.f32 %v1301, %v1352
    %v1360 = vmul.f32 %v1303, %v1352
    %v1361 = vmul.f32 %v1305, %v1352
    %v1362 = vmul.f32 %v1307, %v1352
    %v1363 = vmul.f32 %v1309, %v1352
    %v1364 = vmul.f32 %v1311, %v1352
    %v1365 = vmul.f32 %v1313, %v1352
    %v1366 = vmul.f32 %v1315, %v1352
    %v1367 = vmul.f32 %v1317, %v1352
    %v1368 = vmul.f32 %v1319, %v1352
    %v1369 = vmul.f32 %v1321, %v1352
    %v1370 = vmul.f32 %v1323, %v1352
    %v1371 = vmul.f32 %v1325, %v1352
    %v1372 = vmul.f32 %v1327, %v1352
    %v1373 = vmul.f32 %v1329, %v1352
    %v1374 = vmul.f32 %v1331, %v1352
    %v1375 = vmul.f32 %v1333, %v1352
    %v1376 = vmul.f32 %v1335, %v1352
    %v1377 = vmul.f32 %v1337, %v1352
    %v1378 = vmul.f32 %v1339, %v1352
    %v1379 = vmul.f32 %v1341, %v1352
    %v1380 = vmul.f32 %v1343, %v1352
    %v1381 = vmul.f32 %v1345, %v1352
    %v1382 = vmul.f32 %v1347, %v1352
    %v1383 = vmul.f32 %v1349, %v1352
    %v1384 = vmul.f32 %v1351, %v1352
    %v1385 = vsub.f32 %v1256, %v1353
    %v1386 = vsub.f32 %v1257, %v1354
    %v1387 = vsub.f32 %v1258, %v1355
    %v1388 = vsub.f32 %v1259, %v1356
    %v1389 = vsub.f32 %v1260, %v1357
    %v1390 = vsub.f32 %v1261, %v1358
    %v1391 = vsub.f32 %v1262, %v1359
    %v1392 = vsub.f32 %v1263, %v1360
    %v1393 = vsub.f32 %v1264, %v1361
    %v1394 = vsub.f32 %v1265, %v1362
    %v1395 = vsub.f32 %v1266, %v1363
    %v1396 = vsub.f32 %v1267, %v1364
    %v1397 = vsub.f32 %v1268, %v1365
    %v1398 = vsub.f32 %v1269, %v1366
    %v1399 = vsub.f32 %v1270, %v1367
    %v1400 = vsub.f32 %v1271, %v1368
    %v1401 = vsub.f32 %v1272, %v1369
    %v1402 = vsub.f32 %v1273, %v1370
    %v1403 = vsub.f32 %v1274, %v1371
    %v1404 = vsub.f32 %v1275, %v1372
    %v1405 = vsub.f32 %v1276, %v1373
    %v1406 = vsub.f32 %v1277, %v1374
    %v1407 = vsub.f32 %v1278, %v1375
    %v1408 = vsub.f32 %v1279, %v1376
    %v1409 = vsub.f32 %v1280, %v1377
    %v1410 = vsub.f32 %v1281, %v1378
    %v1411 = vsub.f32 %v1282, %v1379
    %v1412 = vsub.f32 %v1283, %v1380
    %v1413 = vsub.f32 %v1284, %v1381
    %v1414 = vsub.f32 %v1285, %v1382
    %v1415 = vsub.f32 %v1286, %v1383
    %v1416 = vsub.f32 %v1287, %v1384
    %v1417 = vmul.f32 %v1385, %v1385
    %v1418 = vmul.f32 %v1386, %v1386
    %v1419 = vmul.f32 %v1387, %v1387
    %v1420 = vmul.f32 %v1388, %v1388
    %v1421 = vmul.f32 %v1389, %v1389
    %v1422 = vmul.f32 %v1390, %v1390
    %v1423 = vmul.f32 %v1391, %v1391
    %v1424 = vmul.f32 %v1392, %v1392
    %v1425 = vmul.f32 %v1393, %v1393
    %v1426 = vmul.f32 %v1394, %v1394
    %v1427 = vmul.f32 %v1395, %v1395
    %v1428 = vmul.f32 %v1396, %v1396
    %v1429 = vmul.f32 %v1397, %v1397
    %v1430 = vmul.f32 %v1398, %v1398
    %v1431 = vmul.f32 %v1399, %v1399
    %v1432 = vmul.f32 %v1400, %v1400
    %v1433 = vmul.f32 %v1401, %v1401
    %v1434 = vmul.f32 %v1402, %v1402
    %v1435 = vmul.f32 %v1403, %v1403
    %v1436 = vmul.f32 %v1404, %v1404
    %v1437 = vmul.f32 %v1405, %v1405
    %v1438 = vmul.f32 %v1406, %v1406
    %v1439 = vmul.f32 %v1407, %v1407
    %v1440 = vmul.f32 %v1408, %v1408
    %v1441 = vmul.f32 %v1409, %v1409
    %v1442 = vmul.f32 %v1410, %v1410
    %v1443 = vmul.f32 %v1411, %v1411
    %v1444 = vmul.f32 %v1412, %v1412
    %v1445 = vmul.f32 %v1413, %v1413
    %v1446 = vmul.f32 %v1414, %v1414
    %v1447 = vmul.f32 %v1415, %v1415
    %v1448 = vmul.f32 %v1416, %v1416
    %1449 = vadd.xlane.f32.xlu0 %v1417
    %v1450 = vpop.xlane.xlu0 %1449
    %1451 = vadd.xlane.f32.xlu0 %v1418
    %v1452 = vpop.xlane.xlu0 %1451
    %1453 = vadd.xlane.f32.xlu0 %v1419
    %v1454 = vpop.xlane.xlu0 %1453
    %1455 = vadd.xlane.f32.xlu0 %v1420
    %v1456 = vpop.xlane.xlu0 %1455
    %1457 = vadd.xlane.f32.xlu0 %v1421
    %v1458 = vpop.xlane.xlu0 %1457
    %1459 = vadd.xlane.f32.xlu0 %v1422
    %v1460 = vpop.xlane.xlu0 %1459
    %1461 = vadd.xlane.f32.xlu0 %v1423
    %v1462 = vpop.xlane.xlu0 %1461
    %1463 = vadd.xlane.f32.xlu0 %v1424
    %v1464 = vpop.xlane.xlu0 %1463
    %1465 = vadd.xlane.f32.xlu0 %v1425
    %v1466 = vpop.xlane.xlu0 %1465
    %1467 = vadd.xlane.f32.xlu0 %v1426
    %v1468 = vpop.xlane.xlu0 %1467
    %1469 = vadd.xlane.f32.xlu0 %v1427
    %v1470 = vpop.xlane.xlu0 %1469
    %1471 = vadd.xlane.f32.xlu0 %v1428
    %v1472 = vpop.xlane.xlu0 %1471
    %1473 = vadd.xlane.f32.xlu0 %v1429
    %v1474 = vpop.xlane.xlu0 %1473
    %1475 = vadd.xlane.f32.xlu0 %v1430
    %v1476 = vpop.xlane.xlu0 %1475
    %1477 = vadd.xlane.f32.xlu0 %v1431
    %v1478 = vpop.xlane.xlu0 %1477
    %1479 = vadd.xlane.f32.xlu0 %v1432
    %v1480 = vpop.xlane.xlu0 %1479
    %1481 = vadd.xlane.f32.xlu0 %v1433
    %v1482 = vpop.xlane.xlu0 %1481
    %1483 = vadd.xlane.f32.xlu0 %v1434
    %v1484 = vpop.xlane.xlu0 %1483
    %1485 = vadd.xlane.f32.xlu0 %v1435
    %v1486 = vpop.xlane.xlu0 %1485
    %1487 = vadd.xlane.f32.xlu0 %v1436
    %v1488 = vpop.xlane.xlu0 %1487
    %1489 = vadd.xlane.f32.xlu0 %v1437
    %v1490 = vpop.xlane.xlu0 %1489
    %1491 = vadd.xlane.f32.xlu0 %v1438
    %v1492 = vpop.xlane.xlu0 %1491
    %1493 = vadd.xlane.f32.xlu0 %v1439
    %v1494 = vpop.xlane.xlu0 %1493
    %1495 = vadd.xlane.f32.xlu0 %v1440
    %v1496 = vpop.xlane.xlu0 %1495
    %1497 = vadd.xlane.f32.xlu0 %v1441
    %v1498 = vpop.xlane.xlu0 %1497
    %1499 = vadd.xlane.f32.xlu0 %v1442
    %v1500 = vpop.xlane.xlu0 %1499
    %1501 = vadd.xlane.f32.xlu0 %v1443
    %v1502 = vpop.xlane.xlu0 %1501
    %1503 = vadd.xlane.f32.xlu0 %v1444
    %v1504 = vpop.xlane.xlu0 %1503
    %1505 = vadd.xlane.f32.xlu0 %v1445
    %v1506 = vpop.xlane.xlu0 %1505
    %1507 = vadd.xlane.f32.xlu0 %v1446
    %v1508 = vpop.xlane.xlu0 %1507
    %1509 = vadd.xlane.f32.xlu0 %v1447
    %v1510 = vpop.xlane.xlu0 %1509
    %1511 = vadd.xlane.f32.xlu0 %v1448
    %v1512 = vpop.xlane.xlu0 %1511
    %v1513 = vmul.f32 %v1450, %v1352
    %v1514 = vmul.f32 %v1452, %v1352
    %v1515 = vmul.f32 %v1454, %v1352
    %v1516 = vmul.f32 %v1456, %v1352
    %v1517 = vmul.f32 %v1458, %v1352
    %v1518 = vmul.f32 %v1460, %v1352
    %v1519 = vmul.f32 %v1462, %v1352
    %v1520 = vmul.f32 %v1464, %v1352
    %v1521 = vmul.f32 %v1466, %v1352
    %v1522 = vmul.f32 %v1468, %v1352
    %v1523 = vmul.f32 %v1470, %v1352
    %v1524 = vmul.f32 %v1472, %v1352
    %v1525 = vmul.f32 %v1474, %v1352
    %v1526 = vmul.f32 %v1476, %v1352
    %v1527 = vmul.f32 %v1478, %v1352
    %v1528 = vmul.f32 %v1480, %v1352
    %v1529 = vmul.f32 %v1482, %v1352
    %v1530 = vmul.f32 %v1484, %v1352
    %v1531 = vmul.f32 %v1486, %v1352
    %v1532 = vmul.f32 %v1488, %v1352
    %v1533 = vmul.f32 %v1490, %v1352
    %v1534 = vmul.f32 %v1492, %v1352
    %v1535 = vmul.f32 %v1494, %v1352
    %v1536 = vmul.f32 %v1496, %v1352
    %v1537 = vmul.f32 %v1498, %v1352
    %v1538 = vmul.f32 %v1500, %v1352
    %v1539 = vmul.f32 %v1502, %v1352
    %v1540 = vmul.f32 %v1504, %v1352
    %v1541 = vmul.f32 %v1506, %v1352
    %v1542 = vmul.f32 %v1508, %v1352
    %v1543 = vmul.f32 %v1510, %v1352
    %v1544 = vmul.f32 %v1512, %v1352
    %v1545 = vadd.f32 %v1513, 1e-05
    %v1546 = vadd.f32 %v1514, 1e-05
    %v1547 = vadd.f32 %v1515, 1e-05
    %v1548 = vadd.f32 %v1516, 1e-05
    %v1549 = vadd.f32 %v1517, 1e-05
    %v1550 = vadd.f32 %v1518, 1e-05
    %v1551 = vadd.f32 %v1519, 1e-05
    %v1552 = vadd.f32 %v1520, 1e-05
    %v1553 = vadd.f32 %v1521, 1e-05
    %v1554 = vadd.f32 %v1522, 1e-05
    %v1555 = vadd.f32 %v1523, 1e-05
    %v1556 = vadd.f32 %v1524, 1e-05
    %v1557 = vadd.f32 %v1525, 1e-05
    %v1558 = vadd.f32 %v1526, 1e-05
    %v1559 = vadd.f32 %v1527, 1e-05
    %v1560 = vadd.f32 %v1528, 1e-05
    %v1561 = vadd.f32 %v1529, 1e-05
    %v1562 = vadd.f32 %v1530, 1e-05
    %v1563 = vadd.f32 %v1531, 1e-05
    %v1564 = vadd.f32 %v1532, 1e-05
    %v1565 = vadd.f32 %v1533, 1e-05
    %v1566 = vadd.f32 %v1534, 1e-05
    %v1567 = vadd.f32 %v1535, 1e-05
    %v1568 = vadd.f32 %v1536, 1e-05
    %v1569 = vadd.f32 %v1537, 1e-05
    %v1570 = vadd.f32 %v1538, 1e-05
    %v1571 = vadd.f32 %v1539, 1e-05
    %v1572 = vadd.f32 %v1540, 1e-05
    %v1573 = vadd.f32 %v1541, 1e-05
    %v1574 = vadd.f32 %v1542, 1e-05
    %v1575 = vadd.f32 %v1543, 1e-05
    %v1576 = vadd.f32 %v1544, 1e-05
    %v1577 = vrsqrt.pop %v1545
    %v1578 = vrsqrt.pop %v1546
    %v1579 = vrsqrt.pop %v1547
    %v1580 = vrsqrt.pop %v1548
    %v1581 = vrsqrt.pop %v1549
    %v1582 = vrsqrt.pop %v1550
    %v1583 = vrsqrt.pop %v1551
    %v1584 = vrsqrt.pop %v1552
    %v1585 = vrsqrt.pop %v1553
    %v1586 = vrsqrt.pop %v1554
    %v1587 = vrsqrt.pop %v1555
    %v1588 = vrsqrt.pop %v1556
    %v1589 = vrsqrt.pop %v1557
    %v1590 = vrsqrt.pop %v1558
    %v1591 = vrsqrt.pop %v1559
    %v1592 = vrsqrt.pop %v1560
    %v1593 = vrsqrt.pop %v1561
    %v1594 = vrsqrt.pop %v1562
    %v1595 = vrsqrt.pop %v1563
    %v1596 = vrsqrt.pop %v1564
    %v1597 = vrsqrt.pop %v1565
    %v1598 = vrsqrt.pop %v1566
    %v1599 = vrsqrt.pop %v1567
    %v1600 = vrsqrt.pop %v1568
    %v1601 = vrsqrt.pop %v1569
    %v1602 = vrsqrt.pop %v1570
    %v1603 = vrsqrt.pop %v1571
    %v1604 = vrsqrt.pop %v1572
    %v1605 = vrsqrt.pop %v1573
    %v1606 = vrsqrt.pop %v1574
    %v1607 = vrsqrt.pop %v1575
    %v1608 = vrsqrt.pop %v1576
    %v1609 = vmul.f32 %v1385, %v1577
    %v1610 = vmul.f32 %v1386, %v1578
    %v1611 = vmul.f32 %v1387, %v1579
    %v1612 = vmul.f32 %v1388, %v1580
    %v1613 = vmul.f32 %v1389, %v1581
    %v1614 = vmul.f32 %v1390, %v1582
    %v1615 = vmul.f32 %v1391, %v1583
    %v1616 = vmul.f32 %v1392, %v1584
    %v1617 = vmul.f32 %v1393, %v1585
    %v1618 = vmul.f32 %v1394, %v1586
    %v1619 = vmul.f32 %v1395, %v1587
    %v1620 = vmul.f32 %v1396, %v1588
    %v1621 = vmul.f32 %v1397, %v1589
    %v1622 = vmul.f32 %v1398, %v1590
    %v1623 = vmul.f32 %v1399, %v1591
    %v1624 = vmul.f32 %v1400, %v1592
    %v1625 = vmul.f32 %v1401, %v1593
    %v1626 = vmul.f32 %v1402, %v1594
    %v1627 = vmul.f32 %v1403, %v1595
    %v1628 = vmul.f32 %v1404, %v1596
    %v1629 = vmul.f32 %v1405, %v1597
    %v1630 = vmul.f32 %v1406, %v1598
    %v1631 = vmul.f32 %v1407, %v1599
    %v1632 = vmul.f32 %v1408, %v1600
    %v1633 = vmul.f32 %v1409, %v1601
    %v1634 = vmul.f32 %v1410, %v1602
    %v1635 = vmul.f32 %v1411, %v1603
    %v1636 = vmul.f32 %v1412, %v1604
    %v1637 = vmul.f32 %v1413, %v1605
    %v1638 = vmul.f32 %v1414, %v1606
    %v1639 = vmul.f32 %v1415, %v1607
    %v1640 = vmul.f32 %v1416, %v1608
    %v1641 = vld [vmem:[%s4] sm:$0x1]
    %v1643 = vlaneseq
    %v1644 = vshrl.u32 %v1643, 7
    %v1645 = vsub.s32 0, %v1644
    %v1646 = vrot.slane %v1641, %v1645
    %v1648 = vmul.f32 %v1609, %v1646
    %v1649 = vmul.f32 %v1610, %v1646
    %v1650 = vmul.f32 %v1611, %v1646
    %v1651 = vmul.f32 %v1612, %v1646
    %v1652 = vmul.f32 %v1613, %v1646
    %v1653 = vmul.f32 %v1614, %v1646
    %v1654 = vmul.f32 %v1615, %v1646
    %v1655 = vmul.f32 %v1616, %v1646
    %v1656 = vmul.f32 %v1617, %v1646
    %v1657 = vmul.f32 %v1618, %v1646
    %v1658 = vmul.f32 %v1619, %v1646
    %v1659 = vmul.f32 %v1620, %v1646
    %v1660 = vmul.f32 %v1621, %v1646
    %v1661 = vmul.f32 %v1622, %v1646
    %v1662 = vmul.f32 %v1623, %v1646
    %v1663 = vmul.f32 %v1624, %v1646
    %v1664 = vmul.f32 %v1625, %v1646
    %v1665 = vmul.f32 %v1626, %v1646
    %v1666 = vmul.f32 %v1627, %v1646
    %v1667 = vmul.f32 %v1628, %v1646
    %v1668 = vmul.f32 %v1629, %v1646
    %v1669 = vmul.f32 %v1630, %v1646
    %v1670 = vmul.f32 %v1631, %v1646
    %v1671 = vmul.f32 %v1632, %v1646
    %v1672 = vmul.f32 %v1633, %v1646
    %v1673 = vmul.f32 %v1634, %v1646
    %v1674 = vmul.f32 %v1635, %v1646
    %v1675 = vmul.f32 %v1636, %v1646
    %v1676 = vmul.f32 %v1637, %v1646
    %v1677 = vmul.f32 %v1638, %v1646
    %v1678 = vmul.f32 %v1639, %v1646
    %v1679 = vmul.f32 %v1640, %v1646
    %v1680 = vld [vmem:[%s5] sm:$0x1]
    %v1682 = vlaneseq
    %v1683 = vshrl.u32 %v1682, 7
    %v1684 = vsub.s32 0, %v1683
    %v1685 = vrot.slane %v1680, %v1684
    %v1687 = vadd.f32 %v1648, %v1685
    %v1688 = vadd.f32 %v1649, %v1685
    %v1689 = vadd.f32 %v1650, %v1685
    %v1690 = vadd.f32 %v1651, %v1685
    %v1691 = vadd.f32 %v1652, %v1685
    %v1692 = vadd.f32 %v1653, %v1685
    %v1693 = vadd.f32 %v1654, %v1685
    %v1694 = vadd.f32 %v1655, %v1685
    %v1695 = vadd.f32 %v1656, %v1685
    %v1696 = vadd.f32 %v1657, %v1685
    %v1697 = vadd.f32 %v1658, %v1685
    %v1698 = vadd.f32 %v1659, %v1685
    %v1699 = vadd.f32 %v1660, %v1685
    %v1700 = vadd.f32 %v1661, %v1685
    %v1701 = vadd.f32 %v1662, %v1685
    %v1702 = vadd.f32 %v1663, %v1685
    %v1703 = vadd.f32 %v1664, %v1685
    %v1704 = vadd.f32 %v1665, %v1685
    %v1705 = vadd.f32 %v1666, %v1685
    %v1706 = vadd.f32 %v1667, %v1685
    %v1707 = vadd.f32 %v1668, %v1685
    %v1708 = vadd.f32 %v1669, %v1685
    %v1709 = vadd.f32 %v1670, %v1685
    %v1710 = vadd.f32 %v1671, %v1685
    %v1711 = vadd.f32 %v1672, %v1685
    %v1712 = vadd.f32 %v1673, %v1685
    %v1713 = vadd.f32 %v1674, %v1685
    %v1714 = vadd.f32 %v1675, %v1685
    %v1715 = vadd.f32 %v1676, %v1685
    %v1716 = vadd.f32 %v1677, %v1685
    %v1717 = vadd.f32 %v1678, %v1685
    %v1718 = vadd.f32 %v1679, %v1685
    %v1719 = vpack.c.bf16 %v1688, %v1687
    %v1720 = vpack.c.bf16 %v1690, %v1689
    %v1721 = vpack.c.bf16 %v1692, %v1691
    %v1722 = vpack.c.bf16 %v1694, %v1693
    %v1723 = vpack.c.bf16 %v1696, %v1695
    %v1724 = vpack.c.bf16 %v1698, %v1697
    %v1725 = vpack.c.bf16 %v1700, %v1699
    %v1726 = vpack.c.bf16 %v1702, %v1701
    %v1727 = vpack.c.bf16 %v1704, %v1703
    %v1728 = vpack.c.bf16 %v1706, %v1705
    %v1729 = vpack.c.bf16 %v1708, %v1707
    %v1730 = vpack.c.bf16 %v1710, %v1709
    %v1731 = vpack.c.bf16 %v1712, %v1711
    %v1732 = vpack.c.bf16 %v1714, %v1713
    %v1733 = vpack.c.bf16 %v1716, %v1715
    %v1734 = vpack.c.bf16 %v1718, %v1717
    %v1751 = vunpack.c.l.b16 %v1719
    %v1752 = vunpack.c.h.b16 %v1719
    %v1753 = vunpack.c.l.b16 %v1720
    %v1754 = vunpack.c.h.b16 %v1720
    %v1755 = vunpack.c.l.b16 %v1721
    %v1756 = vunpack.c.h.b16 %v1721
    %v1757 = vunpack.c.l.b16 %v1722
    %v1758 = vunpack.c.h.b16 %v1722
    %v1759 = vunpack.c.l.b16 %v1723
    %v1760 = vunpack.c.h.b16 %v1723
    %v1761 = vunpack.c.l.b16 %v1724
    %v1762 = vunpack.c.h.b16 %v1724
    %v1763 = vunpack.c.l.b16 %v1725
    %v1764 = vunpack.c.h.b16 %v1725
    %v1765 = vunpack.c.l.b16 %v1726
    %v1766 = vunpack.c.h.b16 %v1726
    %v1767 = vunpack.c.l.b16 %v1727
    %v1768 = vunpack.c.h.b16 %v1727
    %v1769 = vunpack.c.l.b16 %v1728
    %v1770 = vunpack.c.h.b16 %v1728
    %v1771 = vunpack.c.l.b16 %v1729
    %v1772 = vunpack.c.h.b16 %v1729
    %v1773 = vunpack.c.l.b16 %v1730
    %v1774 = vunpack.c.h.b16 %v1730
    %v1775 = vunpack.c.l.b16 %v1731
    %v1776 = vunpack.c.h.b16 %v1731
    %v1777 = vunpack.c.l.b16 %v1732
    %v1778 = vunpack.c.h.b16 %v1732
    %v1779 = vunpack.c.l.b16 %v1733
    %v1780 = vunpack.c.h.b16 %v1733
    %v1781 = vunpack.c.l.b16 %v1734
    %v1782 = vunpack.c.h.b16 %v1734
    %v1783 = vpack.c.b16 %v1751, %v1751
    %v1784 = vpack.c.b16 %v1752, %v1752
    %v1785 = vpack.c.b16 %v1753, %v1753
    %v1786 = vpack.c.b16 %v1754, %v1754
    %v1787 = vpack.c.b16 %v1755, %v1755
    %v1788 = vpack.c.b16 %v1756, %v1756
    %v1789 = vpack.c.b16 %v1757, %v1757
    %v1790 = vpack.c.b16 %v1758, %v1758
    %v1791 = vpack.c.b16 %v1759, %v1759
    %v1792 = vpack.c.b16 %v1760, %v1760
    %v1793 = vpack.c.b16 %v1761, %v1761
    %v1794 = vpack.c.b16 %v1762, %v1762
    %v1795 = vpack.c.b16 %v1763, %v1763
    %v1796 = vpack.c.b16 %v1764, %v1764
    %v1797 = vpack.c.b16 %v1765, %v1765
    %v1798 = vpack.c.b16 %v1766, %v1766
    %v1799 = vpack.c.b16 %v1767, %v1767
    %v1800 = vpack.c.b16 %v1768, %v1768
    %v1801 = vpack.c.b16 %v1769, %v1769
    %v1802 = vpack.c.b16 %v1770, %v1770
    %v1803 = vpack.c.b16 %v1771, %v1771
    %v1804 = vpack.c.b16 %v1772, %v1772
    %v1805 = vpack.c.b16 %v1773, %v1773
    %v1806 = vpack.c.b16 %v1774, %v1774
    %v1807 = vpack.c.b16 %v1775, %v1775
    %v1808 = vpack.c.b16 %v1776, %v1776
    %v1809 = vpack.c.b16 %v1777, %v1777
    %v1810 = vpack.c.b16 %v1778, %v1778
    %v1811 = vpack.c.b16 %v1779, %v1779
    %v1812 = vpack.c.b16 %v1780, %v1780
    %v1813 = vpack.c.b16 %v1781, %v1781
    %v1814 = vpack.c.b16 %v1782, %v1782
    %1847 = vst [vmem:[%s6] sm:$0xf] %v1783
    %1848 = vst [vmem:[%s6 + $0x4] sm:$0xf] %v1784
    %1849 = vst [vmem:[%s6 + $0x8] sm:$0xf] %v1785
    %1850 = vst [vmem:[%s6 + $0xc] sm:$0xf] %v1786
    %1851 = vst [vmem:[%s6 + $0x10] sm:$0xf] %v1787
    %1852 = vst [vmem:[%s6 + $0x14] sm:$0xf] %v1788
    %1853 = vst [vmem:[%s6 + $0x18] sm:$0xf] %v1789
    %1854 = vst [vmem:[%s6 + $0x1c] sm:$0xf] %v1790
    %1855 = vst [vmem:[%s6 + $0x20] sm:$0xf] %v1791
    %1856 = vst [vmem:[%s6 + $0x24] sm:$0xf] %v1792
    %1857 = vst [vmem:[%s6 + $0x28] sm:$0xf] %v1793
    %1858 = vst [vmem:[%s6 + $0x2c] sm:$0xf] %v1794
    %1859 = vst [vmem:[%s6 + $0x30] sm:$0xf] %v1795
    %1860 = vst [vmem:[%s6 + $0x34] sm:$0xf] %v1796
    %1861 = vst [vmem:[%s6 + $0x38] sm:$0xf] %v1797
    %1862 = vst [vmem:[%s6 + $0x3c] sm:$0xf] %v1798
    %1863 = vst [vmem:[%s6 + $0x40] sm:$0xf] %v1799
    %1864 = vst [vmem:[%s6 + $0x44] sm:$0xf] %v1800
    %1865 = vst [vmem:[%s6 + $0x48] sm:$0xf] %v1801
    %1866 = vst [vmem:[%s6 + $0x4c] sm:$0xf] %v1802
    %1867 = vst [vmem:[%s6 + $0x50] sm:$0xf] %v1803
    %1868 = vst [vmem:[%s6 + $0x54] sm:$0xf] %v1804
    %1869 = vst [vmem:[%s6 + $0x58] sm:$0xf] %v1805
    %1870 = vst [vmem:[%s6 + $0x5c] sm:$0xf] %v1806
    %1871 = vst [vmem:[%s6 + $0x60] sm:$0xf] %v1807
    %1872 = vst [vmem:[%s6 + $0x64] sm:$0xf] %v1808
    %1873 = vst [vmem:[%s6 + $0x68] sm:$0xf] %v1809
    %1874 = vst [vmem:[%s6 + $0x6c] sm:$0xf] %v1810
    %1875 = vst [vmem:[%s6 + $0x70] sm:$0xf] %v1811
    %1876 = vst [vmem:[%s6 + $0x74] sm:$0xf] %v1812
    %1877 = vst [vmem:[%s6 + $0x78] sm:$0xf] %v1813
    %1878 = vst [vmem:[%s6 + $0x7c] sm:$0xf] %v1814
  $region33: #{forward.17} parent=0 // pred_fallthru
    _
  // Predicated region
  $region34: #{forward.17} parent=0 // pred_check
    _
  $region35: #{forward.17} parent=0 // pred_check_branch
    %1880 = sbr.rel (0) target = $region37
  $region36: #{forward.17} parent=0 // pred_region
    _
  $region37: #{forward.17} parent=0 // pred_fallthru
    _
  // Predicated region
  $region38: #{forward.17} parent=0 // pred_check
    _
  $region39: #{forward.17} parent=0 // pred_check_branch
    %1882 = sbr.rel (0) target = $region41
  $region40: #{forward.17} parent=0 // pred_region
    _
  $region41: #{forward.17} parent=0 // pred_fallthru
    _

</llo_original>
